<compile_context>
chip_gen: v7x
topology: tpu7x:2x2x1
jax: 0.10.0
libtpu: 0.0.40
codegen_flags: <defaults>
</compile_context>

<pallas_src>
import numpy as np
import jax
import jax.numpy as jnp
from jax import lax
from jax.experimental import pallas as pl
from jax.experimental.pallas import tpu as pltpu


CONV_CFGS = (
    dict(cout=32,  k=(4, 5, 5), s=(2, 2, 2), p=(0, 1, 1)),
    dict(cout=64,  k=(4, 4, 4), s=(1, 2, 2), p=(0, 1, 1)),
    dict(cout=128, k=(3, 3, 3), s=(1, 2, 2), p=(0, 1, 1)),
    dict(cout=256, k=(2, 2, 2), s=(1, 2, 2), p=(0, 1, 1)),
)
BN_EPS = 1e-5
LANE = 128
COMPUTE_DTYPE = jnp.bfloat16   # MXU-native operands on v6e/v7x; f32 accumulation.


# ------------------------------ Pallas kernels ------------------------------

def _conv_gemm_bn_kernel(p_ref, w_ref, aux_ref, o_ref):
    """One M-tile of relu(patches @ W + bias) * bn_scale + bn_shift.

    aux_ref rows: 0 = conv bias, 1 = BN scale, 2 = BN shift (f32, lane = Cout_pad).
    Epilogue is f32; only the stored activation is cast to bf16.
    """
    acc = jnp.dot(p_ref[...], w_ref[...], preferred_element_type=jnp.float32)
    y = jnp.maximum(acc + aux_ref[0:1, :], 0.0)                 # Conv3d bias + ReLU
    o_ref[...] = (y * aux_ref[1:2, :] + aux_ref[2:3, :]).astype(o_ref.dtype)


def _conv_bn_head_kernel(p_ref, w_ref, aux_ref, fcw_ref, fcb_ref, o_ref):
    """Last conv block fused with AvgPool3d(2,2) + Linear(256,1) + sigmoid.

    Patch rows are ordered (n, do, ho, wo) with (Do, Ho, Wo) == (2, 2, 2), so the
    single 2x2x2 pooling window per batch element is a mean over 8 consecutive rows.
    """
    acc = jnp.dot(p_ref[...], w_ref[...], preferred_element_type=jnp.float32)
    y = jnp.maximum(acc + aux_ref[0:1, :], 0.0)
    y = y * aux_ref[1:2, :] + aux_ref[2:3, :]                   # (N*8, 256) f32
    n = o_ref.shape[0]
    pooled = jnp.mean(y.reshape(n, 8, y.shape[-1]), axis=1)     # AvgPool3d(2,2) -> (N, 256)
    logits = jnp.sum(pooled * fcw_ref[...], axis=-1, keepdims=True) + fcb_ref[...]
    o_ref[...] = jax.nn.sigmoid(logits)


# --------------------------------- glue -------------------------------------

def _pick_tile_m(m, cap=256):
    """Largest M tile <= cap that divides M exactly and keeps bf16 sublane alignment
    (multiple of 16); falls back to a single full-size block (no M padding ever)."""
    for t in range((min(cap, m) // 16) * 16, 0, -16):
        if m % t == 0:
            return t
    return m


def _im2col_ndhwc(x, ksize, stride, padding):
    """im2col for a channel-last Conv3d.  x: (N, D, H, W, C).

    Returns (patches, (Do, Ho, Wo)); patches has shape (N*Do*Ho*Wo, kd*kh*kw*C) with
    feature order (dz, dy, dx, c), matching the weight layout from prepare_params.
    """
    N, _, _, _, C = x.shape
    kd, kh, kw = ksize
    sd, sh, sw = stride
    pd, ph, pw = padding
    xp = jnp.pad(x, ((0, 0), (pd, pd), (ph, ph), (pw, pw), (0, 0)))
    Dp, Hp, Wp = xp.shape[1:4]
    Do = (Dp - kd) // sd + 1
    Ho = (Hp - kh) // sh + 1
    Wo = (Wp - kw) // sw + 1
    cols = []
    for dz in range(kd):
        for dy in range(kh):
            for dx in range(kw):
                cols.append(lax.slice(
                    xp,
                    (0, dz, dy, dx, 0),
                    (N, dz + (Do - 1) * sd + 1, dy + (Ho - 1) * sh + 1,
                     dx + (Wo - 1) * sw + 1, C),
                    (1, sd, sh, sw, 1)))
    patches = jnp.stack(cols, axis=4)                    # (N, Do, Ho, Wo, KK, C)
    return patches.reshape(N * Do * Ho * Wo, kd * kh * kw * C), (Do, Ho, Wo)


def _conv_relu_bn_block(x, wmat, aux, ksize, stride, padding):
    """x: (N, D, H, W, Cin_pad) channel-last bf16 -> (N, Do, Ho, Wo, Cout_pad) bf16."""
    N = x.shape[0]
    patches, (Do, Ho, Wo) = _im2col_ndhwc(x, ksize, stride, padding)
    M, K = patches.shape
    Cp = wmat.shape[1]
    tm = _pick_tile_m(M)
    flops = 2 * M * K * Cp
    bytes_accessed = (patches.size * patches.dtype.itemsize
                      + wmat.size * wmat.dtype.itemsize
                      + aux.size * 4 + M * Cp * 2)
    out = pl.pallas_call(
        _conv_gemm_bn_kernel,
        out_shape=jax.ShapeDtypeStruct((M, Cp), COMPUTE_DTYPE),
        grid=(M // tm,),
        in_specs=[
            pl.BlockSpec((tm, K), lambda i: (i, 0)),     # patch tile (no M padding)
            pl.BlockSpec((K, Cp), lambda i: (0, 0)),     # full weight (lane-dense Cout)
            pl.BlockSpec((3, Cp), lambda i: (0, 0)),     # bias / scale / shift
        ],
        out_specs=pl.BlockSpec((tm, Cp), lambda i: (i, 0)),
        compiler_params=pltpu.CompilerParams(dimension_semantics=("parallel",)),
        cost_estimate=pl.CostEstimate(flops=flops, transcendentals=0,
                                      bytes_accessed=bytes_accessed),
    )(patches, wmat, aux)
    return out.reshape(N, Do, Ho, Wo, Cp)                # contiguous -> free reshape


def _conv_bn_head_block(x, wmat, aux, fc_w, fc_b, ksize, stride, padding):
    """Last conv block + AvgPool3d(2,2) + Linear(256,1) + sigmoid -> (N, 1) f32."""
    N = x.shape[0]
    patches, (Do, Ho, Wo) = _im2col_ndhwc(x, ksize, stride, padding)
    # fc(in_features=256) requires the conv stack to end in a single 2x2x2 pool window.
    assert (Do, Ho, Wo) == (2, 2, 2), (
        f"conv stack must end at spatial (2,2,2) for fc(256); got {(Do, Ho, Wo)}")
    # TODO(synk): support 3-wide spatial dims (AvgPool3d would crop to the leading 2).
    M, K = patches.shape
    Cout = wmat.shape[1]
    flops = 2 * M * K * Cout + 2 * N * Cout
    bytes_accessed = (patches.size * patches.dtype.itemsize
                      + wmat.size * wmat.dtype.itemsize
                      + aux.size * 4 + fc_w.size * 4 + N * 4)
    return pl.pallas_call(
        _conv_bn_head_kernel,
        out_shape=jax.ShapeDtypeStruct((N, 1), jnp.float32),
        grid=(1,),
        in_specs=[
            pl.BlockSpec((M, K), lambda i: (0, 0)),
            pl.BlockSpec((K, Cout), lambda i: (0, 0)),
            pl.BlockSpec((3, Cout), lambda i: (0, 0)),
            pl.BlockSpec((1, Cout), lambda i: (0, 0)),
            pl.BlockSpec((1, 1), lambda i: (0, 0)),
        ],
        out_specs=pl.BlockSpec((N, 1), lambda i: (0, 0)),
        compiler_params=pltpu.CompilerParams(dimension_semantics=("arbitrary",)),
        cost_estimate=pl.CostEstimate(flops=flops, transcendentals=N,
                                      bytes_accessed=bytes_accessed),
    )(patches, wmat, aux, fc_w, fc_b)


@jax.jit
def forward(x, prepared):
    """x: (N, C, D, H, W) NCDHW float32, like the PyTorch module."""
    y = jnp.transpose(x, (0, 2, 3, 4, 1)).astype(COMPUTE_DTYPE)     # NDHWC, bf16
    for li, (cfg, lyr) in enumerate(zip(CONV_CFGS, prepared["convs"])):
        if li < len(CONV_CFGS) - 1:
            y = _conv_relu_bn_block(y, lyr["wmat"], lyr["aux"],
                                    cfg["k"], cfg["s"], cfg["p"])
        else:
            y = _conv_bn_head_block(y, lyr["wmat"], lyr["aux"],
                                    prepared["fc_w"], prepared["fc_b"],
                                    cfg["k"], cfg["s"], cfg["p"])
    return y


# ------------------------- params & pure-JAX reference ----------------------

def init_params(key, in_channels):
    """Raw torch-layout parameters (BN running stats folded into scale/shift)."""
    convs = []
    cin = in_channels
    for cfg in CONV_CFGS:
        key, kw_, kb, kg, kbt, krm, krv = jax.random.split(key, 7)
        cout, k = cfg["cout"], cfg["k"]
        fan_in = cin * k[0] * k[1] * k[2]
        w = jax.random.normal(kw_, (cout, cin, *k), jnp.float32) / np.sqrt(fan_in)
        b = 0.05 * jax.random.normal(kb, (cout,), jnp.float32)
        gamma = 1.0 + 0.1 * jax.random.normal(kg, (cout,), jnp.float32)
        beta = 0.1 * jax.random.normal(kbt, (cout,), jnp.float32)
        r_mean = 0.1 * jax.random.normal(krm, (cout,), jnp.float32)
        r_var = 0.5 + jax.random.uniform(krv, (cout,), jnp.float32)
        scale = gamma / jnp.sqrt(r_var + BN_EPS)
        shift = beta - r_mean * scale
        convs.append(dict(w=w, b=b, scale=scale, shift=shift))
        cin = cout
    key, kfw, kfb = jax.random.split(key, 3)
    fc_w = jax.random.normal(kfw, (1, 256), jnp.float32) / np.sqrt(256.0)
    fc_b = 0.05 * jax.random.normal(kfb, (1,), jnp.float32)
    return dict(convs=convs, fc_w=fc_w, fc_b=fc_b)


def prepare_params(params):
    """One-time (export-time) repack into the GEMM layout the kernels consume:
    weights -> (kd*kh*kw*Cin_pad, Cout_pad) bf16 with Cout on the 128-lane axis;
    bias/scale/shift -> one (3, Cout_pad) f32 aux.  Channel padding is zero-filled
    and carried through the network (padded channels stay exactly zero)."""
    prepared = []
    cin_pad = params["convs"][0]["w"].shape[1]       # layer-1 input channels unpadded
    for cfg, lyr in zip(CONV_CFGS, params["convs"]):
        cout = cfg["cout"]
        kd, kh, kw = cfg["k"]
        cout_pad = ((cout + LANE - 1) // LANE) * LANE
        w = jnp.transpose(lyr["w"], (2, 3, 4, 1, 0))             # (kd, kh, kw, Cin, Cout)
        cin = w.shape[3]
        w = jnp.pad(w, ((0, 0), (0, 0), (0, 0),
                        (0, cin_pad - cin), (0, cout_pad - cout)))
        wmat = w.reshape(kd * kh * kw * cin_pad, cout_pad).astype(COMPUTE_DTYPE)
        aux = jnp.stack([
            jnp.pad(lyr["b"], (0, cout_pad - cout)),
            jnp.pad(lyr["scale"], (0, cout_pad - cout)),
            jnp.pad(lyr["shift"], (0, cout_pad - cout)),
        ]).astype(jnp.float32)                                   # (3, Cout_pad)
        prepared.append(dict(wmat=wmat, aux=aux))
        cin_pad = cout_pad
    return dict(convs=prepared,
                fc_w=params["fc_w"].reshape(1, -1).astype(jnp.float32),
                fc_b=params["fc_b"].reshape(1, 1).astype(jnp.float32))


def reference_forward(x, params):
    y = x
    for cfg, lyr in zip(CONV_CFGS, params["convs"]):
        y = jax.lax.conv_general_dilated(
            y, lyr["w"], window_strides=cfg["s"],
            padding=[(p, p) for p in cfg["p"]],
            dimension_numbers=("NCDHW", "OIDHW", "NCDHW"),
            precision=jax.lax.Precision.HIGHEST)
        y = jnp.maximum(y + lyr["b"].reshape(1, -1, 1, 1, 1), 0.0)
        y = y * lyr["scale"].reshape(1, -1, 1, 1, 1) + lyr["shift"].reshape(1, -1, 1, 1, 1)
    N, C, D, H, W = y.shape
    y = y[:, :, :(D // 2) * 2, :(H // 2) * 2, :(W // 2) * 2]
    y = y.reshape(N, C, D // 2, 2, H // 2, 2, W // 2, 2).mean(axis=(3, 5, 7))
    y = y.reshape(N, -1)
    logits = y @ params["fc_w"].T + params["fc_b"]
    return jax.nn.sigmoid(logits)


if __name__ == "__main__":
    key = jax.random.PRNGKey(0)
    key, kx, kp = jax.random.split(key, 3)

    # NCDHW input; D=18, H=W=16 is the smallest "nice" volume for which the module's
    # fc(in_features=256) is shape-consistent (conv stack -> (256,2,2,2), pool -> 1x1x1).
    B, C_IN, D, H, W = 2, 4, 18, 16, 16
    x = jax.random.normal(kx, (B, C_IN, D, H, W), jnp.float32)
    params = init_params(kp, C_IN)
    prepared = prepare_params(params)

    out = jax.block_until_ready(forward(x, prepared))
    ref = jax.block_until_ready(reference_forward(x, params))

    assert out.shape == (B, 1), out.shape
    # bf16 MXU operands (f32 accumulation) vs an f32 HIGHEST-precision reference:
    # allow ~1e-2-scale deviation on the sigmoid output.
    np.testing.assert_allclose(np.asarray(out), np.asarray(ref), rtol=2e-2, atol=2e-2)
    print("KERNEL_OK")
</pallas_src>

<mosaic_0001>
module attributes {stable_mosaic.version = 11 : i64} {
  func.func @_conv_gemm_bn_kernel(%arg0: i32, %arg1: memref<112x400xbf16, #tpu.memory_space<vmem>>, %arg2: memref<400x128xbf16, #tpu.memory_space<vmem>>, %arg3: memref<3x128xf32, #tpu.memory_space<vmem>>, %arg4: memref<112x128xbf16, #tpu.memory_space<vmem>>) attributes {dimension_semantics = [#tpu.dimension_semantics<parallel>], iteration_bounds = array<i64: 7>, scalar_prefetch = 0 : i64, scratch_operands = 0 : i64, tpu.core_type = #tpu.core_type<tc>, window_params = [{transform_indices = @transform_0, window_bounds = array<i64: 112, 400>}, {pipeline_mode = #tpu.pipeline_mode<synchronous>, transform_indices = @transform_1, window_bounds = array<i64: 400, 128>}, {pipeline_mode = #tpu.pipeline_mode<synchronous>, transform_indices = @transform_2, window_bounds = array<i64: 3, 128>}, {transform_indices = @transform_3, window_bounds = array<i64: 112, 128>}]} {
    %c0 = arith.constant 0 : index
    %c0_0 = arith.constant 0 : index
    %0 = vector.load %arg1[%c0, %c0_0] : memref<112x400xbf16, #tpu.memory_space<vmem>>, vector<112x400xbf16>
    %c0_1 = arith.constant 0 : index
    %c0_2 = arith.constant 0 : index
    %1 = vector.load %arg2[%c0_1, %c0_2] : memref<400x128xbf16, #tpu.memory_space<vmem>>, vector<400x128xbf16>
    %cst = arith.constant dense<0.000000e+00> : vector<112x128xf32>
    %2 = tpu.matmul %0, %1, %cst {dimension_numbers = #tpu.dot_dimension_numbers<[1], [0], [0], [1], [0, 0, 1, 1], [], []>} : vector<112x400xbf16>, vector<400x128xbf16>, vector<112x128xf32> -> vector<112x128xf32>
    %c0_3 = arith.constant 0 : index
    %c0_4 = arith.constant 0 : index
    %3 = vector.load %arg3[%c0_3, %c0_4] : memref<3x128xf32, #tpu.memory_space<vmem>>, vector<1x128xf32>
    %4 = vector.broadcast %3 : vector<1x128xf32> to vector<112x128xf32>
    %5 = arith.addf %2, %4 : vector<112x128xf32>
    %cst_5 = arith.constant 0.000000e+00 : f32
    %6 = vector.broadcast %cst_5 : f32 to vector<112x128xf32>
    %7 = arith.maximumf %5, %6 : vector<112x128xf32>
    %c1 = arith.constant 1 : index
    %c0_6 = arith.constant 0 : index
    %8 = vector.load %arg3[%c1, %c0_6] : memref<3x128xf32, #tpu.memory_space<vmem>>, vector<1x128xf32>
    %9 = vector.broadcast %8 : vector<1x128xf32> to vector<112x128xf32>
    %10 = arith.mulf %7, %9 : vector<112x128xf32>
    %c2 = arith.constant 2 : index
    %c0_7 = arith.constant 0 : index
    %11 = vector.load %arg3[%c2, %c0_7] : memref<3x128xf32, #tpu.memory_space<vmem>>, vector<1x128xf32>
    %12 = vector.broadcast %11 : vector<1x128xf32> to vector<112x128xf32>
    %13 = arith.addf %10, %12 : vector<112x128xf32>
    %14 = arith.truncf %13 : vector<112x128xf32> to vector<112x128xbf16>
    %c0_8 = arith.constant 0 : index
    %c0_9 = arith.constant 0 : index
    %15 = vector.load %arg4[%c0_8, %c0_9] : memref<112x128xbf16, #tpu.memory_space<vmem>>, vector<112x128xbf16>
    tpu.vector_store %arg4[%c0_8, %c0_9], %14 {strides = array<i32>} : memref<112x128xbf16, #tpu.memory_space<vmem>>, vector<112x128xbf16>,
    return
  }
  func.func @transform_0(%arg0: i32) -> (i32, i32) {
    %c0_i32 = arith.constant 0 : i32
    %c0_i32_0 = arith.constant 0 : i32
    return %arg0, %c0_i32 : i32, i32
  }
  func.func @transform_1(%arg0: i32) -> (i32, i32) {
    %c0_i32 = arith.constant 0 : i32
    %c0_i32_0 = arith.constant 0 : i32
    %c0_i32_1 = arith.constant 0 : i32
    return %c0_i32, %c0_i32_0 : i32, i32
  }
  func.func @transform_2(%arg0: i32) -> (i32, i32) {
    %c0_i32 = arith.constant 0 : i32
    %c0_i32_0 = arith.constant 0 : i32
    %c0_i32_1 = arith.constant 0 : i32
    return %c0_i32, %c0_i32_0 : i32, i32
  }
  func.func @transform_3(%arg0: i32) -> (i32, i32) {
    %c0_i32 = arith.constant 0 : i32
    %c0_i32_0 = arith.constant 0 : i32
    return %arg0, %c0_i32 : i32, i32
  }
}

module attributes {stable_mosaic.version = 11 : i64} {
  func.func @_conv_gemm_bn_kernel(%arg0: i32, %arg1: memref<90x8192xbf16, #tpu.memory_space<vmem>>, %arg2: memref<8192x128xbf16, #tpu.memory_space<vmem>>, %arg3: memref<3x128xf32, #tpu.memory_space<vmem>>, %arg4: memref<90x128xbf16, #tpu.memory_space<vmem>>) attributes {dimension_semantics = [#tpu.dimension_semantics<parallel>], iteration_bounds = array<i64: 1>, scalar_prefetch = 0 : i64, scratch_operands = 0 : i64, tpu.core_type = #tpu.core_type<tc>, window_params = [{transform_indices = @transform_0, window_bounds = array<i64: 90, 8192>}, {pipeline_mode = #tpu.pipeline_mode<synchronous>, transform_indices = @transform_1, window_bounds = array<i64: 8192, 128>}, {pipeline_mode = #tpu.pipeline_mode<synchronous>, transform_indices = @transform_2, window_bounds = array<i64: 3, 128>}, {transform_indices = @transform_3, window_bounds = array<i64: 90, 128>}]} {
    %c0 = arith.constant 0 : index
    %c0_0 = arith.constant 0 : index
    %0 = vector.load %arg1[%c0, %c0_0] : memref<90x8192xbf16, #tpu.memory_space<vmem>>, vector<90x8192xbf16>
    %c0_1 = arith.constant 0 : index
    %c0_2 = arith.constant 0 : index
    %1 = vector.load %arg2[%c0_1, %c0_2] : memref<8192x128xbf16, #tpu.memory_space<vmem>>, vector<8192x128xbf16>
    %cst = arith.constant dense<0.000000e+00> : vector<90x128xf32>
    %2 = tpu.matmul %0, %1, %cst {dimension_numbers = #tpu.dot_dimension_numbers<[1], [0], [0], [1], [0, 0, 1, 1], [], []>} : vector<90x8192xbf16>, vector<8192x128xbf16>, vector<90x128xf32> -> vector<90x128xf32>
    %c0_3 = arith.constant 0 : index
    %c0_4 = arith.constant 0 : index
    %3 = vector.load %arg3[%c0_3, %c0_4] : memref<3x128xf32, #tpu.memory_space<vmem>>, vector<1x128xf32>
    %4 = vector.broadcast %3 : vector<1x128xf32> to vector<90x128xf32>
    %5 = arith.addf %2, %4 : vector<90x128xf32>
    %cst_5 = arith.constant 0.000000e+00 : f32
    %6 = vector.broadcast %cst_5 : f32 to vector<90x128xf32>
    %7 = arith.maximumf %5, %6 : vector<90x128xf32>
    %c1 = arith.constant 1 : index
    %c0_6 = arith.constant 0 : index
    %8 = vector.load %arg3[%c1, %c0_6] : memref<3x128xf32, #tpu.memory_space<vmem>>, vector<1x128xf32>
    %9 = vector.broadcast %8 : vector<1x128xf32> to vector<90x128xf32>
    %10 = arith.mulf %7, %9 : vector<90x128xf32>
    %c2 = arith.constant 2 : index
    %c0_7 = arith.constant 0 : index
    %11 = vector.load %arg3[%c2, %c0_7] : memref<3x128xf32, #tpu.memory_space<vmem>>, vector<1x128xf32>
    %12 = vector.broadcast %11 : vector<1x128xf32> to vector<90x128xf32>
    %13 = arith.addf %10, %12 : vector<90x128xf32>
    %14 = arith.truncf %13 : vector<90x128xf32> to vector<90x128xbf16>
    %c0_8 = arith.constant 0 : index
    %c0_9 = arith.constant 0 : index
    %15 = vector.load %arg4[%c0_8, %c0_9] : memref<90x128xbf16, #tpu.memory_space<vmem>>, vector<90x128xbf16>
    tpu.vector_store %arg4[%c0_8, %c0_9], %14 {strides = array<i32>} : memref<90x128xbf16, #tpu.memory_space<vmem>>, vector<90x128xbf16>,
    return
  }
  func.func @transform_0(%arg0: i32) -> (i32, i32) {
    %c0_i32 = arith.constant 0 : i32
    %c0_i32_0 = arith.constant 0 : i32
    return %arg0, %c0_i32 : i32, i32
  }
  func.func @transform_1(%arg0: i32) -> (i32, i32) {
    %c0_i32 = arith.constant 0 : i32
    %c0_i32_0 = arith.constant 0 : i32
    %c0_i32_1 = arith.constant 0 : i32
    return %c0_i32, %c0_i32_0 : i32, i32
  }
  func.func @transform_2(%arg0: i32) -> (i32, i32) {
    %c0_i32 = arith.constant 0 : i32
    %c0_i32_0 = arith.constant 0 : i32
    %c0_i32_1 = arith.constant 0 : i32
    return %c0_i32, %c0_i32_0 : i32, i32
  }
  func.func @transform_3(%arg0: i32) -> (i32, i32) {
    %c0_i32 = arith.constant 0 : i32
    %c0_i32_0 = arith.constant 0 : i32
    return %arg0, %c0_i32 : i32, i32
  }
}

module attributes {stable_mosaic.version = 11 : i64} {
  func.func @_conv_gemm_bn_kernel(%arg0: i32, %arg1: memref<24x3456xbf16, #tpu.memory_space<vmem>>, %arg2: memref<3456x128xbf16, #tpu.memory_space<vmem>>, %arg3: memref<3x128xf32, #tpu.memory_space<vmem>>, %arg4: memref<24x128xbf16, #tpu.memory_space<vmem>>) attributes {dimension_semantics = [#tpu.dimension_semantics<parallel>], iteration_bounds = array<i64: 1>, scalar_prefetch = 0 : i64, scratch_operands = 0 : i64, tpu.core_type = #tpu.core_type<tc>, window_params = [{transform_indices = @transform_0, window_bounds = array<i64: 24, 3456>}, {pipeline_mode = #tpu.pipeline_mode<synchronous>, transform_indices = @transform_1, window_bounds = array<i64: 3456, 128>}, {pipeline_mode = #tpu.pipeline_mode<synchronous>, transform_indices = @transform_2, window_bounds = array<i64: 3, 128>}, {transform_indices = @transform_3, window_bounds = array<i64: 24, 128>}]} {
    %c0 = arith.constant 0 : index
    %c0_0 = arith.constant 0 : index
    %0 = vector.load %arg1[%c0, %c0_0] : memref<24x3456xbf16, #tpu.memory_space<vmem>>, vector<24x3456xbf16>
    %c0_1 = arith.constant 0 : index
    %c0_2 = arith.constant 0 : index
    %1 = vector.load %arg2[%c0_1, %c0_2] : memref<3456x128xbf16, #tpu.memory_space<vmem>>, vector<3456x128xbf16>
    %cst = arith.constant dense<0.000000e+00> : vector<24x128xf32>
    %2 = tpu.matmul %0, %1, %cst {dimension_numbers = #tpu.dot_dimension_numbers<[1], [0], [0], [1], [0, 0, 1, 1], [], []>} : vector<24x3456xbf16>, vector<3456x128xbf16>, vector<24x128xf32> -> vector<24x128xf32>
    %c0_3 = arith.constant 0 : index
    %c0_4 = arith.constant 0 : index
    %3 = vector.load %arg3[%c0_3, %c0_4] : memref<3x128xf32, #tpu.memory_space<vmem>>, vector<1x128xf32>
    %4 = vector.broadcast %3 : vector<1x128xf32> to vector<24x128xf32>
    %5 = arith.addf %2, %4 : vector<24x128xf32>
    %cst_5 = arith.constant 0.000000e+00 : f32
    %6 = vector.broadcast %cst_5 : f32 to vector<24x128xf32>
    %7 = arith.maximumf %5, %6 : vector<24x128xf32>
    %c1 = arith.constant 1 : index
    %c0_6 = arith.constant 0 : index
    %8 = vector.load %arg3[%c1, %c0_6] : memref<3x128xf32, #tpu.memory_space<vmem>>, vector<1x128xf32>
    %9 = vector.broadcast %8 : vector<1x128xf32> to vector<24x128xf32>
    %10 = arith.mulf %7, %9 : vector<24x128xf32>
    %c2 = arith.constant 2 : index
    %c0_7 = arith.constant 0 : index
    %11 = vector.load %arg3[%c2, %c0_7] : memref<3x128xf32, #tpu.memory_space<vmem>>, vector<1x128xf32>
    %12 = vector.broadcast %11 : vector<1x128xf32> to vector<24x128xf32>
    %13 = arith.addf %10, %12 : vector<24x128xf32>
    %14 = arith.truncf %13 : vector<24x128xf32> to vector<24x128xbf16>
    %c0_8 = arith.constant 0 : index
    %c0_9 = arith.constant 0 : index
    %15 = vector.load %arg4[%c0_8, %c0_9] : memref<24x128xbf16, #tpu.memory_space<vmem>>, vector<24x128xbf16>
    tpu.vector_store %arg4[%c0_8, %c0_9], %14 {strides = array<i32>} : memref<24x128xbf16, #tpu.memory_space<vmem>>, vector<24x128xbf16>,
    return
  }
  func.func @transform_0(%arg0: i32) -> (i32, i32) {
    %c0_i32 = arith.constant 0 : i32
    %c0_i32_0 = arith.constant 0 : i32
    return %arg0, %c0_i32 : i32, i32
  }
  func.func @transform_1(%arg0: i32) -> (i32, i32) {
    %c0_i32 = arith.constant 0 : i32
    %c0_i32_0 = arith.constant 0 : i32
    %c0_i32_1 = arith.constant 0 : i32
    return %c0_i32, %c0_i32_0 : i32, i32
  }
  func.func @transform_2(%arg0: i32) -> (i32, i32) {
    %c0_i32 = arith.constant 0 : i32
    %c0_i32_0 = arith.constant 0 : i32
    %c0_i32_1 = arith.constant 0 : i32
    return %c0_i32, %c0_i32_0 : i32, i32
  }
  func.func @transform_3(%arg0: i32) -> (i32, i32) {
    %c0_i32 = arith.constant 0 : i32
    %c0_i32_0 = arith.constant 0 : i32
    return %arg0, %c0_i32 : i32, i32
  }
}

module attributes {stable_mosaic.version = 11 : i64} {
  func.func @_conv_bn_head_kernel(%arg0: i32, %arg1: memref<16x1024xbf16, #tpu.memory_space<vmem>>, %arg2: memref<1024x256xbf16, #tpu.memory_space<vmem>>, %arg3: memref<3x256xf32, #tpu.memory_space<vmem>>, %arg4: memref<1x256xf32, #tpu.memory_space<vmem>>, %arg5: memref<1x1xf32, #tpu.memory_space<vmem>>, %arg6: memref<2x1xf32, #tpu.memory_space<vmem>>) attributes {dimension_semantics = [#tpu.dimension_semantics<arbitrary>], iteration_bounds = array<i64: 1>, scalar_prefetch = 0 : i64, scratch_operands = 0 : i64, tpu.core_type = #tpu.core_type<tc>, window_params = [{pipeline_mode = #tpu.pipeline_mode<synchronous>, transform_indices = @transform_0, window_bounds = array<i64: 16, 1024>}, {pipeline_mode = #tpu.pipeline_mode<synchronous>, transform_indices = @transform_1, window_bounds = array<i64: 1024, 256>}, {pipeline_mode = #tpu.pipeline_mode<synchronous>, transform_indices = @transform_2, window_bounds = array<i64: 3, 256>}, {pipeline_mode = #tpu.pipeline_mode<synchronous>, transform_indices = @transform_3, window_bounds = array<i64: 1, 256>}, {pipeline_mode = #tpu.pipeline_mode<synchronous>, transform_indices = @transform_4, window_bounds = array<i64: 1, 1>}, {pipeline_mode = #tpu.pipeline_mode<synchronous>, transform_indices = @transform_5, window_bounds = array<i64: 2, 1>}]} {
    %c0 = arith.constant 0 : index
    %c0_0 = arith.constant 0 : index
    %0 = vector.load %arg1[%c0, %c0_0] : memref<16x1024xbf16, #tpu.memory_space<vmem>>, vector<16x1024xbf16>
    %c0_1 = arith.constant 0 : index
    %c0_2 = arith.constant 0 : index
    %1 = vector.load %arg2[%c0_1, %c0_2] : memref<1024x256xbf16, #tpu.memory_space<vmem>>, vector<1024x256xbf16>
    %cst = arith.constant dense<0.000000e+00> : vector<16x256xf32>
    %2 = tpu.matmul %0, %1, %cst {dimension_numbers = #tpu.dot_dimension_numbers<[1], [0], [0], [1], [0, 0, 1, 1], [], []>} : vector<16x1024xbf16>, vector<1024x256xbf16>, vector<16x256xf32> -> vector<16x256xf32>
    %c0_3 = arith.constant 0 : index
    %c0_4 = arith.constant 0 : index
    %3 = vector.load %arg3[%c0_3, %c0_4] : memref<3x256xf32, #tpu.memory_space<vmem>>, vector<1x256xf32>
    %4 = vector.broadcast %3 : vector<1x256xf32> to vector<16x256xf32>
    %5 = arith.addf %2, %4 : vector<16x256xf32>
    %cst_5 = arith.constant 0.000000e+00 : f32
    %6 = vector.broadcast %cst_5 : f32 to vector<16x256xf32>
    %7 = arith.maximumf %5, %6 : vector<16x256xf32>
    %c1 = arith.constant 1 : index
    %c0_6 = arith.constant 0 : index
    %8 = vector.load %arg3[%c1, %c0_6] : memref<3x256xf32, #tpu.memory_space<vmem>>, vector<1x256xf32>
    %9 = vector.broadcast %8 : vector<1x256xf32> to vector<16x256xf32>
    %10 = arith.mulf %7, %9 : vector<16x256xf32>
    %c2 = arith.constant 2 : index
    %c0_7 = arith.constant 0 : index
    %11 = vector.load %arg3[%c2, %c0_7] : memref<3x256xf32, #tpu.memory_space<vmem>>, vector<1x256xf32>
    %12 = vector.broadcast %11 : vector<1x256xf32> to vector<16x256xf32>
    %13 = arith.addf %10, %12 : vector<16x256xf32>
    %14 = vector.shape_cast %13 : vector<16x256xf32> to vector<2x8x256xf32>
    %cst_8 = arith.constant dense<0.000000e+00> : vector<2x256xf32>
    %15 = vector.multi_reduction <add>, %14, %cst_8 [1] : vector<2x8x256xf32> to vector<2x256xf32>
    %cst_9 = arith.constant 8.000000e+00 : f32
    %16 = vector.broadcast %cst_9 : f32 to vector<2x256xf32>
    %17 = arith.divf %15, %16 : vector<2x256xf32>
    %c0_10 = arith.constant 0 : index
    %c0_11 = arith.constant 0 : index
    %18 = vector.load %arg4[%c0_10, %c0_11] : memref<1x256xf32, #tpu.memory_space<vmem>>, vector<1x256xf32>
    %19 = vector.broadcast %18 : vector<1x256xf32> to vector<2x256xf32>
    %20 = arith.mulf %17, %19 : vector<2x256xf32>
    %cst_12 = arith.constant dense<0.000000e+00> : vector<2xf32>
    %21 = vector.multi_reduction <add>, %20, %cst_12 [1] : vector<2x256xf32> to vector<2xf32>
    %22 = vector.shape_cast %21 : vector<2xf32> to vector<2x1xf32>
    %c0_13 = arith.constant 0 : index
    %c0_14 = arith.constant 0 : index
    %23 = vector.load %arg5[%c0_13, %c0_14] : memref<1x1xf32, #tpu.memory_space<vmem>>, vector<1x1xf32>
    %24 = vector.broadcast %23 : vector<1x1xf32> to vector<2x1xf32>
    %25 = arith.addf %22, %24 : vector<2x1xf32>
    %26 = arith.negf %25 : vector<2x1xf32>
    %27 = math.exp %26 : vector<2x1xf32>
    %cst_15 = arith.constant 1.000000e+00 : f32
    %28 = vector.broadcast %cst_15 : f32 to vector<2x1xf32>
    %29 = arith.addf %28, %27 : vector<2x1xf32>
    %30 = arith.divf %28, %29 : vector<2x1xf32>
    %c0_16 = arith.constant 0 : index
    %c0_17 = arith.constant 0 : index
    %31 = vector.load %arg6[%c0_16, %c0_17] : memref<2x1xf32, #tpu.memory_space<vmem>>, vector<2x1xf32>
    tpu.vector_store %arg6[%c0_16, %c0_17], %30 {strides = array<i32>} : memref<2x1xf32, #tpu.memory_space<vmem>>, vector<2x1xf32>,
    return
  }
  func.func @transform_0(%arg0: i32) -> (i32, i32) {
    %c0_i32 = arith.constant 0 : i32
    %c0_i32_0 = arith.constant 0 : i32
    %c0_i32_1 = arith.constant 0 : i32
    return %c0_i32, %c0_i32_0 : i32, i32
  }
  func.func @transform_1(%arg0: i32) -> (i32, i32) {
    %c0_i32 = arith.constant 0 : i32
    %c0_i32_0 = arith.constant 0 : i32
    %c0_i32_1 = arith.constant 0 : i32
    return %c0_i32, %c0_i32_0 : i32, i32
  }
  func.func @transform_2(%arg0: i32) -> (i32, i32) {
    %c0_i32 = arith.constant 0 : i32
    %c0_i32_0 = arith.constant 0 : i32
    %c0_i32_1 = arith.constant 0 : i32
    return %c0_i32, %c0_i32_0 : i32, i32
  }
  func.func @transform_3(%arg0: i32) -> (i32, i32) {
    %c0_i32 = arith.constant 0 : i32
    %c0_i32_0 = arith.constant 0 : i32
    %c0_i32_1 = arith.constant 0 : i32
    return %c0_i32, %c0_i32_0 : i32, i32
  }
  func.func @transform_4(%arg0: i32) -> (i32, i32) {
    %c0_i32 = arith.constant 0 : i32
    %c0_i32_0 = arith.constant 0 : i32
    %c0_i32_1 = arith.constant 0 : i32
    return %c0_i32, %c0_i32_0 : i32, i32
  }
  func.func @transform_5(%arg0: i32) -> (i32, i32) {
    %c0_i32 = arith.constant 0 : i32
    %c0_i32_0 = arith.constant 0 : i32
    %c0_i32_1 = arith.constant 0 : i32
    return %c0_i32, %c0_i32_0 : i32, i32
  }
}

</mosaic_0001>

<llo_original>
// kernel: forward.4
$region0: #{forward.4}
  #allocation0 [shape = 'u32[]', space=smem, size = 0x4, offset = 0x4, fixed_abs, tag = 'smem constant byte address 0x4 - core index']
  #allocation1 [shape = 'u32[144,128]{1,0:T(1,128)}', space=vmem, size = 0x12000, scoped, tag = 'internal scratch']
  %s0 = inlined_call_operand.vmem [shape: bf16[784,400], index: 0, kind: input, shape index: {}]
  %s1 = inlined_call_operand.vmem [shape: bf16[400,128], index: 1, kind: input, shape index: {}]
  %s2 = inlined_call_operand.vmem [shape: f32[3,128], index: 2, kind: input, shape index: {}]
  %s3 = inlined_call_operand.vmem [shape: bf16[784,128], index: 3, kind: output, shape index: {}]
  %s4 = sld [smem:[#allocation0]]
  $region45: #{forward.4} parent=0
    _
  %s6 = ssub.s32 1, %s4
  %s7 = scalar_select 0, %s6, %s4
  loop: start=0, step=1, limit=9
  $region2: #{forward.4} parent=0 // loop_pre_header
    _
  $region3: #{forward.4} parent=0 // loop_header
    %s9 = sphi 0, %s13
    %p10 = scmp.ge.s32.totalorder %s9, 9
    %s19 = sphi 0, %s21
    %s22 = sphi 0, %s19
    %s23 = sphi 0, %s22
    %s39 = sphi 0, %s23
    %s43 = sphi 0, %s43
    %s45 = sphi 0, %s43
    %s46 = sphi 0, %s45
    %s60 = sphi 0, %s46
    %s64 = sphi 0, %s64
    %s66 = sphi 0, %s64
    %s67 = sphi 0, %s66
    %s81 = sphi 0, %s67
    %s87 = sphi 0, %s89
    %s90 = sphi 0, %s87
    %s91 = sphi 0, %s90
    %s107 = sphi 0, %s91
  $region4: #{forward.4} parent=0 // loop_header_branch
    %12 = sbr.rel (%p10) target = $region8
  $region5: #{forward.4} parent=0 // loop_body
    %s14 = ssub.s32 %s9, 1
    %s15 = ssub.s32 %s9, 2
    %s16 = sadd.s32 %s9, 1
    %s17 = ssub.s32 %s9, %s16
    %p18 = scmp.eq.s32.totalorder %s17, 0
    %s20 = sadd.s32 %s19, 1
    %s21 = scalar_select %p18, %s19, %s20
    %p24 = pneg %p18
    %p25 = scmp.eq.s32.totalorder %s9, 6
    %p26 = por %p24, %p25
    %p27 = scmp.ne.s32.totalorder %s19, %s22
    %p28 = scmp.eq.s32.totalorder %s9, 0
    %p29 = por %p27, %p28
    %p30 = scmp.ne.s32.totalorder %s19, %s22
    %p31 = scmp.eq.s32.totalorder %s14, 6
    %p32 = por %p30, %p31
    %p33 = scmp.ne.s32.totalorder %s22, %s23
    %p34 = scmp.eq.s32.totalorder %s14, 0
    %p35 = por %p33, %p34
    %p36 = scmp.ne.s32.totalorder %s22, %s23
    %p37 = scmp.eq.s32.totalorder %s15, 6
    %p38 = por %p36, %p37
    %p40 = scmp.ne.s32.totalorder %s23, %s39
    %p41 = scmp.eq.s32.totalorder %s15, 0
    %p42 = por %p40, %p41
    %s44 = sadd.s32 %s43, 1
    %p47 = scmp.eq.s32.totalorder %s9, 6
    %p48 = scmp.ne.s32.totalorder %s43, %s45
    %p49 = scmp.eq.s32.totalorder %s9, 0
    %p50 = por %p48, %p49
    %p51 = scmp.ne.s32.totalorder %s43, %s45
    %p52 = scmp.eq.s32.totalorder %s14, 6
    %p53 = por %p51, %p52
    %p54 = scmp.ne.s32.totalorder %s45, %s46
    %p55 = scmp.eq.s32.totalorder %s14, 0
    %p56 = por %p54, %p55
    %p57 = scmp.ne.s32.totalorder %s45, %s46
    %p58 = scmp.eq.s32.totalorder %s15, 6
    %p59 = por %p57, %p58
    %p61 = scmp.ne.s32.totalorder %s46, %s60
    %p62 = scmp.eq.s32.totalorder %s15, 0
    %p63 = por %p61, %p62
    %s65 = sadd.s32 %s64, 1
    %p68 = scmp.eq.s32.totalorder %s9, 6
    %p69 = scmp.ne.s32.totalorder %s64, %s66
    %p70 = scmp.eq.s32.totalorder %s9, 0
    %p71 = por %p69, %p70
    %p72 = scmp.ne.s32.totalorder %s64, %s66
    %p73 = scmp.eq.s32.totalorder %s14, 6
    %p74 = por %p72, %p73
    %p75 = scmp.ne.s32.totalorder %s66, %s67
    %p76 = scmp.eq.s32.totalorder %s14, 0
    %p77 = por %p75, %p76
    %p78 = scmp.ne.s32.totalorder %s66, %s67
    %p79 = scmp.eq.s32.totalorder %s15, 6
    %p80 = por %p78, %p79
    %p82 = scmp.ne.s32.totalorder %s67, %s81
    %p83 = scmp.eq.s32.totalorder %s15, 0
    %p84 = por %p82, %p83
    %s85 = ssub.s32 %s9, %s16
    %p86 = scmp.eq.s32.totalorder %s85, 0
    %s88 = sadd.s32 %s87, 1
    %s89 = scalar_select %p86, %s87, %s88
    %p92 = pneg %p86
    %p93 = scmp.eq.s32.totalorder %s9, 6
    %p94 = por %p92, %p93
    %p95 = scmp.ne.s32.totalorder %s87, %s90
    %p96 = scmp.eq.s32.totalorder %s9, 0
    %p97 = por %p95, %p96
    %p98 = scmp.ne.s32.totalorder %s87, %s90
    %p99 = scmp.eq.s32.totalorder %s14, 6
    %p100 = por %p98, %p99
    %p101 = scmp.ne.s32.totalorder %s90, %s91
    %p102 = scmp.eq.s32.totalorder %s14, 0
    %p103 = por %p101, %p102
    %p104 = scmp.ne.s32.totalorder %s90, %s91
    %p105 = scmp.eq.s32.totalorder %s15, 6
    %p106 = por %p104, %p105
    %p108 = scmp.ne.s32.totalorder %s91, %s107
    %p109 = scmp.eq.s32.totalorder %s15, 0
    %p110 = por %p108, %p109
    %p111 = scmp.le.s32.totalorder 1, %s9
    %p112 = scmp.lt.s32.totalorder %s9, 8
    %p113 = pnand %p111, %p112
    %p114 = pneg %p113
    // Predicated region
    $region9: #{forward.4} parent=5 // pred_check
      _
    $region10: #{forward.4} parent=5 // pred_check_branch
      %116 = sbr.rel (%p113) target = $region12
    $region11: #{forward.4} parent=5 // pred_region
      %s117 = ssub.s32 %s9, 1
      // Predicated region
      $region13: #{forward.4} parent=11 // pred_check
        %p118 = pneg %p56
      $region14: #{forward.4} parent=11 // pred_check_branch
        %120 = sbr.rel (%p118) target = $region16
      $region15: #{forward.4} parent=11 // pred_region
        _
      $region16: #{forward.4} parent=11 // pred_fallthru
        _
      // Predicated region
      $region17: #{forward.4} parent=11 // pred_check
        %p121 = pneg %p77
      $region18: #{forward.4} parent=11 // pred_check_branch
        %123 = sbr.rel (%p121) target = $region20
      $region19: #{forward.4} parent=11 // pred_region
        _
      $region20: #{forward.4} parent=11 // pred_fallthru
        _
    $region12: #{forward.4} parent=5 // pred_fallthru
      _
    %p124 = scmp.lt.s32.totalorder %s9, 7
    // Predicated region
    $region21: #{forward.4} parent=5 // pred_check
      %p125 = pneg %p124
    $region22: #{forward.4} parent=5 // pred_check_branch
      %127 = sbr.rel (%p125) target = $region24
    $region23: #{forward.4} parent=5 // pred_region
      // Predicated region
      $region25: #{forward.4} parent=23 // pred_check
        %p128 = pneg %p29
      $region26: #{forward.4} parent=23 // pred_check_branch
        %130 = sbr.rel (%p128) target = $region28
      $region27: #{forward.4} parent=23 // pred_region
        %s131 = smul.u32 14, %s9
        %p132 = scmp.lt.s32.totalorder %s131, 97
        %s133 = scalar_select %p132, %s131, 97
        %s134 = smul.addr %s133, 4
        %s135 = smul.addr %s134, 4
        %s136 = scalar_lea.vmem %s0, %s135
        %s137 = smul.u32 14, %s9
      $region28: #{forward.4} parent=23 // pred_fallthru
        _
    $region24: #{forward.4} parent=5 // pred_fallthru
      _
    %p138 = scmp.le.s32.totalorder 1, %s9
    %p139 = scmp.lt.s32.totalorder %s9, 8
    %p140 = pnand %p138, %p139
    %p141 = pneg %p140
    // Predicated region
    $region29: #{forward.4} parent=5 // pred_check
      _
    $region30: #{forward.4} parent=5 // pred_check_branch
      %143 = sbr.rel (%p140) target = $region32
    $region31: #{forward.4} parent=5 // pred_region
      %s144 = ssub.s32 %s9, 1
      %s145 = smul.u32 14, %s14
      %p146 = scmp.lt.s32.totalorder %s145, 97
      %s147 = scalar_select %p146, %s145, 97
      %s148 = smul.addr %s147, 4
      %s149 = smul.addr %s148, 4
      %s150 = scalar_lea.vmem %s0, %s149
      %p151 = pneg %p35
      %p152 = pneg %p32
      %p153 = pneg %p56
      %p154 = pneg %p53
      %p155 = pneg %p77
      %p156 = pneg %p74
      %p157 = pneg %p103
      %p158 = pneg %p100
      %s159 = smul.u32 14, %s14
      %p160 = scmp.lt.s32.totalorder %s159, 97
      %s161 = scalar_select %p160, %s159, 97
      %s162 = smul.addr %s161, 4
      %s163 = scalar_lea.vmem %s3, %s162
      %s164 = smul.u32 14, %s14
      %p165 = scmp.lt.s32.totalorder %s164, 97
      %s166 = scalar_select %p165, %s164, 97
      %s167 = smul.addr %s166, 4
      %s168 = smul.addr %s167, 4
      %s169 = scalar_lea.vmem %s0, %s168
      %s170 = smul.u32 14, %s14
      %s171 = smul.u32 14, %s14
      %p172 = scmp.lt.s32.totalorder %s171, 97
      %s173 = scalar_select %p172, %s171, 97
      %s174 = smul.addr %s173, 4
      %s175 = scalar_lea.vmem %s3, %s174
      %s176 = smul.u32 14, %s14
      %v178 = vld [vmem:[%s169] sm:$0xff]
      %v179 = vld [vmem:[%s169 + $0x8] sm:$0xff]
      %v180 = vld [vmem:[%s169 + $0x10] sm:$0xff]
      %v181 = vld [vmem:[%s169 + $0x18] sm:$0xff]
      %v182 = vld [vmem:[%s169 + $0x20] sm:$0xff]
      %v183 = vld [vmem:[%s169 + $0x28] sm:$0xff]
      %v184 = vld [vmem:[%s169 + $0x30] sm:$0xff]
      %v185 = vld [vmem:[%s169 + $0x38] sm:$0xff]
      %v186 = vld [vmem:[%s169 + $0x40] sm:$0xff]
      %v187 = vld [vmem:[%s169 + $0x48] sm:$0xff]
      %v188 = vld [vmem:[%s169 + $0x50] sm:$0xff]
      %v189 = vld [vmem:[%s169 + $0x58] sm:$0xff]
      %v190 = vld [vmem:[%s169 + $0x60] sm:$0xff]
      %v191 = vld [vmem:[%s169 + $0x68] sm:$0xff]
      %v192 = vld [vmem:[%s169 + $0x70] sm:$0xff]
      %v193 = vld [vmem:[%s169 + $0x78] sm:$0xff]
      %v194 = vld [vmem:[%s169 + $0x80] sm:$0xff]
      %v195 = vld [vmem:[%s169 + $0x88] sm:$0xff]
      %v196 = vld [vmem:[%s169 + $0x90] sm:$0xff]
      %v197 = vld [vmem:[%s169 + $0x98] sm:$0xff]
      %v198 = vld [vmem:[%s169 + $0xa0] sm:$0xff]
      %v199 = vld [vmem:[%s169 + $0xa8] sm:$0xff]
      %v200 = vld [vmem:[%s169 + $0xb0] sm:$0xff]
      %v201 = vld [vmem:[%s169 + $0xb8] sm:$0xff]
      %v202 = vld [vmem:[%s169 + $0xc0] sm:$0xff]
      %v203 = vld [vmem:[%s169 + $0xc8] sm:$0xff]
      %v204 = vld [vmem:[%s169 + $0xd0] sm:$0xff]
      %v205 = vld [vmem:[%s169 + $0xd8] sm:$0xff]
      %v206 = vld [vmem:[%s1] sm:$0xf]
      %v207 = vld [vmem:[%s1 + $0x4] sm:$0xf]
      %v208 = vld [vmem:[%s1 + $0x8] sm:$0xf]
      %v209 = vld [vmem:[%s1 + $0xc] sm:$0xf]
      %v210 = vld [vmem:[%s1 + $0x10] sm:$0xf]
      %v211 = vld [vmem:[%s1 + $0x14] sm:$0xf]
      %v212 = vld [vmem:[%s1 + $0x18] sm:$0xf]
      %v213 = vld [vmem:[%s1 + $0x1c] sm:$0xf]
      %v214 = vld [vmem:[%s1 + $0x20] sm:$0xf]
      %v215 = vld [vmem:[%s1 + $0x24] sm:$0xf]
      %v216 = vld [vmem:[%s1 + $0x28] sm:$0xf]
      %v217 = vld [vmem:[%s1 + $0x2c] sm:$0xf]
      %v218 = vld [vmem:[%s1 + $0x30] sm:$0xf]
      %v219 = vld [vmem:[%s1 + $0x34] sm:$0xf]
      %v220 = vld [vmem:[%s1 + $0x38] sm:$0xf]
      %v221 = vld [vmem:[%s1 + $0x3c] sm:$0xf]
      %v222 = vld [vmem:[%s1 + $0x40] sm:$0xf]
      %v223 = vld [vmem:[%s1 + $0x44] sm:$0xf]
      %v224 = vld [vmem:[%s1 + $0x48] sm:$0xf]
      %v225 = vld [vmem:[%s1 + $0x4c] sm:$0xf]
      %v226 = vld [vmem:[%s1 + $0x50] sm:$0xf]
      %v227 = vld [vmem:[%s1 + $0x54] sm:$0xf]
      %v228 = vld [vmem:[%s1 + $0x58] sm:$0xf]
      %v229 = vld [vmem:[%s1 + $0x5c] sm:$0xf]
      %v230 = vld [vmem:[%s1 + $0x60] sm:$0xf]
      %v231 = vld [vmem:[%s1 + $0x64] sm:$0xf]
      %v232 = vld [vmem:[%s1 + $0x68] sm:$0xf]
      %v233 = vld [vmem:[%s1 + $0x6c] sm:$0xf]
      %v234 = vld [vmem:[%s1 + $0x70] sm:$0xf]
      %v235 = vld [vmem:[%s1 + $0x74] sm:$0xf]
      %v236 = vld [vmem:[%s1 + $0x78] sm:$0xf]
      %v237 = vld [vmem:[%s1 + $0x7c] sm:$0xf]
      %v238 = vld [vmem:[%s1 + $0x80] sm:$0xf]
      %v239 = vld [vmem:[%s1 + $0x84] sm:$0xf]
      %v240 = vld [vmem:[%s1 + $0x88] sm:$0xf]
      %v241 = vld [vmem:[%s1 + $0x8c] sm:$0xf]
      %v242 = vld [vmem:[%s1 + $0x90] sm:$0xf]
      %v243 = vld [vmem:[%s1 + $0x94] sm:$0xf]
      %v244 = vld [vmem:[%s1 + $0x98] sm:$0xf]
      %v245 = vld [vmem:[%s1 + $0x9c] sm:$0xf]
      %v246 = vld [vmem:[%s1 + $0xa0] sm:$0xf]
      %v247 = vld [vmem:[%s1 + $0xa4] sm:$0xf]
      %v248 = vld [vmem:[%s1 + $0xa8] sm:$0xf]
      %v249 = vld [vmem:[%s1 + $0xac] sm:$0xf]
      %v250 = vld [vmem:[%s1 + $0xb0] sm:$0xf]
      %v251 = vld [vmem:[%s1 + $0xb4] sm:$0xf]
      %v252 = vld [vmem:[%s1 + $0xb8] sm:$0xf]
      %v253 = vld [vmem:[%s1 + $0xbc] sm:$0xf]
      %v254 = vld [vmem:[%s1 + $0xc0] sm:$0xf]
      %v255 = vld [vmem:[%s1 + $0xc4] sm:$0xf]
      %v256 = vld [vmem:[%s2] sm:$0x1]
      %v257 = vlaneseq
      %v258 = vshrl.u32 %v257, 7
      %v259 = vsub.s32 0, %v258
      %v260 = vrot.slane %v256, %v259
      %v289 = vunpack.c.l.b16 %v178
      %v290 = vunpack.c.h.b16 %v178
      %v291 = vunpack.c.l.b16 %v179
      %v292 = vunpack.c.h.b16 %v179
      %v293 = vunpack.c.l.b16 %v180
      %v294 = vunpack.c.h.b16 %v180
      %v295 = vunpack.c.l.b16 %v181
      %v296 = vunpack.c.h.b16 %v181
      %v297 = vunpack.c.l.b16 %v182
      %v298 = vunpack.c.h.b16 %v182
      %v299 = vunpack.c.l.b16 %v183
      %v300 = vunpack.c.h.b16 %v183
      %v301 = vunpack.c.l.b16 %v184
      %v302 = vunpack.c.h.b16 %v184
      %v303 = vunpack.c.l.b16 %v185
      %v304 = vunpack.c.h.b16 %v185
      %v305 = vunpack.c.l.b16 %v186
      %v306 = vunpack.c.h.b16 %v186
      %v307 = vunpack.c.l.b16 %v187
      %v308 = vunpack.c.h.b16 %v187
      %v309 = vunpack.c.l.b16 %v188
      %v310 = vunpack.c.h.b16 %v188
      %v311 = vunpack.c.l.b16 %v189
      %v312 = vunpack.c.h.b16 %v189
      %v313 = vunpack.c.l.b16 %v190
      %v314 = vunpack.c.h.b16 %v190
      %v315 = vunpack.c.l.b16 %v191
      %v316 = vunpack.c.h.b16 %v191
      %v317 = vunpack.c.l.b16 %v192
      %v318 = vunpack.c.h.b16 %v192
      %v319 = vunpack.c.l.b16 %v193
      %v320 = vunpack.c.h.b16 %v193
      %v321 = vunpack.c.l.b16 %v194
      %v322 = vunpack.c.h.b16 %v194
      %v323 = vunpack.c.l.b16 %v195
      %v324 = vunpack.c.h.b16 %v195
      %v325 = vunpack.c.l.b16 %v196
      %v326 = vunpack.c.h.b16 %v196
      %v327 = vunpack.c.l.b16 %v197
      %v328 = vunpack.c.h.b16 %v197
      %v329 = vunpack.c.l.b16 %v198
      %v330 = vunpack.c.h.b16 %v198
      %v331 = vunpack.c.l.b16 %v199
      %v332 = vunpack.c.h.b16 %v199
      %v333 = vunpack.c.l.b16 %v200
      %v334 = vunpack.c.h.b16 %v200
      %v335 = vunpack.c.l.b16 %v201
      %v336 = vunpack.c.h.b16 %v201
      %v337 = vunpack.c.l.b16 %v202
      %v338 = vunpack.c.h.b16 %v202
      %v339 = vunpack.c.l.b16 %v203
      %v340 = vunpack.c.h.b16 %v203
      %v341 = vunpack.c.l.b16 %v204
      %v342 = vunpack.c.h.b16 %v204
      %v343 = vunpack.c.l.b16 %v205
      %v344 = vunpack.c.h.b16 %v205
      %v345 = vpack.c.b16 %v293, %v289
      %v346 = vpack.c.b16 %v294, %v290
      %v347 = vpack.c.b16 %v295, %v291
      %v348 = vpack.c.b16 %v296, %v292
      %v349 = vpack.c.b16 %v301, %v297
      %v350 = vpack.c.b16 %v302, %v298
      %v351 = vpack.c.b16 %v303, %v299
      %v352 = vpack.c.b16 %v304, %v300
      %v353 = vpack.c.b16 %v309, %v305
      %v354 = vpack.c.b16 %v310, %v306
      %v355 = vpack.c.b16 %v311, %v307
      %v356 = vpack.c.b16 %v312, %v308
      %v357 = vpack.c.b16 %v317, %v313
      %v358 = vpack.c.b16 %v318, %v314
      %v359 = vpack.c.b16 %v319, %v315
      %v360 = vpack.c.b16 %v320, %v316
      %v361 = vpack.c.b16 %v325, %v321
      %v362 = vpack.c.b16 %v326, %v322
      %v363 = vpack.c.b16 %v327, %v323
      %v364 = vpack.c.b16 %v328, %v324
      %v365 = vpack.c.b16 %v333, %v329
      %v366 = vpack.c.b16 %v334, %v330
      %v367 = vpack.c.b16 %v335, %v331
      %v368 = vpack.c.b16 %v336, %v332
      %v369 = vpack.c.b16 %v341, %v337
      %v370 = vpack.c.b16 %v342, %v338
      %v371 = vpack.c.b16 %v343, %v339
      %v372 = vpack.c.b16 %v344, %v340
      %v444 = vunpack.c.l.b16 %v206
      %v445 = vunpack.c.l.b16 %v207
      %v446 = vunpack.c.l.b16 %v208
      %v447 = vunpack.c.l.b16 %v209
      %v448 = vunpack.c.l.b16 %v210
      %v449 = vunpack.c.l.b16 %v211
      %v450 = vunpack.c.l.b16 %v212
      %v451 = vunpack.c.l.b16 %v213
      %v452 = vunpack.c.l.b16 %v214
      %v453 = vunpack.c.l.b16 %v215
      %v454 = vunpack.c.l.b16 %v216
      %v455 = vunpack.c.l.b16 %v217
      %v456 = vunpack.c.l.b16 %v218
      %v457 = vunpack.c.l.b16 %v219
      %v458 = vunpack.c.l.b16 %v220
      %v459 = vunpack.c.l.b16 %v221
      %v460 = vunpack.c.l.b16 %v222
      %v461 = vunpack.c.l.b16 %v223
      %v462 = vunpack.c.l.b16 %v224
      %v463 = vunpack.c.l.b16 %v225
      %v464 = vunpack.c.l.b16 %v226
      %v465 = vunpack.c.l.b16 %v227
      %v466 = vunpack.c.l.b16 %v228
      %v467 = vunpack.c.l.b16 %v229
      %v468 = vunpack.c.l.b16 %v230
      %v469 = vunpack.c.l.b16 %v231
      %v470 = vunpack.c.l.b16 %v232
      %v471 = vunpack.c.l.b16 %v233
      %v472 = vunpack.c.l.b16 %v234
      %v473 = vunpack.c.l.b16 %v235
      %v474 = vunpack.c.l.b16 %v236
      %v475 = vunpack.c.l.b16 %v237
      %v476 = vunpack.c.l.b16 %v238
      %v477 = vunpack.c.l.b16 %v239
      %v478 = vunpack.c.l.b16 %v240
      %v479 = vunpack.c.l.b16 %v241
      %v480 = vunpack.c.l.b16 %v242
      %v481 = vunpack.c.l.b16 %v243
      %v482 = vunpack.c.l.b16 %v244
      %v483 = vunpack.c.l.b16 %v245
      %v484 = vunpack.c.l.b16 %v246
      %v485 = vunpack.c.l.b16 %v247
      %v486 = vunpack.c.l.b16 %v248
      %v487 = vunpack.c.l.b16 %v249
      %v488 = vunpack.c.l.b16 %v250
      %v489 = vunpack.c.l.b16 %v251
      %v490 = vunpack.c.l.b16 %v252
      %v491 = vunpack.c.l.b16 %v253
      %v492 = vunpack.c.l.b16 %v254
      %v493 = vunpack.c.l.b16 %v255
      %v494 = vpack.c.b16 %v445, %v444
      %v495 = vpack.c.b16 %v447, %v446
      %v496 = vpack.c.b16 %v449, %v448
      %v497 = vpack.c.b16 %v451, %v450
      %v498 = vpack.c.b16 %v453, %v452
      %v499 = vpack.c.b16 %v455, %v454
      %v500 = vpack.c.b16 %v457, %v456
      %v501 = vpack.c.b16 %v459, %v458
      %v502 = vpack.c.b16 %v461, %v460
      %v503 = vpack.c.b16 %v463, %v462
      %v504 = vpack.c.b16 %v465, %v464
      %v505 = vpack.c.b16 %v467, %v466
      %v506 = vpack.c.b16 %v469, %v468
      %v507 = vpack.c.b16 %v471, %v470
      %v508 = vpack.c.b16 %v473, %v472
      %v509 = vpack.c.b16 %v475, %v474
      %v510 = vpack.c.b16 %v477, %v476
      %v511 = vpack.c.b16 %v479, %v478
      %v512 = vpack.c.b16 %v481, %v480
      %v513 = vpack.c.b16 %v483, %v482
      %v514 = vpack.c.b16 %v485, %v484
      %v515 = vpack.c.b16 %v487, %v486
      %v516 = vpack.c.b16 %v489, %v488
      %v517 = vpack.c.b16 %v491, %v490
      %v518 = vpack.c.b16 %v493, %v492
      %vm544 = vcmask 130048
      %v546 = vsel %vm544, %v348, 0
      %v549 = vsel %vm544, %v352, 0
      %v552 = vsel %vm544, %v356, 0
      %v555 = vsel %vm544, %v360, 0
      %v558 = vsel %vm544, %v364, 0
      %v561 = vsel %vm544, %v368, 0
      %v564 = vsel %vm544, %v372, 0
      %566 = vmatprep.subr.bf16.mxu0 0
      %567 = vmatpush1.bf16.msra.mxu0 %v494
      %568 = vmatprep.subr.bf16.mxu0 0
      %569 = vmatpush1.bf16.msra.mxu0 %v495
      %570 = vmatprep.subr.bf16.mxu0 0
      %571 = vmatpush1.bf16.msra.mxu0 %v496
      %572 = vmatprep.subr.bf16.mxu0 0
      %573 = vmatpush1.bf16.msra.mxu0 %v497
      %574 = vmatprep.subr.bf16.mxu0 0
      %575 = vmatpush1.bf16.msra.mxu0 %v498
      %576 = vmatprep.subr.bf16.mxu0 0
      %577 = vmatpush1.bf16.msra.mxu0 %v499
      %578 = vmatprep.subr.bf16.mxu0 0
      %579 = vmatpush1.bf16.msra.mxu0 %v500
      %580 = vmatprep.subr.bf16.mxu0 0
      %581 = vmatpush1.bf16.msra.mxu0 %v501
      %582 = vmatprep.subr.bf16.mxu0 0
      %583 = vmatpush1.bf16.msra.mxu0 %v502
      %584 = vmatprep.subr.bf16.mxu0 0
      %585 = vmatpush1.bf16.msra.mxu0 %v503
      %586 = vmatprep.subr.bf16.mxu0 0
      %587 = vmatpush1.bf16.msra.mxu0 %v504
      %588 = vmatprep.subr.bf16.mxu0 0
      %589 = vmatpush1.bf16.msra.mxu0 %v505
      %590 = vmatprep.subr.bf16.mxu0 0
      %591 = vmatpush1.bf16.msra.mxu0 %v506
      %592 = vmatprep.subr.bf16.mxu0 0
      %593 = vmatpush1.bf16.msra.mxu0 %v507
      %594 = vmatprep.subr.bf16.mxu0 0
      %595 = vmatpush1.bf16.msra.mxu0 %v508
      %596 = vmatprep.subr.bf16.mxu0 0
      %597 = vmatpush1.bf16.msra.mxu0 %v509
      %598 = vmatprep.mubr.bf16.mxu0 %v346
      %599 = vmatmul.mubr.bf16.gmra.mrb[0].mxu0 %v345
      %v600 = vpop.f32.mrb[0].mxu0
      %v601 = vadd.f32 %v260, %v600
      %v602 = vpop.f32.mrb[0].mxu0
      %v603 = vpop.f32.mrb[0].mxu0
      %v604 = vadd.f32 %v260, %v603
      %v605 = vpop.f32.mrb[0].mxu0
      %606 = vmatprep.mubr.bf16.mxu0 %v350
      %607 = vmatmul.mubr.bf16.gmra.mrb[0].mxu0 %v349
      %v608 = vpop.f32.mrb[0].mxu0
      %v609 = vadd.f32 %v260, %v608
      %v610 = vpop.f32.mrb[0].mxu0
      %v611 = vpop.f32.mrb[0].mxu0
      %v612 = vadd.f32 %v260, %v611
      %v613 = vpop.f32.mrb[0].mxu0
      %614 = vmatprep.mubr.bf16.mxu0 %v354
      %615 = vmatmul.mubr.bf16.gmra.mrb[0].mxu0 %v353
      %v616 = vpop.f32.mrb[0].mxu0
      %v617 = vadd.f32 %v260, %v616
      %v618 = vpop.f32.mrb[0].mxu0
      %v619 = vpop.f32.mrb[0].mxu0
      %v620 = vadd.f32 %v260, %v619
      %v621 = vpop.f32.mrb[0].mxu0
      %622 = vmatprep.mubr.bf16.mxu0 %v358
      %623 = vmatmul.mubr.bf16.gmra.mrb[0].mxu0 %v357
      %v624 = vpop.f32.mrb[0].mxu0
      %v625 = vadd.f32 %v260, %v624
      %v626 = vpop.f32.mrb[0].mxu0
      %v627 = vpop.f32.mrb[0].mxu0
      %v628 = vadd.f32 %v260, %v627
      %v629 = vpop.f32.mrb[0].mxu0
      %630 = vmatprep.mubr.bf16.mxu0 %v362
      %631 = vmatmul.mubr.bf16.gmra.mrb[0].mxu0 %v361
      %v632 = vpop.f32.mrb[0].mxu0
      %v633 = vadd.f32 %v260, %v632
      %v634 = vpop.f32.mrb[0].mxu0
      %v635 = vpop.f32.mrb[0].mxu0
      %v636 = vadd.f32 %v260, %v635
      %v637 = vpop.f32.mrb[0].mxu0
      %638 = vmatprep.mubr.bf16.mxu0 %v366
      %639 = vmatmul.mubr.bf16.gmra.mrb[0].mxu0 %v365
      %v640 = vpop.f32.mrb[0].mxu0
      %v641 = vadd.f32 %v260, %v640
      %v642 = vpop.f32.mrb[0].mxu0
      %v643 = vpop.f32.mrb[0].mxu0
      %v644 = vadd.f32 %v260, %v643
      %v645 = vpop.f32.mrb[0].mxu0
      %646 = vmatprep.mubr.bf16.mxu0 %v370
      %647 = vmatmul.mubr.bf16.gmra.mrb[0].mxu0 %v369
      %v648 = vpop.f32.mrb[0].mxu0
      %v649 = vadd.f32 %v260, %v648
      %v650 = vpop.f32.mrb[0].mxu0
      %v651 = vpop.f32.mrb[0].mxu0
      %v652 = vadd.f32 %v260, %v651
      %v653 = vpop.f32.mrb[0].mxu0
      %654 = vdwg.mxu0
      %655 = vmatprep.subr.bf16.mxu0 0
      %656 = vmatpush1.bf16.msra.mxu0 %v510
      %657 = vmatprep.subr.bf16.mxu0 0
      %658 = vmatpush1.bf16.msra.mxu0 %v511
      %659 = vmatprep.subr.bf16.mxu0 0
      %660 = vmatpush1.bf16.msra.mxu0 %v512
      %661 = vmatprep.subr.bf16.mxu0 0
      %662 = vmatpush1.bf16.msra.mxu0 %v513
      %663 = vmatprep.subr.bf16.mxu0 0
      %664 = vmatpush1.bf16.msra.mxu0 %v514
      %665 = vmatprep.subr.bf16.mxu0 0
      %666 = vmatpush1.bf16.msra.mxu0 %v515
      %667 = vmatprep.subr.bf16.mxu0 0
      %668 = vmatpush1.bf16.msra.mxu0 %v516
      %669 = vmatprep.subr.bf16.mxu0 0
      %670 = vmatpush1.bf16.msra.mxu0 %v517
      %671 = vmatprep.subr.bf16.mxu0 0
      %672 = vmatpush1.bf16.msra.mxu0 %v518
      %673 = vmatprep.subr.bf16.mxu0 0
      %674 = vmatpush1.bf16.msra.mxu0 0
      %675 = vmatprep.subr.bf16.mxu0 0
      %676 = vmatpush1.bf16.msra.mxu0 0
      %677 = vmatprep.subr.bf16.mxu0 0
      %678 = vmatpush1.bf16.msra.mxu0 0
      %679 = vmatprep.subr.bf16.mxu0 0
      %680 = vmatpush1.bf16.msra.mxu0 0
      %681 = vmatprep.subr.bf16.mxu0 0
      %682 = vmatpush1.bf16.msra.mxu0 0
      %683 = vmatprep.subr.bf16.mxu0 0
      %684 = vmatpush1.bf16.msra.mxu0 0
      %685 = vmatprep.subr.bf16.mxu0 0
      %686 = vmatpush1.bf16.msra.mxu0 0
      %687 = vmatprep.mubr.bf16.mxu0 %v546
      %688 = vmatmul.mubr.bf16.gmra.mrb[0].mxu0 %v347
      %v689 = vpop.f32.mrb[0].mxu0
      %v690 = vadd.f32 %v601, %v689
      %v691 = vpop.f32.mrb[0].mxu0
      %v692 = vpop.f32.mrb[0].mxu0
      %v693 = vadd.f32 %v604, %v692
      %v694 = vpop.f32.mrb[0].mxu0
      %695 = vmatprep.mubr.bf16.mxu0 %v549
      %696 = vmatmul.mubr.bf16.gmra.mrb[0].mxu0 %v351
      %v697 = vpop.f32.mrb[0].mxu0
      %v698 = vadd.f32 %v609, %v697
      %v699 = vpop.f32.mrb[0].mxu0
      %v700 = vpop.f32.mrb[0].mxu0
      %v701 = vadd.f32 %v612, %v700
      %v702 = vpop.f32.mrb[0].mxu0
      %703 = vmatprep.mubr.bf16.mxu0 %v552
      %704 = vmatmul.mubr.bf16.gmra.mrb[0].mxu0 %v355
      %v705 = vpop.f32.mrb[0].mxu0
      %v706 = vadd.f32 %v617, %v705
      %v707 = vpop.f32.mrb[0].mxu0
      %v708 = vpop.f32.mrb[0].mxu0
      %v709 = vadd.f32 %v620, %v708
      %v710 = vpop.f32.mrb[0].mxu0
      %711 = vmatprep.mubr.bf16.mxu0 %v555
      %712 = vmatmul.mubr.bf16.gmra.mrb[0].mxu0 %v359
      %v713 = vpop.f32.mrb[0].mxu0
      %v714 = vadd.f32 %v625, %v713
      %v715 = vpop.f32.mrb[0].mxu0
      %v716 = vpop.f32.mrb[0].mxu0
      %v717 = vadd.f32 %v628, %v716
      %v718 = vpop.f32.mrb[0].mxu0
      %719 = vmatprep.mubr.bf16.mxu0 %v558
      %720 = vmatmul.mubr.bf16.gmra.mrb[0].mxu0 %v363
      %v721 = vpop.f32.mrb[0].mxu0
      %v722 = vadd.f32 %v633, %v721
      %v723 = vpop.f32.mrb[0].mxu0
      %v724 = vpop.f32.mrb[0].mxu0
      %v725 = vadd.f32 %v636, %v724
      %v726 = vpop.f32.mrb[0].mxu0
      %727 = vmatprep.mubr.bf16.mxu0 %v561
      %728 = vmatmul.mubr.bf16.gmra.mrb[0].mxu0 %v367
      %v729 = vpop.f32.mrb[0].mxu0
      %v730 = vadd.f32 %v641, %v729
      %v731 = vpop.f32.mrb[0].mxu0
      %v732 = vpop.f32.mrb[0].mxu0
      %v733 = vadd.f32 %v644, %v732
      %v734 = vpop.f32.mrb[0].mxu0
      %735 = vmatprep.mubr.bf16.mxu0 %v564
      %736 = vmatmul.mubr.bf16.gmra.mrb[0].mxu0 %v371
      %v737 = vpop.f32.mrb[0].mxu0
      %v738 = vadd.f32 %v649, %v737
      %v739 = vpop.f32.mrb[0].mxu0
      %v740 = vpop.f32.mrb[0].mxu0
      %v741 = vadd.f32 %v652, %v740
      %v742 = vpop.f32.mrb[0].mxu0
      %743 = vdwg.mxu0
      %v744 = vmax.f32 %v690, 0.0
      %v745 = vmax.f32 %v693, 0.0
      %v746 = vmax.f32 %v698, 0.0
      %v747 = vmax.f32 %v701, 0.0
      %v748 = vmax.f32 %v706, 0.0
      %v749 = vmax.f32 %v709, 0.0
      %v750 = vmax.f32 %v714, 0.0
      %v751 = vmax.f32 %v717, 0.0
      %v752 = vmax.f32 %v722, 0.0
      %v753 = vmax.f32 %v725, 0.0
      %v754 = vmax.f32 %v730, 0.0
      %v755 = vmax.f32 %v733, 0.0
      %v756 = vmax.f32 %v738, 0.0
      %v757 = vmax.f32 %v741, 0.0
      %v758 = vld [vmem:[%s2 + $0x1] sm:$0x1]
      %v759 = vlaneseq
      %v760 = vshrl.u32 %v759, 7
      %v761 = vsub.s32 0, %v760
      %v762 = vrot.slane %v758, %v761
      %v763 = vmul.f32 %v744, %v762
      %v764 = vmul.f32 %v745, %v762
      %v765 = vmul.f32 %v746, %v762
      %v766 = vmul.f32 %v747, %v762
      %v767 = vmul.f32 %v748, %v762
      %v768 = vmul.f32 %v749, %v762
      %v769 = vmul.f32 %v750, %v762
      %v770 = vmul.f32 %v751, %v762
      %v771 = vmul.f32 %v752, %v762
      %v772 = vmul.f32 %v753, %v762
      %v773 = vmul.f32 %v754, %v762
      %v774 = vmul.f32 %v755, %v762
      %v775 = vmul.f32 %v756, %v762
      %v776 = vmul.f32 %v757, %v762
      %v777 = vld [vmem:[%s2 + $0x2] sm:$0x1]
      %v778 = vlaneseq
      %v779 = vshrl.u32 %v778, 7
      %v780 = vsub.s32 0, %v779
      %v781 = vrot.slane %v777, %v780
      %v782 = vadd.f32 %v763, %v781
      %v783 = vadd.f32 %v764, %v781
      %v784 = vadd.f32 %v765, %v781
      %v785 = vadd.f32 %v766, %v781
      %v786 = vadd.f32 %v767, %v781
      %v787 = vadd.f32 %v768, %v781
      %v788 = vadd.f32 %v769, %v781
      %v789 = vadd.f32 %v770, %v781
      %v790 = vadd.f32 %v771, %v781
      %v791 = vadd.f32 %v772, %v781
      %v792 = vadd.f32 %v773, %v781
      %v793 = vadd.f32 %v774, %v781
      %v794 = vadd.f32 %v775, %v781
      %v795 = vadd.f32 %v776, %v781
      %v796 = vpack.c.bf16 %v783, %v782
      %v797 = vpack.c.bf16 %v785, %v784
      %v798 = vpack.c.bf16 %v787, %v786
      %v799 = vpack.c.bf16 %v789, %v788
      %v800 = vpack.c.bf16 %v791, %v790
      %v801 = vpack.c.bf16 %v793, %v792
      %v802 = vpack.c.bf16 %v795, %v794
      %v810 = vunpack.c.l.b16 %v796
      %v811 = vunpack.c.h.b16 %v796
      %v812 = vunpack.c.l.b16 %v797
      %v813 = vunpack.c.h.b16 %v797
      %v814 = vunpack.c.l.b16 %v798
      %v815 = vunpack.c.h.b16 %v798
      %v816 = vunpack.c.l.b16 %v799
      %v817 = vunpack.c.h.b16 %v799
      %v818 = vunpack.c.l.b16 %v800
      %v819 = vunpack.c.h.b16 %v800
      %v820 = vunpack.c.l.b16 %v801
      %v821 = vunpack.c.h.b16 %v801
      %v822 = vunpack.c.l.b16 %v802
      %v823 = vunpack.c.h.b16 %v802
      %v824 = vpack.c.b16 %v810, %v810
      %v825 = vpack.c.b16 %v811, %v811
      %v826 = vpack.c.b16 %v812, %v812
      %v827 = vpack.c.b16 %v813, %v813
      %v828 = vpack.c.b16 %v814, %v814
      %v829 = vpack.c.b16 %v815, %v815
      %v830 = vpack.c.b16 %v816, %v816
      %v831 = vpack.c.b16 %v817, %v817
      %v832 = vpack.c.b16 %v818, %v818
      %v833 = vpack.c.b16 %v819, %v819
      %v834 = vpack.c.b16 %v820, %v820
      %v835 = vpack.c.b16 %v821, %v821
      %v836 = vpack.c.b16 %v822, %v822
      %v837 = vpack.c.b16 %v823, %v823
      %852 = vst [vmem:[%s175] sm:$0xf] %v824
      %853 = vst [vmem:[%s175 + $0x4] sm:$0xf] %v825
      %854 = vst [vmem:[%s175 + $0x8] sm:$0xf] %v826
      %855 = vst [vmem:[%s175 + $0xc] sm:$0xf] %v827
      %856 = vst [vmem:[%s175 + $0x10] sm:$0xf] %v828
      %857 = vst [vmem:[%s175 + $0x14] sm:$0xf] %v829
      %858 = vst [vmem:[%s175 + $0x18] sm:$0xf] %v830
      %859 = vst [vmem:[%s175 + $0x1c] sm:$0xf] %v831
      %860 = vst [vmem:[%s175 + $0x20] sm:$0xf] %v832
      %861 = vst [vmem:[%s175 + $0x24] sm:$0xf] %v833
      %862 = vst [vmem:[%s175 + $0x28] sm:$0xf] %v834
      %863 = vst [vmem:[%s175 + $0x2c] sm:$0xf] %v835
      %864 = vst [vmem:[%s175 + $0x30] sm:$0xf] %v836
      %865 = vst [vmem:[%s175 + $0x34] sm:$0xf] %v837
      %s866 = smul.u32 14, %s14
      %p867 = scmp.lt.s32.totalorder %s866, 97
      %s868 = scalar_select %p867, %s866, 97
      %s869 = smul.addr %s868, 4
      %s870 = scalar_lea.vmem %s3, %s869
      // Predicated region
      $region33: #{forward.4} parent=31 // pred_check
        %p871 = pneg %p100
      $region34: #{forward.4} parent=31 // pred_check_branch
        %873 = sbr.rel (%p871) target = $region36
      $region35: #{forward.4} parent=31 // pred_region
        %s874 = smul.u32 14, %s14
      $region36: #{forward.4} parent=31 // pred_fallthru
        _
    $region32: #{forward.4} parent=5 // pred_fallthru
      _
    %p875 = scmp.le.s32.totalorder 2, %s9
    // Predicated region
    $region37: #{forward.4} parent=5 // pred_check
      %p876 = pneg %p875
    $region38: #{forward.4} parent=5 // pred_check_branch
      %878 = sbr.rel (%p876) target = $region40
    $region39: #{forward.4} parent=5 // pred_region
      %s879 = ssub.s32 %s9, 2
      // Predicated region
      $region41: #{forward.4} parent=39 // pred_check
        %p880 = pneg %p106
      $region42: #{forward.4} parent=39 // pred_check_branch
        %882 = sbr.rel (%p880) target = $region44
      $region43: #{forward.4} parent=39 // pred_region
        %s883 = smul.u32 14, %s15
        %p884 = scmp.lt.s32.totalorder %s883, 97
        %s885 = scalar_select %p884, %s883, 97
        %s886 = smul.addr %s885, 4
        %s887 = scalar_lea.vmem %s3, %s886
      $region44: #{forward.4} parent=39 // pred_fallthru
        _
    $region40: #{forward.4} parent=5 // pred_fallthru
      _
  $region6: #{forward.4} parent=0 // loop_footer
    %s13 = sadd.s32 1, %s9
  $region7: #{forward.4} parent=0 // loop_footer_branch
    %8 = sbr.rel target = $region3
  $region8: #{forward.4} parent=0 // loop_exit
    _

// kernel: forward.5
$region0: #{forward.5}
  #allocation0 [shape = 'u32[]', space=smem, size = 0x4, offset = 0x4, fixed_abs, tag = 'smem constant byte address 0x4 - core index']
  #allocation1 [shape = 'u32[144,128]{1,0:T(1,128)}', space=vmem, size = 0x12000, scoped, tag = 'internal scratch']
  %s0 = inlined_call_operand.vmem [shape: bf16[90,8192], index: 0, kind: input, shape index: {}]
  %s1 = inlined_call_operand.vmem [shape: bf16[8192,128], index: 1, kind: input, shape index: {}]
  %s2 = inlined_call_operand.vmem [shape: f32[3,128], index: 2, kind: input, shape index: {}]
  %s3 = inlined_call_operand.vmem [shape: bf16[90,128], index: 3, kind: output, shape index: {}]
  %s4 = sld [smem:[#allocation0]]
  $region22: #{forward.5} parent=0
    _
  %s6 = ssub.s32 1, %s4
  %s7 = scalar_select 0, %s6, %s4
  // Predicated region
  $region2: #{forward.5} parent=0 // pred_check
    _
  $region3: #{forward.5} parent=0 // pred_check_branch
    %9 = sbr.rel (0) target = $region5
  $region4: #{forward.5} parent=0 // pred_region
    _
  $region5: #{forward.5} parent=0 // pred_fallthru
    _
  // Predicated region
  $region6: #{forward.5} parent=0 // pred_check
    _
  $region7: #{forward.5} parent=0 // pred_check_branch
    %11 = sbr.rel (0) target = $region9
  $region8: #{forward.5} parent=0 // pred_region
    _
  $region9: #{forward.5} parent=0 // pred_fallthru
    _
  // Predicated region
  $region10: #{forward.5} parent=0 // pred_check
    _
  $region11: #{forward.5} parent=0 // pred_check_branch
    %13 = sbr.rel (0) target = $region13
  $region12: #{forward.5} parent=0 // pred_region
    _
  $region13: #{forward.5} parent=0 // pred_fallthru
    _
  %v15 = vld [vmem:[%s0] sm:$0xff]
  %v16 = vld [vmem:[%s0 + $0x8] sm:$0xff]
  %v17 = vld [vmem:[%s0 + $0x10] sm:$0xff]
  %v18 = vld [vmem:[%s0 + $0x18] sm:$0xff]
  %v19 = vld [vmem:[%s0 + $0x20] sm:$0xff]
  %v20 = vld [vmem:[%s0 + $0x28] sm:$0xff]
  %v21 = vld [vmem:[%s0 + $0x30] sm:$0xff]
  %v22 = vld [vmem:[%s0 + $0x38] sm:$0xff]
  %v23 = vld [vmem:[%s0 + $0x40] sm:$0xff]
  %v24 = vld [vmem:[%s0 + $0x48] sm:$0xff]
  %v25 = vld [vmem:[%s0 + $0x50] sm:$0xff]
  %v26 = vld [vmem:[%s0 + $0x58] sm:$0xff]
  %v27 = vld [vmem:[%s0 + $0x60] sm:$0xff]
  %v28 = vld [vmem:[%s0 + $0x68] sm:$0xff]
  %v29 = vld [vmem:[%s0 + $0x70] sm:$0xff]
  %v30 = vld [vmem:[%s0 + $0x78] sm:$0xff]
  %v31 = vld [vmem:[%s0 + $0x80] sm:$0xff]
  %v32 = vld [vmem:[%s0 + $0x88] sm:$0xff]
  %v33 = vld [vmem:[%s0 + $0x90] sm:$0xff]
  %v34 = vld [vmem:[%s0 + $0x98] sm:$0xff]
  %v35 = vld [vmem:[%s0 + $0xa0] sm:$0xff]
  %v36 = vld [vmem:[%s0 + $0xa8] sm:$0xff]
  %v37 = vld [vmem:[%s0 + $0xb0] sm:$0xff]
  %v38 = vld [vmem:[%s0 + $0xb8] sm:$0xff]
  %v39 = vld [vmem:[%s0 + $0xc0] sm:$0xff]
  %v40 = vld [vmem:[%s0 + $0xc8] sm:$0xff]
  %v41 = vld [vmem:[%s0 + $0xd0] sm:$0xff]
  %v42 = vld [vmem:[%s0 + $0xd8] sm:$0xff]
  %v43 = vld [vmem:[%s0 + $0xe0] sm:$0xff]
  %v44 = vld [vmem:[%s0 + $0xe8] sm:$0xff]
  %v45 = vld [vmem:[%s0 + $0xf0] sm:$0xff]
  %v46 = vld [vmem:[%s0 + $0xf8] sm:$0xff]
  %v47 = vld [vmem:[%s0 + $0x100] sm:$0xff]
  %v48 = vld [vmem:[%s0 + $0x108] sm:$0xff]
  %v49 = vld [vmem:[%s0 + $0x110] sm:$0xff]
  %v50 = vld [vmem:[%s0 + $0x118] sm:$0xff]
  %v51 = vld [vmem:[%s0 + $0x120] sm:$0xff]
  %v52 = vld [vmem:[%s0 + $0x128] sm:$0xff]
  %v53 = vld [vmem:[%s0 + $0x130] sm:$0xff]
  %v54 = vld [vmem:[%s0 + $0x138] sm:$0xff]
  %v55 = vld [vmem:[%s0 + $0x140] sm:$0xff]
  %v56 = vld [vmem:[%s0 + $0x148] sm:$0xff]
  %v57 = vld [vmem:[%s0 + $0x150] sm:$0xff]
  %v58 = vld [vmem:[%s0 + $0x158] sm:$0xff]
  %v59 = vld [vmem:[%s0 + $0x160] sm:$0xff]
  %v60 = vld [vmem:[%s0 + $0x168] sm:$0xff]
  %v61 = vld [vmem:[%s0 + $0x170] sm:$0xff]
  %v62 = vld [vmem:[%s0 + $0x178] sm:$0xff]
  %v63 = vld [vmem:[%s0 + $0x180] sm:$0xff]
  %v64 = vld [vmem:[%s0 + $0x188] sm:$0xff]
  %v65 = vld [vmem:[%s0 + $0x190] sm:$0xff]
  %v66 = vld [vmem:[%s0 + $0x198] sm:$0xff]
  %v67 = vld [vmem:[%s0 + $0x1a0] sm:$0xff]
  %v68 = vld [vmem:[%s0 + $0x1a8] sm:$0xff]
  %v69 = vld [vmem:[%s0 + $0x1b0] sm:$0xff]
  %v70 = vld [vmem:[%s0 + $0x1b8] sm:$0xff]
  %v71 = vld [vmem:[%s0 + $0x1c0] sm:$0xff]
  %v72 = vld [vmem:[%s0 + $0x1c8] sm:$0xff]
  %v73 = vld [vmem:[%s0 + $0x1d0] sm:$0xff]
  %v74 = vld [vmem:[%s0 + $0x1d8] sm:$0xff]
  %v75 = vld [vmem:[%s0 + $0x1e0] sm:$0xff]
  %v76 = vld [vmem:[%s0 + $0x1e8] sm:$0xff]
  %v77 = vld [vmem:[%s0 + $0x1f0] sm:$0xff]
  %v78 = vld [vmem:[%s0 + $0x1f8] sm:$0xff]
  %v79 = vld [vmem:[%s0 + $0x200] sm:$0xff]
  %v80 = vld [vmem:[%s0 + $0x208] sm:$0xff]
  %v81 = vld [vmem:[%s0 + $0x210] sm:$0xff]
  %v82 = vld [vmem:[%s0 + $0x218] sm:$0xff]
  %v83 = vld [vmem:[%s0 + $0x220] sm:$0xff]
  %v84 = vld [vmem:[%s0 + $0x228] sm:$0xff]
  %v85 = vld [vmem:[%s0 + $0x230] sm:$0xff]
  %v86 = vld [vmem:[%s0 + $0x238] sm:$0xff]
  %v87 = vld [vmem:[%s0 + $0x240] sm:$0xff]
  %v88 = vld [vmem:[%s0 + $0x248] sm:$0xff]
  %v89 = vld [vmem:[%s0 + $0x250] sm:$0xff]
  %v90 = vld [vmem:[%s0 + $0x258] sm:$0xff]
  %v91 = vld [vmem:[%s0 + $0x260] sm:$0xff]
  %v92 = vld [vmem:[%s0 + $0x268] sm:$0xff]
  %v93 = vld [vmem:[%s0 + $0x270] sm:$0xff]
  %v94 = vld [vmem:[%s0 + $0x278] sm:$0xff]
  %v95 = vld [vmem:[%s0 + $0x280] sm:$0xff]
  %v96 = vld [vmem:[%s0 + $0x288] sm:$0xff]
  %v97 = vld [vmem:[%s0 + $0x290] sm:$0xff]
  %v98 = vld [vmem:[%s0 + $0x298] sm:$0xff]
  %v99 = vld [vmem:[%s0 + $0x2a0] sm:$0xff]
  %v100 = vld [vmem:[%s0 + $0x2a8] sm:$0xff]
  %v101 = vld [vmem:[%s0 + $0x2b0] sm:$0xff]
  %v102 = vld [vmem:[%s0 + $0x2b8] sm:$0xff]
  %v103 = vld [vmem:[%s0 + $0x2c0] sm:$0xff]
  %v104 = vld [vmem:[%s0 + $0x2c8] sm:$0xff]
  %v105 = vld [vmem:[%s0 + $0x2d0] sm:$0xff]
  %v106 = vld [vmem:[%s0 + $0x2d8] sm:$0xff]
  %v107 = vld [vmem:[%s0 + $0x2e0] sm:$0xff]
  %v108 = vld [vmem:[%s0 + $0x2e8] sm:$0xff]
  %v109 = vld [vmem:[%s0 + $0x2f0] sm:$0xff]
  %v110 = vld [vmem:[%s0 + $0x2f8] sm:$0xff]
  %v111 = vld [vmem:[%s0 + $0x300] sm:$0xff]
  %v112 = vld [vmem:[%s0 + $0x308] sm:$0xff]
  %v113 = vld [vmem:[%s0 + $0x310] sm:$0xff]
  %v114 = vld [vmem:[%s0 + $0x318] sm:$0xff]
  %v115 = vld [vmem:[%s0 + $0x320] sm:$0xff]
  %v116 = vld [vmem:[%s0 + $0x328] sm:$0xff]
  %v117 = vld [vmem:[%s0 + $0x330] sm:$0xff]
  %v118 = vld [vmem:[%s0 + $0x338] sm:$0xff]
  %v119 = vld [vmem:[%s0 + $0x340] sm:$0xff]
  %v120 = vld [vmem:[%s0 + $0x348] sm:$0xff]
  %v121 = vld [vmem:[%s0 + $0x350] sm:$0xff]
  %v122 = vld [vmem:[%s0 + $0x358] sm:$0xff]
  %v123 = vld [vmem:[%s0 + $0x360] sm:$0xff]
  %v124 = vld [vmem:[%s0 + $0x368] sm:$0xff]
  %v125 = vld [vmem:[%s0 + $0x370] sm:$0xff]
  %v126 = vld [vmem:[%s0 + $0x378] sm:$0xff]
  %v127 = vld [vmem:[%s0 + $0x380] sm:$0xff]
  %v128 = vld [vmem:[%s0 + $0x388] sm:$0xff]
  %v129 = vld [vmem:[%s0 + $0x390] sm:$0xff]
  %v130 = vld [vmem:[%s0 + $0x398] sm:$0xff]
  %v131 = vld [vmem:[%s0 + $0x3a0] sm:$0xff]
  %v132 = vld [vmem:[%s0 + $0x3a8] sm:$0xff]
  %v133 = vld [vmem:[%s0 + $0x3b0] sm:$0xff]
  %v134 = vld [vmem:[%s0 + $0x3b8] sm:$0xff]
  %v135 = vld [vmem:[%s0 + $0x3c0] sm:$0xff]
  %v136 = vld [vmem:[%s0 + $0x3c8] sm:$0xff]
  %v137 = vld [vmem:[%s0 + $0x3d0] sm:$0xff]
  %v138 = vld [vmem:[%s0 + $0x3d8] sm:$0xff]
  %v139 = vld [vmem:[%s0 + $0x3e0] sm:$0xff]
  %v140 = vld [vmem:[%s0 + $0x3e8] sm:$0xff]
  %v141 = vld [vmem:[%s0 + $0x3f0] sm:$0xff]
  %v142 = vld [vmem:[%s0 + $0x3f8] sm:$0xff]
  %v143 = vld [vmem:[%s0 + $0x400] sm:$0xff]
  %v144 = vld [vmem:[%s0 + $0x408] sm:$0xff]
  %v145 = vld [vmem:[%s0 + $0x410] sm:$0xff]
  %v146 = vld [vmem:[%s0 + $0x418] sm:$0xff]
  %v147 = vld [vmem:[%s0 + $0x420] sm:$0xff]
  %v148 = vld [vmem:[%s0 + $0x428] sm:$0xff]
  %v149 = vld [vmem:[%s0 + $0x430] sm:$0xff]
  %v150 = vld [vmem:[%s0 + $0x438] sm:$0xff]
  %v151 = vld [vmem:[%s0 + $0x440] sm:$0xff]
  %v152 = vld [vmem:[%s0 + $0x448] sm:$0xff]
  %v153 = vld [vmem:[%s0 + $0x450] sm:$0xff]
  %v154 = vld [vmem:[%s0 + $0x458] sm:$0xff]
  %v155 = vld [vmem:[%s0 + $0x460] sm:$0xff]
  %v156 = vld [vmem:[%s0 + $0x468] sm:$0xff]
  %v157 = vld [vmem:[%s0 + $0x470] sm:$0xff]
  %v158 = vld [vmem:[%s0 + $0x478] sm:$0xff]
  %v159 = vld [vmem:[%s0 + $0x480] sm:$0xff]
  %v160 = vld [vmem:[%s0 + $0x488] sm:$0xff]
  %v161 = vld [vmem:[%s0 + $0x490] sm:$0xff]
  %v162 = vld [vmem:[%s0 + $0x498] sm:$0xff]
  %v163 = vld [vmem:[%s0 + $0x4a0] sm:$0xff]
  %v164 = vld [vmem:[%s0 + $0x4a8] sm:$0xff]
  %v165 = vld [vmem:[%s0 + $0x4b0] sm:$0xff]
  %v166 = vld [vmem:[%s0 + $0x4b8] sm:$0xff]
  %v167 = vld [vmem:[%s0 + $0x4c0] sm:$0xff]
  %v168 = vld [vmem:[%s0 + $0x4c8] sm:$0xff]
  %v169 = vld [vmem:[%s0 + $0x4d0] sm:$0xff]
  %v170 = vld [vmem:[%s0 + $0x4d8] sm:$0xff]
  %v171 = vld [vmem:[%s0 + $0x4e0] sm:$0xff]
  %v172 = vld [vmem:[%s0 + $0x4e8] sm:$0xff]
  %v173 = vld [vmem:[%s0 + $0x4f0] sm:$0xff]
  %v174 = vld [vmem:[%s0 + $0x4f8] sm:$0xff]
  %v175 = vld [vmem:[%s0 + $0x500] sm:$0xff]
  %v176 = vld [vmem:[%s0 + $0x508] sm:$0xff]
  %v177 = vld [vmem:[%s0 + $0x510] sm:$0xff]
  %v178 = vld [vmem:[%s0 + $0x518] sm:$0xff]
  %v179 = vld [vmem:[%s0 + $0x520] sm:$0xff]
  %v180 = vld [vmem:[%s0 + $0x528] sm:$0xff]
  %v181 = vld [vmem:[%s0 + $0x530] sm:$0xff]
  %v182 = vld [vmem:[%s0 + $0x538] sm:$0xff]
  %v183 = vld [vmem:[%s0 + $0x540] sm:$0xff]
  %v184 = vld [vmem:[%s0 + $0x548] sm:$0xff]
  %v185 = vld [vmem:[%s0 + $0x550] sm:$0xff]
  %v186 = vld [vmem:[%s0 + $0x558] sm:$0xff]
  %v187 = vld [vmem:[%s0 + $0x560] sm:$0xff]
  %v188 = vld [vmem:[%s0 + $0x568] sm:$0xff]
  %v189 = vld [vmem:[%s0 + $0x570] sm:$0xff]
  %v190 = vld [vmem:[%s0 + $0x578] sm:$0xff]
  %v191 = vld [vmem:[%s0 + $0x580] sm:$0xff]
  %v192 = vld [vmem:[%s0 + $0x588] sm:$0xff]
  %v193 = vld [vmem:[%s0 + $0x590] sm:$0xff]
  %v194 = vld [vmem:[%s0 + $0x598] sm:$0xff]
  %v195 = vld [vmem:[%s0 + $0x5a0] sm:$0xff]
  %v196 = vld [vmem:[%s0 + $0x5a8] sm:$0xff]
  %v197 = vld [vmem:[%s0 + $0x5b0] sm:$0xff]
  %v198 = vld [vmem:[%s0 + $0x5b8] sm:$0xff]
  %v199 = vld [vmem:[%s0 + $0x5c0] sm:$0xff]
  %v200 = vld [vmem:[%s0 + $0x5c8] sm:$0xff]
  %v201 = vld [vmem:[%s0 + $0x5d0] sm:$0xff]
  %v202 = vld [vmem:[%s0 + $0x5d8] sm:$0xff]
  %v203 = vld [vmem:[%s0 + $0x5e0] sm:$0xff]
  %v204 = vld [vmem:[%s0 + $0x5e8] sm:$0xff]
  %v205 = vld [vmem:[%s0 + $0x5f0] sm:$0xff]
  %v206 = vld [vmem:[%s0 + $0x5f8] sm:$0xff]
  %v207 = vld [vmem:[%s0 + $0x600] sm:$0xff]
  %v208 = vld [vmem:[%s0 + $0x608] sm:$0xff]
  %v209 = vld [vmem:[%s0 + $0x610] sm:$0xff]
  %v210 = vld [vmem:[%s0 + $0x618] sm:$0xff]
  %v211 = vld [vmem:[%s0 + $0x620] sm:$0xff]
  %v212 = vld [vmem:[%s0 + $0x628] sm:$0xff]
  %v213 = vld [vmem:[%s0 + $0x630] sm:$0xff]
  %v214 = vld [vmem:[%s0 + $0x638] sm:$0xff]
  %v215 = vld [vmem:[%s0 + $0x640] sm:$0xff]
  %v216 = vld [vmem:[%s0 + $0x648] sm:$0xff]
  %v217 = vld [vmem:[%s0 + $0x650] sm:$0xff]
  %v218 = vld [vmem:[%s0 + $0x658] sm:$0xff]
  %v219 = vld [vmem:[%s0 + $0x660] sm:$0xff]
  %v220 = vld [vmem:[%s0 + $0x668] sm:$0xff]
  %v221 = vld [vmem:[%s0 + $0x670] sm:$0xff]
  %v222 = vld [vmem:[%s0 + $0x678] sm:$0xff]
  %v223 = vld [vmem:[%s0 + $0x680] sm:$0xff]
  %v224 = vld [vmem:[%s0 + $0x688] sm:$0xff]
  %v225 = vld [vmem:[%s0 + $0x690] sm:$0xff]
  %v226 = vld [vmem:[%s0 + $0x698] sm:$0xff]
  %v227 = vld [vmem:[%s0 + $0x6a0] sm:$0xff]
  %v228 = vld [vmem:[%s0 + $0x6a8] sm:$0xff]
  %v229 = vld [vmem:[%s0 + $0x6b0] sm:$0xff]
  %v230 = vld [vmem:[%s0 + $0x6b8] sm:$0xff]
  %v231 = vld [vmem:[%s0 + $0x6c0] sm:$0xff]
  %v232 = vld [vmem:[%s0 + $0x6c8] sm:$0xff]
  %v233 = vld [vmem:[%s0 + $0x6d0] sm:$0xff]
  %v234 = vld [vmem:[%s0 + $0x6d8] sm:$0xff]
  %v235 = vld [vmem:[%s0 + $0x6e0] sm:$0xff]
  %v236 = vld [vmem:[%s0 + $0x6e8] sm:$0xff]
  %v237 = vld [vmem:[%s0 + $0x6f0] sm:$0xff]
  %v238 = vld [vmem:[%s0 + $0x6f8] sm:$0xff]
  %v239 = vld [vmem:[%s0 + $0x700] sm:$0xff]
  %v240 = vld [vmem:[%s0 + $0x708] sm:$0xff]
  %v241 = vld [vmem:[%s0 + $0x710] sm:$0xff]
  %v242 = vld [vmem:[%s0 + $0x718] sm:$0xff]
  %v243 = vld [vmem:[%s0 + $0x720] sm:$0xff]
  %v244 = vld [vmem:[%s0 + $0x728] sm:$0xff]
  %v245 = vld [vmem:[%s0 + $0x730] sm:$0xff]
  %v246 = vld [vmem:[%s0 + $0x738] sm:$0xff]
  %v247 = vld [vmem:[%s0 + $0x740] sm:$0xff]
  %v248 = vld [vmem:[%s0 + $0x748] sm:$0xff]
  %v249 = vld [vmem:[%s0 + $0x750] sm:$0xff]
  %v250 = vld [vmem:[%s0 + $0x758] sm:$0xff]
  %v251 = vld [vmem:[%s0 + $0x760] sm:$0xff]
  %v252 = vld [vmem:[%s0 + $0x768] sm:$0xff]
  %v253 = vld [vmem:[%s0 + $0x770] sm:$0xff]
  %v254 = vld [vmem:[%s0 + $0x778] sm:$0xff]
  %v255 = vld [vmem:[%s0 + $0x780] sm:$0xff]
  %v256 = vld [vmem:[%s0 + $0x788] sm:$0xff]
  %v257 = vld [vmem:[%s0 + $0x790] sm:$0xff]
  %v258 = vld [vmem:[%s0 + $0x798] sm:$0xff]
  %v259 = vld [vmem:[%s0 + $0x7a0] sm:$0xff]
  %v260 = vld [vmem:[%s0 + $0x7a8] sm:$0xff]
  %v261 = vld [vmem:[%s0 + $0x7b0] sm:$0xff]
  %v262 = vld [vmem:[%s0 + $0x7b8] sm:$0xff]
  %v263 = vld [vmem:[%s0 + $0x7c0] sm:$0xff]
  %v264 = vld [vmem:[%s0 + $0x7c8] sm:$0xff]
  %v265 = vld [vmem:[%s0 + $0x7d0] sm:$0xff]
  %v266 = vld [vmem:[%s0 + $0x7d8] sm:$0xff]
  %v267 = vld [vmem:[%s0 + $0x7e0] sm:$0xff]
  %v268 = vld [vmem:[%s0 + $0x7e8] sm:$0xff]
  %v269 = vld [vmem:[%s0 + $0x7f0] sm:$0xff]
  %v270 = vld [vmem:[%s0 + $0x7f8] sm:$0xff]
  %v271 = vld [vmem:[%s0 + $0x800] sm:$0xff]
  %v272 = vld [vmem:[%s0 + $0x808] sm:$0xff]
  %v273 = vld [vmem:[%s0 + $0x810] sm:$0xff]
  %v274 = vld [vmem:[%s0 + $0x818] sm:$0xff]
  %v275 = vld [vmem:[%s0 + $0x820] sm:$0xff]
  %v276 = vld [vmem:[%s0 + $0x828] sm:$0xff]
  %v277 = vld [vmem:[%s0 + $0x830] sm:$0xff]
  %v278 = vld [vmem:[%s0 + $0x838] sm:$0xff]
  %v279 = vld [vmem:[%s0 + $0x840] sm:$0xff]
  %v280 = vld [vmem:[%s0 + $0x848] sm:$0xff]
  %v281 = vld [vmem:[%s0 + $0x850] sm:$0xff]
  %v282 = vld [vmem:[%s0 + $0x858] sm:$0xff]
  %v283 = vld [vmem:[%s0 + $0x860] sm:$0xff]
  %v284 = vld [vmem:[%s0 + $0x868] sm:$0xff]
  %v285 = vld [vmem:[%s0 + $0x870] sm:$0xff]
  %v286 = vld [vmem:[%s0 + $0x878] sm:$0xff]
  %v287 = vld [vmem:[%s0 + $0x880] sm:$0xff]
  %v288 = vld [vmem:[%s0 + $0x888] sm:$0xff]
  %v289 = vld [vmem:[%s0 + $0x890] sm:$0xff]
  %v290 = vld [vmem:[%s0 + $0x898] sm:$0xff]
  %v291 = vld [vmem:[%s0 + $0x8a0] sm:$0xff]
  %v292 = vld [vmem:[%s0 + $0x8a8] sm:$0xff]
  %v293 = vld [vmem:[%s0 + $0x8b0] sm:$0xff]
  %v294 = vld [vmem:[%s0 + $0x8b8] sm:$0xff]
  %v295 = vld [vmem:[%s0 + $0x8c0] sm:$0xff]
  %v296 = vld [vmem:[%s0 + $0x8c8] sm:$0xff]
  %v297 = vld [vmem:[%s0 + $0x8d0] sm:$0xff]
  %v298 = vld [vmem:[%s0 + $0x8d8] sm:$0xff]
  %v299 = vld [vmem:[%s0 + $0x8e0] sm:$0xff]
  %v300 = vld [vmem:[%s0 + $0x8e8] sm:$0xff]
  %v301 = vld [vmem:[%s0 + $0x8f0] sm:$0xff]
  %v302 = vld [vmem:[%s0 + $0x8f8] sm:$0xff]
  %v303 = vld [vmem:[%s0 + $0x900] sm:$0xff]
  %v304 = vld [vmem:[%s0 + $0x908] sm:$0xff]
  %v305 = vld [vmem:[%s0 + $0x910] sm:$0xff]
  %v306 = vld [vmem:[%s0 + $0x918] sm:$0xff]
  %v307 = vld [vmem:[%s0 + $0x920] sm:$0xff]
  %v308 = vld [vmem:[%s0 + $0x928] sm:$0xff]
  %v309 = vld [vmem:[%s0 + $0x930] sm:$0xff]
  %v310 = vld [vmem:[%s0 + $0x938] sm:$0xff]
  %v311 = vld [vmem:[%s0 + $0x940] sm:$0xff]
  %v312 = vld [vmem:[%s0 + $0x948] sm:$0xff]
  %v313 = vld [vmem:[%s0 + $0x950] sm:$0xff]
  %v314 = vld [vmem:[%s0 + $0x958] sm:$0xff]
  %v315 = vld [vmem:[%s0 + $0x960] sm:$0xff]
  %v316 = vld [vmem:[%s0 + $0x968] sm:$0xff]
  %v317 = vld [vmem:[%s0 + $0x970] sm:$0xff]
  %v318 = vld [vmem:[%s0 + $0x978] sm:$0xff]
  %v319 = vld [vmem:[%s0 + $0x980] sm:$0xff]
  %v320 = vld [vmem:[%s0 + $0x988] sm:$0xff]
  %v321 = vld [vmem:[%s0 + $0x990] sm:$0xff]
  %v322 = vld [vmem:[%s0 + $0x998] sm:$0xff]
  %v323 = vld [vmem:[%s0 + $0x9a0] sm:$0xff]
  %v324 = vld [vmem:[%s0 + $0x9a8] sm:$0xff]
  %v325 = vld [vmem:[%s0 + $0x9b0] sm:$0xff]
  %v326 = vld [vmem:[%s0 + $0x9b8] sm:$0xff]
  %v327 = vld [vmem:[%s0 + $0x9c0] sm:$0xff]
  %v328 = vld [vmem:[%s0 + $0x9c8] sm:$0xff]
  %v329 = vld [vmem:[%s0 + $0x9d0] sm:$0xff]
  %v330 = vld [vmem:[%s0 + $0x9d8] sm:$0xff]
  %v331 = vld [vmem:[%s0 + $0x9e0] sm:$0xff]
  %v332 = vld [vmem:[%s0 + $0x9e8] sm:$0xff]
  %v333 = vld [vmem:[%s0 + $0x9f0] sm:$0xff]
  %v334 = vld [vmem:[%s0 + $0x9f8] sm:$0xff]
  %v335 = vld [vmem:[%s0 + $0xa00] sm:$0xff]
  %v336 = vld [vmem:[%s0 + $0xa08] sm:$0xff]
  %v337 = vld [vmem:[%s0 + $0xa10] sm:$0xff]
  %v338 = vld [vmem:[%s0 + $0xa18] sm:$0xff]
  %v339 = vld [vmem:[%s0 + $0xa20] sm:$0xff]
  %v340 = vld [vmem:[%s0 + $0xa28] sm:$0xff]
  %v341 = vld [vmem:[%s0 + $0xa30] sm:$0xff]
  %v342 = vld [vmem:[%s0 + $0xa38] sm:$0xff]
  %v343 = vld [vmem:[%s0 + $0xa40] sm:$0xff]
  %v344 = vld [vmem:[%s0 + $0xa48] sm:$0xff]
  %v345 = vld [vmem:[%s0 + $0xa50] sm:$0xff]
  %v346 = vld [vmem:[%s0 + $0xa58] sm:$0xff]
  %v347 = vld [vmem:[%s0 + $0xa60] sm:$0xff]
  %v348 = vld [vmem:[%s0 + $0xa68] sm:$0xff]
  %v349 = vld [vmem:[%s0 + $0xa70] sm:$0xff]
  %v350 = vld [vmem:[%s0 + $0xa78] sm:$0xff]
  %v351 = vld [vmem:[%s0 + $0xa80] sm:$0xff]
  %v352 = vld [vmem:[%s0 + $0xa88] sm:$0xff]
  %v353 = vld [vmem:[%s0 + $0xa90] sm:$0xff]
  %v354 = vld [vmem:[%s0 + $0xa98] sm:$0xff]
  %v355 = vld [vmem:[%s0 + $0xaa0] sm:$0xff]
  %v356 = vld [vmem:[%s0 + $0xaa8] sm:$0xff]
  %v357 = vld [vmem:[%s0 + $0xab0] sm:$0xff]
  %v358 = vld [vmem:[%s0 + $0xab8] sm:$0xff]
  %v359 = vld [vmem:[%s0 + $0xac0] sm:$0xff]
  %v360 = vld [vmem:[%s0 + $0xac8] sm:$0xff]
  %v361 = vld [vmem:[%s0 + $0xad0] sm:$0xff]
  %v362 = vld [vmem:[%s0 + $0xad8] sm:$0xff]
  %v363 = vld [vmem:[%s0 + $0xae0] sm:$0xff]
  %v364 = vld [vmem:[%s0 + $0xae8] sm:$0xff]
  %v365 = vld [vmem:[%s0 + $0xaf0] sm:$0xff]
  %v366 = vld [vmem:[%s0 + $0xaf8] sm:$0xff]
  %v367 = vld [vmem:[%s0 + $0xb00] sm:$0x11]
  %v368 = vld [vmem:[%s0 + $0xb08] sm:$0x11]
  %v369 = vld [vmem:[%s0 + $0xb10] sm:$0x11]
  %v370 = vld [vmem:[%s0 + $0xb18] sm:$0x11]
  %v371 = vld [vmem:[%s0 + $0xb20] sm:$0x11]
  %v372 = vld [vmem:[%s0 + $0xb28] sm:$0x11]
  %v373 = vld [vmem:[%s0 + $0xb30] sm:$0x11]
  %v374 = vld [vmem:[%s0 + $0xb38] sm:$0x11]
  %v375 = vld [vmem:[%s0 + $0xb40] sm:$0x11]
  %v376 = vld [vmem:[%s0 + $0xb48] sm:$0x11]
  %v377 = vld [vmem:[%s0 + $0xb50] sm:$0x11]
  %v378 = vld [vmem:[%s0 + $0xb58] sm:$0x11]
  %v379 = vld [vmem:[%s0 + $0xb60] sm:$0x11]
  %v380 = vld [vmem:[%s0 + $0xb68] sm:$0x11]
  %v381 = vld [vmem:[%s0 + $0xb70] sm:$0x11]
  %v382 = vld [vmem:[%s0 + $0xb78] sm:$0x11]
  %v383 = vld [vmem:[%s0 + $0xb80] sm:$0x11]
  %v384 = vld [vmem:[%s0 + $0xb88] sm:$0x11]
  %v385 = vld [vmem:[%s0 + $0xb90] sm:$0x11]
  %v386 = vld [vmem:[%s0 + $0xb98] sm:$0x11]
  %v387 = vld [vmem:[%s0 + $0xba0] sm:$0x11]
  %v388 = vld [vmem:[%s0 + $0xba8] sm:$0x11]
  %v389 = vld [vmem:[%s0 + $0xbb0] sm:$0x11]
  %v390 = vld [vmem:[%s0 + $0xbb8] sm:$0x11]
  %v391 = vld [vmem:[%s0 + $0xbc0] sm:$0x11]
  %v392 = vld [vmem:[%s0 + $0xbc8] sm:$0x11]
  %v393 = vld [vmem:[%s0 + $0xbd0] sm:$0x11]
  %v394 = vld [vmem:[%s0 + $0xbd8] sm:$0x11]
  %v395 = vld [vmem:[%s0 + $0xbe0] sm:$0x11]
  %v396 = vld [vmem:[%s0 + $0xbe8] sm:$0x11]
  %v397 = vld [vmem:[%s0 + $0xbf0] sm:$0x11]
  %v398 = vld [vmem:[%s0 + $0xbf8] sm:$0x11]
  %v399 = vld [vmem:[%s1] sm:$0xf]
  %v400 = vld [vmem:[%s1 + $0x4] sm:$0xf]
  %v401 = vld [vmem:[%s1 + $0x8] sm:$0xf]
  %v402 = vld [vmem:[%s1 + $0xc] sm:$0xf]
  %v403 = vld [vmem:[%s1 + $0x10] sm:$0xf]
  %v404 = vld [vmem:[%s1 + $0x14] sm:$0xf]
  %v405 = vld [vmem:[%s1 + $0x18] sm:$0xf]
  %v406 = vld [vmem:[%s1 + $0x1c] sm:$0xf]
  %v407 = vld [vmem:[%s1 + $0x20] sm:$0xf]
  %v408 = vld [vmem:[%s1 + $0x24] sm:$0xf]
  %v409 = vld [vmem:[%s1 + $0x28] sm:$0xf]
  %v410 = vld [vmem:[%s1 + $0x2c] sm:$0xf]
  %v411 = vld [vmem:[%s1 + $0x30] sm:$0xf]
  %v412 = vld [vmem:[%s1 + $0x34] sm:$0xf]
  %v413 = vld [vmem:[%s1 + $0x38] sm:$0xf]
  %v414 = vld [vmem:[%s1 + $0x3c] sm:$0xf]
  %v415 = vld [vmem:[%s1 + $0x40] sm:$0xf]
  %v416 = vld [vmem:[%s1 + $0x44] sm:$0xf]
  %v417 = vld [vmem:[%s1 + $0x48] sm:$0xf]
  %v418 = vld [vmem:[%s1 + $0x4c] sm:$0xf]
  %v419 = vld [vmem:[%s1 + $0x50] sm:$0xf]
  %v420 = vld [vmem:[%s1 + $0x54] sm:$0xf]
  %v421 = vld [vmem:[%s1 + $0x58] sm:$0xf]
  %v422 = vld [vmem:[%s1 + $0x5c] sm:$0xf]
  %v423 = vld [vmem:[%s1 + $0x60] sm:$0xf]
  %v424 = vld [vmem:[%s1 + $0x64] sm:$0xf]
  %v425 = vld [vmem:[%s1 + $0x68] sm:$0xf]
  %v426 = vld [vmem:[%s1 + $0x6c] sm:$0xf]
  %v427 = vld [vmem:[%s1 + $0x70] sm:$0xf]
  %v428 = vld [vmem:[%s1 + $0x74] sm:$0xf]
  %v429 = vld [vmem:[%s1 + $0x78] sm:$0xf]
  %v430 = vld [vmem:[%s1 + $0x7c] sm:$0xf]
  %v431 = vld [vmem:[%s1 + $0x80] sm:$0xf]
  %v432 = vld [vmem:[%s1 + $0x84] sm:$0xf]
  %v433 = vld [vmem:[%s1 + $0x88] sm:$0xf]
  %v434 = vld [vmem:[%s1 + $0x8c] sm:$0xf]
  %v435 = vld [vmem:[%s1 + $0x90] sm:$0xf]
  %v436 = vld [vmem:[%s1 + $0x94] sm:$0xf]
  %v437 = vld [vmem:[%s1 + $0x98] sm:$0xf]
  %v438 = vld [vmem:[%s1 + $0x9c] sm:$0xf]
  %v439 = vld [vmem:[%s1 + $0xa0] sm:$0xf]
  %v440 = vld [vmem:[%s1 + $0xa4] sm:$0xf]
  %v441 = vld [vmem:[%s1 + $0xa8] sm:$0xf]
  %v442 = vld [vmem:[%s1 + $0xac] sm:$0xf]
  %v443 = vld [vmem:[%s1 + $0xb0] sm:$0xf]
  %v444 = vld [vmem:[%s1 + $0xb4] sm:$0xf]
  %v445 = vld [vmem:[%s1 + $0xb8] sm:$0xf]
  %v446 = vld [vmem:[%s1 + $0xbc] sm:$0xf]
  %v447 = vld [vmem:[%s1 + $0xc0] sm:$0xf]
  %v448 = vld [vmem:[%s1 + $0xc4] sm:$0xf]
  %v449 = vld [vmem:[%s1 + $0xc8] sm:$0xf]
  %v450 = vld [vmem:[%s1 + $0xcc] sm:$0xf]
  %v451 = vld [vmem:[%s1 + $0xd0] sm:$0xf]
  %v452 = vld [vmem:[%s1 + $0xd4] sm:$0xf]
  %v453 = vld [vmem:[%s1 + $0xd8] sm:$0xf]
  %v454 = vld [vmem:[%s1 + $0xdc] sm:$0xf]
  %v455 = vld [vmem:[%s1 + $0xe0] sm:$0xf]
  %v456 = vld [vmem:[%s1 + $0xe4] sm:$0xf]
  %v457 = vld [vmem:[%s1 + $0xe8] sm:$0xf]
  %v458 = vld [vmem:[%s1 + $0xec] sm:$0xf]
  %v459 = vld [vmem:[%s1 + $0xf0] sm:$0xf]
  %v460 = vld [vmem:[%s1 + $0xf4] sm:$0xf]
  %v461 = vld [vmem:[%s1 + $0xf8] sm:$0xf]
  %v462 = vld [vmem:[%s1 + $0xfc] sm:$0xf]
  %v463 = vld [vmem:[%s1 + $0x100] sm:$0xf]
  %v464 = vld [vmem:[%s1 + $0x104] sm:$0xf]
  %v465 = vld [vmem:[%s1 + $0x108] sm:$0xf]
  %v466 = vld [vmem:[%s1 + $0x10c] sm:$0xf]
  %v467 = vld [vmem:[%s1 + $0x110] sm:$0xf]
  %v468 = vld [vmem:[%s1 + $0x114] sm:$0xf]
  %v469 = vld [vmem:[%s1 + $0x118] sm:$0xf]
  %v470 = vld [vmem:[%s1 + $0x11c] sm:$0xf]
  %v471 = vld [vmem:[%s1 + $0x120] sm:$0xf]
  %v472 = vld [vmem:[%s1 + $0x124] sm:$0xf]
  %v473 = vld [vmem:[%s1 + $0x128] sm:$0xf]
  %v474 = vld [vmem:[%s1 + $0x12c] sm:$0xf]
  %v475 = vld [vmem:[%s1 + $0x130] sm:$0xf]
  %v476 = vld [vmem:[%s1 + $0x134] sm:$0xf]
  %v477 = vld [vmem:[%s1 + $0x138] sm:$0xf]
  %v478 = vld [vmem:[%s1 + $0x13c] sm:$0xf]
  %v479 = vld [vmem:[%s1 + $0x140] sm:$0xf]
  %v480 = vld [vmem:[%s1 + $0x144] sm:$0xf]
  %v481 = vld [vmem:[%s1 + $0x148] sm:$0xf]
  %v482 = vld [vmem:[%s1 + $0x14c] sm:$0xf]
  %v483 = vld [vmem:[%s1 + $0x150] sm:$0xf]
  %v484 = vld [vmem:[%s1 + $0x154] sm:$0xf]
  %v485 = vld [vmem:[%s1 + $0x158] sm:$0xf]
  %v486 = vld [vmem:[%s1 + $0x15c] sm:$0xf]
  %v487 = vld [vmem:[%s1 + $0x160] sm:$0xf]
  %v488 = vld [vmem:[%s1 + $0x164] sm:$0xf]
  %v489 = vld [vmem:[%s1 + $0x168] sm:$0xf]
  %v490 = vld [vmem:[%s1 + $0x16c] sm:$0xf]
  %v491 = vld [vmem:[%s1 + $0x170] sm:$0xf]
  %v492 = vld [vmem:[%s1 + $0x174] sm:$0xf]
  %v493 = vld [vmem:[%s1 + $0x178] sm:$0xf]
  %v494 = vld [vmem:[%s1 + $0x17c] sm:$0xf]
  %v495 = vld [vmem:[%s1 + $0x180] sm:$0xf]
  %v496 = vld [vmem:[%s1 + $0x184] sm:$0xf]
  %v497 = vld [vmem:[%s1 + $0x188] sm:$0xf]
  %v498 = vld [vmem:[%s1 + $0x18c] sm:$0xf]
  %v499 = vld [vmem:[%s1 + $0x190] sm:$0xf]
  %v500 = vld [vmem:[%s1 + $0x194] sm:$0xf]
  %v501 = vld [vmem:[%s1 + $0x198] sm:$0xf]
  %v502 = vld [vmem:[%s1 + $0x19c] sm:$0xf]
  %v503 = vld [vmem:[%s1 + $0x1a0] sm:$0xf]
  %v504 = vld [vmem:[%s1 + $0x1a4] sm:$0xf]
  %v505 = vld [vmem:[%s1 + $0x1a8] sm:$0xf]
  %v506 = vld [vmem:[%s1 + $0x1ac] sm:$0xf]
  %v507 = vld [vmem:[%s1 + $0x1b0] sm:$0xf]
  %v508 = vld [vmem:[%s1 + $0x1b4] sm:$0xf]
  %v509 = vld [vmem:[%s1 + $0x1b8] sm:$0xf]
  %v510 = vld [vmem:[%s1 + $0x1bc] sm:$0xf]
  %v511 = vld [vmem:[%s1 + $0x1c0] sm:$0xf]
  %v512 = vld [vmem:[%s1 + $0x1c4] sm:$0xf]
  %v513 = vld [vmem:[%s1 + $0x1c8] sm:$0xf]
  %v514 = vld [vmem:[%s1 + $0x1cc] sm:$0xf]
  %v515 = vld [vmem:[%s1 + $0x1d0] sm:$0xf]
  %v516 = vld [vmem:[%s1 + $0x1d4] sm:$0xf]
  %v517 = vld [vmem:[%s1 + $0x1d8] sm:$0xf]
  %v518 = vld [vmem:[%s1 + $0x1dc] sm:$0xf]
  %v519 = vld [vmem:[%s1 + $0x1e0] sm:$0xf]
  %v520 = vld [vmem:[%s1 + $0x1e4] sm:$0xf]
  %v521 = vld [vmem:[%s1 + $0x1e8] sm:$0xf]
  %v522 = vld [vmem:[%s1 + $0x1ec] sm:$0xf]
  %v523 = vld [vmem:[%s1 + $0x1f0] sm:$0xf]
  %v524 = vld [vmem:[%s1 + $0x1f4] sm:$0xf]
  %v525 = vld [vmem:[%s1 + $0x1f8] sm:$0xf]
  %v526 = vld [vmem:[%s1 + $0x1fc] sm:$0xf]
  %v527 = vld [vmem:[%s1 + $0x200] sm:$0xf]
  %v528 = vld [vmem:[%s1 + $0x204] sm:$0xf]
  %v529 = vld [vmem:[%s1 + $0x208] sm:$0xf]
  %v530 = vld [vmem:[%s1 + $0x20c] sm:$0xf]
  %v531 = vld [vmem:[%s1 + $0x210] sm:$0xf]
  %v532 = vld [vmem:[%s1 + $0x214] sm:$0xf]
  %v533 = vld [vmem:[%s1 + $0x218] sm:$0xf]
  %v534 = vld [vmem:[%s1 + $0x21c] sm:$0xf]
  %v535 = vld [vmem:[%s1 + $0x220] sm:$0xf]
  %v536 = vld [vmem:[%s1 + $0x224] sm:$0xf]
  %v537 = vld [vmem:[%s1 + $0x228] sm:$0xf]
  %v538 = vld [vmem:[%s1 + $0x22c] sm:$0xf]
  %v539 = vld [vmem:[%s1 + $0x230] sm:$0xf]
  %v540 = vld [vmem:[%s1 + $0x234] sm:$0xf]
  %v541 = vld [vmem:[%s1 + $0x238] sm:$0xf]
  %v542 = vld [vmem:[%s1 + $0x23c] sm:$0xf]
  %v543 = vld [vmem:[%s1 + $0x240] sm:$0xf]
  %v544 = vld [vmem:[%s1 + $0x244] sm:$0xf]
  %v545 = vld [vmem:[%s1 + $0x248] sm:$0xf]
  %v546 = vld [vmem:[%s1 + $0x24c] sm:$0xf]
  %v547 = vld [vmem:[%s1 + $0x250] sm:$0xf]
  %v548 = vld [vmem:[%s1 + $0x254] sm:$0xf]
  %v549 = vld [vmem:[%s1 + $0x258] sm:$0xf]
  %v550 = vld [vmem:[%s1 + $0x25c] sm:$0xf]
  %v551 = vld [vmem:[%s1 + $0x260] sm:$0xf]
  %v552 = vld [vmem:[%s1 + $0x264] sm:$0xf]
  %v553 = vld [vmem:[%s1 + $0x268] sm:$0xf]
  %v554 = vld [vmem:[%s1 + $0x26c] sm:$0xf]
  %v555 = vld [vmem:[%s1 + $0x270] sm:$0xf]
  %v556 = vld [vmem:[%s1 + $0x274] sm:$0xf]
  %v557 = vld [vmem:[%s1 + $0x278] sm:$0xf]
  %v558 = vld [vmem:[%s1 + $0x27c] sm:$0xf]
  %v559 = vld [vmem:[%s1 + $0x280] sm:$0xf]
  %v560 = vld [vmem:[%s1 + $0x284] sm:$0xf]
  %v561 = vld [vmem:[%s1 + $0x288] sm:$0xf]
  %v562 = vld [vmem:[%s1 + $0x28c] sm:$0xf]
  %v563 = vld [vmem:[%s1 + $0x290] sm:$0xf]
  %v564 = vld [vmem:[%s1 + $0x294] sm:$0xf]
  %v565 = vld [vmem:[%s1 + $0x298] sm:$0xf]
  %v566 = vld [vmem:[%s1 + $0x29c] sm:$0xf]
  %v567 = vld [vmem:[%s1 + $0x2a0] sm:$0xf]
  %v568 = vld [vmem:[%s1 + $0x2a4] sm:$0xf]
  %v569 = vld [vmem:[%s1 + $0x2a8] sm:$0xf]
  %v570 = vld [vmem:[%s1 + $0x2ac] sm:$0xf]
  %v571 = vld [vmem:[%s1 + $0x2b0] sm:$0xf]
  %v572 = vld [vmem:[%s1 + $0x2b4] sm:$0xf]
  %v573 = vld [vmem:[%s1 + $0x2b8] sm:$0xf]
  %v574 = vld [vmem:[%s1 + $0x2bc] sm:$0xf]
  %v575 = vld [vmem:[%s1 + $0x2c0] sm:$0xf]
  %v576 = vld [vmem:[%s1 + $0x2c4] sm:$0xf]
  %v577 = vld [vmem:[%s1 + $0x2c8] sm:$0xf]
  %v578 = vld [vmem:[%s1 + $0x2cc] sm:$0xf]
  %v579 = vld [vmem:[%s1 + $0x2d0] sm:$0xf]
  %v580 = vld [vmem:[%s1 + $0x2d4] sm:$0xf]
  %v581 = vld [vmem:[%s1 + $0x2d8] sm:$0xf]
  %v582 = vld [vmem:[%s1 + $0x2dc] sm:$0xf]
  %v583 = vld [vmem:[%s1 + $0x2e0] sm:$0xf]
  %v584 = vld [vmem:[%s1 + $0x2e4] sm:$0xf]
  %v585 = vld [vmem:[%s1 + $0x2e8] sm:$0xf]
  %v586 = vld [vmem:[%s1 + $0x2ec] sm:$0xf]
  %v587 = vld [vmem:[%s1 + $0x2f0] sm:$0xf]
  %v588 = vld [vmem:[%s1 + $0x2f4] sm:$0xf]
  %v589 = vld [vmem:[%s1 + $0x2f8] sm:$0xf]
  %v590 = vld [vmem:[%s1 + $0x2fc] sm:$0xf]
  %v591 = vld [vmem:[%s1 + $0x300] sm:$0xf]
  %v592 = vld [vmem:[%s1 + $0x304] sm:$0xf]
  %v593 = vld [vmem:[%s1 + $0x308] sm:$0xf]
  %v594 = vld [vmem:[%s1 + $0x30c] sm:$0xf]
  %v595 = vld [vmem:[%s1 + $0x310] sm:$0xf]
  %v596 = vld [vmem:[%s1 + $0x314] sm:$0xf]
  %v597 = vld [vmem:[%s1 + $0x318] sm:$0xf]
  %v598 = vld [vmem:[%s1 + $0x31c] sm:$0xf]
  %v599 = vld [vmem:[%s1 + $0x320] sm:$0xf]
  %v600 = vld [vmem:[%s1 + $0x324] sm:$0xf]
  %v601 = vld [vmem:[%s1 + $0x328] sm:$0xf]
  %v602 = vld [vmem:[%s1 + $0x32c] sm:$0xf]
  %v603 = vld [vmem:[%s1 + $0x330] sm:$0xf]
  %v604 = vld [vmem:[%s1 + $0x334] sm:$0xf]
  %v605 = vld [vmem:[%s1 + $0x338] sm:$0xf]
  %v606 = vld [vmem:[%s1 + $0x33c] sm:$0xf]
  %v607 = vld [vmem:[%s1 + $0x340] sm:$0xf]
  %v608 = vld [vmem:[%s1 + $0x344] sm:$0xf]
  %v609 = vld [vmem:[%s1 + $0x348] sm:$0xf]
  %v610 = vld [vmem:[%s1 + $0x34c] sm:$0xf]
  %v611 = vld [vmem:[%s1 + $0x350] sm:$0xf]
  %v612 = vld [vmem:[%s1 + $0x354] sm:$0xf]
  %v613 = vld [vmem:[%s1 + $0x358] sm:$0xf]
  %v614 = vld [vmem:[%s1 + $0x35c] sm:$0xf]
  %v615 = vld [vmem:[%s1 + $0x360] sm:$0xf]
  %v616 = vld [vmem:[%s1 + $0x364] sm:$0xf]
  %v617 = vld [vmem:[%s1 + $0x368] sm:$0xf]
  %v618 = vld [vmem:[%s1 + $0x36c] sm:$0xf]
  %v619 = vld [vmem:[%s1 + $0x370] sm:$0xf]
  %v620 = vld [vmem:[%s1 + $0x374] sm:$0xf]
  %v621 = vld [vmem:[%s1 + $0x378] sm:$0xf]
  %v622 = vld [vmem:[%s1 + $0x37c] sm:$0xf]
  %v623 = vld [vmem:[%s1 + $0x380] sm:$0xf]
  %v624 = vld [vmem:[%s1 + $0x384] sm:$0xf]
  %v625 = vld [vmem:[%s1 + $0x388] sm:$0xf]
  %v626 = vld [vmem:[%s1 + $0x38c] sm:$0xf]
  %v627 = vld [vmem:[%s1 + $0x390] sm:$0xf]
  %v628 = vld [vmem:[%s1 + $0x394] sm:$0xf]
  %v629 = vld [vmem:[%s1 + $0x398] sm:$0xf]
  %v630 = vld [vmem:[%s1 + $0x39c] sm:$0xf]
  %v631 = vld [vmem:[%s1 + $0x3a0] sm:$0xf]
  %v632 = vld [vmem:[%s1 + $0x3a4] sm:$0xf]
  %v633 = vld [vmem:[%s1 + $0x3a8] sm:$0xf]
  %v634 = vld [vmem:[%s1 + $0x3ac] sm:$0xf]
  %v635 = vld [vmem:[%s1 + $0x3b0] sm:$0xf]
  %v636 = vld [vmem:[%s1 + $0x3b4] sm:$0xf]
  %v637 = vld [vmem:[%s1 + $0x3b8] sm:$0xf]
  %v638 = vld [vmem:[%s1 + $0x3bc] sm:$0xf]
  %v639 = vld [vmem:[%s1 + $0x3c0] sm:$0xf]
  %v640 = vld [vmem:[%s1 + $0x3c4] sm:$0xf]
  %v641 = vld [vmem:[%s1 + $0x3c8] sm:$0xf]
  %v642 = vld [vmem:[%s1 + $0x3cc] sm:$0xf]
  %v643 = vld [vmem:[%s1 + $0x3d0] sm:$0xf]
  %v644 = vld [vmem:[%s1 + $0x3d4] sm:$0xf]
  %v645 = vld [vmem:[%s1 + $0x3d8] sm:$0xf]
  %v646 = vld [vmem:[%s1 + $0x3dc] sm:$0xf]
  %v647 = vld [vmem:[%s1 + $0x3e0] sm:$0xf]
  %v648 = vld [vmem:[%s1 + $0x3e4] sm:$0xf]
  %v649 = vld [vmem:[%s1 + $0x3e8] sm:$0xf]
  %v650 = vld [vmem:[%s1 + $0x3ec] sm:$0xf]
  %v651 = vld [vmem:[%s1 + $0x3f0] sm:$0xf]
  %v652 = vld [vmem:[%s1 + $0x3f4] sm:$0xf]
  %v653 = vld [vmem:[%s1 + $0x3f8] sm:$0xf]
  %v654 = vld [vmem:[%s1 + $0x3fc] sm:$0xf]
  %v655 = vld [vmem:[%s1 + $0x400] sm:$0xf]
  %v656 = vld [vmem:[%s1 + $0x404] sm:$0xf]
  %v657 = vld [vmem:[%s1 + $0x408] sm:$0xf]
  %v658 = vld [vmem:[%s1 + $0x40c] sm:$0xf]
  %v659 = vld [vmem:[%s1 + $0x410] sm:$0xf]
  %v660 = vld [vmem:[%s1 + $0x414] sm:$0xf]
  %v661 = vld [vmem:[%s1 + $0x418] sm:$0xf]
  %v662 = vld [vmem:[%s1 + $0x41c] sm:$0xf]
  %v663 = vld [vmem:[%s1 + $0x420] sm:$0xf]
  %v664 = vld [vmem:[%s1 + $0x424] sm:$0xf]
  %v665 = vld [vmem:[%s1 + $0x428] sm:$0xf]
  %v666 = vld [vmem:[%s1 + $0x42c] sm:$0xf]
  %v667 = vld [vmem:[%s1 + $0x430] sm:$0xf]
  %v668 = vld [vmem:[%s1 + $0x434] sm:$0xf]
  %v669 = vld [vmem:[%s1 + $0x438] sm:$0xf]
  %v670 = vld [vmem:[%s1 + $0x43c] sm:$0xf]
  %v671 = vld [vmem:[%s1 + $0x440] sm:$0xf]
  %v672 = vld [vmem:[%s1 + $0x444] sm:$0xf]
  %v673 = vld [vmem:[%s1 + $0x448] sm:$0xf]
  %v674 = vld [vmem:[%s1 + $0x44c] sm:$0xf]
  %v675 = vld [vmem:[%s1 + $0x450] sm:$0xf]
  %v676 = vld [vmem:[%s1 + $0x454] sm:$0xf]
  %v677 = vld [vmem:[%s1 + $0x458] sm:$0xf]
  %v678 = vld [vmem:[%s1 + $0x45c] sm:$0xf]
  %v679 = vld [vmem:[%s1 + $0x460] sm:$0xf]
  %v680 = vld [vmem:[%s1 + $0x464] sm:$0xf]
  %v681 = vld [vmem:[%s1 + $0x468] sm:$0xf]
  %v682 = vld [vmem:[%s1 + $0x46c] sm:$0xf]
  %v683 = vld [vmem:[%s1 + $0x470] sm:$0xf]
  %v684 = vld [vmem:[%s1 + $0x474] sm:$0xf]
  %v685 = vld [vmem:[%s1 + $0x478] sm:$0xf]
  %v686 = vld [vmem:[%s1 + $0x47c] sm:$0xf]
  %v687 = vld [vmem:[%s1 + $0x480] sm:$0xf]
  %v688 = vld [vmem:[%s1 + $0x484] sm:$0xf]
  %v689 = vld [vmem:[%s1 + $0x488] sm:$0xf]
  %v690 = vld [vmem:[%s1 + $0x48c] sm:$0xf]
  %v691 = vld [vmem:[%s1 + $0x490] sm:$0xf]
  %v692 = vld [vmem:[%s1 + $0x494] sm:$0xf]
  %v693 = vld [vmem:[%s1 + $0x498] sm:$0xf]
  %v694 = vld [vmem:[%s1 + $0x49c] sm:$0xf]
  %v695 = vld [vmem:[%s1 + $0x4a0] sm:$0xf]
  %v696 = vld [vmem:[%s1 + $0x4a4] sm:$0xf]
  %v697 = vld [vmem:[%s1 + $0x4a8] sm:$0xf]
  %v698 = vld [vmem:[%s1 + $0x4ac] sm:$0xf]
  %v699 = vld [vmem:[%s1 + $0x4b0] sm:$0xf]
  %v700 = vld [vmem:[%s1 + $0x4b4] sm:$0xf]
  %v701 = vld [vmem:[%s1 + $0x4b8] sm:$0xf]
  %v702 = vld [vmem:[%s1 + $0x4bc] sm:$0xf]
  %v703 = vld [vmem:[%s1 + $0x4c0] sm:$0xf]
  %v704 = vld [vmem:[%s1 + $0x4c4] sm:$0xf]
  %v705 = vld [vmem:[%s1 + $0x4c8] sm:$0xf]
  %v706 = vld [vmem:[%s1 + $0x4cc] sm:$0xf]
  %v707 = vld [vmem:[%s1 + $0x4d0] sm:$0xf]
  %v708 = vld [vmem:[%s1 + $0x4d4] sm:$0xf]
  %v709 = vld [vmem:[%s1 + $0x4d8] sm:$0xf]
  %v710 = vld [vmem:[%s1 + $0x4dc] sm:$0xf]
  %v711 = vld [vmem:[%s1 + $0x4e0] sm:$0xf]
  %v712 = vld [vmem:[%s1 + $0x4e4] sm:$0xf]
  %v713 = vld [vmem:[%s1 + $0x4e8] sm:$0xf]
  %v714 = vld [vmem:[%s1 + $0x4ec] sm:$0xf]
  %v715 = vld [vmem:[%s1 + $0x4f0] sm:$0xf]
  %v716 = vld [vmem:[%s1 + $0x4f4] sm:$0xf]
  %v717 = vld [vmem:[%s1 + $0x4f8] sm:$0xf]
  %v718 = vld [vmem:[%s1 + $0x4fc] sm:$0xf]
  %v719 = vld [vmem:[%s1 + $0x500] sm:$0xf]
  %v720 = vld [vmem:[%s1 + $0x504] sm:$0xf]
  %v721 = vld [vmem:[%s1 + $0x508] sm:$0xf]
  %v722 = vld [vmem:[%s1 + $0x50c] sm:$0xf]
  %v723 = vld [vmem:[%s1 + $0x510] sm:$0xf]
  %v724 = vld [vmem:[%s1 + $0x514] sm:$0xf]
  %v725 = vld [vmem:[%s1 + $0x518] sm:$0xf]
  %v726 = vld [vmem:[%s1 + $0x51c] sm:$0xf]
  %v727 = vld [vmem:[%s1 + $0x520] sm:$0xf]
  %v728 = vld [vmem:[%s1 + $0x524] sm:$0xf]
  %v729 = vld [vmem:[%s1 + $0x528] sm:$0xf]
  %v730 = vld [vmem:[%s1 + $0x52c] sm:$0xf]
  %v731 = vld [vmem:[%s1 + $0x530] sm:$0xf]
  %v732 = vld [vmem:[%s1 + $0x534] sm:$0xf]
  %v733 = vld [vmem:[%s1 + $0x538] sm:$0xf]
  %v734 = vld [vmem:[%s1 + $0x53c] sm:$0xf]
  %v735 = vld [vmem:[%s1 + $0x540] sm:$0xf]
  %v736 = vld [vmem:[%s1 + $0x544] sm:$0xf]
  %v737 = vld [vmem:[%s1 + $0x548] sm:$0xf]
  %v738 = vld [vmem:[%s1 + $0x54c] sm:$0xf]
  %v739 = vld [vmem:[%s1 + $0x550] sm:$0xf]
  %v740 = vld [vmem:[%s1 + $0x554] sm:$0xf]
  %v741 = vld [vmem:[%s1 + $0x558] sm:$0xf]
  %v742 = vld [vmem:[%s1 + $0x55c] sm:$0xf]
  %v743 = vld [vmem:[%s1 + $0x560] sm:$0xf]
  %v744 = vld [vmem:[%s1 + $0x564] sm:$0xf]
  %v745 = vld [vmem:[%s1 + $0x568] sm:$0xf]
  %v746 = vld [vmem:[%s1 + $0x56c] sm:$0xf]
  %v747 = vld [vmem:[%s1 + $0x570] sm:$0xf]
  %v748 = vld [vmem:[%s1 + $0x574] sm:$0xf]
  %v749 = vld [vmem:[%s1 + $0x578] sm:$0xf]
  %v750 = vld [vmem:[%s1 + $0x57c] sm:$0xf]
  %v751 = vld [vmem:[%s1 + $0x580] sm:$0xf]
  %v752 = vld [vmem:[%s1 + $0x584] sm:$0xf]
  %v753 = vld [vmem:[%s1 + $0x588] sm:$0xf]
  %v754 = vld [vmem:[%s1 + $0x58c] sm:$0xf]
  %v755 = vld [vmem:[%s1 + $0x590] sm:$0xf]
  %v756 = vld [vmem:[%s1 + $0x594] sm:$0xf]
  %v757 = vld [vmem:[%s1 + $0x598] sm:$0xf]
  %v758 = vld [vmem:[%s1 + $0x59c] sm:$0xf]
  %v759 = vld [vmem:[%s1 + $0x5a0] sm:$0xf]
  %v760 = vld [vmem:[%s1 + $0x5a4] sm:$0xf]
  %v761 = vld [vmem:[%s1 + $0x5a8] sm:$0xf]
  %v762 = vld [vmem:[%s1 + $0x5ac] sm:$0xf]
  %v763 = vld [vmem:[%s1 + $0x5b0] sm:$0xf]
  %v764 = vld [vmem:[%s1 + $0x5b4] sm:$0xf]
  %v765 = vld [vmem:[%s1 + $0x5b8] sm:$0xf]
  %v766 = vld [vmem:[%s1 + $0x5bc] sm:$0xf]
  %v767 = vld [vmem:[%s1 + $0x5c0] sm:$0xf]
  %v768 = vld [vmem:[%s1 + $0x5c4] sm:$0xf]
  %v769 = vld [vmem:[%s1 + $0x5c8] sm:$0xf]
  %v770 = vld [vmem:[%s1 + $0x5cc] sm:$0xf]
  %v771 = vld [vmem:[%s1 + $0x5d0] sm:$0xf]
  %v772 = vld [vmem:[%s1 + $0x5d4] sm:$0xf]
  %v773 = vld [vmem:[%s1 + $0x5d8] sm:$0xf]
  %v774 = vld [vmem:[%s1 + $0x5dc] sm:$0xf]
  %v775 = vld [vmem:[%s1 + $0x5e0] sm:$0xf]
  %v776 = vld [vmem:[%s1 + $0x5e4] sm:$0xf]
  %v777 = vld [vmem:[%s1 + $0x5e8] sm:$0xf]
  %v778 = vld [vmem:[%s1 + $0x5ec] sm:$0xf]
  %v779 = vld [vmem:[%s1 + $0x5f0] sm:$0xf]
  %v780 = vld [vmem:[%s1 + $0x5f4] sm:$0xf]
  %v781 = vld [vmem:[%s1 + $0x5f8] sm:$0xf]
  %v782 = vld [vmem:[%s1 + $0x5fc] sm:$0xf]
  %v783 = vld [vmem:[%s1 + $0x600] sm:$0xf]
  %v784 = vld [vmem:[%s1 + $0x604] sm:$0xf]
  %v785 = vld [vmem:[%s1 + $0x608] sm:$0xf]
  %v786 = vld [vmem:[%s1 + $0x60c] sm:$0xf]
  %v787 = vld [vmem:[%s1 + $0x610] sm:$0xf]
  %v788 = vld [vmem:[%s1 + $0x614] sm:$0xf]
  %v789 = vld [vmem:[%s1 + $0x618] sm:$0xf]
  %v790 = vld [vmem:[%s1 + $0x61c] sm:$0xf]
  %v791 = vld [vmem:[%s1 + $0x620] sm:$0xf]
  %v792 = vld [vmem:[%s1 + $0x624] sm:$0xf]
  %v793 = vld [vmem:[%s1 + $0x628] sm:$0xf]
  %v794 = vld [vmem:[%s1 + $0x62c] sm:$0xf]
  %v795 = vld [vmem:[%s1 + $0x630] sm:$0xf]
  %v796 = vld [vmem:[%s1 + $0x634] sm:$0xf]
  %v797 = vld [vmem:[%s1 + $0x638] sm:$0xf]
  %v798 = vld [vmem:[%s1 + $0x63c] sm:$0xf]
  %v799 = vld [vmem:[%s1 + $0x640] sm:$0xf]
  %v800 = vld [vmem:[%s1 + $0x644] sm:$0xf]
  %v801 = vld [vmem:[%s1 + $0x648] sm:$0xf]
  %v802 = vld [vmem:[%s1 + $0x64c] sm:$0xf]
  %v803 = vld [vmem:[%s1 + $0x650] sm:$0xf]
  %v804 = vld [vmem:[%s1 + $0x654] sm:$0xf]
  %v805 = vld [vmem:[%s1 + $0x658] sm:$0xf]
  %v806 = vld [vmem:[%s1 + $0x65c] sm:$0xf]
  %v807 = vld [vmem:[%s1 + $0x660] sm:$0xf]
  %v808 = vld [vmem:[%s1 + $0x664] sm:$0xf]
  %v809 = vld [vmem:[%s1 + $0x668] sm:$0xf]
  %v810 = vld [vmem:[%s1 + $0x66c] sm:$0xf]
  %v811 = vld [vmem:[%s1 + $0x670] sm:$0xf]
  %v812 = vld [vmem:[%s1 + $0x674] sm:$0xf]
  %v813 = vld [vmem:[%s1 + $0x678] sm:$0xf]
  %v814 = vld [vmem:[%s1 + $0x67c] sm:$0xf]
  %v815 = vld [vmem:[%s1 + $0x680] sm:$0xf]
  %v816 = vld [vmem:[%s1 + $0x684] sm:$0xf]
  %v817 = vld [vmem:[%s1 + $0x688] sm:$0xf]
  %v818 = vld [vmem:[%s1 + $0x68c] sm:$0xf]
  %v819 = vld [vmem:[%s1 + $0x690] sm:$0xf]
  %v820 = vld [vmem:[%s1 + $0x694] sm:$0xf]
  %v821 = vld [vmem:[%s1 + $0x698] sm:$0xf]
  %v822 = vld [vmem:[%s1 + $0x69c] sm:$0xf]
  %v823 = vld [vmem:[%s1 + $0x6a0] sm:$0xf]
  %v824 = vld [vmem:[%s1 + $0x6a4] sm:$0xf]
  %v825 = vld [vmem:[%s1 + $0x6a8] sm:$0xf]
  %v826 = vld [vmem:[%s1 + $0x6ac] sm:$0xf]
  %v827 = vld [vmem:[%s1 + $0x6b0] sm:$0xf]
  %v828 = vld [vmem:[%s1 + $0x6b4] sm:$0xf]
  %v829 = vld [vmem:[%s1 + $0x6b8] sm:$0xf]
  %v830 = vld [vmem:[%s1 + $0x6bc] sm:$0xf]
  %v831 = vld [vmem:[%s1 + $0x6c0] sm:$0xf]
  %v832 = vld [vmem:[%s1 + $0x6c4] sm:$0xf]
  %v833 = vld [vmem:[%s1 + $0x6c8] sm:$0xf]
  %v834 = vld [vmem:[%s1 + $0x6cc] sm:$0xf]
  %v835 = vld [vmem:[%s1 + $0x6d0] sm:$0xf]
  %v836 = vld [vmem:[%s1 + $0x6d4] sm:$0xf]
  %v837 = vld [vmem:[%s1 + $0x6d8] sm:$0xf]
  %v838 = vld [vmem:[%s1 + $0x6dc] sm:$0xf]
  %v839 = vld [vmem:[%s1 + $0x6e0] sm:$0xf]
  %v840 = vld [vmem:[%s1 + $0x6e4] sm:$0xf]
  %v841 = vld [vmem:[%s1 + $0x6e8] sm:$0xf]
  %v842 = vld [vmem:[%s1 + $0x6ec] sm:$0xf]
  %v843 = vld [vmem:[%s1 + $0x6f0] sm:$0xf]
  %v844 = vld [vmem:[%s1 + $0x6f4] sm:$0xf]
  %v845 = vld [vmem:[%s1 + $0x6f8] sm:$0xf]
  %v846 = vld [vmem:[%s1 + $0x6fc] sm:$0xf]
  %v847 = vld [vmem:[%s1 + $0x700] sm:$0xf]
  %v848 = vld [vmem:[%s1 + $0x704] sm:$0xf]
  %v849 = vld [vmem:[%s1 + $0x708] sm:$0xf]
  %v850 = vld [vmem:[%s1 + $0x70c] sm:$0xf]
  %v851 = vld [vmem:[%s1 + $0x710] sm:$0xf]
  %v852 = vld [vmem:[%s1 + $0x714] sm:$0xf]
  %v853 = vld [vmem:[%s1 + $0x718] sm:$0xf]
  %v854 = vld [vmem:[%s1 + $0x71c] sm:$0xf]
  %v855 = vld [vmem:[%s1 + $0x720] sm:$0xf]
  %v856 = vld [vmem:[%s1 + $0x724] sm:$0xf]
  %v857 = vld [vmem:[%s1 + $0x728] sm:$0xf]
  %v858 = vld [vmem:[%s1 + $0x72c] sm:$0xf]
  %v859 = vld [vmem:[%s1 + $0x730] sm:$0xf]
  %v860 = vld [vmem:[%s1 + $0x734] sm:$0xf]
  %v861 = vld [vmem:[%s1 + $0x738] sm:$0xf]
  %v862 = vld [vmem:[%s1 + $0x73c] sm:$0xf]
  %v863 = vld [vmem:[%s1 + $0x740] sm:$0xf]
  %v864 = vld [vmem:[%s1 + $0x744] sm:$0xf]
  %v865 = vld [vmem:[%s1 + $0x748] sm:$0xf]
  %v866 = vld [vmem:[%s1 + $0x74c] sm:$0xf]
  %v867 = vld [vmem:[%s1 + $0x750] sm:$0xf]
  %v868 = vld [vmem:[%s1 + $0x754] sm:$0xf]
  %v869 = vld [vmem:[%s1 + $0x758] sm:$0xf]
  %v870 = vld [vmem:[%s1 + $0x75c] sm:$0xf]
  %v871 = vld [vmem:[%s1 + $0x760] sm:$0xf]
  %v872 = vld [vmem:[%s1 + $0x764] sm:$0xf]
  %v873 = vld [vmem:[%s1 + $0x768] sm:$0xf]
  %v874 = vld [vmem:[%s1 + $0x76c] sm:$0xf]
  %v875 = vld [vmem:[%s1 + $0x770] sm:$0xf]
  %v876 = vld [vmem:[%s1 + $0x774] sm:$0xf]
  %v877 = vld [vmem:[%s1 + $0x778] sm:$0xf]
  %v878 = vld [vmem:[%s1 + $0x77c] sm:$0xf]
  %v879 = vld [vmem:[%s1 + $0x780] sm:$0xf]
  %v880 = vld [vmem:[%s1 + $0x784] sm:$0xf]
  %v881 = vld [vmem:[%s1 + $0x788] sm:$0xf]
  %v882 = vld [vmem:[%s1 + $0x78c] sm:$0xf]
  %v883 = vld [vmem:[%s1 + $0x790] sm:$0xf]
  %v884 = vld [vmem:[%s1 + $0x794] sm:$0xf]
  %v885 = vld [vmem:[%s1 + $0x798] sm:$0xf]
  %v886 = vld [vmem:[%s1 + $0x79c] sm:$0xf]
  %v887 = vld [vmem:[%s1 + $0x7a0] sm:$0xf]
  %v888 = vld [vmem:[%s1 + $0x7a4] sm:$0xf]
  %v889 = vld [vmem:[%s1 + $0x7a8] sm:$0xf]
  %v890 = vld [vmem:[%s1 + $0x7ac] sm:$0xf]
  %v891 = vld [vmem:[%s1 + $0x7b0] sm:$0xf]
  %v892 = vld [vmem:[%s1 + $0x7b4] sm:$0xf]
  %v893 = vld [vmem:[%s1 + $0x7b8] sm:$0xf]
  %v894 = vld [vmem:[%s1 + $0x7bc] sm:$0xf]
  %v895 = vld [vmem:[%s1 + $0x7c0] sm:$0xf]
  %v896 = vld [vmem:[%s1 + $0x7c4] sm:$0xf]
  %v897 = vld [vmem:[%s1 + $0x7c8] sm:$0xf]
  %v898 = vld [vmem:[%s1 + $0x7cc] sm:$0xf]
  %v899 = vld [vmem:[%s1 + $0x7d0] sm:$0xf]
  %v900 = vld [vmem:[%s1 + $0x7d4] sm:$0xf]
  %v901 = vld [vmem:[%s1 + $0x7d8] sm:$0xf]
  %v902 = vld [vmem:[%s1 + $0x7dc] sm:$0xf]
  %v903 = vld [vmem:[%s1 + $0x7e0] sm:$0xf]
  %v904 = vld [vmem:[%s1 + $0x7e4] sm:$0xf]
  %v905 = vld [vmem:[%s1 + $0x7e8] sm:$0xf]
  %v906 = vld [vmem:[%s1 + $0x7ec] sm:$0xf]
  %v907 = vld [vmem:[%s1 + $0x7f0] sm:$0xf]
  %v908 = vld [vmem:[%s1 + $0x7f4] sm:$0xf]
  %v909 = vld [vmem:[%s1 + $0x7f8] sm:$0xf]
  %v910 = vld [vmem:[%s1 + $0x7fc] sm:$0xf]
  %v911 = vld [vmem:[%s1 + $0x800] sm:$0xf]
  %v912 = vld [vmem:[%s1 + $0x804] sm:$0xf]
  %v913 = vld [vmem:[%s1 + $0x808] sm:$0xf]
  %v914 = vld [vmem:[%s1 + $0x80c] sm:$0xf]
  %v915 = vld [vmem:[%s1 + $0x810] sm:$0xf]
  %v916 = vld [vmem:[%s1 + $0x814] sm:$0xf]
  %v917 = vld [vmem:[%s1 + $0x818] sm:$0xf]
  %v918 = vld [vmem:[%s1 + $0x81c] sm:$0xf]
  %v919 = vld [vmem:[%s1 + $0x820] sm:$0xf]
  %v920 = vld [vmem:[%s1 + $0x824] sm:$0xf]
  %v921 = vld [vmem:[%s1 + $0x828] sm:$0xf]
  %v922 = vld [vmem:[%s1 + $0x82c] sm:$0xf]
  %v923 = vld [vmem:[%s1 + $0x830] sm:$0xf]
  %v924 = vld [vmem:[%s1 + $0x834] sm:$0xf]
  %v925 = vld [vmem:[%s1 + $0x838] sm:$0xf]
  %v926 = vld [vmem:[%s1 + $0x83c] sm:$0xf]
  %v927 = vld [vmem:[%s1 + $0x840] sm:$0xf]
  %v928 = vld [vmem:[%s1 + $0x844] sm:$0xf]
  %v929 = vld [vmem:[%s1 + $0x848] sm:$0xf]
  %v930 = vld [vmem:[%s1 + $0x84c] sm:$0xf]
  %v931 = vld [vmem:[%s1 + $0x850] sm:$0xf]
  %v932 = vld [vmem:[%s1 + $0x854] sm:$0xf]
  %v933 = vld [vmem:[%s1 + $0x858] sm:$0xf]
  %v934 = vld [vmem:[%s1 + $0x85c] sm:$0xf]
  %v935 = vld [vmem:[%s1 + $0x860] sm:$0xf]
  %v936 = vld [vmem:[%s1 + $0x864] sm:$0xf]
  %v937 = vld [vmem:[%s1 + $0x868] sm:$0xf]
  %v938 = vld [vmem:[%s1 + $0x86c] sm:$0xf]
  %v939 = vld [vmem:[%s1 + $0x870] sm:$0xf]
  %v940 = vld [vmem:[%s1 + $0x874] sm:$0xf]
  %v941 = vld [vmem:[%s1 + $0x878] sm:$0xf]
  %v942 = vld [vmem:[%s1 + $0x87c] sm:$0xf]
  %v943 = vld [vmem:[%s1 + $0x880] sm:$0xf]
  %v944 = vld [vmem:[%s1 + $0x884] sm:$0xf]
  %v945 = vld [vmem:[%s1 + $0x888] sm:$0xf]
  %v946 = vld [vmem:[%s1 + $0x88c] sm:$0xf]
  %v947 = vld [vmem:[%s1 + $0x890] sm:$0xf]
  %v948 = vld [vmem:[%s1 + $0x894] sm:$0xf]
  %v949 = vld [vmem:[%s1 + $0x898] sm:$0xf]
  %v950 = vld [vmem:[%s1 + $0x89c] sm:$0xf]
  %v951 = vld [vmem:[%s1 + $0x8a0] sm:$0xf]
  %v952 = vld [vmem:[%s1 + $0x8a4] sm:$0xf]
  %v953 = vld [vmem:[%s1 + $0x8a8] sm:$0xf]
  %v954 = vld [vmem:[%s1 + $0x8ac] sm:$0xf]
  %v955 = vld [vmem:[%s1 + $0x8b0] sm:$0xf]
  %v956 = vld [vmem:[%s1 + $0x8b4] sm:$0xf]
  %v957 = vld [vmem:[%s1 + $0x8b8] sm:$0xf]
  %v958 = vld [vmem:[%s1 + $0x8bc] sm:$0xf]
  %v959 = vld [vmem:[%s1 + $0x8c0] sm:$0xf]
  %v960 = vld [vmem:[%s1 + $0x8c4] sm:$0xf]
  %v961 = vld [vmem:[%s1 + $0x8c8] sm:$0xf]
  %v962 = vld [vmem:[%s1 + $0x8cc] sm:$0xf]
  %v963 = vld [vmem:[%s1 + $0x8d0] sm:$0xf]
  %v964 = vld [vmem:[%s1 + $0x8d4] sm:$0xf]
  %v965 = vld [vmem:[%s1 + $0x8d8] sm:$0xf]
  %v966 = vld [vmem:[%s1 + $0x8dc] sm:$0xf]
  %v967 = vld [vmem:[%s1 + $0x8e0] sm:$0xf]
  %v968 = vld [vmem:[%s1 + $0x8e4] sm:$0xf]
  %v969 = vld [vmem:[%s1 + $0x8e8] sm:$0xf]
  %v970 = vld [vmem:[%s1 + $0x8ec] sm:$0xf]
  %v971 = vld [vmem:[%s1 + $0x8f0] sm:$0xf]
  %v972 = vld [vmem:[%s1 + $0x8f4] sm:$0xf]
  %v973 = vld [vmem:[%s1 + $0x8f8] sm:$0xf]
  %v974 = vld [vmem:[%s1 + $0x8fc] sm:$0xf]
  %v975 = vld [vmem:[%s1 + $0x900] sm:$0xf]
  %v976 = vld [vmem:[%s1 + $0x904] sm:$0xf]
  %v977 = vld [vmem:[%s1 + $0x908] sm:$0xf]
  %v978 = vld [vmem:[%s1 + $0x90c] sm:$0xf]
  %v979 = vld [vmem:[%s1 + $0x910] sm:$0xf]
  %v980 = vld [vmem:[%s1 + $0x914] sm:$0xf]
  %v981 = vld [vmem:[%s1 + $0x918] sm:$0xf]
  %v982 = vld [vmem:[%s1 + $0x91c] sm:$0xf]
  %v983 = vld [vmem:[%s1 + $0x920] sm:$0xf]
  %v984 = vld [vmem:[%s1 + $0x924] sm:$0xf]
  %v985 = vld [vmem:[%s1 + $0x928] sm:$0xf]
  %v986 = vld [vmem:[%s1 + $0x92c] sm:$0xf]
  %v987 = vld [vmem:[%s1 + $0x930] sm:$0xf]
  %v988 = vld [vmem:[%s1 + $0x934] sm:$0xf]
  %v989 = vld [vmem:[%s1 + $0x938] sm:$0xf]
  %v990 = vld [vmem:[%s1 + $0x93c] sm:$0xf]
  %v991 = vld [vmem:[%s1 + $0x940] sm:$0xf]
  %v992 = vld [vmem:[%s1 + $0x944] sm:$0xf]
  %v993 = vld [vmem:[%s1 + $0x948] sm:$0xf]
  %v994 = vld [vmem:[%s1 + $0x94c] sm:$0xf]
  %v995 = vld [vmem:[%s1 + $0x950] sm:$0xf]
  %v996 = vld [vmem:[%s1 + $0x954] sm:$0xf]
  %v997 = vld [vmem:[%s1 + $0x958] sm:$0xf]
  %v998 = vld [vmem:[%s1 + $0x95c] sm:$0xf]
  %v999 = vld [vmem:[%s1 + $0x960] sm:$0xf]
  %v1000 = vld [vmem:[%s1 + $0x964] sm:$0xf]
  %v1001 = vld [vmem:[%s1 + $0x968] sm:$0xf]
  %v1002 = vld [vmem:[%s1 + $0x96c] sm:$0xf]
  %v1003 = vld [vmem:[%s1 + $0x970] sm:$0xf]
  %v1004 = vld [vmem:[%s1 + $0x974] sm:$0xf]
  %v1005 = vld [vmem:[%s1 + $0x978] sm:$0xf]
  %v1006 = vld [vmem:[%s1 + $0x97c] sm:$0xf]
  %v1007 = vld [vmem:[%s1 + $0x980] sm:$0xf]
  %v1008 = vld [vmem:[%s1 + $0x984] sm:$0xf]
  %v1009 = vld [vmem:[%s1 + $0x988] sm:$0xf]
  %v1010 = vld [vmem:[%s1 + $0x98c] sm:$0xf]
  %v1011 = vld [vmem:[%s1 + $0x990] sm:$0xf]
  %v1012 = vld [vmem:[%s1 + $0x994] sm:$0xf]
  %v1013 = vld [vmem:[%s1 + $0x998] sm:$0xf]
  %v1014 = vld [vmem:[%s1 + $0x99c] sm:$0xf]
  %v1015 = vld [vmem:[%s1 + $0x9a0] sm:$0xf]
  %v1016 = vld [vmem:[%s1 + $0x9a4] sm:$0xf]
  %v1017 = vld [vmem:[%s1 + $0x9a8] sm:$0xf]
  %v1018 = vld [vmem:[%s1 + $0x9ac] sm:$0xf]
  %v1019 = vld [vmem:[%s1 + $0x9b0] sm:$0xf]
  %v1020 = vld [vmem:[%s1 + $0x9b4] sm:$0xf]
  %v1021 = vld [vmem:[%s1 + $0x9b8] sm:$0xf]
  %v1022 = vld [vmem:[%s1 + $0x9bc] sm:$0xf]
  %v1023 = vld [vmem:[%s1 + $0x9c0] sm:$0xf]
  %v1024 = vld [vmem:[%s1 + $0x9c4] sm:$0xf]
  %v1025 = vld [vmem:[%s1 + $0x9c8] sm:$0xf]
  %v1026 = vld [vmem:[%s1 + $0x9cc] sm:$0xf]
  %v1027 = vld [vmem:[%s1 + $0x9d0] sm:$0xf]
  %v1028 = vld [vmem:[%s1 + $0x9d4] sm:$0xf]
  %v1029 = vld [vmem:[%s1 + $0x9d8] sm:$0xf]
  %v1030 = vld [vmem:[%s1 + $0x9dc] sm:$0xf]
  %v1031 = vld [vmem:[%s1 + $0x9e0] sm:$0xf]
  %v1032 = vld [vmem:[%s1 + $0x9e4] sm:$0xf]
  %v1033 = vld [vmem:[%s1 + $0x9e8] sm:$0xf]
  %v1034 = vld [vmem:[%s1 + $0x9ec] sm:$0xf]
  %v1035 = vld [vmem:[%s1 + $0x9f0] sm:$0xf]
  %v1036 = vld [vmem:[%s1 + $0x9f4] sm:$0xf]
  %v1037 = vld [vmem:[%s1 + $0x9f8] sm:$0xf]
  %v1038 = vld [vmem:[%s1 + $0x9fc] sm:$0xf]
  %v1039 = vld [vmem:[%s1 + $0xa00] sm:$0xf]
  %v1040 = vld [vmem:[%s1 + $0xa04] sm:$0xf]
  %v1041 = vld [vmem:[%s1 + $0xa08] sm:$0xf]
  %v1042 = vld [vmem:[%s1 + $0xa0c] sm:$0xf]
  %v1043 = vld [vmem:[%s1 + $0xa10] sm:$0xf]
  %v1044 = vld [vmem:[%s1 + $0xa14] sm:$0xf]
  %v1045 = vld [vmem:[%s1 + $0xa18] sm:$0xf]
  %v1046 = vld [vmem:[%s1 + $0xa1c] sm:$0xf]
  %v1047 = vld [vmem:[%s1 + $0xa20] sm:$0xf]
  %v1048 = vld [vmem:[%s1 + $0xa24] sm:$0xf]
  %v1049 = vld [vmem:[%s1 + $0xa28] sm:$0xf]
  %v1050 = vld [vmem:[%s1 + $0xa2c] sm:$0xf]
  %v1051 = vld [vmem:[%s1 + $0xa30] sm:$0xf]
  %v1052 = vld [vmem:[%s1 + $0xa34] sm:$0xf]
  %v1053 = vld [vmem:[%s1 + $0xa38] sm:$0xf]
  %v1054 = vld [vmem:[%s1 + $0xa3c] sm:$0xf]
  %v1055 = vld [vmem:[%s1 + $0xa40] sm:$0xf]
  %v1056 = vld [vmem:[%s1 + $0xa44] sm:$0xf]
  %v1057 = vld [vmem:[%s1 + $0xa48] sm:$0xf]
  %v1058 = vld [vmem:[%s1 + $0xa4c] sm:$0xf]
  %v1059 = vld [vmem:[%s1 + $0xa50] sm:$0xf]
  %v1060 = vld [vmem:[%s1 + $0xa54] sm:$0xf]
  %v1061 = vld [vmem:[%s1 + $0xa58] sm:$0xf]
  %v1062 = vld [vmem:[%s1 + $0xa5c] sm:$0xf]
  %v1063 = vld [vmem:[%s1 + $0xa60] sm:$0xf]
  %v1064 = vld [vmem:[%s1 + $0xa64] sm:$0xf]
  %v1065 = vld [vmem:[%s1 + $0xa68] sm:$0xf]
  %v1066 = vld [vmem:[%s1 + $0xa6c] sm:$0xf]
  %v1067 = vld [vmem:[%s1 + $0xa70] sm:$0xf]
  %v1068 = vld [vmem:[%s1 + $0xa74] sm:$0xf]
  %v1069 = vld [vmem:[%s1 + $0xa78] sm:$0xf]
  %v1070 = vld [vmem:[%s1 + $0xa7c] sm:$0xf]
  %v1071 = vld [vmem:[%s1 + $0xa80] sm:$0xf]
  %v1072 = vld [vmem:[%s1 + $0xa84] sm:$0xf]
  %v1073 = vld [vmem:[%s1 + $0xa88] sm:$0xf]
  %v1074 = vld [vmem:[%s1 + $0xa8c] sm:$0xf]
  %v1075 = vld [vmem:[%s1 + $0xa90] sm:$0xf]
  %v1076 = vld [vmem:[%s1 + $0xa94] sm:$0xf]
  %v1077 = vld [vmem:[%s1 + $0xa98] sm:$0xf]
  %v1078 = vld [vmem:[%s1 + $0xa9c] sm:$0xf]
  %v1079 = vld [vmem:[%s1 + $0xaa0] sm:$0xf]
  %v1080 = vld [vmem:[%s1 + $0xaa4] sm:$0xf]
  %v1081 = vld [vmem:[%s1 + $0xaa8] sm:$0xf]
  %v1082 = vld [vmem:[%s1 + $0xaac] sm:$0xf]
  %v1083 = vld [vmem:[%s1 + $0xab0] sm:$0xf]
  %v1084 = vld [vmem:[%s1 + $0xab4] sm:$0xf]
  %v1085 = vld [vmem:[%s1 + $0xab8] sm:$0xf]
  %v1086 = vld [vmem:[%s1 + $0xabc] sm:$0xf]
  %v1087 = vld [vmem:[%s1 + $0xac0] sm:$0xf]
  %v1088 = vld [vmem:[%s1 + $0xac4] sm:$0xf]
  %v1089 = vld [vmem:[%s1 + $0xac8] sm:$0xf]
  %v1090 = vld [vmem:[%s1 + $0xacc] sm:$0xf]
  %v1091 = vld [vmem:[%s1 + $0xad0] sm:$0xf]
  %v1092 = vld [vmem:[%s1 + $0xad4] sm:$0xf]
  %v1093 = vld [vmem:[%s1 + $0xad8] sm:$0xf]
  %v1094 = vld [vmem:[%s1 + $0xadc] sm:$0xf]
  %v1095 = vld [vmem:[%s1 + $0xae0] sm:$0xf]
  %v1096 = vld [vmem:[%s1 + $0xae4] sm:$0xf]
  %v1097 = vld [vmem:[%s1 + $0xae8] sm:$0xf]
  %v1098 = vld [vmem:[%s1 + $0xaec] sm:$0xf]
  %v1099 = vld [vmem:[%s1 + $0xaf0] sm:$0xf]
  %v1100 = vld [vmem:[%s1 + $0xaf4] sm:$0xf]
  %v1101 = vld [vmem:[%s1 + $0xaf8] sm:$0xf]
  %v1102 = vld [vmem:[%s1 + $0xafc] sm:$0xf]
  %v1103 = vld [vmem:[%s1 + $0xb00] sm:$0xf]
  %v1104 = vld [vmem:[%s1 + $0xb04] sm:$0xf]
  %v1105 = vld [vmem:[%s1 + $0xb08] sm:$0xf]
  %v1106 = vld [vmem:[%s1 + $0xb0c] sm:$0xf]
  %v1107 = vld [vmem:[%s1 + $0xb10] sm:$0xf]
  %v1108 = vld [vmem:[%s1 + $0xb14] sm:$0xf]
  %v1109 = vld [vmem:[%s1 + $0xb18] sm:$0xf]
  %v1110 = vld [vmem:[%s1 + $0xb1c] sm:$0xf]
  %v1111 = vld [vmem:[%s1 + $0xb20] sm:$0xf]
  %v1112 = vld [vmem:[%s1 + $0xb24] sm:$0xf]
  %v1113 = vld [vmem:[%s1 + $0xb28] sm:$0xf]
  %v1114 = vld [vmem:[%s1 + $0xb2c] sm:$0xf]
  %v1115 = vld [vmem:[%s1 + $0xb30] sm:$0xf]
  %v1116 = vld [vmem:[%s1 + $0xb34] sm:$0xf]
  %v1117 = vld [vmem:[%s1 + $0xb38] sm:$0xf]
  %v1118 = vld [vmem:[%s1 + $0xb3c] sm:$0xf]
  %v1119 = vld [vmem:[%s1 + $0xb40] sm:$0xf]
  %v1120 = vld [vmem:[%s1 + $0xb44] sm:$0xf]
  %v1121 = vld [vmem:[%s1 + $0xb48] sm:$0xf]
  %v1122 = vld [vmem:[%s1 + $0xb4c] sm:$0xf]
  %v1123 = vld [vmem:[%s1 + $0xb50] sm:$0xf]
  %v1124 = vld [vmem:[%s1 + $0xb54] sm:$0xf]
  %v1125 = vld [vmem:[%s1 + $0xb58] sm:$0xf]
  %v1126 = vld [vmem:[%s1 + $0xb5c] sm:$0xf]
  %v1127 = vld [vmem:[%s1 + $0xb60] sm:$0xf]
  %v1128 = vld [vmem:[%s1 + $0xb64] sm:$0xf]
  %v1129 = vld [vmem:[%s1 + $0xb68] sm:$0xf]
  %v1130 = vld [vmem:[%s1 + $0xb6c] sm:$0xf]
  %v1131 = vld [vmem:[%s1 + $0xb70] sm:$0xf]
  %v1132 = vld [vmem:[%s1 + $0xb74] sm:$0xf]
  %v1133 = vld [vmem:[%s1 + $0xb78] sm:$0xf]
  %v1134 = vld [vmem:[%s1 + $0xb7c] sm:$0xf]
  %v1135 = vld [vmem:[%s1 + $0xb80] sm:$0xf]
  %v1136 = vld [vmem:[%s1 + $0xb84] sm:$0xf]
  %v1137 = vld [vmem:[%s1 + $0xb88] sm:$0xf]
  %v1138 = vld [vmem:[%s1 + $0xb8c] sm:$0xf]
  %v1139 = vld [vmem:[%s1 + $0xb90] sm:$0xf]
  %v1140 = vld [vmem:[%s1 + $0xb94] sm:$0xf]
  %v1141 = vld [vmem:[%s1 + $0xb98] sm:$0xf]
  %v1142 = vld [vmem:[%s1 + $0xb9c] sm:$0xf]
  %v1143 = vld [vmem:[%s1 + $0xba0] sm:$0xf]
  %v1144 = vld [vmem:[%s1 + $0xba4] sm:$0xf]
  %v1145 = vld [vmem:[%s1 + $0xba8] sm:$0xf]
  %v1146 = vld [vmem:[%s1 + $0xbac] sm:$0xf]
  %v1147 = vld [vmem:[%s1 + $0xbb0] sm:$0xf]
  %v1148 = vld [vmem:[%s1 + $0xbb4] sm:$0xf]
  %v1149 = vld [vmem:[%s1 + $0xbb8] sm:$0xf]
  %v1150 = vld [vmem:[%s1 + $0xbbc] sm:$0xf]
  %v1151 = vld [vmem:[%s1 + $0xbc0] sm:$0xf]
  %v1152 = vld [vmem:[%s1 + $0xbc4] sm:$0xf]
  %v1153 = vld [vmem:[%s1 + $0xbc8] sm:$0xf]
  %v1154 = vld [vmem:[%s1 + $0xbcc] sm:$0xf]
  %v1155 = vld [vmem:[%s1 + $0xbd0] sm:$0xf]
  %v1156 = vld [vmem:[%s1 + $0xbd4] sm:$0xf]
  %v1157 = vld [vmem:[%s1 + $0xbd8] sm:$0xf]
  %v1158 = vld [vmem:[%s1 + $0xbdc] sm:$0xf]
  %v1159 = vld [vmem:[%s1 + $0xbe0] sm:$0xf]
  %v1160 = vld [vmem:[%s1 + $0xbe4] sm:$0xf]
  %v1161 = vld [vmem:[%s1 + $0xbe8] sm:$0xf]
  %v1162 = vld [vmem:[%s1 + $0xbec] sm:$0xf]
  %v1163 = vld [vmem:[%s1 + $0xbf0] sm:$0xf]
  %v1164 = vld [vmem:[%s1 + $0xbf4] sm:$0xf]
  %v1165 = vld [vmem:[%s1 + $0xbf8] sm:$0xf]
  %v1166 = vld [vmem:[%s1 + $0xbfc] sm:$0xf]
  %v1167 = vld [vmem:[%s1 + $0xc00] sm:$0xf]
  %v1168 = vld [vmem:[%s1 + $0xc04] sm:$0xf]
  %v1169 = vld [vmem:[%s1 + $0xc08] sm:$0xf]
  %v1170 = vld [vmem:[%s1 + $0xc0c] sm:$0xf]
  %v1171 = vld [vmem:[%s1 + $0xc10] sm:$0xf]
  %v1172 = vld [vmem:[%s1 + $0xc14] sm:$0xf]
  %v1173 = vld [vmem:[%s1 + $0xc18] sm:$0xf]
  %v1174 = vld [vmem:[%s1 + $0xc1c] sm:$0xf]
  %v1175 = vld [vmem:[%s1 + $0xc20] sm:$0xf]
  %v1176 = vld [vmem:[%s1 + $0xc24] sm:$0xf]
  %v1177 = vld [vmem:[%s1 + $0xc28] sm:$0xf]
  %v1178 = vld [vmem:[%s1 + $0xc2c] sm:$0xf]
  %v1179 = vld [vmem:[%s1 + $0xc30] sm:$0xf]
  %v1180 = vld [vmem:[%s1 + $0xc34] sm:$0xf]
  %v1181 = vld [vmem:[%s1 + $0xc38] sm:$0xf]
  %v1182 = vld [vmem:[%s1 + $0xc3c] sm:$0xf]
  %v1183 = vld [vmem:[%s1 + $0xc40] sm:$0xf]
  %v1184 = vld [vmem:[%s1 + $0xc44] sm:$0xf]
  %v1185 = vld [vmem:[%s1 + $0xc48] sm:$0xf]
  %v1186 = vld [vmem:[%s1 + $0xc4c] sm:$0xf]
  %v1187 = vld [vmem:[%s1 + $0xc50] sm:$0xf]
  %v1188 = vld [vmem:[%s1 + $0xc54] sm:$0xf]
  %v1189 = vld [vmem:[%s1 + $0xc58] sm:$0xf]
  %v1190 = vld [vmem:[%s1 + $0xc5c] sm:$0xf]
  %v1191 = vld [vmem:[%s1 + $0xc60] sm:$0xf]
  %v1192 = vld [vmem:[%s1 + $0xc64] sm:$0xf]
  %v1193 = vld [vmem:[%s1 + $0xc68] sm:$0xf]
  %v1194 = vld [vmem:[%s1 + $0xc6c] sm:$0xf]
  %v1195 = vld [vmem:[%s1 + $0xc70] sm:$0xf]
  %v1196 = vld [vmem:[%s1 + $0xc74] sm:$0xf]
  %v1197 = vld [vmem:[%s1 + $0xc78] sm:$0xf]
  %v1198 = vld [vmem:[%s1 + $0xc7c] sm:$0xf]
  %v1199 = vld [vmem:[%s1 + $0xc80] sm:$0xf]
  %v1200 = vld [vmem:[%s1 + $0xc84] sm:$0xf]
  %v1201 = vld [vmem:[%s1 + $0xc88] sm:$0xf]
  %v1202 = vld [vmem:[%s1 + $0xc8c] sm:$0xf]
  %v1203 = vld [vmem:[%s1 + $0xc90] sm:$0xf]
  %v1204 = vld [vmem:[%s1 + $0xc94] sm:$0xf]
  %v1205 = vld [vmem:[%s1 + $0xc98] sm:$0xf]
  %v1206 = vld [vmem:[%s1 + $0xc9c] sm:$0xf]
  %v1207 = vld [vmem:[%s1 + $0xca0] sm:$0xf]
  %v1208 = vld [vmem:[%s1 + $0xca4] sm:$0xf]
  %v1209 = vld [vmem:[%s1 + $0xca8] sm:$0xf]
  %v1210 = vld [vmem:[%s1 + $0xcac] sm:$0xf]
  %v1211 = vld [vmem:[%s1 + $0xcb0] sm:$0xf]
  %v1212 = vld [vmem:[%s1 + $0xcb4] sm:$0xf]
  %v1213 = vld [vmem:[%s1 + $0xcb8] sm:$0xf]
  %v1214 = vld [vmem:[%s1 + $0xcbc] sm:$0xf]
  %v1215 = vld [vmem:[%s1 + $0xcc0] sm:$0xf]
  %v1216 = vld [vmem:[%s1 + $0xcc4] sm:$0xf]
  %v1217 = vld [vmem:[%s1 + $0xcc8] sm:$0xf]
  %v1218 = vld [vmem:[%s1 + $0xccc] sm:$0xf]
  %v1219 = vld [vmem:[%s1 + $0xcd0] sm:$0xf]
  %v1220 = vld [vmem:[%s1 + $0xcd4] sm:$0xf]
  %v1221 = vld [vmem:[%s1 + $0xcd8] sm:$0xf]
  %v1222 = vld [vmem:[%s1 + $0xcdc] sm:$0xf]
  %v1223 = vld [vmem:[%s1 + $0xce0] sm:$0xf]
  %v1224 = vld [vmem:[%s1 + $0xce4] sm:$0xf]
  %v1225 = vld [vmem:[%s1 + $0xce8] sm:$0xf]
  %v1226 = vld [vmem:[%s1 + $0xcec] sm:$0xf]
  %v1227 = vld [vmem:[%s1 + $0xcf0] sm:$0xf]
  %v1228 = vld [vmem:[%s1 + $0xcf4] sm:$0xf]
  %v1229 = vld [vmem:[%s1 + $0xcf8] sm:$0xf]
  %v1230 = vld [vmem:[%s1 + $0xcfc] sm:$0xf]
  %v1231 = vld [vmem:[%s1 + $0xd00] sm:$0xf]
  %v1232 = vld [vmem:[%s1 + $0xd04] sm:$0xf]
  %v1233 = vld [vmem:[%s1 + $0xd08] sm:$0xf]
  %v1234 = vld [vmem:[%s1 + $0xd0c] sm:$0xf]
  %v1235 = vld [vmem:[%s1 + $0xd10] sm:$0xf]
  %v1236 = vld [vmem:[%s1 + $0xd14] sm:$0xf]
  %v1237 = vld [vmem:[%s1 + $0xd18] sm:$0xf]
  %v1238 = vld [vmem:[%s1 + $0xd1c] sm:$0xf]
  %v1239 = vld [vmem:[%s1 + $0xd20] sm:$0xf]
  %v1240 = vld [vmem:[%s1 + $0xd24] sm:$0xf]
  %v1241 = vld [vmem:[%s1 + $0xd28] sm:$0xf]
  %v1242 = vld [vmem:[%s1 + $0xd2c] sm:$0xf]
  %v1243 = vld [vmem:[%s1 + $0xd30] sm:$0xf]
  %v1244 = vld [vmem:[%s1 + $0xd34] sm:$0xf]
  %v1245 = vld [vmem:[%s1 + $0xd38] sm:$0xf]
  %v1246 = vld [vmem:[%s1 + $0xd3c] sm:$0xf]
  %v1247 = vld [vmem:[%s1 + $0xd40] sm:$0xf]
  %v1248 = vld [vmem:[%s1 + $0xd44] sm:$0xf]
  %v1249 = vld [vmem:[%s1 + $0xd48] sm:$0xf]
  %v1250 = vld [vmem:[%s1 + $0xd4c] sm:$0xf]
  %v1251 = vld [vmem:[%s1 + $0xd50] sm:$0xf]
  %v1252 = vld [vmem:[%s1 + $0xd54] sm:$0xf]
  %v1253 = vld [vmem:[%s1 + $0xd58] sm:$0xf]
  %v1254 = vld [vmem:[%s1 + $0xd5c] sm:$0xf]
  %v1255 = vld [vmem:[%s1 + $0xd60] sm:$0xf]
  %v1256 = vld [vmem:[%s1 + $0xd64] sm:$0xf]
  %v1257 = vld [vmem:[%s1 + $0xd68] sm:$0xf]
  %v1258 = vld [vmem:[%s1 + $0xd6c] sm:$0xf]
  %v1259 = vld [vmem:[%s1 + $0xd70] sm:$0xf]
  %v1260 = vld [vmem:[%s1 + $0xd74] sm:$0xf]
  %v1261 = vld [vmem:[%s1 + $0xd78] sm:$0xf]
  %v1262 = vld [vmem:[%s1 + $0xd7c] sm:$0xf]
  %v1263 = vld [vmem:[%s1 + $0xd80] sm:$0xf]
  %v1264 = vld [vmem:[%s1 + $0xd84] sm:$0xf]
  %v1265 = vld [vmem:[%s1 + $0xd88] sm:$0xf]
  %v1266 = vld [vmem:[%s1 + $0xd8c] sm:$0xf]
  %v1267 = vld [vmem:[%s1 + $0xd90] sm:$0xf]
  %v1268 = vld [vmem:[%s1 + $0xd94] sm:$0xf]
  %v1269 = vld [vmem:[%s1 + $0xd98] sm:$0xf]
  %v1270 = vld [vmem:[%s1 + $0xd9c] sm:$0xf]
  %v1271 = vld [vmem:[%s1 + $0xda0] sm:$0xf]
  %v1272 = vld [vmem:[%s1 + $0xda4] sm:$0xf]
  %v1273 = vld [vmem:[%s1 + $0xda8] sm:$0xf]
  %v1274 = vld [vmem:[%s1 + $0xdac] sm:$0xf]
  %v1275 = vld [vmem:[%s1 + $0xdb0] sm:$0xf]
  %v1276 = vld [vmem:[%s1 + $0xdb4] sm:$0xf]
  %v1277 = vld [vmem:[%s1 + $0xdb8] sm:$0xf]
  %v1278 = vld [vmem:[%s1 + $0xdbc] sm:$0xf]
  %v1279 = vld [vmem:[%s1 + $0xdc0] sm:$0xf]
  %v1280 = vld [vmem:[%s1 + $0xdc4] sm:$0xf]
  %v1281 = vld [vmem:[%s1 + $0xdc8] sm:$0xf]
  %v1282 = vld [vmem:[%s1 + $0xdcc] sm:$0xf]
  %v1283 = vld [vmem:[%s1 + $0xdd0] sm:$0xf]
  %v1284 = vld [vmem:[%s1 + $0xdd4] sm:$0xf]
  %v1285 = vld [vmem:[%s1 + $0xdd8] sm:$0xf]
  %v1286 = vld [vmem:[%s1 + $0xddc] sm:$0xf]
  %v1287 = vld [vmem:[%s1 + $0xde0] sm:$0xf]
  %v1288 = vld [vmem:[%s1 + $0xde4] sm:$0xf]
  %v1289 = vld [vmem:[%s1 + $0xde8] sm:$0xf]
  %v1290 = vld [vmem:[%s1 + $0xdec] sm:$0xf]
  %v1291 = vld [vmem:[%s1 + $0xdf0] sm:$0xf]
  %v1292 = vld [vmem:[%s1 + $0xdf4] sm:$0xf]
  %v1293 = vld [vmem:[%s1 + $0xdf8] sm:$0xf]
  %v1294 = vld [vmem:[%s1 + $0xdfc] sm:$0xf]
  %v1295 = vld [vmem:[%s1 + $0xe00] sm:$0xf]
  %v1296 = vld [vmem:[%s1 + $0xe04] sm:$0xf]
  %v1297 = vld [vmem:[%s1 + $0xe08] sm:$0xf]
  %v1298 = vld [vmem:[%s1 + $0xe0c] sm:$0xf]
  %v1299 = vld [vmem:[%s1 + $0xe10] sm:$0xf]
  %v1300 = vld [vmem:[%s1 + $0xe14] sm:$0xf]
  %v1301 = vld [vmem:[%s1 + $0xe18] sm:$0xf]
  %v1302 = vld [vmem:[%s1 + $0xe1c] sm:$0xf]
  %v1303 = vld [vmem:[%s1 + $0xe20] sm:$0xf]
  %v1304 = vld [vmem:[%s1 + $0xe24] sm:$0xf]
  %v1305 = vld [vmem:[%s1 + $0xe28] sm:$0xf]
  %v1306 = vld [vmem:[%s1 + $0xe2c] sm:$0xf]
  %v1307 = vld [vmem:[%s1 + $0xe30] sm:$0xf]
  %v1308 = vld [vmem:[%s1 + $0xe34] sm:$0xf]
  %v1309 = vld [vmem:[%s1 + $0xe38] sm:$0xf]
  %v1310 = vld [vmem:[%s1 + $0xe3c] sm:$0xf]
  %v1311 = vld [vmem:[%s1 + $0xe40] sm:$0xf]
  %v1312 = vld [vmem:[%s1 + $0xe44] sm:$0xf]
  %v1313 = vld [vmem:[%s1 + $0xe48] sm:$0xf]
  %v1314 = vld [vmem:[%s1 + $0xe4c] sm:$0xf]
  %v1315 = vld [vmem:[%s1 + $0xe50] sm:$0xf]
  %v1316 = vld [vmem:[%s1 + $0xe54] sm:$0xf]
  %v1317 = vld [vmem:[%s1 + $0xe58] sm:$0xf]
  %v1318 = vld [vmem:[%s1 + $0xe5c] sm:$0xf]
  %v1319 = vld [vmem:[%s1 + $0xe60] sm:$0xf]
  %v1320 = vld [vmem:[%s1 + $0xe64] sm:$0xf]
  %v1321 = vld [vmem:[%s1 + $0xe68] sm:$0xf]
  %v1322 = vld [vmem:[%s1 + $0xe6c] sm:$0xf]
  %v1323 = vld [vmem:[%s1 + $0xe70] sm:$0xf]
  %v1324 = vld [vmem:[%s1 + $0xe74] sm:$0xf]
  %v1325 = vld [vmem:[%s1 + $0xe78] sm:$0xf]
  %v1326 = vld [vmem:[%s1 + $0xe7c] sm:$0xf]
  %v1327 = vld [vmem:[%s1 + $0xe80] sm:$0xf]
  %v1328 = vld [vmem:[%s1 + $0xe84] sm:$0xf]
  %v1329 = vld [vmem:[%s1 + $0xe88] sm:$0xf]
  %v1330 = vld [vmem:[%s1 + $0xe8c] sm:$0xf]
  %v1331 = vld [vmem:[%s1 + $0xe90] sm:$0xf]
  %v1332 = vld [vmem:[%s1 + $0xe94] sm:$0xf]
  %v1333 = vld [vmem:[%s1 + $0xe98] sm:$0xf]
  %v1334 = vld [vmem:[%s1 + $0xe9c] sm:$0xf]
  %v1335 = vld [vmem:[%s1 + $0xea0] sm:$0xf]
  %v1336 = vld [vmem:[%s1 + $0xea4] sm:$0xf]
  %v1337 = vld [vmem:[%s1 + $0xea8] sm:$0xf]
  %v1338 = vld [vmem:[%s1 + $0xeac] sm:$0xf]
  %v1339 = vld [vmem:[%s1 + $0xeb0] sm:$0xf]
  %v1340 = vld [vmem:[%s1 + $0xeb4] sm:$0xf]
  %v1341 = vld [vmem:[%s1 + $0xeb8] sm:$0xf]
  %v1342 = vld [vmem:[%s1 + $0xebc] sm:$0xf]
  %v1343 = vld [vmem:[%s1 + $0xec0] sm:$0xf]
  %v1344 = vld [vmem:[%s1 + $0xec4] sm:$0xf]
  %v1345 = vld [vmem:[%s1 + $0xec8] sm:$0xf]
  %v1346 = vld [vmem:[%s1 + $0xecc] sm:$0xf]
  %v1347 = vld [vmem:[%s1 + $0xed0] sm:$0xf]
  %v1348 = vld [vmem:[%s1 + $0xed4] sm:$0xf]
  %v1349 = vld [vmem:[%s1 + $0xed8] sm:$0xf]
  %v1350 = vld [vmem:[%s1 + $0xedc] sm:$0xf]
  %v1351 = vld [vmem:[%s1 + $0xee0] sm:$0xf]
  %v1352 = vld [vmem:[%s1 + $0xee4] sm:$0xf]
  %v1353 = vld [vmem:[%s1 + $0xee8] sm:$0xf]
  %v1354 = vld [vmem:[%s1 + $0xeec] sm:$0xf]
  %v1355 = vld [vmem:[%s1 + $0xef0] sm:$0xf]
  %v1356 = vld [vmem:[%s1 + $0xef4] sm:$0xf]
  %v1357 = vld [vmem:[%s1 + $0xef8] sm:$0xf]
  %v1358 = vld [vmem:[%s1 + $0xefc] sm:$0xf]
  %v1359 = vld [vmem:[%s1 + $0xf00] sm:$0xf]
  %v1360 = vld [vmem:[%s1 + $0xf04] sm:$0xf]
  %v1361 = vld [vmem:[%s1 + $0xf08] sm:$0xf]
  %v1362 = vld [vmem:[%s1 + $0xf0c] sm:$0xf]
  %v1363 = vld [vmem:[%s1 + $0xf10] sm:$0xf]
  %v1364 = vld [vmem:[%s1 + $0xf14] sm:$0xf]
  %v1365 = vld [vmem:[%s1 + $0xf18] sm:$0xf]
  %v1366 = vld [vmem:[%s1 + $0xf1c] sm:$0xf]
  %v1367 = vld [vmem:[%s1 + $0xf20] sm:$0xf]
  %v1368 = vld [vmem:[%s1 + $0xf24] sm:$0xf]
  %v1369 = vld [vmem:[%s1 + $0xf28] sm:$0xf]
  %v1370 = vld [vmem:[%s1 + $0xf2c] sm:$0xf]
  %v1371 = vld [vmem:[%s1 + $0xf30] sm:$0xf]
  %v1372 = vld [vmem:[%s1 + $0xf34] sm:$0xf]
  %v1373 = vld [vmem:[%s1 + $0xf38] sm:$0xf]
  %v1374 = vld [vmem:[%s1 + $0xf3c] sm:$0xf]
  %v1375 = vld [vmem:[%s1 + $0xf40] sm:$0xf]
  %v1376 = vld [vmem:[%s1 + $0xf44] sm:$0xf]
  %v1377 = vld [vmem:[%s1 + $0xf48] sm:$0xf]
  %v1378 = vld [vmem:[%s1 + $0xf4c] sm:$0xf]
  %v1379 = vld [vmem:[%s1 + $0xf50] sm:$0xf]
  %v1380 = vld [vmem:[%s1 + $0xf54] sm:$0xf]
  %v1381 = vld [vmem:[%s1 + $0xf58] sm:$0xf]
  %v1382 = vld [vmem:[%s1 + $0xf5c] sm:$0xf]
  %v1383 = vld [vmem:[%s1 + $0xf60] sm:$0xf]
  %v1384 = vld [vmem:[%s1 + $0xf64] sm:$0xf]
  %v1385 = vld [vmem:[%s1 + $0xf68] sm:$0xf]
  %v1386 = vld [vmem:[%s1 + $0xf6c] sm:$0xf]
  %v1387 = vld [vmem:[%s1 + $0xf70] sm:$0xf]
  %v1388 = vld [vmem:[%s1 + $0xf74] sm:$0xf]
  %v1389 = vld [vmem:[%s1 + $0xf78] sm:$0xf]
  %v1390 = vld [vmem:[%s1 + $0xf7c] sm:$0xf]
  %v1391 = vld [vmem:[%s1 + $0xf80] sm:$0xf]
  %v1392 = vld [vmem:[%s1 + $0xf84] sm:$0xf]
  %v1393 = vld [vmem:[%s1 + $0xf88] sm:$0xf]
  %v1394 = vld [vmem:[%s1 + $0xf8c] sm:$0xf]
  %v1395 = vld [vmem:[%s1 + $0xf90] sm:$0xf]
  %v1396 = vld [vmem:[%s1 + $0xf94] sm:$0xf]
  %v1397 = vld [vmem:[%s1 + $0xf98] sm:$0xf]
  %v1398 = vld [vmem:[%s1 + $0xf9c] sm:$0xf]
  %v1399 = vld [vmem:[%s1 + $0xfa0] sm:$0xf]
  %v1400 = vld [vmem:[%s1 + $0xfa4] sm:$0xf]
  %v1401 = vld [vmem:[%s1 + $0xfa8] sm:$0xf]
  %v1402 = vld [vmem:[%s1 + $0xfac] sm:$0xf]
  %v1403 = vld [vmem:[%s1 + $0xfb0] sm:$0xf]
  %v1404 = vld [vmem:[%s1 + $0xfb4] sm:$0xf]
  %v1405 = vld [vmem:[%s1 + $0xfb8] sm:$0xf]
  %v1406 = vld [vmem:[%s1 + $0xfbc] sm:$0xf]
  %v1407 = vld [vmem:[%s1 + $0xfc0] sm:$0xf]
  %v1408 = vld [vmem:[%s1 + $0xfc4] sm:$0xf]
  %v1409 = vld [vmem:[%s1 + $0xfc8] sm:$0xf]
  %v1410 = vld [vmem:[%s1 + $0xfcc] sm:$0xf]
  %v1411 = vld [vmem:[%s1 + $0xfd0] sm:$0xf]
  %v1412 = vld [vmem:[%s1 + $0xfd4] sm:$0xf]
  %v1413 = vld [vmem:[%s1 + $0xfd8] sm:$0xf]
  %v1414 = vld [vmem:[%s1 + $0xfdc] sm:$0xf]
  %v1415 = vld [vmem:[%s1 + $0xfe0] sm:$0xf]
  %v1416 = vld [vmem:[%s1 + $0xfe4] sm:$0xf]
  %v1417 = vld [vmem:[%s1 + $0xfe8] sm:$0xf]
  %v1418 = vld [vmem:[%s1 + $0xfec] sm:$0xf]
  %v1419 = vld [vmem:[%s1 + $0xff0] sm:$0xf]
  %v1420 = vld [vmem:[%s1 + $0xff4] sm:$0xf]
  %v1421 = vld [vmem:[%s1 + $0xff8] sm:$0xf]
  %v1422 = vld [vmem:[%s1 + $0xffc] sm:$0xf]
  %v1423 = vld [vmem:[%s2] sm:$0x1]
  %v1424 = vlaneseq
  %v1425 = vshrl.u32 %v1424, 7
  %v1426 = vsub.s32 0, %v1425
  %v1427 = vrot.slane %v1423, %v1426
  %v1812 = vunpack.c.l.b16 %v15
  %v1813 = vunpack.c.h.b16 %v15
  %v1814 = vunpack.c.l.b16 %v16
  %v1815 = vunpack.c.h.b16 %v16
  %v1816 = vunpack.c.l.b16 %v17
  %v1817 = vunpack.c.h.b16 %v17
  %v1818 = vunpack.c.l.b16 %v18
  %v1819 = vunpack.c.h.b16 %v18
  %v1820 = vunpack.c.l.b16 %v19
  %v1821 = vunpack.c.h.b16 %v19
  %v1822 = vunpack.c.l.b16 %v20
  %v1823 = vunpack.c.h.b16 %v20
  %v1824 = vunpack.c.l.b16 %v21
  %v1825 = vunpack.c.h.b16 %v21
  %v1826 = vunpack.c.l.b16 %v22
  %v1827 = vunpack.c.h.b16 %v22
  %v1828 = vunpack.c.l.b16 %v23
  %v1829 = vunpack.c.h.b16 %v23
  %v1830 = vunpack.c.l.b16 %v24
  %v1831 = vunpack.c.h.b16 %v24
  %v1832 = vunpack.c.l.b16 %v25
  %v1833 = vunpack.c.h.b16 %v25
  %v1834 = vunpack.c.l.b16 %v26
  %v1835 = vunpack.c.h.b16 %v26
  %v1836 = vunpack.c.l.b16 %v27
  %v1837 = vunpack.c.h.b16 %v27
  %v1838 = vunpack.c.l.b16 %v28
  %v1839 = vunpack.c.h.b16 %v28
  %v1840 = vunpack.c.l.b16 %v29
  %v1841 = vunpack.c.h.b16 %v29
  %v1842 = vunpack.c.l.b16 %v30
  %v1843 = vunpack.c.h.b16 %v30
  %v1844 = vunpack.c.l.b16 %v31
  %v1845 = vunpack.c.h.b16 %v31
  %v1846 = vunpack.c.l.b16 %v32
  %v1847 = vunpack.c.h.b16 %v32
  %v1848 = vunpack.c.l.b16 %v33
  %v1849 = vunpack.c.h.b16 %v33
  %v1850 = vunpack.c.l.b16 %v34
  %v1851 = vunpack.c.h.b16 %v34
  %v1852 = vunpack.c.l.b16 %v35
  %v1853 = vunpack.c.h.b16 %v35
  %v1854 = vunpack.c.l.b16 %v36
  %v1855 = vunpack.c.h.b16 %v36
  %v1856 = vunpack.c.l.b16 %v37
  %v1857 = vunpack.c.h.b16 %v37
  %v1858 = vunpack.c.l.b16 %v38
  %v1859 = vunpack.c.h.b16 %v38
  %v1860 = vunpack.c.l.b16 %v39
  %v1861 = vunpack.c.h.b16 %v39
  %v1862 = vunpack.c.l.b16 %v40
  %v1863 = vunpack.c.h.b16 %v40
  %v1864 = vunpack.c.l.b16 %v41
  %v1865 = vunpack.c.h.b16 %v41
  %v1866 = vunpack.c.l.b16 %v42
  %v1867 = vunpack.c.h.b16 %v42
  %v1868 = vunpack.c.l.b16 %v43
  %v1869 = vunpack.c.h.b16 %v43
  %v1870 = vunpack.c.l.b16 %v44
  %v1871 = vunpack.c.h.b16 %v44
  %v1872 = vunpack.c.l.b16 %v45
  %v1873 = vunpack.c.h.b16 %v45
  %v1874 = vunpack.c.l.b16 %v46
  %v1875 = vunpack.c.h.b16 %v46
  %v1876 = vunpack.c.l.b16 %v47
  %v1877 = vunpack.c.h.b16 %v47
  %v1878 = vunpack.c.l.b16 %v48
  %v1879 = vunpack.c.h.b16 %v48
  %v1880 = vunpack.c.l.b16 %v49
  %v1881 = vunpack.c.h.b16 %v49
  %v1882 = vunpack.c.l.b16 %v50
  %v1883 = vunpack.c.h.b16 %v50
  %v1884 = vunpack.c.l.b16 %v51
  %v1885 = vunpack.c.h.b16 %v51
  %v1886 = vunpack.c.l.b16 %v52
  %v1887 = vunpack.c.h.b16 %v52
  %v1888 = vunpack.c.l.b16 %v53
  %v1889 = vunpack.c.h.b16 %v53
  %v1890 = vunpack.c.l.b16 %v54
  %v1891 = vunpack.c.h.b16 %v54
  %v1892 = vunpack.c.l.b16 %v55
  %v1893 = vunpack.c.h.b16 %v55
  %v1894 = vunpack.c.l.b16 %v56
  %v1895 = vunpack.c.h.b16 %v56
  %v1896 = vunpack.c.l.b16 %v57
  %v1897 = vunpack.c.h.b16 %v57
  %v1898 = vunpack.c.l.b16 %v58
  %v1899 = vunpack.c.h.b16 %v58
  %v1900 = vunpack.c.l.b16 %v59
  %v1901 = vunpack.c.h.b16 %v59
  %v1902 = vunpack.c.l.b16 %v60
  %v1903 = vunpack.c.h.b16 %v60
  %v1904 = vunpack.c.l.b16 %v61
  %v1905 = vunpack.c.h.b16 %v61
  %v1906 = vunpack.c.l.b16 %v62
  %v1907 = vunpack.c.h.b16 %v62
  %v1908 = vunpack.c.l.b16 %v63
  %v1909 = vunpack.c.h.b16 %v63
  %v1910 = vunpack.c.l.b16 %v64
  %v1911 = vunpack.c.h.b16 %v64
  %v1912 = vunpack.c.l.b16 %v65
  %v1913 = vunpack.c.h.b16 %v65
  %v1914 = vunpack.c.l.b16 %v66
  %v1915 = vunpack.c.h.b16 %v66
  %v1916 = vunpack.c.l.b16 %v67
  %v1917 = vunpack.c.h.b16 %v67
  %v1918 = vunpack.c.l.b16 %v68
  %v1919 = vunpack.c.h.b16 %v68
  %v1920 = vunpack.c.l.b16 %v69
  %v1921 = vunpack.c.h.b16 %v69
  %v1922 = vunpack.c.l.b16 %v70
  %v1923 = vunpack.c.h.b16 %v70
  %v1924 = vunpack.c.l.b16 %v71
  %v1925 = vunpack.c.h.b16 %v71
  %v1926 = vunpack.c.l.b16 %v72
  %v1927 = vunpack.c.h.b16 %v72
  %v1928 = vunpack.c.l.b16 %v73
  %v1929 = vunpack.c.h.b16 %v73
  %v1930 = vunpack.c.l.b16 %v74
  %v1931 = vunpack.c.h.b16 %v74
  %v1932 = vunpack.c.l.b16 %v75
  %v1933 = vunpack.c.h.b16 %v75
  %v1934 = vunpack.c.l.b16 %v76
  %v1935 = vunpack.c.h.b16 %v76
  %v1936 = vunpack.c.l.b16 %v77
  %v1937 = vunpack.c.h.b16 %v77
  %v1938 = vunpack.c.l.b16 %v78
  %v1939 = vunpack.c.h.b16 %v78
  %v1940 = vunpack.c.l.b16 %v79
  %v1941 = vunpack.c.h.b16 %v79
  %v1942 = vunpack.c.l.b16 %v80
  %v1943 = vunpack.c.h.b16 %v80
  %v1944 = vunpack.c.l.b16 %v81
  %v1945 = vunpack.c.h.b16 %v81
  %v1946 = vunpack.c.l.b16 %v82
  %v1947 = vunpack.c.h.b16 %v82
  %v1948 = vunpack.c.l.b16 %v83
  %v1949 = vunpack.c.h.b16 %v83
  %v1950 = vunpack.c.l.b16 %v84
  %v1951 = vunpack.c.h.b16 %v84
  %v1952 = vunpack.c.l.b16 %v85
  %v1953 = vunpack.c.h.b16 %v85
  %v1954 = vunpack.c.l.b16 %v86
  %v1955 = vunpack.c.h.b16 %v86
  %v1956 = vunpack.c.l.b16 %v87
  %v1957 = vunpack.c.h.b16 %v87
  %v1958 = vunpack.c.l.b16 %v88
  %v1959 = vunpack.c.h.b16 %v88
  %v1960 = vunpack.c.l.b16 %v89
  %v1961 = vunpack.c.h.b16 %v89
  %v1962 = vunpack.c.l.b16 %v90
  %v1963 = vunpack.c.h.b16 %v90
  %v1964 = vunpack.c.l.b16 %v91
  %v1965 = vunpack.c.h.b16 %v91
  %v1966 = vunpack.c.l.b16 %v92
  %v1967 = vunpack.c.h.b16 %v92
  %v1968 = vunpack.c.l.b16 %v93
  %v1969 = vunpack.c.h.b16 %v93
  %v1970 = vunpack.c.l.b16 %v94
  %v1971 = vunpack.c.h.b16 %v94
  %v1972 = vunpack.c.l.b16 %v95
  %v1973 = vunpack.c.h.b16 %v95
  %v1974 = vunpack.c.l.b16 %v96
  %v1975 = vunpack.c.h.b16 %v96
  %v1976 = vunpack.c.l.b16 %v97
  %v1977 = vunpack.c.h.b16 %v97
  %v1978 = vunpack.c.l.b16 %v98
  %v1979 = vunpack.c.h.b16 %v98
  %v1980 = vunpack.c.l.b16 %v99
  %v1981 = vunpack.c.h.b16 %v99
  %v1982 = vunpack.c.l.b16 %v100
  %v1983 = vunpack.c.h.b16 %v100
  %v1984 = vunpack.c.l.b16 %v101
  %v1985 = vunpack.c.h.b16 %v101
  %v1986 = vunpack.c.l.b16 %v102
  %v1987 = vunpack.c.h.b16 %v102
  %v1988 = vunpack.c.l.b16 %v103
  %v1989 = vunpack.c.h.b16 %v103
  %v1990 = vunpack.c.l.b16 %v104
  %v1991 = vunpack.c.h.b16 %v104
  %v1992 = vunpack.c.l.b16 %v105
  %v1993 = vunpack.c.h.b16 %v105
  %v1994 = vunpack.c.l.b16 %v106
  %v1995 = vunpack.c.h.b16 %v106
  %v1996 = vunpack.c.l.b16 %v107
  %v1997 = vunpack.c.h.b16 %v107
  %v1998 = vunpack.c.l.b16 %v108
  %v1999 = vunpack.c.h.b16 %v108
  %v2000 = vunpack.c.l.b16 %v109
  %v2001 = vunpack.c.h.b16 %v109
  %v2002 = vunpack.c.l.b16 %v110
  %v2003 = vunpack.c.h.b16 %v110
  %v2004 = vunpack.c.l.b16 %v111
  %v2005 = vunpack.c.h.b16 %v111
  %v2006 = vunpack.c.l.b16 %v112
  %v2007 = vunpack.c.h.b16 %v112
  %v2008 = vunpack.c.l.b16 %v113
  %v2009 = vunpack.c.h.b16 %v113
  %v2010 = vunpack.c.l.b16 %v114
  %v2011 = vunpack.c.h.b16 %v114
  %v2012 = vunpack.c.l.b16 %v115
  %v2013 = vunpack.c.h.b16 %v115
  %v2014 = vunpack.c.l.b16 %v116
  %v2015 = vunpack.c.h.b16 %v116
  %v2016 = vunpack.c.l.b16 %v117
  %v2017 = vunpack.c.h.b16 %v117
  %v2018 = vunpack.c.l.b16 %v118
  %v2019 = vunpack.c.h.b16 %v118
  %v2020 = vunpack.c.l.b16 %v119
  %v2021 = vunpack.c.h.b16 %v119
  %v2022 = vunpack.c.l.b16 %v120
  %v2023 = vunpack.c.h.b16 %v120
  %v2024 = vunpack.c.l.b16 %v121
  %v2025 = vunpack.c.h.b16 %v121
  %v2026 = vunpack.c.l.b16 %v122
  %v2027 = vunpack.c.h.b16 %v122
  %v2028 = vunpack.c.l.b16 %v123
  %v2029 = vunpack.c.h.b16 %v123
  %v2030 = vunpack.c.l.b16 %v124
  %v2031 = vunpack.c.h.b16 %v124
  %v2032 = vunpack.c.l.b16 %v125
  %v2033 = vunpack.c.h.b16 %v125
  %v2034 = vunpack.c.l.b16 %v126
  %v2035 = vunpack.c.h.b16 %v126
  %v2036 = vunpack.c.l.b16 %v127
  %v2037 = vunpack.c.h.b16 %v127
  %v2038 = vunpack.c.l.b16 %v128
  %v2039 = vunpack.c.h.b16 %v128
  %v2040 = vunpack.c.l.b16 %v129
  %v2041 = vunpack.c.h.b16 %v129
  %v2042 = vunpack.c.l.b16 %v130
  %v2043 = vunpack.c.h.b16 %v130
  %v2044 = vunpack.c.l.b16 %v131
  %v2045 = vunpack.c.h.b16 %v131
  %v2046 = vunpack.c.l.b16 %v132
  %v2047 = vunpack.c.h.b16 %v132
  %v2048 = vunpack.c.l.b16 %v133
  %v2049 = vunpack.c.h.b16 %v133
  %v2050 = vunpack.c.l.b16 %v134
  %v2051 = vunpack.c.h.b16 %v134
  %v2052 = vunpack.c.l.b16 %v135
  %v2053 = vunpack.c.h.b16 %v135
  %v2054 = vunpack.c.l.b16 %v136
  %v2055 = vunpack.c.h.b16 %v136
  %v2056 = vunpack.c.l.b16 %v137
  %v2057 = vunpack.c.h.b16 %v137
  %v2058 = vunpack.c.l.b16 %v138
  %v2059 = vunpack.c.h.b16 %v138
  %v2060 = vunpack.c.l.b16 %v139
  %v2061 = vunpack.c.h.b16 %v139
  %v2062 = vunpack.c.l.b16 %v140
  %v2063 = vunpack.c.h.b16 %v140
  %v2064 = vunpack.c.l.b16 %v141
  %v2065 = vunpack.c.h.b16 %v141
  %v2066 = vunpack.c.l.b16 %v142
  %v2067 = vunpack.c.h.b16 %v142
  %v2068 = vunpack.c.l.b16 %v143
  %v2069 = vunpack.c.h.b16 %v143
  %v2070 = vunpack.c.l.b16 %v144
  %v2071 = vunpack.c.h.b16 %v144
  %v2072 = vunpack.c.l.b16 %v145
  %v2073 = vunpack.c.h.b16 %v145
  %v2074 = vunpack.c.l.b16 %v146
  %v2075 = vunpack.c.h.b16 %v146
  %v2076 = vunpack.c.l.b16 %v147
  %v2077 = vunpack.c.h.b16 %v147
  %v2078 = vunpack.c.l.b16 %v148
  %v2079 = vunpack.c.h.b16 %v148
  %v2080 = vunpack.c.l.b16 %v149
  %v2081 = vunpack.c.h.b16 %v149
  %v2082 = vunpack.c.l.b16 %v150
  %v2083 = vunpack.c.h.b16 %v150
  %v2084 = vunpack.c.l.b16 %v151
  %v2085 = vunpack.c.h.b16 %v151
  %v2086 = vunpack.c.l.b16 %v152
  %v2087 = vunpack.c.h.b16 %v152
  %v2088 = vunpack.c.l.b16 %v153
  %v2089 = vunpack.c.h.b16 %v153
  %v2090 = vunpack.c.l.b16 %v154
  %v2091 = vunpack.c.h.b16 %v154
  %v2092 = vunpack.c.l.b16 %v155
  %v2093 = vunpack.c.h.b16 %v155
  %v2094 = vunpack.c.l.b16 %v156
  %v2095 = vunpack.c.h.b16 %v156
  %v2096 = vunpack.c.l.b16 %v157
  %v2097 = vunpack.c.h.b16 %v157
  %v2098 = vunpack.c.l.b16 %v158
  %v2099 = vunpack.c.h.b16 %v158
  %v2100 = vunpack.c.l.b16 %v159
  %v2101 = vunpack.c.h.b16 %v159
  %v2102 = vunpack.c.l.b16 %v160
  %v2103 = vunpack.c.h.b16 %v160
  %v2104 = vunpack.c.l.b16 %v161
  %v2105 = vunpack.c.h.b16 %v161
  %v2106 = vunpack.c.l.b16 %v162
  %v2107 = vunpack.c.h.b16 %v162
  %v2108 = vunpack.c.l.b16 %v163
  %v2109 = vunpack.c.h.b16 %v163
  %v2110 = vunpack.c.l.b16 %v164
  %v2111 = vunpack.c.h.b16 %v164
  %v2112 = vunpack.c.l.b16 %v165
  %v2113 = vunpack.c.h.b16 %v165
  %v2114 = vunpack.c.l.b16 %v166
  %v2115 = vunpack.c.h.b16 %v166
  %v2116 = vunpack.c.l.b16 %v167
  %v2117 = vunpack.c.h.b16 %v167
  %v2118 = vunpack.c.l.b16 %v168
  %v2119 = vunpack.c.h.b16 %v168
  %v2120 = vunpack.c.l.b16 %v169
  %v2121 = vunpack.c.h.b16 %v169
  %v2122 = vunpack.c.l.b16 %v170
  %v2123 = vunpack.c.h.b16 %v170
  %v2124 = vunpack.c.l.b16 %v171
  %v2125 = vunpack.c.h.b16 %v171
  %v2126 = vunpack.c.l.b16 %v172
  %v2127 = vunpack.c.h.b16 %v172
  %v2128 = vunpack.c.l.b16 %v173
  %v2129 = vunpack.c.h.b16 %v173
  %v2130 = vunpack.c.l.b16 %v174
  %v2131 = vunpack.c.h.b16 %v174
  %v2132 = vunpack.c.l.b16 %v175
  %v2133 = vunpack.c.h.b16 %v175
  %v2134 = vunpack.c.l.b16 %v176
  %v2135 = vunpack.c.h.b16 %v176
  %v2136 = vunpack.c.l.b16 %v177
  %v2137 = vunpack.c.h.b16 %v177
  %v2138 = vunpack.c.l.b16 %v178
  %v2139 = vunpack.c.h.b16 %v178
  %v2140 = vunpack.c.l.b16 %v179
  %v2141 = vunpack.c.h.b16 %v179
  %v2142 = vunpack.c.l.b16 %v180
  %v2143 = vunpack.c.h.b16 %v180
  %v2144 = vunpack.c.l.b16 %v181
  %v2145 = vunpack.c.h.b16 %v181
  %v2146 = vunpack.c.l.b16 %v182
  %v2147 = vunpack.c.h.b16 %v182
  %v2148 = vunpack.c.l.b16 %v183
  %v2149 = vunpack.c.h.b16 %v183
  %v2150 = vunpack.c.l.b16 %v184
  %v2151 = vunpack.c.h.b16 %v184
  %v2152 = vunpack.c.l.b16 %v185
  %v2153 = vunpack.c.h.b16 %v185
  %v2154 = vunpack.c.l.b16 %v186
  %v2155 = vunpack.c.h.b16 %v186
  %v2156 = vunpack.c.l.b16 %v187
  %v2157 = vunpack.c.h.b16 %v187
  %v2158 = vunpack.c.l.b16 %v188
  %v2159 = vunpack.c.h.b16 %v188
  %v2160 = vunpack.c.l.b16 %v189
  %v2161 = vunpack.c.h.b16 %v189
  %v2162 = vunpack.c.l.b16 %v190
  %v2163 = vunpack.c.h.b16 %v190
  %v2164 = vunpack.c.l.b16 %v191
  %v2165 = vunpack.c.h.b16 %v191
  %v2166 = vunpack.c.l.b16 %v192
  %v2167 = vunpack.c.h.b16 %v192
  %v2168 = vunpack.c.l.b16 %v193
  %v2169 = vunpack.c.h.b16 %v193
  %v2170 = vunpack.c.l.b16 %v194
  %v2171 = vunpack.c.h.b16 %v194
  %v2172 = vunpack.c.l.b16 %v195
  %v2173 = vunpack.c.h.b16 %v195
  %v2174 = vunpack.c.l.b16 %v196
  %v2175 = vunpack.c.h.b16 %v196
  %v2176 = vunpack.c.l.b16 %v197
  %v2177 = vunpack.c.h.b16 %v197
  %v2178 = vunpack.c.l.b16 %v198
  %v2179 = vunpack.c.h.b16 %v198
  %v2180 = vunpack.c.l.b16 %v199
  %v2181 = vunpack.c.h.b16 %v199
  %v2182 = vunpack.c.l.b16 %v200
  %v2183 = vunpack.c.h.b16 %v200
  %v2184 = vunpack.c.l.b16 %v201
  %v2185 = vunpack.c.h.b16 %v201
  %v2186 = vunpack.c.l.b16 %v202
  %v2187 = vunpack.c.h.b16 %v202
  %v2188 = vunpack.c.l.b16 %v203
  %v2189 = vunpack.c.h.b16 %v203
  %v2190 = vunpack.c.l.b16 %v204
  %v2191 = vunpack.c.h.b16 %v204
  %v2192 = vunpack.c.l.b16 %v205
  %v2193 = vunpack.c.h.b16 %v205
  %v2194 = vunpack.c.l.b16 %v206
  %v2195 = vunpack.c.h.b16 %v206
  %v2196 = vunpack.c.l.b16 %v207
  %v2197 = vunpack.c.h.b16 %v207
  %v2198 = vunpack.c.l.b16 %v208
  %v2199 = vunpack.c.h.b16 %v208
  %v2200 = vunpack.c.l.b16 %v209
  %v2201 = vunpack.c.h.b16 %v209
  %v2202 = vunpack.c.l.b16 %v210
  %v2203 = vunpack.c.h.b16 %v210
  %v2204 = vunpack.c.l.b16 %v211
  %v2205 = vunpack.c.h.b16 %v211
  %v2206 = vunpack.c.l.b16 %v212
  %v2207 = vunpack.c.h.b16 %v212
  %v2208 = vunpack.c.l.b16 %v213
  %v2209 = vunpack.c.h.b16 %v213
  %v2210 = vunpack.c.l.b16 %v214
  %v2211 = vunpack.c.h.b16 %v214
  %v2212 = vunpack.c.l.b16 %v215
  %v2213 = vunpack.c.h.b16 %v215
  %v2214 = vunpack.c.l.b16 %v216
  %v2215 = vunpack.c.h.b16 %v216
  %v2216 = vunpack.c.l.b16 %v217
  %v2217 = vunpack.c.h.b16 %v217
  %v2218 = vunpack.c.l.b16 %v218
  %v2219 = vunpack.c.h.b16 %v218
  %v2220 = vunpack.c.l.b16 %v219
  %v2221 = vunpack.c.h.b16 %v219
  %v2222 = vunpack.c.l.b16 %v220
  %v2223 = vunpack.c.h.b16 %v220
  %v2224 = vunpack.c.l.b16 %v221
  %v2225 = vunpack.c.h.b16 %v221
  %v2226 = vunpack.c.l.b16 %v222
  %v2227 = vunpack.c.h.b16 %v222
  %v2228 = vunpack.c.l.b16 %v223
  %v2229 = vunpack.c.h.b16 %v223
  %v2230 = vunpack.c.l.b16 %v224
  %v2231 = vunpack.c.h.b16 %v224
  %v2232 = vunpack.c.l.b16 %v225
  %v2233 = vunpack.c.h.b16 %v225
  %v2234 = vunpack.c.l.b16 %v226
  %v2235 = vunpack.c.h.b16 %v226
  %v2236 = vunpack.c.l.b16 %v227
  %v2237 = vunpack.c.h.b16 %v227
  %v2238 = vunpack.c.l.b16 %v228
  %v2239 = vunpack.c.h.b16 %v228
  %v2240 = vunpack.c.l.b16 %v229
  %v2241 = vunpack.c.h.b16 %v229
  %v2242 = vunpack.c.l.b16 %v230
  %v2243 = vunpack.c.h.b16 %v230
  %v2244 = vunpack.c.l.b16 %v231
  %v2245 = vunpack.c.h.b16 %v231
  %v2246 = vunpack.c.l.b16 %v232
  %v2247 = vunpack.c.h.b16 %v232
  %v2248 = vunpack.c.l.b16 %v233
  %v2249 = vunpack.c.h.b16 %v233
  %v2250 = vunpack.c.l.b16 %v234
  %v2251 = vunpack.c.h.b16 %v234
  %v2252 = vunpack.c.l.b16 %v235
  %v2253 = vunpack.c.h.b16 %v235
  %v2254 = vunpack.c.l.b16 %v236
  %v2255 = vunpack.c.h.b16 %v236
  %v2256 = vunpack.c.l.b16 %v237
  %v2257 = vunpack.c.h.b16 %v237
  %v2258 = vunpack.c.l.b16 %v238
  %v2259 = vunpack.c.h.b16 %v238
  %v2260 = vunpack.c.l.b16 %v239
  %v2261 = vunpack.c.h.b16 %v239
  %v2262 = vunpack.c.l.b16 %v240
  %v2263 = vunpack.c.h.b16 %v240
  %v2264 = vunpack.c.l.b16 %v241
  %v2265 = vunpack.c.h.b16 %v241
  %v2266 = vunpack.c.l.b16 %v242
  %v2267 = vunpack.c.h.b16 %v242
  %v2268 = vunpack.c.l.b16 %v243
  %v2269 = vunpack.c.h.b16 %v243
  %v2270 = vunpack.c.l.b16 %v244
  %v2271 = vunpack.c.h.b16 %v244
  %v2272 = vunpack.c.l.b16 %v245
  %v2273 = vunpack.c.h.b16 %v245
  %v2274 = vunpack.c.l.b16 %v246
  %v2275 = vunpack.c.h.b16 %v246
  %v2276 = vunpack.c.l.b16 %v247
  %v2277 = vunpack.c.h.b16 %v247
  %v2278 = vunpack.c.l.b16 %v248
  %v2279 = vunpack.c.h.b16 %v248
  %v2280 = vunpack.c.l.b16 %v249
  %v2281 = vunpack.c.h.b16 %v249
  %v2282 = vunpack.c.l.b16 %v250
  %v2283 = vunpack.c.h.b16 %v250
  %v2284 = vunpack.c.l.b16 %v251
  %v2285 = vunpack.c.h.b16 %v251
  %v2286 = vunpack.c.l.b16 %v252
  %v2287 = vunpack.c.h.b16 %v252
  %v2288 = vunpack.c.l.b16 %v253
  %v2289 = vunpack.c.h.b16 %v253
  %v2290 = vunpack.c.l.b16 %v254
  %v2291 = vunpack.c.h.b16 %v254
  %v2292 = vunpack.c.l.b16 %v255
  %v2293 = vunpack.c.h.b16 %v255
  %v2294 = vunpack.c.l.b16 %v256
  %v2295 = vunpack.c.h.b16 %v256
  %v2296 = vunpack.c.l.b16 %v257
  %v2297 = vunpack.c.h.b16 %v257
  %v2298 = vunpack.c.l.b16 %v258
  %v2299 = vunpack.c.h.b16 %v258
  %v2300 = vunpack.c.l.b16 %v259
  %v2301 = vunpack.c.h.b16 %v259
  %v2302 = vunpack.c.l.b16 %v260
  %v2303 = vunpack.c.h.b16 %v260
  %v2304 = vunpack.c.l.b16 %v261
  %v2305 = vunpack.c.h.b16 %v261
  %v2306 = vunpack.c.l.b16 %v262
  %v2307 = vunpack.c.h.b16 %v262
  %v2308 = vunpack.c.l.b16 %v263
  %v2309 = vunpack.c.h.b16 %v263
  %v2310 = vunpack.c.l.b16 %v264
  %v2311 = vunpack.c.h.b16 %v264
  %v2312 = vunpack.c.l.b16 %v265
  %v2313 = vunpack.c.h.b16 %v265
  %v2314 = vunpack.c.l.b16 %v266
  %v2315 = vunpack.c.h.b16 %v266
  %v2316 = vunpack.c.l.b16 %v267
  %v2317 = vunpack.c.h.b16 %v267
  %v2318 = vunpack.c.l.b16 %v268
  %v2319 = vunpack.c.h.b16 %v268
  %v2320 = vunpack.c.l.b16 %v269
  %v2321 = vunpack.c.h.b16 %v269
  %v2322 = vunpack.c.l.b16 %v270
  %v2323 = vunpack.c.h.b16 %v270
  %v2324 = vunpack.c.l.b16 %v271
  %v2325 = vunpack.c.h.b16 %v271
  %v2326 = vunpack.c.l.b16 %v272
  %v2327 = vunpack.c.h.b16 %v272
  %v2328 = vunpack.c.l.b16 %v273
  %v2329 = vunpack.c.h.b16 %v273
  %v2330 = vunpack.c.l.b16 %v274
  %v2331 = vunpack.c.h.b16 %v274
  %v2332 = vunpack.c.l.b16 %v275
  %v2333 = vunpack.c.h.b16 %v275
  %v2334 = vunpack.c.l.b16 %v276
  %v2335 = vunpack.c.h.b16 %v276
  %v2336 = vunpack.c.l.b16 %v277
  %v2337 = vunpack.c.h.b16 %v277
  %v2338 = vunpack.c.l.b16 %v278
  %v2339 = vunpack.c.h.b16 %v278
  %v2340 = vunpack.c.l.b16 %v279
  %v2341 = vunpack.c.h.b16 %v279
  %v2342 = vunpack.c.l.b16 %v280
  %v2343 = vunpack.c.h.b16 %v280
  %v2344 = vunpack.c.l.b16 %v281
  %v2345 = vunpack.c.h.b16 %v281
  %v2346 = vunpack.c.l.b16 %v282
  %v2347 = vunpack.c.h.b16 %v282
  %v2348 = vunpack.c.l.b16 %v283
  %v2349 = vunpack.c.h.b16 %v283
  %v2350 = vunpack.c.l.b16 %v284
  %v2351 = vunpack.c.h.b16 %v284
  %v2352 = vunpack.c.l.b16 %v285
  %v2353 = vunpack.c.h.b16 %v285
  %v2354 = vunpack.c.l.b16 %v286
  %v2355 = vunpack.c.h.b16 %v286
  %v2356 = vunpack.c.l.b16 %v287
  %v2357 = vunpack.c.h.b16 %v287
  %v2358 = vunpack.c.l.b16 %v288
  %v2359 = vunpack.c.h.b16 %v288
  %v2360 = vunpack.c.l.b16 %v289
  %v2361 = vunpack.c.h.b16 %v289
  %v2362 = vunpack.c.l.b16 %v290
  %v2363 = vunpack.c.h.b16 %v290
  %v2364 = vunpack.c.l.b16 %v291
  %v2365 = vunpack.c.h.b16 %v291
  %v2366 = vunpack.c.l.b16 %v292
  %v2367 = vunpack.c.h.b16 %v292
  %v2368 = vunpack.c.l.b16 %v293
  %v2369 = vunpack.c.h.b16 %v293
  %v2370 = vunpack.c.l.b16 %v294
  %v2371 = vunpack.c.h.b16 %v294
  %v2372 = vunpack.c.l.b16 %v295
  %v2373 = vunpack.c.h.b16 %v295
  %v2374 = vunpack.c.l.b16 %v296
  %v2375 = vunpack.c.h.b16 %v296
  %v2376 = vunpack.c.l.b16 %v297
  %v2377 = vunpack.c.h.b16 %v297
  %v2378 = vunpack.c.l.b16 %v298
  %v2379 = vunpack.c.h.b16 %v298
  %v2380 = vunpack.c.l.b16 %v299
  %v2381 = vunpack.c.h.b16 %v299
  %v2382 = vunpack.c.l.b16 %v300
  %v2383 = vunpack.c.h.b16 %v300
  %v2384 = vunpack.c.l.b16 %v301
  %v2385 = vunpack.c.h.b16 %v301
  %v2386 = vunpack.c.l.b16 %v302
  %v2387 = vunpack.c.h.b16 %v302
  %v2388 = vunpack.c.l.b16 %v303
  %v2389 = vunpack.c.h.b16 %v303
  %v2390 = vunpack.c.l.b16 %v304
  %v2391 = vunpack.c.h.b16 %v304
  %v2392 = vunpack.c.l.b16 %v305
  %v2393 = vunpack.c.h.b16 %v305
  %v2394 = vunpack.c.l.b16 %v306
  %v2395 = vunpack.c.h.b16 %v306
  %v2396 = vunpack.c.l.b16 %v307
  %v2397 = vunpack.c.h.b16 %v307
  %v2398 = vunpack.c.l.b16 %v308
  %v2399 = vunpack.c.h.b16 %v308
  %v2400 = vunpack.c.l.b16 %v309
  %v2401 = vunpack.c.h.b16 %v309
  %v2402 = vunpack.c.l.b16 %v310
  %v2403 = vunpack.c.h.b16 %v310
  %v2404 = vunpack.c.l.b16 %v311
  %v2405 = vunpack.c.h.b16 %v311
  %v2406 = vunpack.c.l.b16 %v312
  %v2407 = vunpack.c.h.b16 %v312
  %v2408 = vunpack.c.l.b16 %v313
  %v2409 = vunpack.c.h.b16 %v313
  %v2410 = vunpack.c.l.b16 %v314
  %v2411 = vunpack.c.h.b16 %v314
  %v2412 = vunpack.c.l.b16 %v315
  %v2413 = vunpack.c.h.b16 %v315
  %v2414 = vunpack.c.l.b16 %v316
  %v2415 = vunpack.c.h.b16 %v316
  %v2416 = vunpack.c.l.b16 %v317
  %v2417 = vunpack.c.h.b16 %v317
  %v2418 = vunpack.c.l.b16 %v318
  %v2419 = vunpack.c.h.b16 %v318
  %v2420 = vunpack.c.l.b16 %v319
  %v2421 = vunpack.c.h.b16 %v319
  %v2422 = vunpack.c.l.b16 %v320
  %v2423 = vunpack.c.h.b16 %v320
  %v2424 = vunpack.c.l.b16 %v321
  %v2425 = vunpack.c.h.b16 %v321
  %v2426 = vunpack.c.l.b16 %v322
  %v2427 = vunpack.c.h.b16 %v322
  %v2428 = vunpack.c.l.b16 %v323
  %v2429 = vunpack.c.h.b16 %v323
  %v2430 = vunpack.c.l.b16 %v324
  %v2431 = vunpack.c.h.b16 %v324
  %v2432 = vunpack.c.l.b16 %v325
  %v2433 = vunpack.c.h.b16 %v325
  %v2434 = vunpack.c.l.b16 %v326
  %v2435 = vunpack.c.h.b16 %v326
  %v2436 = vunpack.c.l.b16 %v327
  %v2437 = vunpack.c.h.b16 %v327
  %v2438 = vunpack.c.l.b16 %v328
  %v2439 = vunpack.c.h.b16 %v328
  %v2440 = vunpack.c.l.b16 %v329
  %v2441 = vunpack.c.h.b16 %v329
  %v2442 = vunpack.c.l.b16 %v330
  %v2443 = vunpack.c.h.b16 %v330
  %v2444 = vunpack.c.l.b16 %v331
  %v2445 = vunpack.c.h.b16 %v331
  %v2446 = vunpack.c.l.b16 %v332
  %v2447 = vunpack.c.h.b16 %v332
  %v2448 = vunpack.c.l.b16 %v333
  %v2449 = vunpack.c.h.b16 %v333
  %v2450 = vunpack.c.l.b16 %v334
  %v2451 = vunpack.c.h.b16 %v334
  %v2452 = vunpack.c.l.b16 %v335
  %v2453 = vunpack.c.h.b16 %v335
  %v2454 = vunpack.c.l.b16 %v336
  %v2455 = vunpack.c.h.b16 %v336
  %v2456 = vunpack.c.l.b16 %v337
  %v2457 = vunpack.c.h.b16 %v337
  %v2458 = vunpack.c.l.b16 %v338
  %v2459 = vunpack.c.h.b16 %v338
  %v2460 = vunpack.c.l.b16 %v339
  %v2461 = vunpack.c.h.b16 %v339
  %v2462 = vunpack.c.l.b16 %v340
  %v2463 = vunpack.c.h.b16 %v340
  %v2464 = vunpack.c.l.b16 %v341
  %v2465 = vunpack.c.h.b16 %v341
  %v2466 = vunpack.c.l.b16 %v342
  %v2467 = vunpack.c.h.b16 %v342
  %v2468 = vunpack.c.l.b16 %v343
  %v2469 = vunpack.c.h.b16 %v343
  %v2470 = vunpack.c.l.b16 %v344
  %v2471 = vunpack.c.h.b16 %v344
  %v2472 = vunpack.c.l.b16 %v345
  %v2473 = vunpack.c.h.b16 %v345
  %v2474 = vunpack.c.l.b16 %v346
  %v2475 = vunpack.c.h.b16 %v346
  %v2476 = vunpack.c.l.b16 %v347
  %v2477 = vunpack.c.h.b16 %v347
  %v2478 = vunpack.c.l.b16 %v348
  %v2479 = vunpack.c.h.b16 %v348
  %v2480 = vunpack.c.l.b16 %v349
  %v2481 = vunpack.c.h.b16 %v349
  %v2482 = vunpack.c.l.b16 %v350
  %v2483 = vunpack.c.h.b16 %v350
  %v2484 = vunpack.c.l.b16 %v351
  %v2485 = vunpack.c.h.b16 %v351
  %v2486 = vunpack.c.l.b16 %v352
  %v2487 = vunpack.c.h.b16 %v352
  %v2488 = vunpack.c.l.b16 %v353
  %v2489 = vunpack.c.h.b16 %v353
  %v2490 = vunpack.c.l.b16 %v354
  %v2491 = vunpack.c.h.b16 %v354
  %v2492 = vunpack.c.l.b16 %v355
  %v2493 = vunpack.c.h.b16 %v355
  %v2494 = vunpack.c.l.b16 %v356
  %v2495 = vunpack.c.h.b16 %v356
  %v2496 = vunpack.c.l.b16 %v357
  %v2497 = vunpack.c.h.b16 %v357
  %v2498 = vunpack.c.l.b16 %v358
  %v2499 = vunpack.c.h.b16 %v358
  %v2500 = vunpack.c.l.b16 %v359
  %v2501 = vunpack.c.h.b16 %v359
  %v2502 = vunpack.c.l.b16 %v360
  %v2503 = vunpack.c.h.b16 %v360
  %v2504 = vunpack.c.l.b16 %v361
  %v2505 = vunpack.c.h.b16 %v361
  %v2506 = vunpack.c.l.b16 %v362
  %v2507 = vunpack.c.h.b16 %v362
  %v2508 = vunpack.c.l.b16 %v363
  %v2509 = vunpack.c.h.b16 %v363
  %v2510 = vunpack.c.l.b16 %v364
  %v2511 = vunpack.c.h.b16 %v364
  %v2512 = vunpack.c.l.b16 %v365
  %v2513 = vunpack.c.h.b16 %v365
  %v2514 = vunpack.c.l.b16 %v366
  %v2515 = vunpack.c.h.b16 %v366
  %v2516 = vunpack.c.l.b16 %v367
  %v2517 = vunpack.c.h.b16 %v367
  %v2518 = vunpack.c.l.b16 %v368
  %v2519 = vunpack.c.h.b16 %v368
  %v2520 = vunpack.c.l.b16 %v369
  %v2521 = vunpack.c.h.b16 %v369
  %v2522 = vunpack.c.l.b16 %v370
  %v2523 = vunpack.c.h.b16 %v370
  %v2524 = vunpack.c.l.b16 %v371
  %v2525 = vunpack.c.h.b16 %v371
  %v2526 = vunpack.c.l.b16 %v372
  %v2527 = vunpack.c.h.b16 %v372
  %v2528 = vunpack.c.l.b16 %v373
  %v2529 = vunpack.c.h.b16 %v373
  %v2530 = vunpack.c.l.b16 %v374
  %v2531 = vunpack.c.h.b16 %v374
  %v2532 = vunpack.c.l.b16 %v375
  %v2533 = vunpack.c.h.b16 %v375
  %v2534 = vunpack.c.l.b16 %v376
  %v2535 = vunpack.c.h.b16 %v376
  %v2536 = vunpack.c.l.b16 %v377
  %v2537 = vunpack.c.h.b16 %v377
  %v2538 = vunpack.c.l.b16 %v378
  %v2539 = vunpack.c.h.b16 %v378
  %v2540 = vunpack.c.l.b16 %v379
  %v2541 = vunpack.c.h.b16 %v379
  %v2542 = vunpack.c.l.b16 %v380
  %v2543 = vunpack.c.h.b16 %v380
  %v2544 = vunpack.c.l.b16 %v381
  %v2545 = vunpack.c.h.b16 %v381
  %v2546 = vunpack.c.l.b16 %v382
  %v2547 = vunpack.c.h.b16 %v382
  %v2548 = vunpack.c.l.b16 %v383
  %v2549 = vunpack.c.h.b16 %v383
  %v2550 = vunpack.c.l.b16 %v384
  %v2551 = vunpack.c.h.b16 %v384
  %v2552 = vunpack.c.l.b16 %v385
  %v2553 = vunpack.c.h.b16 %v385
  %v2554 = vunpack.c.l.b16 %v386
  %v2555 = vunpack.c.h.b16 %v386
  %v2556 = vunpack.c.l.b16 %v387
  %v2557 = vunpack.c.h.b16 %v387
  %v2558 = vunpack.c.l.b16 %v388
  %v2559 = vunpack.c.h.b16 %v388
  %v2560 = vunpack.c.l.b16 %v389
  %v2561 = vunpack.c.h.b16 %v389
  %v2562 = vunpack.c.l.b16 %v390
  %v2563 = vunpack.c.h.b16 %v390
  %v2564 = vunpack.c.l.b16 %v391
  %v2565 = vunpack.c.h.b16 %v391
  %v2566 = vunpack.c.l.b16 %v392
  %v2567 = vunpack.c.h.b16 %v392
  %v2568 = vunpack.c.l.b16 %v393
  %v2569 = vunpack.c.h.b16 %v393
  %v2570 = vunpack.c.l.b16 %v394
  %v2571 = vunpack.c.h.b16 %v394
  %v2572 = vunpack.c.l.b16 %v395
  %v2573 = vunpack.c.h.b16 %v395
  %v2574 = vunpack.c.l.b16 %v396
  %v2575 = vunpack.c.h.b16 %v396
  %v2576 = vunpack.c.l.b16 %v397
  %v2577 = vunpack.c.h.b16 %v397
  %v2578 = vunpack.c.l.b16 %v398
  %v2579 = vunpack.c.h.b16 %v398
  %v2580 = vpack.c.b16 %v1876, %v1812
  %v2581 = vpack.c.b16 %v1877, %v1813
  %v2582 = vpack.c.b16 %v1878, %v1814
  %v2583 = vpack.c.b16 %v1879, %v1815
  %v2584 = vpack.c.b16 %v1880, %v1816
  %v2585 = vpack.c.b16 %v1881, %v1817
  %v2586 = vpack.c.b16 %v1882, %v1818
  %v2587 = vpack.c.b16 %v1883, %v1819
  %v2588 = vpack.c.b16 %v1884, %v1820
  %v2589 = vpack.c.b16 %v1885, %v1821
  %v2590 = vpack.c.b16 %v1886, %v1822
  %v2591 = vpack.c.b16 %v1887, %v1823
  %v2592 = vpack.c.b16 %v1888, %v1824
  %v2593 = vpack.c.b16 %v1889, %v1825
  %v2594 = vpack.c.b16 %v1890, %v1826
  %v2595 = vpack.c.b16 %v1891, %v1827
  %v2596 = vpack.c.b16 %v1892, %v1828
  %v2597 = vpack.c.b16 %v1893, %v1829
  %v2598 = vpack.c.b16 %v1894, %v1830
  %v2599 = vpack.c.b16 %v1895, %v1831
  %v2600 = vpack.c.b16 %v1896, %v1832
  %v2601 = vpack.c.b16 %v1897, %v1833
  %v2602 = vpack.c.b16 %v1898, %v1834
  %v2603 = vpack.c.b16 %v1899, %v1835
  %v2604 = vpack.c.b16 %v1900, %v1836
  %v2605 = vpack.c.b16 %v1901, %v1837
  %v2606 = vpack.c.b16 %v1902, %v1838
  %v2607 = vpack.c.b16 %v1903, %v1839
  %v2608 = vpack.c.b16 %v1904, %v1840
  %v2609 = vpack.c.b16 %v1905, %v1841
  %v2610 = vpack.c.b16 %v1906, %v1842
  %v2611 = vpack.c.b16 %v1907, %v1843
  %v2612 = vpack.c.b16 %v1908, %v1844
  %v2613 = vpack.c.b16 %v1909, %v1845
  %v2614 = vpack.c.b16 %v1910, %v1846
  %v2615 = vpack.c.b16 %v1911, %v1847
  %v2616 = vpack.c.b16 %v1912, %v1848
  %v2617 = vpack.c.b16 %v1913, %v1849
  %v2618 = vpack.c.b16 %v1914, %v1850
  %v2619 = vpack.c.b16 %v1915, %v1851
  %v2620 = vpack.c.b16 %v1916, %v1852
  %v2621 = vpack.c.b16 %v1917, %v1853
  %v2622 = vpack.c.b16 %v1918, %v1854
  %v2623 = vpack.c.b16 %v1919, %v1855
  %v2624 = vpack.c.b16 %v1920, %v1856
  %v2625 = vpack.c.b16 %v1921, %v1857
  %v2626 = vpack.c.b16 %v1922, %v1858
  %v2627 = vpack.c.b16 %v1923, %v1859
  %v2628 = vpack.c.b16 %v1924, %v1860
  %v2629 = vpack.c.b16 %v1925, %v1861
  %v2630 = vpack.c.b16 %v1926, %v1862
  %v2631 = vpack.c.b16 %v1927, %v1863
  %v2632 = vpack.c.b16 %v1928, %v1864
  %v2633 = vpack.c.b16 %v1929, %v1865
  %v2634 = vpack.c.b16 %v1930, %v1866
  %v2635 = vpack.c.b16 %v1931, %v1867
  %v2636 = vpack.c.b16 %v1932, %v1868
  %v2637 = vpack.c.b16 %v1933, %v1869
  %v2638 = vpack.c.b16 %v1934, %v1870
  %v2639 = vpack.c.b16 %v1935, %v1871
  %v2640 = vpack.c.b16 %v1936, %v1872
  %v2641 = vpack.c.b16 %v1937, %v1873
  %v2642 = vpack.c.b16 %v1938, %v1874
  %v2643 = vpack.c.b16 %v1939, %v1875
  %v2644 = vpack.c.b16 %v2004, %v1940
  %v2645 = vpack.c.b16 %v2005, %v1941
  %v2646 = vpack.c.b16 %v2006, %v1942
  %v2647 = vpack.c.b16 %v2007, %v1943
  %v2648 = vpack.c.b16 %v2008, %v1944
  %v2649 = vpack.c.b16 %v2009, %v1945
  %v2650 = vpack.c.b16 %v2010, %v1946
  %v2651 = vpack.c.b16 %v2011, %v1947
  %v2652 = vpack.c.b16 %v2012, %v1948
  %v2653 = vpack.c.b16 %v2013, %v1949
  %v2654 = vpack.c.b16 %v2014, %v1950
  %v2655 = vpack.c.b16 %v2015, %v1951
  %v2656 = vpack.c.b16 %v2016, %v1952
  %v2657 = vpack.c.b16 %v2017, %v1953
  %v2658 = vpack.c.b16 %v2018, %v1954
  %v2659 = vpack.c.b16 %v2019, %v1955
  %v2660 = vpack.c.b16 %v2020, %v1956
  %v2661 = vpack.c.b16 %v2021, %v1957
  %v2662 = vpack.c.b16 %v2022, %v1958
  %v2663 = vpack.c.b16 %v2023, %v1959
  %v2664 = vpack.c.b16 %v2024, %v1960
  %v2665 = vpack.c.b16 %v2025, %v1961
  %v2666 = vpack.c.b16 %v2026, %v1962
  %v2667 = vpack.c.b16 %v2027, %v1963
  %v2668 = vpack.c.b16 %v2028, %v1964
  %v2669 = vpack.c.b16 %v2029, %v1965
  %v2670 = vpack.c.b16 %v2030, %v1966
  %v2671 = vpack.c.b16 %v2031, %v1967
  %v2672 = vpack.c.b16 %v2032, %v1968
  %v2673 = vpack.c.b16 %v2033, %v1969
  %v2674 = vpack.c.b16 %v2034, %v1970
  %v2675 = vpack.c.b16 %v2035, %v1971
  %v2676 = vpack.c.b16 %v2036, %v1972
  %v2677 = vpack.c.b16 %v2037, %v1973
  %v2678 = vpack.c.b16 %v2038, %v1974
  %v2679 = vpack.c.b16 %v2039, %v1975
  %v2680 = vpack.c.b16 %v2040, %v1976
  %v2681 = vpack.c.b16 %v2041, %v1977
  %v2682 = vpack.c.b16 %v2042, %v1978
  %v2683 = vpack.c.b16 %v2043, %v1979
  %v2684 = vpack.c.b16 %v2044, %v1980
  %v2685 = vpack.c.b16 %v2045, %v1981
  %v2686 = vpack.c.b16 %v2046, %v1982
  %v2687 = vpack.c.b16 %v2047, %v1983
  %v2688 = vpack.c.b16 %v2048, %v1984
  %v2689 = vpack.c.b16 %v2049, %v1985
  %v2690 = vpack.c.b16 %v2050, %v1986
  %v2691 = vpack.c.b16 %v2051, %v1987
  %v2692 = vpack.c.b16 %v2052, %v1988
  %v2693 = vpack.c.b16 %v2053, %v1989
  %v2694 = vpack.c.b16 %v2054, %v1990
  %v2695 = vpack.c.b16 %v2055, %v1991
  %v2696 = vpack.c.b16 %v2056, %v1992
  %v2697 = vpack.c.b16 %v2057, %v1993
  %v2698 = vpack.c.b16 %v2058, %v1994
  %v2699 = vpack.c.b16 %v2059, %v1995
  %v2700 = vpack.c.b16 %v2060, %v1996
  %v2701 = vpack.c.b16 %v2061, %v1997
  %v2702 = vpack.c.b16 %v2062, %v1998
  %v2703 = vpack.c.b16 %v2063, %v1999
  %v2704 = vpack.c.b16 %v2064, %v2000
  %v2705 = vpack.c.b16 %v2065, %v2001
  %v2706 = vpack.c.b16 %v2066, %v2002
  %v2707 = vpack.c.b16 %v2067, %v2003
  %v2708 = vpack.c.b16 %v2132, %v2068
  %v2709 = vpack.c.b16 %v2133, %v2069
  %v2710 = vpack.c.b16 %v2134, %v2070
  %v2711 = vpack.c.b16 %v2135, %v2071
  %v2712 = vpack.c.b16 %v2136, %v2072
  %v2713 = vpack.c.b16 %v2137, %v2073
  %v2714 = vpack.c.b16 %v2138, %v2074
  %v2715 = vpack.c.b16 %v2139, %v2075
  %v2716 = vpack.c.b16 %v2140, %v2076
  %v2717 = vpack.c.b16 %v2141, %v2077
  %v2718 = vpack.c.b16 %v2142, %v2078
  %v2719 = vpack.c.b16 %v2143, %v2079
  %v2720 = vpack.c.b16 %v2144, %v2080
  %v2721 = vpack.c.b16 %v2145, %v2081
  %v2722 = vpack.c.b16 %v2146, %v2082
  %v2723 = vpack.c.b16 %v2147, %v2083
  %v2724 = vpack.c.b16 %v2148, %v2084
  %v2725 = vpack.c.b16 %v2149, %v2085
  %v2726 = vpack.c.b16 %v2150, %v2086
  %v2727 = vpack.c.b16 %v2151, %v2087
  %v2728 = vpack.c.b16 %v2152, %v2088
  %v2729 = vpack.c.b16 %v2153, %v2089
  %v2730 = vpack.c.b16 %v2154, %v2090
  %v2731 = vpack.c.b16 %v2155, %v2091
  %v2732 = vpack.c.b16 %v2156, %v2092
  %v2733 = vpack.c.b16 %v2157, %v2093
  %v2734 = vpack.c.b16 %v2158, %v2094
  %v2735 = vpack.c.b16 %v2159, %v2095
  %v2736 = vpack.c.b16 %v2160, %v2096
  %v2737 = vpack.c.b16 %v2161, %v2097
  %v2738 = vpack.c.b16 %v2162, %v2098
  %v2739 = vpack.c.b16 %v2163, %v2099
  %v2740 = vpack.c.b16 %v2164, %v2100
  %v2741 = vpack.c.b16 %v2165, %v2101
  %v2742 = vpack.c.b16 %v2166, %v2102
  %v2743 = vpack.c.b16 %v2167, %v2103
  %v2744 = vpack.c.b16 %v2168, %v2104
  %v2745 = vpack.c.b16 %v2169, %v2105
  %v2746 = vpack.c.b16 %v2170, %v2106
  %v2747 = vpack.c.b16 %v2171, %v2107
  %v2748 = vpack.c.b16 %v2172, %v2108
  %v2749 = vpack.c.b16 %v2173, %v2109
  %v2750 = vpack.c.b16 %v2174, %v2110
  %v2751 = vpack.c.b16 %v2175, %v2111
  %v2752 = vpack.c.b16 %v2176, %v2112
  %v2753 = vpack.c.b16 %v2177, %v2113
  %v2754 = vpack.c.b16 %v2178, %v2114
  %v2755 = vpack.c.b16 %v2179, %v2115
  %v2756 = vpack.c.b16 %v2180, %v2116
  %v2757 = vpack.c.b16 %v2181, %v2117
  %v2758 = vpack.c.b16 %v2182, %v2118
  %v2759 = vpack.c.b16 %v2183, %v2119
  %v2760 = vpack.c.b16 %v2184, %v2120
  %v2761 = vpack.c.b16 %v2185, %v2121
  %v2762 = vpack.c.b16 %v2186, %v2122
  %v2763 = vpack.c.b16 %v2187, %v2123
  %v2764 = vpack.c.b16 %v2188, %v2124
  %v2765 = vpack.c.b16 %v2189, %v2125
  %v2766 = vpack.c.b16 %v2190, %v2126
  %v2767 = vpack.c.b16 %v2191, %v2127
  %v2768 = vpack.c.b16 %v2192, %v2128
  %v2769 = vpack.c.b16 %v2193, %v2129
  %v2770 = vpack.c.b16 %v2194, %v2130
  %v2771 = vpack.c.b16 %v2195, %v2131
  %v2772 = vpack.c.b16 %v2260, %v2196
  %v2773 = vpack.c.b16 %v2261, %v2197
  %v2774 = vpack.c.b16 %v2262, %v2198
  %v2775 = vpack.c.b16 %v2263, %v2199
  %v2776 = vpack.c.b16 %v2264, %v2200
  %v2777 = vpack.c.b16 %v2265, %v2201
  %v2778 = vpack.c.b16 %v2266, %v2202
  %v2779 = vpack.c.b16 %v2267, %v2203
  %v2780 = vpack.c.b16 %v2268, %v2204
  %v2781 = vpack.c.b16 %v2269, %v2205
  %v2782 = vpack.c.b16 %v2270, %v2206
  %v2783 = vpack.c.b16 %v2271, %v2207
  %v2784 = vpack.c.b16 %v2272, %v2208
  %v2785 = vpack.c.b16 %v2273, %v2209
  %v2786 = vpack.c.b16 %v2274, %v2210
  %v2787 = vpack.c.b16 %v2275, %v2211
  %v2788 = vpack.c.b16 %v2276, %v2212
  %v2789 = vpack.c.b16 %v2277, %v2213
  %v2790 = vpack.c.b16 %v2278, %v2214
  %v2791 = vpack.c.b16 %v2279, %v2215
  %v2792 = vpack.c.b16 %v2280, %v2216
  %v2793 = vpack.c.b16 %v2281, %v2217
  %v2794 = vpack.c.b16 %v2282, %v2218
  %v2795 = vpack.c.b16 %v2283, %v2219
  %v2796 = vpack.c.b16 %v2284, %v2220
  %v2797 = vpack.c.b16 %v2285, %v2221
  %v2798 = vpack.c.b16 %v2286, %v2222
  %v2799 = vpack.c.b16 %v2287, %v2223
  %v2800 = vpack.c.b16 %v2288, %v2224
  %v2801 = vpack.c.b16 %v2289, %v2225
  %v2802 = vpack.c.b16 %v2290, %v2226
  %v2803 = vpack.c.b16 %v2291, %v2227
  %v2804 = vpack.c.b16 %v2292, %v2228
  %v2805 = vpack.c.b16 %v2293, %v2229
  %v2806 = vpack.c.b16 %v2294, %v2230
  %v2807 = vpack.c.b16 %v2295, %v2231
  %v2808 = vpack.c.b16 %v2296, %v2232
  %v2809 = vpack.c.b16 %v2297, %v2233
  %v2810 = vpack.c.b16 %v2298, %v2234
  %v2811 = vpack.c.b16 %v2299, %v2235
  %v2812 = vpack.c.b16 %v2300, %v2236
  %v2813 = vpack.c.b16 %v2301, %v2237
  %v2814 = vpack.c.b16 %v2302, %v2238
  %v2815 = vpack.c.b16 %v2303, %v2239
  %v2816 = vpack.c.b16 %v2304, %v2240
  %v2817 = vpack.c.b16 %v2305, %v2241
  %v2818 = vpack.c.b16 %v2306, %v2242
  %v2819 = vpack.c.b16 %v2307, %v2243
  %v2820 = vpack.c.b16 %v2308, %v2244
  %v2821 = vpack.c.b16 %v2309, %v2245
  %v2822 = vpack.c.b16 %v2310, %v2246
  %v2823 = vpack.c.b16 %v2311, %v2247
  %v2824 = vpack.c.b16 %v2312, %v2248
  %v2825 = vpack.c.b16 %v2313, %v2249
  %v2826 = vpack.c.b16 %v2314, %v2250
  %v2827 = vpack.c.b16 %v2315, %v2251
  %v2828 = vpack.c.b16 %v2316, %v2252
  %v2829 = vpack.c.b16 %v2317, %v2253
  %v2830 = vpack.c.b16 %v2318, %v2254
  %v2831 = vpack.c.b16 %v2319, %v2255
  %v2832 = vpack.c.b16 %v2320, %v2256
  %v2833 = vpack.c.b16 %v2321, %v2257
  %v2834 = vpack.c.b16 %v2322, %v2258
  %v2835 = vpack.c.b16 %v2323, %v2259
  %v2836 = vpack.c.b16 %v2388, %v2324
  %v2837 = vpack.c.b16 %v2389, %v2325
  %v2838 = vpack.c.b16 %v2390, %v2326
  %v2839 = vpack.c.b16 %v2391, %v2327
  %v2840 = vpack.c.b16 %v2392, %v2328
  %v2841 = vpack.c.b16 %v2393, %v2329
  %v2842 = vpack.c.b16 %v2394, %v2330
  %v2843 = vpack.c.b16 %v2395, %v2331
  %v2844 = vpack.c.b16 %v2396, %v2332
  %v2845 = vpack.c.b16 %v2397, %v2333
  %v2846 = vpack.c.b16 %v2398, %v2334
  %v2847 = vpack.c.b16 %v2399, %v2335
  %v2848 = vpack.c.b16 %v2400, %v2336
  %v2849 = vpack.c.b16 %v2401, %v2337
  %v2850 = vpack.c.b16 %v2402, %v2338
  %v2851 = vpack.c.b16 %v2403, %v2339
  %v2852 = vpack.c.b16 %v2404, %v2340
  %v2853 = vpack.c.b16 %v2405, %v2341
  %v2854 = vpack.c.b16 %v2406, %v2342
  %v2855 = vpack.c.b16 %v2407, %v2343
  %v2856 = vpack.c.b16 %v2408, %v2344
  %v2857 = vpack.c.b16 %v2409, %v2345
  %v2858 = vpack.c.b16 %v2410, %v2346
  %v2859 = vpack.c.b16 %v2411, %v2347
  %v2860 = vpack.c.b16 %v2412, %v2348
  %v2861 = vpack.c.b16 %v2413, %v2349
  %v2862 = vpack.c.b16 %v2414, %v2350
  %v2863 = vpack.c.b16 %v2415, %v2351
  %v2864 = vpack.c.b16 %v2416, %v2352
  %v2865 = vpack.c.b16 %v2417, %v2353
  %v2866 = vpack.c.b16 %v2418, %v2354
  %v2867 = vpack.c.b16 %v2419, %v2355
  %v2868 = vpack.c.b16 %v2420, %v2356
  %v2869 = vpack.c.b16 %v2421, %v2357
  %v2870 = vpack.c.b16 %v2422, %v2358
  %v2871 = vpack.c.b16 %v2423, %v2359
  %v2872 = vpack.c.b16 %v2424, %v2360
  %v2873 = vpack.c.b16 %v2425, %v2361
  %v2874 = vpack.c.b16 %v2426, %v2362
  %v2875 = vpack.c.b16 %v2427, %v2363
  %v2876 = vpack.c.b16 %v2428, %v2364
  %v2877 = vpack.c.b16 %v2429, %v2365
  %v2878 = vpack.c.b16 %v2430, %v2366
  %v2879 = vpack.c.b16 %v2431, %v2367
  %v2880 = vpack.c.b16 %v2432, %v2368
  %v2881 = vpack.c.b16 %v2433, %v2369
  %v2882 = vpack.c.b16 %v2434, %v2370
  %v2883 = vpack.c.b16 %v2435, %v2371
  %v2884 = vpack.c.b16 %v2436, %v2372
  %v2885 = vpack.c.b16 %v2437, %v2373
  %v2886 = vpack.c.b16 %v2438, %v2374
  %v2887 = vpack.c.b16 %v2439, %v2375
  %v2888 = vpack.c.b16 %v2440, %v2376
  %v2889 = vpack.c.b16 %v2441, %v2377
  %v2890 = vpack.c.b16 %v2442, %v2378
  %v2891 = vpack.c.b16 %v2443, %v2379
  %v2892 = vpack.c.b16 %v2444, %v2380
  %v2893 = vpack.c.b16 %v2445, %v2381
  %v2894 = vpack.c.b16 %v2446, %v2382
  %v2895 = vpack.c.b16 %v2447, %v2383
  %v2896 = vpack.c.b16 %v2448, %v2384
  %v2897 = vpack.c.b16 %v2449, %v2385
  %v2898 = vpack.c.b16 %v2450, %v2386
  %v2899 = vpack.c.b16 %v2451, %v2387
  %v2900 = vpack.c.b16 %v2516, %v2452
  %v2901 = vpack.c.b16 %v2517, %v2453
  %v2902 = vpack.c.b16 %v2518, %v2454
  %v2903 = vpack.c.b16 %v2519, %v2455
  %v2904 = vpack.c.b16 %v2520, %v2456
  %v2905 = vpack.c.b16 %v2521, %v2457
  %v2906 = vpack.c.b16 %v2522, %v2458
  %v2907 = vpack.c.b16 %v2523, %v2459
  %v2908 = vpack.c.b16 %v2524, %v2460
  %v2909 = vpack.c.b16 %v2525, %v2461
  %v2910 = vpack.c.b16 %v2526, %v2462
  %v2911 = vpack.c.b16 %v2527, %v2463
  %v2912 = vpack.c.b16 %v2528, %v2464
  %v2913 = vpack.c.b16 %v2529, %v2465
  %v2914 = vpack.c.b16 %v2530, %v2466
  %v2915 = vpack.c.b16 %v2531, %v2467
  %v2916 = vpack.c.b16 %v2532, %v2468
  %v2917 = vpack.c.b16 %v2533, %v2469
  %v2918 = vpack.c.b16 %v2534, %v2470
  %v2919 = vpack.c.b16 %v2535, %v2471
  %v2920 = vpack.c.b16 %v2536, %v2472
  %v2921 = vpack.c.b16 %v2537, %v2473
  %v2922 = vpack.c.b16 %v2538, %v2474
  %v2923 = vpack.c.b16 %v2539, %v2475
  %v2924 = vpack.c.b16 %v2540, %v2476
  %v2925 = vpack.c.b16 %v2541, %v2477
  %v2926 = vpack.c.b16 %v2542, %v2478
  %v2927 = vpack.c.b16 %v2543, %v2479
  %v2928 = vpack.c.b16 %v2544, %v2480
  %v2929 = vpack.c.b16 %v2545, %v2481
  %v2930 = vpack.c.b16 %v2546, %v2482
  %v2931 = vpack.c.b16 %v2547, %v2483
  %v2932 = vpack.c.b16 %v2548, %v2484
  %v2933 = vpack.c.b16 %v2549, %v2485
  %v2934 = vpack.c.b16 %v2550, %v2486
  %v2935 = vpack.c.b16 %v2551, %v2487
  %v2936 = vpack.c.b16 %v2552, %v2488
  %v2937 = vpack.c.b16 %v2553, %v2489
  %v2938 = vpack.c.b16 %v2554, %v2490
  %v2939 = vpack.c.b16 %v2555, %v2491
  %v2940 = vpack.c.b16 %v2556, %v2492
  %v2941 = vpack.c.b16 %v2557, %v2493
  %v2942 = vpack.c.b16 %v2558, %v2494
  %v2943 = vpack.c.b16 %v2559, %v2495
  %v2944 = vpack.c.b16 %v2560, %v2496
  %v2945 = vpack.c.b16 %v2561, %v2497
  %v2946 = vpack.c.b16 %v2562, %v2498
  %v2947 = vpack.c.b16 %v2563, %v2499
  %v2948 = vpack.c.b16 %v2564, %v2500
  %v2949 = vpack.c.b16 %v2565, %v2501
  %v2950 = vpack.c.b16 %v2566, %v2502
  %v2951 = vpack.c.b16 %v2567, %v2503
  %v2952 = vpack.c.b16 %v2568, %v2504
  %v2953 = vpack.c.b16 %v2569, %v2505
  %v2954 = vpack.c.b16 %v2570, %v2506
  %v2955 = vpack.c.b16 %v2571, %v2507
  %v2956 = vpack.c.b16 %v2572, %v2508
  %v2957 = vpack.c.b16 %v2573, %v2509
  %v2958 = vpack.c.b16 %v2574, %v2510
  %v2959 = vpack.c.b16 %v2575, %v2511
  %v2960 = vpack.c.b16 %v2576, %v2512
  %v2961 = vpack.c.b16 %v2577, %v2513
  %v2962 = vpack.c.b16 %v2578, %v2514
  %v2963 = vpack.c.b16 %v2579, %v2515
  %v4372 = vunpack.c.l.b16 %v399
  %v4373 = vunpack.c.l.b16 %v400
  %v4374 = vunpack.c.l.b16 %v401
  %v4375 = vunpack.c.l.b16 %v402
  %v4376 = vunpack.c.l.b16 %v403
  %v4377 = vunpack.c.l.b16 %v404
  %v4378 = vunpack.c.l.b16 %v405
  %v4379 = vunpack.c.l.b16 %v406
  %v4380 = vunpack.c.l.b16 %v407
  %v4381 = vunpack.c.l.b16 %v408
  %v4382 = vunpack.c.l.b16 %v409
  %v4383 = vunpack.c.l.b16 %v410
  %v4384 = vunpack.c.l.b16 %v411
  %v4385 = vunpack.c.l.b16 %v412
  %v4386 = vunpack.c.l.b16 %v413
  %v4387 = vunpack.c.l.b16 %v414
  %v4388 = vunpack.c.l.b16 %v415
  %v4389 = vunpack.c.l.b16 %v416
  %v4390 = vunpack.c.l.b16 %v417
  %v4391 = vunpack.c.l.b16 %v418
  %v4392 = vunpack.c.l.b16 %v419
  %v4393 = vunpack.c.l.b16 %v420
  %v4394 = vunpack.c.l.b16 %v421
  %v4395 = vunpack.c.l.b16 %v422
  %v4396 = vunpack.c.l.b16 %v423
  %v4397 = vunpack.c.l.b16 %v424
  %v4398 = vunpack.c.l.b16 %v425
  %v4399 = vunpack.c.l.b16 %v426
  %v4400 = vunpack.c.l.b16 %v427
  %v4401 = vunpack.c.l.b16 %v428
  %v4402 = vunpack.c.l.b16 %v429
  %v4403 = vunpack.c.l.b16 %v430
  %v4404 = vunpack.c.l.b16 %v431
  %v4405 = vunpack.c.l.b16 %v432
  %v4406 = vunpack.c.l.b16 %v433
  %v4407 = vunpack.c.l.b16 %v434
  %v4408 = vunpack.c.l.b16 %v435
  %v4409 = vunpack.c.l.b16 %v436
  %v4410 = vunpack.c.l.b16 %v437
  %v4411 = vunpack.c.l.b16 %v438
  %v4412 = vunpack.c.l.b16 %v439
  %v4413 = vunpack.c.l.b16 %v440
  %v4414 = vunpack.c.l.b16 %v441
  %v4415 = vunpack.c.l.b16 %v442
  %v4416 = vunpack.c.l.b16 %v443
  %v4417 = vunpack.c.l.b16 %v444
  %v4418 = vunpack.c.l.b16 %v445
  %v4419 = vunpack.c.l.b16 %v446
  %v4420 = vunpack.c.l.b16 %v447
  %v4421 = vunpack.c.l.b16 %v448
  %v4422 = vunpack.c.l.b16 %v449
  %v4423 = vunpack.c.l.b16 %v450
  %v4424 = vunpack.c.l.b16 %v451
  %v4425 = vunpack.c.l.b16 %v452
  %v4426 = vunpack.c.l.b16 %v453
  %v4427 = vunpack.c.l.b16 %v454
  %v4428 = vunpack.c.l.b16 %v455
  %v4429 = vunpack.c.l.b16 %v456
  %v4430 = vunpack.c.l.b16 %v457
  %v4431 = vunpack.c.l.b16 %v458
  %v4432 = vunpack.c.l.b16 %v459
  %v4433 = vunpack.c.l.b16 %v460
  %v4434 = vunpack.c.l.b16 %v461
  %v4435 = vunpack.c.l.b16 %v462
  %v4436 = vunpack.c.l.b16 %v463
  %v4437 = vunpack.c.l.b16 %v464
  %v4438 = vunpack.c.l.b16 %v465
  %v4439 = vunpack.c.l.b16 %v466
  %v4440 = vunpack.c.l.b16 %v467
  %v4441 = vunpack.c.l.b16 %v468
  %v4442 = vunpack.c.l.b16 %v469
  %v4443 = vunpack.c.l.b16 %v470
  %v4444 = vunpack.c.l.b16 %v471
  %v4445 = vunpack.c.l.b16 %v472
  %v4446 = vunpack.c.l.b16 %v473
  %v4447 = vunpack.c.l.b16 %v474
  %v4448 = vunpack.c.l.b16 %v475
  %v4449 = vunpack.c.l.b16 %v476
  %v4450 = vunpack.c.l.b16 %v477
  %v4451 = vunpack.c.l.b16 %v478
  %v4452 = vunpack.c.l.b16 %v479
  %v4453 = vunpack.c.l.b16 %v480
  %v4454 = vunpack.c.l.b16 %v481
  %v4455 = vunpack.c.l.b16 %v482
  %v4456 = vunpack.c.l.b16 %v483
  %v4457 = vunpack.c.l.b16 %v484
  %v4458 = vunpack.c.l.b16 %v485
  %v4459 = vunpack.c.l.b16 %v486
  %v4460 = vunpack.c.l.b16 %v487
  %v4461 = vunpack.c.l.b16 %v488
  %v4462 = vunpack.c.l.b16 %v489
  %v4463 = vunpack.c.l.b16 %v490
  %v4464 = vunpack.c.l.b16 %v491
  %v4465 = vunpack.c.l.b16 %v492
  %v4466 = vunpack.c.l.b16 %v493
  %v4467 = vunpack.c.l.b16 %v494
  %v4468 = vunpack.c.l.b16 %v495
  %v4469 = vunpack.c.l.b16 %v496
  %v4470 = vunpack.c.l.b16 %v497
  %v4471 = vunpack.c.l.b16 %v498
  %v4472 = vunpack.c.l.b16 %v499
  %v4473 = vunpack.c.l.b16 %v500
  %v4474 = vunpack.c.l.b16 %v501
  %v4475 = vunpack.c.l.b16 %v502
  %v4476 = vunpack.c.l.b16 %v503
  %v4477 = vunpack.c.l.b16 %v504
  %v4478 = vunpack.c.l.b16 %v505
  %v4479 = vunpack.c.l.b16 %v506
  %v4480 = vunpack.c.l.b16 %v507
  %v4481 = vunpack.c.l.b16 %v508
  %v4482 = vunpack.c.l.b16 %v509
  %v4483 = vunpack.c.l.b16 %v510
  %v4484 = vunpack.c.l.b16 %v511
  %v4485 = vunpack.c.l.b16 %v512
  %v4486 = vunpack.c.l.b16 %v513
  %v4487 = vunpack.c.l.b16 %v514
  %v4488 = vunpack.c.l.b16 %v515
  %v4489 = vunpack.c.l.b16 %v516
  %v4490 = vunpack.c.l.b16 %v517
  %v4491 = vunpack.c.l.b16 %v518
  %v4492 = vunpack.c.l.b16 %v519
  %v4493 = vunpack.c.l.b16 %v520
  %v4494 = vunpack.c.l.b16 %v521
  %v4495 = vunpack.c.l.b16 %v522
  %v4496 = vunpack.c.l.b16 %v523
  %v4497 = vunpack.c.l.b16 %v524
  %v4498 = vunpack.c.l.b16 %v525
  %v4499 = vunpack.c.l.b16 %v526
  %v4500 = vunpack.c.l.b16 %v527
  %v4501 = vunpack.c.l.b16 %v528
  %v4502 = vunpack.c.l.b16 %v529
  %v4503 = vunpack.c.l.b16 %v530
  %v4504 = vunpack.c.l.b16 %v531
  %v4505 = vunpack.c.l.b16 %v532
  %v4506 = vunpack.c.l.b16 %v533
  %v4507 = vunpack.c.l.b16 %v534
  %v4508 = vunpack.c.l.b16 %v535
  %v4509 = vunpack.c.l.b16 %v536
  %v4510 = vunpack.c.l.b16 %v537
  %v4511 = vunpack.c.l.b16 %v538
  %v4512 = vunpack.c.l.b16 %v539
  %v4513 = vunpack.c.l.b16 %v540
  %v4514 = vunpack.c.l.b16 %v541
  %v4515 = vunpack.c.l.b16 %v542
  %v4516 = vunpack.c.l.b16 %v543
  %v4517 = vunpack.c.l.b16 %v544
  %v4518 = vunpack.c.l.b16 %v545
  %v4519 = vunpack.c.l.b16 %v546
  %v4520 = vunpack.c.l.b16 %v547
  %v4521 = vunpack.c.l.b16 %v548
  %v4522 = vunpack.c.l.b16 %v549
  %v4523 = vunpack.c.l.b16 %v550
  %v4524 = vunpack.c.l.b16 %v551
  %v4525 = vunpack.c.l.b16 %v552
  %v4526 = vunpack.c.l.b16 %v553
  %v4527 = vunpack.c.l.b16 %v554
  %v4528 = vunpack.c.l.b16 %v555
  %v4529 = vunpack.c.l.b16 %v556
  %v4530 = vunpack.c.l.b16 %v557
  %v4531 = vunpack.c.l.b16 %v558
  %v4532 = vunpack.c.l.b16 %v559
  %v4533 = vunpack.c.l.b16 %v560
  %v4534 = vunpack.c.l.b16 %v561
  %v4535 = vunpack.c.l.b16 %v562
  %v4536 = vunpack.c.l.b16 %v563
  %v4537 = vunpack.c.l.b16 %v564
  %v4538 = vunpack.c.l.b16 %v565
  %v4539 = vunpack.c.l.b16 %v566
  %v4540 = vunpack.c.l.b16 %v567
  %v4541 = vunpack.c.l.b16 %v568
  %v4542 = vunpack.c.l.b16 %v569
  %v4543 = vunpack.c.l.b16 %v570
  %v4544 = vunpack.c.l.b16 %v571
  %v4545 = vunpack.c.l.b16 %v572
  %v4546 = vunpack.c.l.b16 %v573
  %v4547 = vunpack.c.l.b16 %v574
  %v4548 = vunpack.c.l.b16 %v575
  %v4549 = vunpack.c.l.b16 %v576
  %v4550 = vunpack.c.l.b16 %v577
  %v4551 = vunpack.c.l.b16 %v578
  %v4552 = vunpack.c.l.b16 %v579
  %v4553 = vunpack.c.l.b16 %v580
  %v4554 = vunpack.c.l.b16 %v581
  %v4555 = vunpack.c.l.b16 %v582
  %v4556 = vunpack.c.l.b16 %v583
  %v4557 = vunpack.c.l.b16 %v584
  %v4558 = vunpack.c.l.b16 %v585
  %v4559 = vunpack.c.l.b16 %v586
  %v4560 = vunpack.c.l.b16 %v587
  %v4561 = vunpack.c.l.b16 %v588
  %v4562 = vunpack.c.l.b16 %v589
  %v4563 = vunpack.c.l.b16 %v590
  %v4564 = vunpack.c.l.b16 %v591
  %v4565 = vunpack.c.l.b16 %v592
  %v4566 = vunpack.c.l.b16 %v593
  %v4567 = vunpack.c.l.b16 %v594
  %v4568 = vunpack.c.l.b16 %v595
  %v4569 = vunpack.c.l.b16 %v596
  %v4570 = vunpack.c.l.b16 %v597
  %v4571 = vunpack.c.l.b16 %v598
  %v4572 = vunpack.c.l.b16 %v599
  %v4573 = vunpack.c.l.b16 %v600
  %v4574 = vunpack.c.l.b16 %v601
  %v4575 = vunpack.c.l.b16 %v602
  %v4576 = vunpack.c.l.b16 %v603
  %v4577 = vunpack.c.l.b16 %v604
  %v4578 = vunpack.c.l.b16 %v605
  %v4579 = vunpack.c.l.b16 %v606
  %v4580 = vunpack.c.l.b16 %v607
  %v4581 = vunpack.c.l.b16 %v608
  %v4582 = vunpack.c.l.b16 %v609
  %v4583 = vunpack.c.l.b16 %v610
  %v4584 = vunpack.c.l.b16 %v611
  %v4585 = vunpack.c.l.b16 %v612
  %v4586 = vunpack.c.l.b16 %v613
  %v4587 = vunpack.c.l.b16 %v614
  %v4588 = vunpack.c.l.b16 %v615
  %v4589 = vunpack.c.l.b16 %v616
  %v4590 = vunpack.c.l.b16 %v617
  %v4591 = vunpack.c.l.b16 %v618
  %v4592 = vunpack.c.l.b16 %v619
  %v4593 = vunpack.c.l.b16 %v620
  %v4594 = vunpack.c.l.b16 %v621
  %v4595 = vunpack.c.l.b16 %v622
  %v4596 = vunpack.c.l.b16 %v623
  %v4597 = vunpack.c.l.b16 %v624
  %v4598 = vunpack.c.l.b16 %v625
  %v4599 = vunpack.c.l.b16 %v626
  %v4600 = vunpack.c.l.b16 %v627
  %v4601 = vunpack.c.l.b16 %v628
  %v4602 = vunpack.c.l.b16 %v629
  %v4603 = vunpack.c.l.b16 %v630
  %v4604 = vunpack.c.l.b16 %v631
  %v4605 = vunpack.c.l.b16 %v632
  %v4606 = vunpack.c.l.b16 %v633
  %v4607 = vunpack.c.l.b16 %v634
  %v4608 = vunpack.c.l.b16 %v635
  %v4609 = vunpack.c.l.b16 %v636
  %v4610 = vunpack.c.l.b16 %v637
  %v4611 = vunpack.c.l.b16 %v638
  %v4612 = vunpack.c.l.b16 %v639
  %v4613 = vunpack.c.l.b16 %v640
  %v4614 = vunpack.c.l.b16 %v641
  %v4615 = vunpack.c.l.b16 %v642
  %v4616 = vunpack.c.l.b16 %v643
  %v4617 = vunpack.c.l.b16 %v644
  %v4618 = vunpack.c.l.b16 %v645
  %v4619 = vunpack.c.l.b16 %v646
  %v4620 = vunpack.c.l.b16 %v647
  %v4621 = vunpack.c.l.b16 %v648
  %v4622 = vunpack.c.l.b16 %v649
  %v4623 = vunpack.c.l.b16 %v650
  %v4624 = vunpack.c.l.b16 %v651
  %v4625 = vunpack.c.l.b16 %v652
  %v4626 = vunpack.c.l.b16 %v653
  %v4627 = vunpack.c.l.b16 %v654
  %v4628 = vunpack.c.l.b16 %v655
  %v4629 = vunpack.c.l.b16 %v656
  %v4630 = vunpack.c.l.b16 %v657
  %v4631 = vunpack.c.l.b16 %v658
  %v4632 = vunpack.c.l.b16 %v659
  %v4633 = vunpack.c.l.b16 %v660
  %v4634 = vunpack.c.l.b16 %v661
  %v4635 = vunpack.c.l.b16 %v662
  %v4636 = vunpack.c.l.b16 %v663
  %v4637 = vunpack.c.l.b16 %v664
  %v4638 = vunpack.c.l.b16 %v665
  %v4639 = vunpack.c.l.b16 %v666
  %v4640 = vunpack.c.l.b16 %v667
  %v4641 = vunpack.c.l.b16 %v668
  %v4642 = vunpack.c.l.b16 %v669
  %v4643 = vunpack.c.l.b16 %v670
  %v4644 = vunpack.c.l.b16 %v671
  %v4645 = vunpack.c.l.b16 %v672
  %v4646 = vunpack.c.l.b16 %v673
  %v4647 = vunpack.c.l.b16 %v674
  %v4648 = vunpack.c.l.b16 %v675
  %v4649 = vunpack.c.l.b16 %v676
  %v4650 = vunpack.c.l.b16 %v677
  %v4651 = vunpack.c.l.b16 %v678
  %v4652 = vunpack.c.l.b16 %v679
  %v4653 = vunpack.c.l.b16 %v680
  %v4654 = vunpack.c.l.b16 %v681
  %v4655 = vunpack.c.l.b16 %v682
  %v4656 = vunpack.c.l.b16 %v683
  %v4657 = vunpack.c.l.b16 %v684
  %v4658 = vunpack.c.l.b16 %v685
  %v4659 = vunpack.c.l.b16 %v686
  %v4660 = vunpack.c.l.b16 %v687
  %v4661 = vunpack.c.l.b16 %v688
  %v4662 = vunpack.c.l.b16 %v689
  %v4663 = vunpack.c.l.b16 %v690
  %v4664 = vunpack.c.l.b16 %v691
  %v4665 = vunpack.c.l.b16 %v692
  %v4666 = vunpack.c.l.b16 %v693
  %v4667 = vunpack.c.l.b16 %v694
  %v4668 = vunpack.c.l.b16 %v695
  %v4669 = vunpack.c.l.b16 %v696
  %v4670 = vunpack.c.l.b16 %v697
  %v4671 = vunpack.c.l.b16 %v698
  %v4672 = vunpack.c.l.b16 %v699
  %v4673 = vunpack.c.l.b16 %v700
  %v4674 = vunpack.c.l.b16 %v701
  %v4675 = vunpack.c.l.b16 %v702
  %v4676 = vunpack.c.l.b16 %v703
  %v4677 = vunpack.c.l.b16 %v704
  %v4678 = vunpack.c.l.b16 %v705
  %v4679 = vunpack.c.l.b16 %v706
  %v4680 = vunpack.c.l.b16 %v707
  %v4681 = vunpack.c.l.b16 %v708
  %v4682 = vunpack.c.l.b16 %v709
  %v4683 = vunpack.c.l.b16 %v710
  %v4684 = vunpack.c.l.b16 %v711
  %v4685 = vunpack.c.l.b16 %v712
  %v4686 = vunpack.c.l.b16 %v713
  %v4687 = vunpack.c.l.b16 %v714
  %v4688 = vunpack.c.l.b16 %v715
  %v4689 = vunpack.c.l.b16 %v716
  %v4690 = vunpack.c.l.b16 %v717
  %v4691 = vunpack.c.l.b16 %v718
  %v4692 = vunpack.c.l.b16 %v719
  %v4693 = vunpack.c.l.b16 %v720
  %v4694 = vunpack.c.l.b16 %v721
  %v4695 = vunpack.c.l.b16 %v722
  %v4696 = vunpack.c.l.b16 %v723
  %v4697 = vunpack.c.l.b16 %v724
  %v4698 = vunpack.c.l.b16 %v725
  %v4699 = vunpack.c.l.b16 %v726
  %v4700 = vunpack.c.l.b16 %v727
  %v4701 = vunpack.c.l.b16 %v728
  %v4702 = vunpack.c.l.b16 %v729
  %v4703 = vunpack.c.l.b16 %v730
  %v4704 = vunpack.c.l.b16 %v731
  %v4705 = vunpack.c.l.b16 %v732
  %v4706 = vunpack.c.l.b16 %v733
  %v4707 = vunpack.c.l.b16 %v734
  %v4708 = vunpack.c.l.b16 %v735
  %v4709 = vunpack.c.l.b16 %v736
  %v4710 = vunpack.c.l.b16 %v737
  %v4711 = vunpack.c.l.b16 %v738
  %v4712 = vunpack.c.l.b16 %v739
  %v4713 = vunpack.c.l.b16 %v740
  %v4714 = vunpack.c.l.b16 %v741
  %v4715 = vunpack.c.l.b16 %v742
  %v4716 = vunpack.c.l.b16 %v743
  %v4717 = vunpack.c.l.b16 %v744
  %v4718 = vunpack.c.l.b16 %v745
  %v4719 = vunpack.c.l.b16 %v746
  %v4720 = vunpack.c.l.b16 %v747
  %v4721 = vunpack.c.l.b16 %v748
  %v4722 = vunpack.c.l.b16 %v749
  %v4723 = vunpack.c.l.b16 %v750
  %v4724 = vunpack.c.l.b16 %v751
  %v4725 = vunpack.c.l.b16 %v752
  %v4726 = vunpack.c.l.b16 %v753
  %v4727 = vunpack.c.l.b16 %v754
  %v4728 = vunpack.c.l.b16 %v755
  %v4729 = vunpack.c.l.b16 %v756
  %v4730 = vunpack.c.l.b16 %v757
  %v4731 = vunpack.c.l.b16 %v758
  %v4732 = vunpack.c.l.b16 %v759
  %v4733 = vunpack.c.l.b16 %v760
  %v4734 = vunpack.c.l.b16 %v761
  %v4735 = vunpack.c.l.b16 %v762
  %v4736 = vunpack.c.l.b16 %v763
  %v4737 = vunpack.c.l.b16 %v764
  %v4738 = vunpack.c.l.b16 %v765
  %v4739 = vunpack.c.l.b16 %v766
  %v4740 = vunpack.c.l.b16 %v767
  %v4741 = vunpack.c.l.b16 %v768
  %v4742 = vunpack.c.l.b16 %v769
  %v4743 = vunpack.c.l.b16 %v770
  %v4744 = vunpack.c.l.b16 %v771
  %v4745 = vunpack.c.l.b16 %v772
  %v4746 = vunpack.c.l.b16 %v773
  %v4747 = vunpack.c.l.b16 %v774
  %v4748 = vunpack.c.l.b16 %v775
  %v4749 = vunpack.c.l.b16 %v776
  %v4750 = vunpack.c.l.b16 %v777
  %v4751 = vunpack.c.l.b16 %v778
  %v4752 = vunpack.c.l.b16 %v779
  %v4753 = vunpack.c.l.b16 %v780
  %v4754 = vunpack.c.l.b16 %v781
  %v4755 = vunpack.c.l.b16 %v782
  %v4756 = vunpack.c.l.b16 %v783
  %v4757 = vunpack.c.l.b16 %v784
  %v4758 = vunpack.c.l.b16 %v785
  %v4759 = vunpack.c.l.b16 %v786
  %v4760 = vunpack.c.l.b16 %v787
  %v4761 = vunpack.c.l.b16 %v788
  %v4762 = vunpack.c.l.b16 %v789
  %v4763 = vunpack.c.l.b16 %v790
  %v4764 = vunpack.c.l.b16 %v791
  %v4765 = vunpack.c.l.b16 %v792
  %v4766 = vunpack.c.l.b16 %v793
  %v4767 = vunpack.c.l.b16 %v794
  %v4768 = vunpack.c.l.b16 %v795
  %v4769 = vunpack.c.l.b16 %v796
  %v4770 = vunpack.c.l.b16 %v797
  %v4771 = vunpack.c.l.b16 %v798
  %v4772 = vunpack.c.l.b16 %v799
  %v4773 = vunpack.c.l.b16 %v800
  %v4774 = vunpack.c.l.b16 %v801
  %v4775 = vunpack.c.l.b16 %v802
  %v4776 = vunpack.c.l.b16 %v803
  %v4777 = vunpack.c.l.b16 %v804
  %v4778 = vunpack.c.l.b16 %v805
  %v4779 = vunpack.c.l.b16 %v806
  %v4780 = vunpack.c.l.b16 %v807
  %v4781 = vunpack.c.l.b16 %v808
  %v4782 = vunpack.c.l.b16 %v809
  %v4783 = vunpack.c.l.b16 %v810
  %v4784 = vunpack.c.l.b16 %v811
  %v4785 = vunpack.c.l.b16 %v812
  %v4786 = vunpack.c.l.b16 %v813
  %v4787 = vunpack.c.l.b16 %v814
  %v4788 = vunpack.c.l.b16 %v815
  %v4789 = vunpack.c.l.b16 %v816
  %v4790 = vunpack.c.l.b16 %v817
  %v4791 = vunpack.c.l.b16 %v818
  %v4792 = vunpack.c.l.b16 %v819
  %v4793 = vunpack.c.l.b16 %v820
  %v4794 = vunpack.c.l.b16 %v821
  %v4795 = vunpack.c.l.b16 %v822
  %v4796 = vunpack.c.l.b16 %v823
  %v4797 = vunpack.c.l.b16 %v824
  %v4798 = vunpack.c.l.b16 %v825
  %v4799 = vunpack.c.l.b16 %v826
  %v4800 = vunpack.c.l.b16 %v827
  %v4801 = vunpack.c.l.b16 %v828
  %v4802 = vunpack.c.l.b16 %v829
  %v4803 = vunpack.c.l.b16 %v830
  %v4804 = vunpack.c.l.b16 %v831
  %v4805 = vunpack.c.l.b16 %v832
  %v4806 = vunpack.c.l.b16 %v833
  %v4807 = vunpack.c.l.b16 %v834
  %v4808 = vunpack.c.l.b16 %v835
  %v4809 = vunpack.c.l.b16 %v836
  %v4810 = vunpack.c.l.b16 %v837
  %v4811 = vunpack.c.l.b16 %v838
  %v4812 = vunpack.c.l.b16 %v839
  %v4813 = vunpack.c.l.b16 %v840
  %v4814 = vunpack.c.l.b16 %v841
  %v4815 = vunpack.c.l.b16 %v842
  %v4816 = vunpack.c.l.b16 %v843
  %v4817 = vunpack.c.l.b16 %v844
  %v4818 = vunpack.c.l.b16 %v845
  %v4819 = vunpack.c.l.b16 %v846
  %v4820 = vunpack.c.l.b16 %v847
  %v4821 = vunpack.c.l.b16 %v848
  %v4822 = vunpack.c.l.b16 %v849
  %v4823 = vunpack.c.l.b16 %v850
  %v4824 = vunpack.c.l.b16 %v851
  %v4825 = vunpack.c.l.b16 %v852
  %v4826 = vunpack.c.l.b16 %v853
  %v4827 = vunpack.c.l.b16 %v854
  %v4828 = vunpack.c.l.b16 %v855
  %v4829 = vunpack.c.l.b16 %v856
  %v4830 = vunpack.c.l.b16 %v857
  %v4831 = vunpack.c.l.b16 %v858
  %v4832 = vunpack.c.l.b16 %v859
  %v4833 = vunpack.c.l.b16 %v860
  %v4834 = vunpack.c.l.b16 %v861
  %v4835 = vunpack.c.l.b16 %v862
  %v4836 = vunpack.c.l.b16 %v863
  %v4837 = vunpack.c.l.b16 %v864
  %v4838 = vunpack.c.l.b16 %v865
  %v4839 = vunpack.c.l.b16 %v866
  %v4840 = vunpack.c.l.b16 %v867
  %v4841 = vunpack.c.l.b16 %v868
  %v4842 = vunpack.c.l.b16 %v869
  %v4843 = vunpack.c.l.b16 %v870
  %v4844 = vunpack.c.l.b16 %v871
  %v4845 = vunpack.c.l.b16 %v872
  %v4846 = vunpack.c.l.b16 %v873
  %v4847 = vunpack.c.l.b16 %v874
  %v4848 = vunpack.c.l.b16 %v875
  %v4849 = vunpack.c.l.b16 %v876
  %v4850 = vunpack.c.l.b16 %v877
  %v4851 = vunpack.c.l.b16 %v878
  %v4852 = vunpack.c.l.b16 %v879
  %v4853 = vunpack.c.l.b16 %v880
  %v4854 = vunpack.c.l.b16 %v881
  %v4855 = vunpack.c.l.b16 %v882
  %v4856 = vunpack.c.l.b16 %v883
  %v4857 = vunpack.c.l.b16 %v884
  %v4858 = vunpack.c.l.b16 %v885
  %v4859 = vunpack.c.l.b16 %v886
  %v4860 = vunpack.c.l.b16 %v887
  %v4861 = vunpack.c.l.b16 %v888
  %v4862 = vunpack.c.l.b16 %v889
  %v4863 = vunpack.c.l.b16 %v890
  %v4864 = vunpack.c.l.b16 %v891
  %v4865 = vunpack.c.l.b16 %v892
  %v4866 = vunpack.c.l.b16 %v893
  %v4867 = vunpack.c.l.b16 %v894
  %v4868 = vunpack.c.l.b16 %v895
  %v4869 = vunpack.c.l.b16 %v896
  %v4870 = vunpack.c.l.b16 %v897
  %v4871 = vunpack.c.l.b16 %v898
  %v4872 = vunpack.c.l.b16 %v899
  %v4873 = vunpack.c.l.b16 %v900
  %v4874 = vunpack.c.l.b16 %v901
  %v4875 = vunpack.c.l.b16 %v902
  %v4876 = vunpack.c.l.b16 %v903
  %v4877 = vunpack.c.l.b16 %v904
  %v4878 = vunpack.c.l.b16 %v905
  %v4879 = vunpack.c.l.b16 %v906
  %v4880 = vunpack.c.l.b16 %v907
  %v4881 = vunpack.c.l.b16 %v908
  %v4882 = vunpack.c.l.b16 %v909
  %v4883 = vunpack.c.l.b16 %v910
  %v4884 = vunpack.c.l.b16 %v911
  %v4885 = vunpack.c.l.b16 %v912
  %v4886 = vunpack.c.l.b16 %v913
  %v4887 = vunpack.c.l.b16 %v914
  %v4888 = vunpack.c.l.b16 %v915
  %v4889 = vunpack.c.l.b16 %v916
  %v4890 = vunpack.c.l.b16 %v917
  %v4891 = vunpack.c.l.b16 %v918
  %v4892 = vunpack.c.l.b16 %v919
  %v4893 = vunpack.c.l.b16 %v920
  %v4894 = vunpack.c.l.b16 %v921
  %v4895 = vunpack.c.l.b16 %v922
  %v4896 = vunpack.c.l.b16 %v923
  %v4897 = vunpack.c.l.b16 %v924
  %v4898 = vunpack.c.l.b16 %v925
  %v4899 = vunpack.c.l.b16 %v926
  %v4900 = vunpack.c.l.b16 %v927
  %v4901 = vunpack.c.l.b16 %v928
  %v4902 = vunpack.c.l.b16 %v929
  %v4903 = vunpack.c.l.b16 %v930
  %v4904 = vunpack.c.l.b16 %v931
  %v4905 = vunpack.c.l.b16 %v932
  %v4906 = vunpack.c.l.b16 %v933
  %v4907 = vunpack.c.l.b16 %v934
  %v4908 = vunpack.c.l.b16 %v935
  %v4909 = vunpack.c.l.b16 %v936
  %v4910 = vunpack.c.l.b16 %v937
  %v4911 = vunpack.c.l.b16 %v938
  %v4912 = vunpack.c.l.b16 %v939
  %v4913 = vunpack.c.l.b16 %v940
  %v4914 = vunpack.c.l.b16 %v941
  %v4915 = vunpack.c.l.b16 %v942
  %v4916 = vunpack.c.l.b16 %v943
  %v4917 = vunpack.c.l.b16 %v944
  %v4918 = vunpack.c.l.b16 %v945
  %v4919 = vunpack.c.l.b16 %v946
  %v4920 = vunpack.c.l.b16 %v947
  %v4921 = vunpack.c.l.b16 %v948
  %v4922 = vunpack.c.l.b16 %v949
  %v4923 = vunpack.c.l.b16 %v950
  %v4924 = vunpack.c.l.b16 %v951
  %v4925 = vunpack.c.l.b16 %v952
  %v4926 = vunpack.c.l.b16 %v953
  %v4927 = vunpack.c.l.b16 %v954
  %v4928 = vunpack.c.l.b16 %v955
  %v4929 = vunpack.c.l.b16 %v956
  %v4930 = vunpack.c.l.b16 %v957
  %v4931 = vunpack.c.l.b16 %v958
  %v4932 = vunpack.c.l.b16 %v959
  %v4933 = vunpack.c.l.b16 %v960
  %v4934 = vunpack.c.l.b16 %v961
  %v4935 = vunpack.c.l.b16 %v962
  %v4936 = vunpack.c.l.b16 %v963
  %v4937 = vunpack.c.l.b16 %v964
  %v4938 = vunpack.c.l.b16 %v965
  %v4939 = vunpack.c.l.b16 %v966
  %v4940 = vunpack.c.l.b16 %v967
  %v4941 = vunpack.c.l.b16 %v968
  %v4942 = vunpack.c.l.b16 %v969
  %v4943 = vunpack.c.l.b16 %v970
  %v4944 = vunpack.c.l.b16 %v971
  %v4945 = vunpack.c.l.b16 %v972
  %v4946 = vunpack.c.l.b16 %v973
  %v4947 = vunpack.c.l.b16 %v974
  %v4948 = vunpack.c.l.b16 %v975
  %v4949 = vunpack.c.l.b16 %v976
  %v4950 = vunpack.c.l.b16 %v977
  %v4951 = vunpack.c.l.b16 %v978
  %v4952 = vunpack.c.l.b16 %v979
  %v4953 = vunpack.c.l.b16 %v980
  %v4954 = vunpack.c.l.b16 %v981
  %v4955 = vunpack.c.l.b16 %v982
  %v4956 = vunpack.c.l.b16 %v983
  %v4957 = vunpack.c.l.b16 %v984
  %v4958 = vunpack.c.l.b16 %v985
  %v4959 = vunpack.c.l.b16 %v986
  %v4960 = vunpack.c.l.b16 %v987
  %v4961 = vunpack.c.l.b16 %v988
  %v4962 = vunpack.c.l.b16 %v989
  %v4963 = vunpack.c.l.b16 %v990
  %v4964 = vunpack.c.l.b16 %v991
  %v4965 = vunpack.c.l.b16 %v992
  %v4966 = vunpack.c.l.b16 %v993
  %v4967 = vunpack.c.l.b16 %v994
  %v4968 = vunpack.c.l.b16 %v995
  %v4969 = vunpack.c.l.b16 %v996
  %v4970 = vunpack.c.l.b16 %v997
  %v4971 = vunpack.c.l.b16 %v998
  %v4972 = vunpack.c.l.b16 %v999
  %v4973 = vunpack.c.l.b16 %v1000
  %v4974 = vunpack.c.l.b16 %v1001
  %v4975 = vunpack.c.l.b16 %v1002
  %v4976 = vunpack.c.l.b16 %v1003
  %v4977 = vunpack.c.l.b16 %v1004
  %v4978 = vunpack.c.l.b16 %v1005
  %v4979 = vunpack.c.l.b16 %v1006
  %v4980 = vunpack.c.l.b16 %v1007
  %v4981 = vunpack.c.l.b16 %v1008
  %v4982 = vunpack.c.l.b16 %v1009
  %v4983 = vunpack.c.l.b16 %v1010
  %v4984 = vunpack.c.l.b16 %v1011
  %v4985 = vunpack.c.l.b16 %v1012
  %v4986 = vunpack.c.l.b16 %v1013
  %v4987 = vunpack.c.l.b16 %v1014
  %v4988 = vunpack.c.l.b16 %v1015
  %v4989 = vunpack.c.l.b16 %v1016
  %v4990 = vunpack.c.l.b16 %v1017
  %v4991 = vunpack.c.l.b16 %v1018
  %v4992 = vunpack.c.l.b16 %v1019
  %v4993 = vunpack.c.l.b16 %v1020
  %v4994 = vunpack.c.l.b16 %v1021
  %v4995 = vunpack.c.l.b16 %v1022
  %v4996 = vunpack.c.l.b16 %v1023
  %v4997 = vunpack.c.l.b16 %v1024
  %v4998 = vunpack.c.l.b16 %v1025
  %v4999 = vunpack.c.l.b16 %v1026
  %v5000 = vunpack.c.l.b16 %v1027
  %v5001 = vunpack.c.l.b16 %v1028
  %v5002 = vunpack.c.l.b16 %v1029
  %v5003 = vunpack.c.l.b16 %v1030
  %v5004 = vunpack.c.l.b16 %v1031
  %v5005 = vunpack.c.l.b16 %v1032
  %v5006 = vunpack.c.l.b16 %v1033
  %v5007 = vunpack.c.l.b16 %v1034
  %v5008 = vunpack.c.l.b16 %v1035
  %v5009 = vunpack.c.l.b16 %v1036
  %v5010 = vunpack.c.l.b16 %v1037
  %v5011 = vunpack.c.l.b16 %v1038
  %v5012 = vunpack.c.l.b16 %v1039
  %v5013 = vunpack.c.l.b16 %v1040
  %v5014 = vunpack.c.l.b16 %v1041
  %v5015 = vunpack.c.l.b16 %v1042
  %v5016 = vunpack.c.l.b16 %v1043
  %v5017 = vunpack.c.l.b16 %v1044
  %v5018 = vunpack.c.l.b16 %v1045
  %v5019 = vunpack.c.l.b16 %v1046
  %v5020 = vunpack.c.l.b16 %v1047
  %v5021 = vunpack.c.l.b16 %v1048
  %v5022 = vunpack.c.l.b16 %v1049
  %v5023 = vunpack.c.l.b16 %v1050
  %v5024 = vunpack.c.l.b16 %v1051
  %v5025 = vunpack.c.l.b16 %v1052
  %v5026 = vunpack.c.l.b16 %v1053
  %v5027 = vunpack.c.l.b16 %v1054
  %v5028 = vunpack.c.l.b16 %v1055
  %v5029 = vunpack.c.l.b16 %v1056
  %v5030 = vunpack.c.l.b16 %v1057
  %v5031 = vunpack.c.l.b16 %v1058
  %v5032 = vunpack.c.l.b16 %v1059
  %v5033 = vunpack.c.l.b16 %v1060
  %v5034 = vunpack.c.l.b16 %v1061
  %v5035 = vunpack.c.l.b16 %v1062
  %v5036 = vunpack.c.l.b16 %v1063
  %v5037 = vunpack.c.l.b16 %v1064
  %v5038 = vunpack.c.l.b16 %v1065
  %v5039 = vunpack.c.l.b16 %v1066
  %v5040 = vunpack.c.l.b16 %v1067
  %v5041 = vunpack.c.l.b16 %v1068
  %v5042 = vunpack.c.l.b16 %v1069
  %v5043 = vunpack.c.l.b16 %v1070
  %v5044 = vunpack.c.l.b16 %v1071
  %v5045 = vunpack.c.l.b16 %v1072
  %v5046 = vunpack.c.l.b16 %v1073
  %v5047 = vunpack.c.l.b16 %v1074
  %v5048 = vunpack.c.l.b16 %v1075
  %v5049 = vunpack.c.l.b16 %v1076
  %v5050 = vunpack.c.l.b16 %v1077
  %v5051 = vunpack.c.l.b16 %v1078
  %v5052 = vunpack.c.l.b16 %v1079
  %v5053 = vunpack.c.l.b16 %v1080
  %v5054 = vunpack.c.l.b16 %v1081
  %v5055 = vunpack.c.l.b16 %v1082
  %v5056 = vunpack.c.l.b16 %v1083
  %v5057 = vunpack.c.l.b16 %v1084
  %v5058 = vunpack.c.l.b16 %v1085
  %v5059 = vunpack.c.l.b16 %v1086
  %v5060 = vunpack.c.l.b16 %v1087
  %v5061 = vunpack.c.l.b16 %v1088
  %v5062 = vunpack.c.l.b16 %v1089
  %v5063 = vunpack.c.l.b16 %v1090
  %v5064 = vunpack.c.l.b16 %v1091
  %v5065 = vunpack.c.l.b16 %v1092
  %v5066 = vunpack.c.l.b16 %v1093
  %v5067 = vunpack.c.l.b16 %v1094
  %v5068 = vunpack.c.l.b16 %v1095
  %v5069 = vunpack.c.l.b16 %v1096
  %v5070 = vunpack.c.l.b16 %v1097
  %v5071 = vunpack.c.l.b16 %v1098
  %v5072 = vunpack.c.l.b16 %v1099
  %v5073 = vunpack.c.l.b16 %v1100
  %v5074 = vunpack.c.l.b16 %v1101
  %v5075 = vunpack.c.l.b16 %v1102
  %v5076 = vunpack.c.l.b16 %v1103
  %v5077 = vunpack.c.l.b16 %v1104
  %v5078 = vunpack.c.l.b16 %v1105
  %v5079 = vunpack.c.l.b16 %v1106
  %v5080 = vunpack.c.l.b16 %v1107
  %v5081 = vunpack.c.l.b16 %v1108
  %v5082 = vunpack.c.l.b16 %v1109
  %v5083 = vunpack.c.l.b16 %v1110
  %v5084 = vunpack.c.l.b16 %v1111
  %v5085 = vunpack.c.l.b16 %v1112
  %v5086 = vunpack.c.l.b16 %v1113
  %v5087 = vunpack.c.l.b16 %v1114
  %v5088 = vunpack.c.l.b16 %v1115
  %v5089 = vunpack.c.l.b16 %v1116
  %v5090 = vunpack.c.l.b16 %v1117
  %v5091 = vunpack.c.l.b16 %v1118
  %v5092 = vunpack.c.l.b16 %v1119
  %v5093 = vunpack.c.l.b16 %v1120
  %v5094 = vunpack.c.l.b16 %v1121
  %v5095 = vunpack.c.l.b16 %v1122
  %v5096 = vunpack.c.l.b16 %v1123
  %v5097 = vunpack.c.l.b16 %v1124
  %v5098 = vunpack.c.l.b16 %v1125
  %v5099 = vunpack.c.l.b16 %v1126
  %v5100 = vunpack.c.l.b16 %v1127
  %v5101 = vunpack.c.l.b16 %v1128
  %v5102 = vunpack.c.l.b16 %v1129
  %v5103 = vunpack.c.l.b16 %v1130
  %v5104 = vunpack.c.l.b16 %v1131
  %v5105 = vunpack.c.l.b16 %v1132
  %v5106 = vunpack.c.l.b16 %v1133
  %v5107 = vunpack.c.l.b16 %v1134
  %v5108 = vunpack.c.l.b16 %v1135
  %v5109 = vunpack.c.l.b16 %v1136
  %v5110 = vunpack.c.l.b16 %v1137
  %v5111 = vunpack.c.l.b16 %v1138
  %v5112 = vunpack.c.l.b16 %v1139
  %v5113 = vunpack.c.l.b16 %v1140
  %v5114 = vunpack.c.l.b16 %v1141
  %v5115 = vunpack.c.l.b16 %v1142
  %v5116 = vunpack.c.l.b16 %v1143
  %v5117 = vunpack.c.l.b16 %v1144
  %v5118 = vunpack.c.l.b16 %v1145
  %v5119 = vunpack.c.l.b16 %v1146
  %v5120 = vunpack.c.l.b16 %v1147
  %v5121 = vunpack.c.l.b16 %v1148
  %v5122 = vunpack.c.l.b16 %v1149
  %v5123 = vunpack.c.l.b16 %v1150
  %v5124 = vunpack.c.l.b16 %v1151
  %v5125 = vunpack.c.l.b16 %v1152
  %v5126 = vunpack.c.l.b16 %v1153
  %v5127 = vunpack.c.l.b16 %v1154
  %v5128 = vunpack.c.l.b16 %v1155
  %v5129 = vunpack.c.l.b16 %v1156
  %v5130 = vunpack.c.l.b16 %v1157
  %v5131 = vunpack.c.l.b16 %v1158
  %v5132 = vunpack.c.l.b16 %v1159
  %v5133 = vunpack.c.l.b16 %v1160
  %v5134 = vunpack.c.l.b16 %v1161
  %v5135 = vunpack.c.l.b16 %v1162
  %v5136 = vunpack.c.l.b16 %v1163
  %v5137 = vunpack.c.l.b16 %v1164
  %v5138 = vunpack.c.l.b16 %v1165
  %v5139 = vunpack.c.l.b16 %v1166
  %v5140 = vunpack.c.l.b16 %v1167
  %v5141 = vunpack.c.l.b16 %v1168
  %v5142 = vunpack.c.l.b16 %v1169
  %v5143 = vunpack.c.l.b16 %v1170
  %v5144 = vunpack.c.l.b16 %v1171
  %v5145 = vunpack.c.l.b16 %v1172
  %v5146 = vunpack.c.l.b16 %v1173
  %v5147 = vunpack.c.l.b16 %v1174
  %v5148 = vunpack.c.l.b16 %v1175
  %v5149 = vunpack.c.l.b16 %v1176
  %v5150 = vunpack.c.l.b16 %v1177
  %v5151 = vunpack.c.l.b16 %v1178
  %v5152 = vunpack.c.l.b16 %v1179
  %v5153 = vunpack.c.l.b16 %v1180
  %v5154 = vunpack.c.l.b16 %v1181
  %v5155 = vunpack.c.l.b16 %v1182
  %v5156 = vunpack.c.l.b16 %v1183
  %v5157 = vunpack.c.l.b16 %v1184
  %v5158 = vunpack.c.l.b16 %v1185
  %v5159 = vunpack.c.l.b16 %v1186
  %v5160 = vunpack.c.l.b16 %v1187
  %v5161 = vunpack.c.l.b16 %v1188
  %v5162 = vunpack.c.l.b16 %v1189
  %v5163 = vunpack.c.l.b16 %v1190
  %v5164 = vunpack.c.l.b16 %v1191
  %v5165 = vunpack.c.l.b16 %v1192
  %v5166 = vunpack.c.l.b16 %v1193
  %v5167 = vunpack.c.l.b16 %v1194
  %v5168 = vunpack.c.l.b16 %v1195
  %v5169 = vunpack.c.l.b16 %v1196
  %v5170 = vunpack.c.l.b16 %v1197
  %v5171 = vunpack.c.l.b16 %v1198
  %v5172 = vunpack.c.l.b16 %v1199
  %v5173 = vunpack.c.l.b16 %v1200
  %v5174 = vunpack.c.l.b16 %v1201
  %v5175 = vunpack.c.l.b16 %v1202
  %v5176 = vunpack.c.l.b16 %v1203
  %v5177 = vunpack.c.l.b16 %v1204
  %v5178 = vunpack.c.l.b16 %v1205
  %v5179 = vunpack.c.l.b16 %v1206
  %v5180 = vunpack.c.l.b16 %v1207
  %v5181 = vunpack.c.l.b16 %v1208
  %v5182 = vunpack.c.l.b16 %v1209
  %v5183 = vunpack.c.l.b16 %v1210
  %v5184 = vunpack.c.l.b16 %v1211
  %v5185 = vunpack.c.l.b16 %v1212
  %v5186 = vunpack.c.l.b16 %v1213
  %v5187 = vunpack.c.l.b16 %v1214
  %v5188 = vunpack.c.l.b16 %v1215
  %v5189 = vunpack.c.l.b16 %v1216
  %v5190 = vunpack.c.l.b16 %v1217
  %v5191 = vunpack.c.l.b16 %v1218
  %v5192 = vunpack.c.l.b16 %v1219
  %v5193 = vunpack.c.l.b16 %v1220
  %v5194 = vunpack.c.l.b16 %v1221
  %v5195 = vunpack.c.l.b16 %v1222
  %v5196 = vunpack.c.l.b16 %v1223
  %v5197 = vunpack.c.l.b16 %v1224
  %v5198 = vunpack.c.l.b16 %v1225
  %v5199 = vunpack.c.l.b16 %v1226
  %v5200 = vunpack.c.l.b16 %v1227
  %v5201 = vunpack.c.l.b16 %v1228
  %v5202 = vunpack.c.l.b16 %v1229
  %v5203 = vunpack.c.l.b16 %v1230
  %v5204 = vunpack.c.l.b16 %v1231
  %v5205 = vunpack.c.l.b16 %v1232
  %v5206 = vunpack.c.l.b16 %v1233
  %v5207 = vunpack.c.l.b16 %v1234
  %v5208 = vunpack.c.l.b16 %v1235
  %v5209 = vunpack.c.l.b16 %v1236
  %v5210 = vunpack.c.l.b16 %v1237
  %v5211 = vunpack.c.l.b16 %v1238
  %v5212 = vunpack.c.l.b16 %v1239
  %v5213 = vunpack.c.l.b16 %v1240
  %v5214 = vunpack.c.l.b16 %v1241
  %v5215 = vunpack.c.l.b16 %v1242
  %v5216 = vunpack.c.l.b16 %v1243
  %v5217 = vunpack.c.l.b16 %v1244
  %v5218 = vunpack.c.l.b16 %v1245
  %v5219 = vunpack.c.l.b16 %v1246
  %v5220 = vunpack.c.l.b16 %v1247
  %v5221 = vunpack.c.l.b16 %v1248
  %v5222 = vunpack.c.l.b16 %v1249
  %v5223 = vunpack.c.l.b16 %v1250
  %v5224 = vunpack.c.l.b16 %v1251
  %v5225 = vunpack.c.l.b16 %v1252
  %v5226 = vunpack.c.l.b16 %v1253
  %v5227 = vunpack.c.l.b16 %v1254
  %v5228 = vunpack.c.l.b16 %v1255
  %v5229 = vunpack.c.l.b16 %v1256
  %v5230 = vunpack.c.l.b16 %v1257
  %v5231 = vunpack.c.l.b16 %v1258
  %v5232 = vunpack.c.l.b16 %v1259
  %v5233 = vunpack.c.l.b16 %v1260
  %v5234 = vunpack.c.l.b16 %v1261
  %v5235 = vunpack.c.l.b16 %v1262
  %v5236 = vunpack.c.l.b16 %v1263
  %v5237 = vunpack.c.l.b16 %v1264
  %v5238 = vunpack.c.l.b16 %v1265
  %v5239 = vunpack.c.l.b16 %v1266
  %v5240 = vunpack.c.l.b16 %v1267
  %v5241 = vunpack.c.l.b16 %v1268
  %v5242 = vunpack.c.l.b16 %v1269
  %v5243 = vunpack.c.l.b16 %v1270
  %v5244 = vunpack.c.l.b16 %v1271
  %v5245 = vunpack.c.l.b16 %v1272
  %v5246 = vunpack.c.l.b16 %v1273
  %v5247 = vunpack.c.l.b16 %v1274
  %v5248 = vunpack.c.l.b16 %v1275
  %v5249 = vunpack.c.l.b16 %v1276
  %v5250 = vunpack.c.l.b16 %v1277
  %v5251 = vunpack.c.l.b16 %v1278
  %v5252 = vunpack.c.l.b16 %v1279
  %v5253 = vunpack.c.l.b16 %v1280
  %v5254 = vunpack.c.l.b16 %v1281
  %v5255 = vunpack.c.l.b16 %v1282
  %v5256 = vunpack.c.l.b16 %v1283
  %v5257 = vunpack.c.l.b16 %v1284
  %v5258 = vunpack.c.l.b16 %v1285
  %v5259 = vunpack.c.l.b16 %v1286
  %v5260 = vunpack.c.l.b16 %v1287
  %v5261 = vunpack.c.l.b16 %v1288
  %v5262 = vunpack.c.l.b16 %v1289
  %v5263 = vunpack.c.l.b16 %v1290
  %v5264 = vunpack.c.l.b16 %v1291
  %v5265 = vunpack.c.l.b16 %v1292
  %v5266 = vunpack.c.l.b16 %v1293
  %v5267 = vunpack.c.l.b16 %v1294
  %v5268 = vunpack.c.l.b16 %v1295
  %v5269 = vunpack.c.l.b16 %v1296
  %v5270 = vunpack.c.l.b16 %v1297
  %v5271 = vunpack.c.l.b16 %v1298
  %v5272 = vunpack.c.l.b16 %v1299
  %v5273 = vunpack.c.l.b16 %v1300
  %v5274 = vunpack.c.l.b16 %v1301
  %v5275 = vunpack.c.l.b16 %v1302
  %v5276 = vunpack.c.l.b16 %v1303
  %v5277 = vunpack.c.l.b16 %v1304
  %v5278 = vunpack.c.l.b16 %v1305
  %v5279 = vunpack.c.l.b16 %v1306
  %v5280 = vunpack.c.l.b16 %v1307
  %v5281 = vunpack.c.l.b16 %v1308
  %v5282 = vunpack.c.l.b16 %v1309
  %v5283 = vunpack.c.l.b16 %v1310
  %v5284 = vunpack.c.l.b16 %v1311
  %v5285 = vunpack.c.l.b16 %v1312
  %v5286 = vunpack.c.l.b16 %v1313
  %v5287 = vunpack.c.l.b16 %v1314
  %v5288 = vunpack.c.l.b16 %v1315
  %v5289 = vunpack.c.l.b16 %v1316
  %v5290 = vunpack.c.l.b16 %v1317
  %v5291 = vunpack.c.l.b16 %v1318
  %v5292 = vunpack.c.l.b16 %v1319
  %v5293 = vunpack.c.l.b16 %v1320
  %v5294 = vunpack.c.l.b16 %v1321
  %v5295 = vunpack.c.l.b16 %v1322
  %v5296 = vunpack.c.l.b16 %v1323
  %v5297 = vunpack.c.l.b16 %v1324
  %v5298 = vunpack.c.l.b16 %v1325
  %v5299 = vunpack.c.l.b16 %v1326
  %v5300 = vunpack.c.l.b16 %v1327
  %v5301 = vunpack.c.l.b16 %v1328
  %v5302 = vunpack.c.l.b16 %v1329
  %v5303 = vunpack.c.l.b16 %v1330
  %v5304 = vunpack.c.l.b16 %v1331
  %v5305 = vunpack.c.l.b16 %v1332
  %v5306 = vunpack.c.l.b16 %v1333
  %v5307 = vunpack.c.l.b16 %v1334
  %v5308 = vunpack.c.l.b16 %v1335
  %v5309 = vunpack.c.l.b16 %v1336
  %v5310 = vunpack.c.l.b16 %v1337
  %v5311 = vunpack.c.l.b16 %v1338
  %v5312 = vunpack.c.l.b16 %v1339
  %v5313 = vunpack.c.l.b16 %v1340
  %v5314 = vunpack.c.l.b16 %v1341
  %v5315 = vunpack.c.l.b16 %v1342
  %v5316 = vunpack.c.l.b16 %v1343
  %v5317 = vunpack.c.l.b16 %v1344
  %v5318 = vunpack.c.l.b16 %v1345
  %v5319 = vunpack.c.l.b16 %v1346
  %v5320 = vunpack.c.l.b16 %v1347
  %v5321 = vunpack.c.l.b16 %v1348
  %v5322 = vunpack.c.l.b16 %v1349
  %v5323 = vunpack.c.l.b16 %v1350
  %v5324 = vunpack.c.l.b16 %v1351
  %v5325 = vunpack.c.l.b16 %v1352
  %v5326 = vunpack.c.l.b16 %v1353
  %v5327 = vunpack.c.l.b16 %v1354
  %v5328 = vunpack.c.l.b16 %v1355
  %v5329 = vunpack.c.l.b16 %v1356
  %v5330 = vunpack.c.l.b16 %v1357
  %v5331 = vunpack.c.l.b16 %v1358
  %v5332 = vunpack.c.l.b16 %v1359
  %v5333 = vunpack.c.l.b16 %v1360
  %v5334 = vunpack.c.l.b16 %v1361
  %v5335 = vunpack.c.l.b16 %v1362
  %v5336 = vunpack.c.l.b16 %v1363
  %v5337 = vunpack.c.l.b16 %v1364
  %v5338 = vunpack.c.l.b16 %v1365
  %v5339 = vunpack.c.l.b16 %v1366
  %v5340 = vunpack.c.l.b16 %v1367
  %v5341 = vunpack.c.l.b16 %v1368
  %v5342 = vunpack.c.l.b16 %v1369
  %v5343 = vunpack.c.l.b16 %v1370
  %v5344 = vunpack.c.l.b16 %v1371
  %v5345 = vunpack.c.l.b16 %v1372
  %v5346 = vunpack.c.l.b16 %v1373
  %v5347 = vunpack.c.l.b16 %v1374
  %v5348 = vunpack.c.l.b16 %v1375
  %v5349 = vunpack.c.l.b16 %v1376
  %v5350 = vunpack.c.l.b16 %v1377
  %v5351 = vunpack.c.l.b16 %v1378
  %v5352 = vunpack.c.l.b16 %v1379
  %v5353 = vunpack.c.l.b16 %v1380
  %v5354 = vunpack.c.l.b16 %v1381
  %v5355 = vunpack.c.l.b16 %v1382
  %v5356 = vunpack.c.l.b16 %v1383
  %v5357 = vunpack.c.l.b16 %v1384
  %v5358 = vunpack.c.l.b16 %v1385
  %v5359 = vunpack.c.l.b16 %v1386
  %v5360 = vunpack.c.l.b16 %v1387
  %v5361 = vunpack.c.l.b16 %v1388
  %v5362 = vunpack.c.l.b16 %v1389
  %v5363 = vunpack.c.l.b16 %v1390
  %v5364 = vunpack.c.l.b16 %v1391
  %v5365 = vunpack.c.l.b16 %v1392
  %v5366 = vunpack.c.l.b16 %v1393
  %v5367 = vunpack.c.l.b16 %v1394
  %v5368 = vunpack.c.l.b16 %v1395
  %v5369 = vunpack.c.l.b16 %v1396
  %v5370 = vunpack.c.l.b16 %v1397
  %v5371 = vunpack.c.l.b16 %v1398
  %v5372 = vunpack.c.l.b16 %v1399
  %v5373 = vunpack.c.l.b16 %v1400
  %v5374 = vunpack.c.l.b16 %v1401
  %v5375 = vunpack.c.l.b16 %v1402
  %v5376 = vunpack.c.l.b16 %v1403
  %v5377 = vunpack.c.l.b16 %v1404
  %v5378 = vunpack.c.l.b16 %v1405
  %v5379 = vunpack.c.l.b16 %v1406
  %v5380 = vunpack.c.l.b16 %v1407
  %v5381 = vunpack.c.l.b16 %v1408
  %v5382 = vunpack.c.l.b16 %v1409
  %v5383 = vunpack.c.l.b16 %v1410
  %v5384 = vunpack.c.l.b16 %v1411
  %v5385 = vunpack.c.l.b16 %v1412
  %v5386 = vunpack.c.l.b16 %v1413
  %v5387 = vunpack.c.l.b16 %v1414
  %v5388 = vunpack.c.l.b16 %v1415
  %v5389 = vunpack.c.l.b16 %v1416
  %v5390 = vunpack.c.l.b16 %v1417
  %v5391 = vunpack.c.l.b16 %v1418
  %v5392 = vunpack.c.l.b16 %v1419
  %v5393 = vunpack.c.l.b16 %v1420
  %v5394 = vunpack.c.l.b16 %v1421
  %v5395 = vunpack.c.l.b16 %v1422
  %v5396 = vpack.c.b16 %v4373, %v4372
  %v5397 = vpack.c.b16 %v4375, %v4374
  %v5398 = vpack.c.b16 %v4377, %v4376
  %v5399 = vpack.c.b16 %v4379, %v4378
  %v5400 = vpack.c.b16 %v4381, %v4380
  %v5401 = vpack.c.b16 %v4383, %v4382
  %v5402 = vpack.c.b16 %v4385, %v4384
  %v5403 = vpack.c.b16 %v4387, %v4386
  %v5404 = vpack.c.b16 %v4389, %v4388
  %v5405 = vpack.c.b16 %v4391, %v4390
  %v5406 = vpack.c.b16 %v4393, %v4392
  %v5407 = vpack.c.b16 %v4395, %v4394
  %v5408 = vpack.c.b16 %v4397, %v4396
  %v5409 = vpack.c.b16 %v4399, %v4398
  %v5410 = vpack.c.b16 %v4401, %v4400
  %v5411 = vpack.c.b16 %v4403, %v4402
  %v5412 = vpack.c.b16 %v4405, %v4404
  %v5413 = vpack.c.b16 %v4407, %v4406
  %v5414 = vpack.c.b16 %v4409, %v4408
  %v5415 = vpack.c.b16 %v4411, %v4410
  %v5416 = vpack.c.b16 %v4413, %v4412
  %v5417 = vpack.c.b16 %v4415, %v4414
  %v5418 = vpack.c.b16 %v4417, %v4416
  %v5419 = vpack.c.b16 %v4419, %v4418
  %v5420 = vpack.c.b16 %v4421, %v4420
  %v5421 = vpack.c.b16 %v4423, %v4422
  %v5422 = vpack.c.b16 %v4425, %v4424
  %v5423 = vpack.c.b16 %v4427, %v4426
  %v5424 = vpack.c.b16 %v4429, %v4428
  %v5425 = vpack.c.b16 %v4431, %v4430
  %v5426 = vpack.c.b16 %v4433, %v4432
  %v5427 = vpack.c.b16 %v4435, %v4434
  %v5428 = vpack.c.b16 %v4437, %v4436
  %v5429 = vpack.c.b16 %v4439, %v4438
  %v5430 = vpack.c.b16 %v4441, %v4440
  %v5431 = vpack.c.b16 %v4443, %v4442
  %v5432 = vpack.c.b16 %v4445, %v4444
  %v5433 = vpack.c.b16 %v4447, %v4446
  %v5434 = vpack.c.b16 %v4449, %v4448
  %v5435 = vpack.c.b16 %v4451, %v4450
  %v5436 = vpack.c.b16 %v4453, %v4452
  %v5437 = vpack.c.b16 %v4455, %v4454
  %v5438 = vpack.c.b16 %v4457, %v4456
  %v5439 = vpack.c.b16 %v4459, %v4458
  %v5440 = vpack.c.b16 %v4461, %v4460
  %v5441 = vpack.c.b16 %v4463, %v4462
  %v5442 = vpack.c.b16 %v4465, %v4464
  %v5443 = vpack.c.b16 %v4467, %v4466
  %v5444 = vpack.c.b16 %v4469, %v4468
  %v5445 = vpack.c.b16 %v4471, %v4470
  %v5446 = vpack.c.b16 %v4473, %v4472
  %v5447 = vpack.c.b16 %v4475, %v4474
  %v5448 = vpack.c.b16 %v4477, %v4476
  %v5449 = vpack.c.b16 %v4479, %v4478
  %v5450 = vpack.c.b16 %v4481, %v4480
  %v5451 = vpack.c.b16 %v4483, %v4482
  %v5452 = vpack.c.b16 %v4485, %v4484
  %v5453 = vpack.c.b16 %v4487, %v4486
  %v5454 = vpack.c.b16 %v4489, %v4488
  %v5455 = vpack.c.b16 %v4491, %v4490
  %v5456 = vpack.c.b16 %v4493, %v4492
  %v5457 = vpack.c.b16 %v4495, %v4494
  %v5458 = vpack.c.b16 %v4497, %v4496
  %v5459 = vpack.c.b16 %v4499, %v4498
  %v5460 = vpack.c.b16 %v4501, %v4500
  %v5461 = vpack.c.b16 %v4503, %v4502
  %v5462 = vpack.c.b16 %v4505, %v4504
  %v5463 = vpack.c.b16 %v4507, %v4506
  %v5464 = vpack.c.b16 %v4509, %v4508
  %v5465 = vpack.c.b16 %v4511, %v4510
  %v5466 = vpack.c.b16 %v4513, %v4512
  %v5467 = vpack.c.b16 %v4515, %v4514
  %v5468 = vpack.c.b16 %v4517, %v4516
  %v5469 = vpack.c.b16 %v4519, %v4518
  %v5470 = vpack.c.b16 %v4521, %v4520
  %v5471 = vpack.c.b16 %v4523, %v4522
  %v5472 = vpack.c.b16 %v4525, %v4524
  %v5473 = vpack.c.b16 %v4527, %v4526
  %v5474 = vpack.c.b16 %v4529, %v4528
  %v5475 = vpack.c.b16 %v4531, %v4530
  %v5476 = vpack.c.b16 %v4533, %v4532
  %v5477 = vpack.c.b16 %v4535, %v4534
  %v5478 = vpack.c.b16 %v4537, %v4536
  %v5479 = vpack.c.b16 %v4539, %v4538
  %v5480 = vpack.c.b16 %v4541, %v4540
  %v5481 = vpack.c.b16 %v4543, %v4542
  %v5482 = vpack.c.b16 %v4545, %v4544
  %v5483 = vpack.c.b16 %v4547, %v4546
  %v5484 = vpack.c.b16 %v4549, %v4548
  %v5485 = vpack.c.b16 %v4551, %v4550
  %v5486 = vpack.c.b16 %v4553, %v4552
  %v5487 = vpack.c.b16 %v4555, %v4554
  %v5488 = vpack.c.b16 %v4557, %v4556
  %v5489 = vpack.c.b16 %v4559, %v4558
  %v5490 = vpack.c.b16 %v4561, %v4560
  %v5491 = vpack.c.b16 %v4563, %v4562
  %v5492 = vpack.c.b16 %v4565, %v4564
  %v5493 = vpack.c.b16 %v4567, %v4566
  %v5494 = vpack.c.b16 %v4569, %v4568
  %v5495 = vpack.c.b16 %v4571, %v4570
  %v5496 = vpack.c.b16 %v4573, %v4572
  %v5497 = vpack.c.b16 %v4575, %v4574
  %v5498 = vpack.c.b16 %v4577, %v4576
  %v5499 = vpack.c.b16 %v4579, %v4578
  %v5500 = vpack.c.b16 %v4581, %v4580
  %v5501 = vpack.c.b16 %v4583, %v4582
  %v5502 = vpack.c.b16 %v4585, %v4584
  %v5503 = vpack.c.b16 %v4587, %v4586
  %v5504 = vpack.c.b16 %v4589, %v4588
  %v5505 = vpack.c.b16 %v4591, %v4590
  %v5506 = vpack.c.b16 %v4593, %v4592
  %v5507 = vpack.c.b16 %v4595, %v4594
  %v5508 = vpack.c.b16 %v4597, %v4596
  %v5509 = vpack.c.b16 %v4599, %v4598
  %v5510 = vpack.c.b16 %v4601, %v4600
  %v5511 = vpack.c.b16 %v4603, %v4602
  %v5512 = vpack.c.b16 %v4605, %v4604
  %v5513 = vpack.c.b16 %v4607, %v4606
  %v5514 = vpack.c.b16 %v4609, %v4608
  %v5515 = vpack.c.b16 %v4611, %v4610
  %v5516 = vpack.c.b16 %v4613, %v4612
  %v5517 = vpack.c.b16 %v4615, %v4614
  %v5518 = vpack.c.b16 %v4617, %v4616
  %v5519 = vpack.c.b16 %v4619, %v4618
  %v5520 = vpack.c.b16 %v4621, %v4620
  %v5521 = vpack.c.b16 %v4623, %v4622
  %v5522 = vpack.c.b16 %v4625, %v4624
  %v5523 = vpack.c.b16 %v4627, %v4626
  %v5524 = vpack.c.b16 %v4629, %v4628
  %v5525 = vpack.c.b16 %v4631, %v4630
  %v5526 = vpack.c.b16 %v4633, %v4632
  %v5527 = vpack.c.b16 %v4635, %v4634
  %v5528 = vpack.c.b16 %v4637, %v4636
  %v5529 = vpack.c.b16 %v4639, %v4638
  %v5530 = vpack.c.b16 %v4641, %v4640
  %v5531 = vpack.c.b16 %v4643, %v4642
  %v5532 = vpack.c.b16 %v4645, %v4644
  %v5533 = vpack.c.b16 %v4647, %v4646
  %v5534 = vpack.c.b16 %v4649, %v4648
  %v5535 = vpack.c.b16 %v4651, %v4650
  %v5536 = vpack.c.b16 %v4653, %v4652
  %v5537 = vpack.c.b16 %v4655, %v4654
  %v5538 = vpack.c.b16 %v4657, %v4656
  %v5539 = vpack.c.b16 %v4659, %v4658
  %v5540 = vpack.c.b16 %v4661, %v4660
  %v5541 = vpack.c.b16 %v4663, %v4662
  %v5542 = vpack.c.b16 %v4665, %v4664
  %v5543 = vpack.c.b16 %v4667, %v4666
  %v5544 = vpack.c.b16 %v4669, %v4668
  %v5545 = vpack.c.b16 %v4671, %v4670
  %v5546 = vpack.c.b16 %v4673, %v4672
  %v5547 = vpack.c.b16 %v4675, %v4674
  %v5548 = vpack.c.b16 %v4677, %v4676
  %v5549 = vpack.c.b16 %v4679, %v4678
  %v5550 = vpack.c.b16 %v4681, %v4680
  %v5551 = vpack.c.b16 %v4683, %v4682
  %v5552 = vpack.c.b16 %v4685, %v4684
  %v5553 = vpack.c.b16 %v4687, %v4686
  %v5554 = vpack.c.b16 %v4689, %v4688
  %v5555 = vpack.c.b16 %v4691, %v4690
  %v5556 = vpack.c.b16 %v4693, %v4692
  %v5557 = vpack.c.b16 %v4695, %v4694
  %v5558 = vpack.c.b16 %v4697, %v4696
  %v5559 = vpack.c.b16 %v4699, %v4698
  %v5560 = vpack.c.b16 %v4701, %v4700
  %v5561 = vpack.c.b16 %v4703, %v4702
  %v5562 = vpack.c.b16 %v4705, %v4704
  %v5563 = vpack.c.b16 %v4707, %v4706
  %v5564 = vpack.c.b16 %v4709, %v4708
  %v5565 = vpack.c.b16 %v4711, %v4710
  %v5566 = vpack.c.b16 %v4713, %v4712
  %v5567 = vpack.c.b16 %v4715, %v4714
  %v5568 = vpack.c.b16 %v4717, %v4716
  %v5569 = vpack.c.b16 %v4719, %v4718
  %v5570 = vpack.c.b16 %v4721, %v4720
  %v5571 = vpack.c.b16 %v4723, %v4722
  %v5572 = vpack.c.b16 %v4725, %v4724
  %v5573 = vpack.c.b16 %v4727, %v4726
  %v5574 = vpack.c.b16 %v4729, %v4728
  %v5575 = vpack.c.b16 %v4731, %v4730
  %v5576 = vpack.c.b16 %v4733, %v4732
  %v5577 = vpack.c.b16 %v4735, %v4734
  %v5578 = vpack.c.b16 %v4737, %v4736
  %v5579 = vpack.c.b16 %v4739, %v4738
  %v5580 = vpack.c.b16 %v4741, %v4740
  %v5581 = vpack.c.b16 %v4743, %v4742
  %v5582 = vpack.c.b16 %v4745, %v4744
  %v5583 = vpack.c.b16 %v4747, %v4746
  %v5584 = vpack.c.b16 %v4749, %v4748
  %v5585 = vpack.c.b16 %v4751, %v4750
  %v5586 = vpack.c.b16 %v4753, %v4752
  %v5587 = vpack.c.b16 %v4755, %v4754
  %v5588 = vpack.c.b16 %v4757, %v4756
  %v5589 = vpack.c.b16 %v4759, %v4758
  %v5590 = vpack.c.b16 %v4761, %v4760
  %v5591 = vpack.c.b16 %v4763, %v4762
  %v5592 = vpack.c.b16 %v4765, %v4764
  %v5593 = vpack.c.b16 %v4767, %v4766
  %v5594 = vpack.c.b16 %v4769, %v4768
  %v5595 = vpack.c.b16 %v4771, %v4770
  %v5596 = vpack.c.b16 %v4773, %v4772
  %v5597 = vpack.c.b16 %v4775, %v4774
  %v5598 = vpack.c.b16 %v4777, %v4776
  %v5599 = vpack.c.b16 %v4779, %v4778
  %v5600 = vpack.c.b16 %v4781, %v4780
  %v5601 = vpack.c.b16 %v4783, %v4782
  %v5602 = vpack.c.b16 %v4785, %v4784
  %v5603 = vpack.c.b16 %v4787, %v4786
  %v5604 = vpack.c.b16 %v4789, %v4788
  %v5605 = vpack.c.b16 %v4791, %v4790
  %v5606 = vpack.c.b16 %v4793, %v4792
  %v5607 = vpack.c.b16 %v4795, %v4794
  %v5608 = vpack.c.b16 %v4797, %v4796
  %v5609 = vpack.c.b16 %v4799, %v4798
  %v5610 = vpack.c.b16 %v4801, %v4800
  %v5611 = vpack.c.b16 %v4803, %v4802
  %v5612 = vpack.c.b16 %v4805, %v4804
  %v5613 = vpack.c.b16 %v4807, %v4806
  %v5614 = vpack.c.b16 %v4809, %v4808
  %v5615 = vpack.c.b16 %v4811, %v4810
  %v5616 = vpack.c.b16 %v4813, %v4812
  %v5617 = vpack.c.b16 %v4815, %v4814
  %v5618 = vpack.c.b16 %v4817, %v4816
  %v5619 = vpack.c.b16 %v4819, %v4818
  %v5620 = vpack.c.b16 %v4821, %v4820
  %v5621 = vpack.c.b16 %v4823, %v4822
  %v5622 = vpack.c.b16 %v4825, %v4824
  %v5623 = vpack.c.b16 %v4827, %v4826
  %v5624 = vpack.c.b16 %v4829, %v4828
  %v5625 = vpack.c.b16 %v4831, %v4830
  %v5626 = vpack.c.b16 %v4833, %v4832
  %v5627 = vpack.c.b16 %v4835, %v4834
  %v5628 = vpack.c.b16 %v4837, %v4836
  %v5629 = vpack.c.b16 %v4839, %v4838
  %v5630 = vpack.c.b16 %v4841, %v4840
  %v5631 = vpack.c.b16 %v4843, %v4842
  %v5632 = vpack.c.b16 %v4845, %v4844
  %v5633 = vpack.c.b16 %v4847, %v4846
  %v5634 = vpack.c.b16 %v4849, %v4848
  %v5635 = vpack.c.b16 %v4851, %v4850
  %v5636 = vpack.c.b16 %v4853, %v4852
  %v5637 = vpack.c.b16 %v4855, %v4854
  %v5638 = vpack.c.b16 %v4857, %v4856
  %v5639 = vpack.c.b16 %v4859, %v4858
  %v5640 = vpack.c.b16 %v4861, %v4860
  %v5641 = vpack.c.b16 %v4863, %v4862
  %v5642 = vpack.c.b16 %v4865, %v4864
  %v5643 = vpack.c.b16 %v4867, %v4866
  %v5644 = vpack.c.b16 %v4869, %v4868
  %v5645 = vpack.c.b16 %v4871, %v4870
  %v5646 = vpack.c.b16 %v4873, %v4872
  %v5647 = vpack.c.b16 %v4875, %v4874
  %v5648 = vpack.c.b16 %v4877, %v4876
  %v5649 = vpack.c.b16 %v4879, %v4878
  %v5650 = vpack.c.b16 %v4881, %v4880
  %v5651 = vpack.c.b16 %v4883, %v4882
  %v5652 = vpack.c.b16 %v4885, %v4884
  %v5653 = vpack.c.b16 %v4887, %v4886
  %v5654 = vpack.c.b16 %v4889, %v4888
  %v5655 = vpack.c.b16 %v4891, %v4890
  %v5656 = vpack.c.b16 %v4893, %v4892
  %v5657 = vpack.c.b16 %v4895, %v4894
  %v5658 = vpack.c.b16 %v4897, %v4896
  %v5659 = vpack.c.b16 %v4899, %v4898
  %v5660 = vpack.c.b16 %v4901, %v4900
  %v5661 = vpack.c.b16 %v4903, %v4902
  %v5662 = vpack.c.b16 %v4905, %v4904
  %v5663 = vpack.c.b16 %v4907, %v4906
  %v5664 = vpack.c.b16 %v4909, %v4908
  %v5665 = vpack.c.b16 %v4911, %v4910
  %v5666 = vpack.c.b16 %v4913, %v4912
  %v5667 = vpack.c.b16 %v4915, %v4914
  %v5668 = vpack.c.b16 %v4917, %v4916
  %v5669 = vpack.c.b16 %v4919, %v4918
  %v5670 = vpack.c.b16 %v4921, %v4920
  %v5671 = vpack.c.b16 %v4923, %v4922
  %v5672 = vpack.c.b16 %v4925, %v4924
  %v5673 = vpack.c.b16 %v4927, %v4926
  %v5674 = vpack.c.b16 %v4929, %v4928
  %v5675 = vpack.c.b16 %v4931, %v4930
  %v5676 = vpack.c.b16 %v4933, %v4932
  %v5677 = vpack.c.b16 %v4935, %v4934
  %v5678 = vpack.c.b16 %v4937, %v4936
  %v5679 = vpack.c.b16 %v4939, %v4938
  %v5680 = vpack.c.b16 %v4941, %v4940
  %v5681 = vpack.c.b16 %v4943, %v4942
  %v5682 = vpack.c.b16 %v4945, %v4944
  %v5683 = vpack.c.b16 %v4947, %v4946
  %v5684 = vpack.c.b16 %v4949, %v4948
  %v5685 = vpack.c.b16 %v4951, %v4950
  %v5686 = vpack.c.b16 %v4953, %v4952
  %v5687 = vpack.c.b16 %v4955, %v4954
  %v5688 = vpack.c.b16 %v4957, %v4956
  %v5689 = vpack.c.b16 %v4959, %v4958
  %v5690 = vpack.c.b16 %v4961, %v4960
  %v5691 = vpack.c.b16 %v4963, %v4962
  %v5692 = vpack.c.b16 %v4965, %v4964
  %v5693 = vpack.c.b16 %v4967, %v4966
  %v5694 = vpack.c.b16 %v4969, %v4968
  %v5695 = vpack.c.b16 %v4971, %v4970
  %v5696 = vpack.c.b16 %v4973, %v4972
  %v5697 = vpack.c.b16 %v4975, %v4974
  %v5698 = vpack.c.b16 %v4977, %v4976
  %v5699 = vpack.c.b16 %v4979, %v4978
  %v5700 = vpack.c.b16 %v4981, %v4980
  %v5701 = vpack.c.b16 %v4983, %v4982
  %v5702 = vpack.c.b16 %v4985, %v4984
  %v5703 = vpack.c.b16 %v4987, %v4986
  %v5704 = vpack.c.b16 %v4989, %v4988
  %v5705 = vpack.c.b16 %v4991, %v4990
  %v5706 = vpack.c.b16 %v4993, %v4992
  %v5707 = vpack.c.b16 %v4995, %v4994
  %v5708 = vpack.c.b16 %v4997, %v4996
  %v5709 = vpack.c.b16 %v4999, %v4998
  %v5710 = vpack.c.b16 %v5001, %v5000
  %v5711 = vpack.c.b16 %v5003, %v5002
  %v5712 = vpack.c.b16 %v5005, %v5004
  %v5713 = vpack.c.b16 %v5007, %v5006
  %v5714 = vpack.c.b16 %v5009, %v5008
  %v5715 = vpack.c.b16 %v5011, %v5010
  %v5716 = vpack.c.b16 %v5013, %v5012
  %v5717 = vpack.c.b16 %v5015, %v5014
  %v5718 = vpack.c.b16 %v5017, %v5016
  %v5719 = vpack.c.b16 %v5019, %v5018
  %v5720 = vpack.c.b16 %v5021, %v5020
  %v5721 = vpack.c.b16 %v5023, %v5022
  %v5722 = vpack.c.b16 %v5025, %v5024
  %v5723 = vpack.c.b16 %v5027, %v5026
  %v5724 = vpack.c.b16 %v5029, %v5028
  %v5725 = vpack.c.b16 %v5031, %v5030
  %v5726 = vpack.c.b16 %v5033, %v5032
  %v5727 = vpack.c.b16 %v5035, %v5034
  %v5728 = vpack.c.b16 %v5037, %v5036
  %v5729 = vpack.c.b16 %v5039, %v5038
  %v5730 = vpack.c.b16 %v5041, %v5040
  %v5731 = vpack.c.b16 %v5043, %v5042
  %v5732 = vpack.c.b16 %v5045, %v5044
  %v5733 = vpack.c.b16 %v5047, %v5046
  %v5734 = vpack.c.b16 %v5049, %v5048
  %v5735 = vpack.c.b16 %v5051, %v5050
  %v5736 = vpack.c.b16 %v5053, %v5052
  %v5737 = vpack.c.b16 %v5055, %v5054
  %v5738 = vpack.c.b16 %v5057, %v5056
  %v5739 = vpack.c.b16 %v5059, %v5058
  %v5740 = vpack.c.b16 %v5061, %v5060
  %v5741 = vpack.c.b16 %v5063, %v5062
  %v5742 = vpack.c.b16 %v5065, %v5064
  %v5743 = vpack.c.b16 %v5067, %v5066
  %v5744 = vpack.c.b16 %v5069, %v5068
  %v5745 = vpack.c.b16 %v5071, %v5070
  %v5746 = vpack.c.b16 %v5073, %v5072
  %v5747 = vpack.c.b16 %v5075, %v5074
  %v5748 = vpack.c.b16 %v5077, %v5076
  %v5749 = vpack.c.b16 %v5079, %v5078
  %v5750 = vpack.c.b16 %v5081, %v5080
  %v5751 = vpack.c.b16 %v5083, %v5082
  %v5752 = vpack.c.b16 %v5085, %v5084
  %v5753 = vpack.c.b16 %v5087, %v5086
  %v5754 = vpack.c.b16 %v5089, %v5088
  %v5755 = vpack.c.b16 %v5091, %v5090
  %v5756 = vpack.c.b16 %v5093, %v5092
  %v5757 = vpack.c.b16 %v5095, %v5094
  %v5758 = vpack.c.b16 %v5097, %v5096
  %v5759 = vpack.c.b16 %v5099, %v5098
  %v5760 = vpack.c.b16 %v5101, %v5100
  %v5761 = vpack.c.b16 %v5103, %v5102
  %v5762 = vpack.c.b16 %v5105, %v5104
  %v5763 = vpack.c.b16 %v5107, %v5106
  %v5764 = vpack.c.b16 %v5109, %v5108
  %v5765 = vpack.c.b16 %v5111, %v5110
  %v5766 = vpack.c.b16 %v5113, %v5112
  %v5767 = vpack.c.b16 %v5115, %v5114
  %v5768 = vpack.c.b16 %v5117, %v5116
  %v5769 = vpack.c.b16 %v5119, %v5118
  %v5770 = vpack.c.b16 %v5121, %v5120
  %v5771 = vpack.c.b16 %v5123, %v5122
  %v5772 = vpack.c.b16 %v5125, %v5124
  %v5773 = vpack.c.b16 %v5127, %v5126
  %v5774 = vpack.c.b16 %v5129, %v5128
  %v5775 = vpack.c.b16 %v5131, %v5130
  %v5776 = vpack.c.b16 %v5133, %v5132
  %v5777 = vpack.c.b16 %v5135, %v5134
  %v5778 = vpack.c.b16 %v5137, %v5136
  %v5779 = vpack.c.b16 %v5139, %v5138
  %v5780 = vpack.c.b16 %v5141, %v5140
  %v5781 = vpack.c.b16 %v5143, %v5142
  %v5782 = vpack.c.b16 %v5145, %v5144
  %v5783 = vpack.c.b16 %v5147, %v5146
  %v5784 = vpack.c.b16 %v5149, %v5148
  %v5785 = vpack.c.b16 %v5151, %v5150
  %v5786 = vpack.c.b16 %v5153, %v5152
  %v5787 = vpack.c.b16 %v5155, %v5154
  %v5788 = vpack.c.b16 %v5157, %v5156
  %v5789 = vpack.c.b16 %v5159, %v5158
  %v5790 = vpack.c.b16 %v5161, %v5160
  %v5791 = vpack.c.b16 %v5163, %v5162
  %v5792 = vpack.c.b16 %v5165, %v5164
  %v5793 = vpack.c.b16 %v5167, %v5166
  %v5794 = vpack.c.b16 %v5169, %v5168
  %v5795 = vpack.c.b16 %v5171, %v5170
  %v5796 = vpack.c.b16 %v5173, %v5172
  %v5797 = vpack.c.b16 %v5175, %v5174
  %v5798 = vpack.c.b16 %v5177, %v5176
  %v5799 = vpack.c.b16 %v5179, %v5178
  %v5800 = vpack.c.b16 %v5181, %v5180
  %v5801 = vpack.c.b16 %v5183, %v5182
  %v5802 = vpack.c.b16 %v5185, %v5184
  %v5803 = vpack.c.b16 %v5187, %v5186
  %v5804 = vpack.c.b16 %v5189, %v5188
  %v5805 = vpack.c.b16 %v5191, %v5190
  %v5806 = vpack.c.b16 %v5193, %v5192
  %v5807 = vpack.c.b16 %v5195, %v5194
  %v5808 = vpack.c.b16 %v5197, %v5196
  %v5809 = vpack.c.b16 %v5199, %v5198
  %v5810 = vpack.c.b16 %v5201, %v5200
  %v5811 = vpack.c.b16 %v5203, %v5202
  %v5812 = vpack.c.b16 %v5205, %v5204
  %v5813 = vpack.c.b16 %v5207, %v5206
  %v5814 = vpack.c.b16 %v5209, %v5208
  %v5815 = vpack.c.b16 %v5211, %v5210
  %v5816 = vpack.c.b16 %v5213, %v5212
  %v5817 = vpack.c.b16 %v5215, %v5214
  %v5818 = vpack.c.b16 %v5217, %v5216
  %v5819 = vpack.c.b16 %v5219, %v5218
  %v5820 = vpack.c.b16 %v5221, %v5220
  %v5821 = vpack.c.b16 %v5223, %v5222
  %v5822 = vpack.c.b16 %v5225, %v5224
  %v5823 = vpack.c.b16 %v5227, %v5226
  %v5824 = vpack.c.b16 %v5229, %v5228
  %v5825 = vpack.c.b16 %v5231, %v5230
  %v5826 = vpack.c.b16 %v5233, %v5232
  %v5827 = vpack.c.b16 %v5235, %v5234
  %v5828 = vpack.c.b16 %v5237, %v5236
  %v5829 = vpack.c.b16 %v5239, %v5238
  %v5830 = vpack.c.b16 %v5241, %v5240
  %v5831 = vpack.c.b16 %v5243, %v5242
  %v5832 = vpack.c.b16 %v5245, %v5244
  %v5833 = vpack.c.b16 %v5247, %v5246
  %v5834 = vpack.c.b16 %v5249, %v5248
  %v5835 = vpack.c.b16 %v5251, %v5250
  %v5836 = vpack.c.b16 %v5253, %v5252
  %v5837 = vpack.c.b16 %v5255, %v5254
  %v5838 = vpack.c.b16 %v5257, %v5256
  %v5839 = vpack.c.b16 %v5259, %v5258
  %v5840 = vpack.c.b16 %v5261, %v5260
  %v5841 = vpack.c.b16 %v5263, %v5262
  %v5842 = vpack.c.b16 %v5265, %v5264
  %v5843 = vpack.c.b16 %v5267, %v5266
  %v5844 = vpack.c.b16 %v5269, %v5268
  %v5845 = vpack.c.b16 %v5271, %v5270
  %v5846 = vpack.c.b16 %v5273, %v5272
  %v5847 = vpack.c.b16 %v5275, %v5274
  %v5848 = vpack.c.b16 %v5277, %v5276
  %v5849 = vpack.c.b16 %v5279, %v5278
  %v5850 = vpack.c.b16 %v5281, %v5280
  %v5851 = vpack.c.b16 %v5283, %v5282
  %v5852 = vpack.c.b16 %v5285, %v5284
  %v5853 = vpack.c.b16 %v5287, %v5286
  %v5854 = vpack.c.b16 %v5289, %v5288
  %v5855 = vpack.c.b16 %v5291, %v5290
  %v5856 = vpack.c.b16 %v5293, %v5292
  %v5857 = vpack.c.b16 %v5295, %v5294
  %v5858 = vpack.c.b16 %v5297, %v5296
  %v5859 = vpack.c.b16 %v5299, %v5298
  %v5860 = vpack.c.b16 %v5301, %v5300
  %v5861 = vpack.c.b16 %v5303, %v5302
  %v5862 = vpack.c.b16 %v5305, %v5304
  %v5863 = vpack.c.b16 %v5307, %v5306
  %v5864 = vpack.c.b16 %v5309, %v5308
  %v5865 = vpack.c.b16 %v5311, %v5310
  %v5866 = vpack.c.b16 %v5313, %v5312
  %v5867 = vpack.c.b16 %v5315, %v5314
  %v5868 = vpack.c.b16 %v5317, %v5316
  %v5869 = vpack.c.b16 %v5319, %v5318
  %v5870 = vpack.c.b16 %v5321, %v5320
  %v5871 = vpack.c.b16 %v5323, %v5322
  %v5872 = vpack.c.b16 %v5325, %v5324
  %v5873 = vpack.c.b16 %v5327, %v5326
  %v5874 = vpack.c.b16 %v5329, %v5328
  %v5875 = vpack.c.b16 %v5331, %v5330
  %v5876 = vpack.c.b16 %v5333, %v5332
  %v5877 = vpack.c.b16 %v5335, %v5334
  %v5878 = vpack.c.b16 %v5337, %v5336
  %v5879 = vpack.c.b16 %v5339, %v5338
  %v5880 = vpack.c.b16 %v5341, %v5340
  %v5881 = vpack.c.b16 %v5343, %v5342
  %v5882 = vpack.c.b16 %v5345, %v5344
  %v5883 = vpack.c.b16 %v5347, %v5346
  %v5884 = vpack.c.b16 %v5349, %v5348
  %v5885 = vpack.c.b16 %v5351, %v5350
  %v5886 = vpack.c.b16 %v5353, %v5352
  %v5887 = vpack.c.b16 %v5355, %v5354
  %v5888 = vpack.c.b16 %v5357, %v5356
  %v5889 = vpack.c.b16 %v5359, %v5358
  %v5890 = vpack.c.b16 %v5361, %v5360
  %v5891 = vpack.c.b16 %v5363, %v5362
  %v5892 = vpack.c.b16 %v5365, %v5364
  %v5893 = vpack.c.b16 %v5367, %v5366
  %v5894 = vpack.c.b16 %v5369, %v5368
  %v5895 = vpack.c.b16 %v5371, %v5370
  %v5896 = vpack.c.b16 %v5373, %v5372
  %v5897 = vpack.c.b16 %v5375, %v5374
  %v5898 = vpack.c.b16 %v5377, %v5376
  %v5899 = vpack.c.b16 %v5379, %v5378
  %v5900 = vpack.c.b16 %v5381, %v5380
  %v5901 = vpack.c.b16 %v5383, %v5382
  %v5902 = vpack.c.b16 %v5385, %v5384
  %v5903 = vpack.c.b16 %v5387, %v5386
  %v5904 = vpack.c.b16 %v5389, %v5388
  %v5905 = vpack.c.b16 %v5391, %v5390
  %v5906 = vpack.c.b16 %v5393, %v5392
  %v5907 = vpack.c.b16 %v5395, %v5394
  %6420 = vmatprep.subr.bf16.mxu0 0
  %6421 = vmatpush1.bf16.msra.mxu0 %v5396
  %6422 = vmatprep.subr.bf16.mxu0 0
  %6423 = vmatpush1.bf16.msra.mxu0 %v5397
  %6424 = vmatprep.subr.bf16.mxu0 0
  %6425 = vmatpush1.bf16.msra.mxu0 %v5398
  %6426 = vmatprep.subr.bf16.mxu0 0
  %6427 = vmatpush1.bf16.msra.mxu0 %v5399
  %6428 = vmatprep.subr.bf16.mxu0 0
  %6429 = vmatpush1.bf16.msra.mxu0 %v5400
  %6430 = vmatprep.subr.bf16.mxu0 0
  %6431 = vmatpush1.bf16.msra.mxu0 %v5401
  %6432 = vmatprep.subr.bf16.mxu0 0
  %6433 = vmatpush1.bf16.msra.mxu0 %v5402
  %6434 = vmatprep.subr.bf16.mxu0 0
  %6435 = vmatpush1.bf16.msra.mxu0 %v5403
  %6436 = vmatprep.subr.bf16.mxu0 0
  %6437 = vmatpush1.bf16.msra.mxu0 %v5404
  %6438 = vmatprep.subr.bf16.mxu0 0
  %6439 = vmatpush1.bf16.msra.mxu0 %v5405
  %6440 = vmatprep.subr.bf16.mxu0 0
  %6441 = vmatpush1.bf16.msra.mxu0 %v5406
  %6442 = vmatprep.subr.bf16.mxu0 0
  %6443 = vmatpush1.bf16.msra.mxu0 %v5407
  %6444 = vmatprep.subr.bf16.mxu0 0
  %6445 = vmatpush1.bf16.msra.mxu0 %v5408
  %6446 = vmatprep.subr.bf16.mxu0 0
  %6447 = vmatpush1.bf16.msra.mxu0 %v5409
  %6448 = vmatprep.subr.bf16.mxu0 0
  %6449 = vmatpush1.bf16.msra.mxu0 %v5410
  %6450 = vmatprep.subr.bf16.mxu0 0
  %6451 = vmatpush1.bf16.msra.mxu0 %v5411
  %6452 = vmatprep.mubr.bf16.mxu0 %v2581
  %6453 = vmatmul.mubr.bf16.gmra.mrb[0].mxu0 %v2580
  %v6454 = vpop.f32.mrb[0].mxu0
  %v6455 = vadd.f32 %v1427, %v6454
  %v6456 = vpop.f32.mrb[0].mxu0
  %v6457 = vpop.f32.mrb[0].mxu0
  %v6458 = vadd.f32 %v1427, %v6457
  %v6459 = vpop.f32.mrb[0].mxu0
  %6460 = vmatprep.mubr.bf16.mxu0 %v2645
  %6461 = vmatmul.mubr.bf16.gmra.mrb[0].mxu0 %v2644
  %v6462 = vpop.f32.mrb[0].mxu0
  %v6463 = vadd.f32 %v1427, %v6462
  %v6464 = vpop.f32.mrb[0].mxu0
  %v6465 = vpop.f32.mrb[0].mxu0
  %v6466 = vadd.f32 %v1427, %v6465
  %v6467 = vpop.f32.mrb[0].mxu0
  %6468 = vmatprep.mubr.bf16.mxu0 %v2709
  %6469 = vmatmul.mubr.bf16.gmra.mrb[0].mxu0 %v2708
  %v6470 = vpop.f32.mrb[0].mxu0
  %v6471 = vadd.f32 %v1427, %v6470
  %v6472 = vpop.f32.mrb[0].mxu0
  %v6473 = vpop.f32.mrb[0].mxu0
  %v6474 = vadd.f32 %v1427, %v6473
  %v6475 = vpop.f32.mrb[0].mxu0
  %6476 = vmatprep.mubr.bf16.mxu0 %v2773
  %6477 = vmatmul.mubr.bf16.gmra.mrb[0].mxu0 %v2772
  %v6478 = vpop.f32.mrb[0].mxu0
  %v6479 = vadd.f32 %v1427, %v6478
  %v6480 = vpop.f32.mrb[0].mxu0
  %v6481 = vpop.f32.mrb[0].mxu0
  %v6482 = vadd.f32 %v1427, %v6481
  %v6483 = vpop.f32.mrb[0].mxu0
  %6484 = vmatprep.mubr.bf16.mxu0 %v2837
  %6485 = vmatmul.mubr.bf16.gmra.mrb[0].mxu0 %v2836
  %v6486 = vpop.f32.mrb[0].mxu0
  %v6487 = vadd.f32 %v1427, %v6486
  %v6488 = vpop.f32.mrb[0].mxu0
  %v6489 = vpop.f32.mrb[0].mxu0
  %v6490 = vadd.f32 %v1427, %v6489
  %v6491 = vpop.f32.mrb[0].mxu0
  %6492 = vmatprep.mubr.bf16.mxu0 %v2901
  %6493 = vmatmul.mubr.bf16.gmra.mrb[0].mxu0 %v2900
  %v6494 = vpop.f32.mrb[0].mxu0
  %v6495 = vadd.f32 %v1427, %v6494
  %v6496 = vpop.f32.mrb[0].mxu0
  %v6497 = vpop.f32.mrb[0].mxu0
  %v6498 = vadd.f32 %v1427, %v6497
  %v6499 = vpop.f32.mrb[0].mxu0
  %6500 = vdwg.mxu0
  %6501 = vmatprep.subr.bf16.mxu0 0
  %6502 = vmatpush1.bf16.msra.mxu0 %v5412
  %6503 = vmatprep.subr.bf16.mxu0 0
  %6504 = vmatpush1.bf16.msra.mxu0 %v5413
  %6505 = vmatprep.subr.bf16.mxu0 0
  %6506 = vmatpush1.bf16.msra.mxu0 %v5414
  %6507 = vmatprep.subr.bf16.mxu0 0
  %6508 = vmatpush1.bf16.msra.mxu0 %v5415
  %6509 = vmatprep.subr.bf16.mxu0 0
  %6510 = vmatpush1.bf16.msra.mxu0 %v5416
  %6511 = vmatprep.subr.bf16.mxu0 0
  %6512 = vmatpush1.bf16.msra.mxu0 %v5417
  %6513 = vmatprep.subr.bf16.mxu0 0
  %6514 = vmatpush1.bf16.msra.mxu0 %v5418
  %6515 = vmatprep.subr.bf16.mxu0 0
  %6516 = vmatpush1.bf16.msra.mxu0 %v5419
  %6517 = vmatprep.subr.bf16.mxu0 0
  %6518 = vmatpush1.bf16.msra.mxu0 %v5420
  %6519 = vmatprep.subr.bf16.mxu0 0
  %6520 = vmatpush1.bf16.msra.mxu0 %v5421
  %6521 = vmatprep.subr.bf16.mxu0 0
  %6522 = vmatpush1.bf16.msra.mxu0 %v5422
  %6523 = vmatprep.subr.bf16.mxu0 0
  %6524 = vmatpush1.bf16.msra.mxu0 %v5423
  %6525 = vmatprep.subr.bf16.mxu0 0
  %6526 = vmatpush1.bf16.msra.mxu0 %v5424
  %6527 = vmatprep.subr.bf16.mxu0 0
  %6528 = vmatpush1.bf16.msra.mxu0 %v5425
  %6529 = vmatprep.subr.bf16.mxu0 0
  %6530 = vmatpush1.bf16.msra.mxu0 %v5426
  %6531 = vmatprep.subr.bf16.mxu0 0
  %6532 = vmatpush1.bf16.msra.mxu0 %v5427
  %6533 = vmatprep.mubr.bf16.mxu0 %v2583
  %6534 = vmatmul.mubr.bf16.gmra.mrb[0].mxu0 %v2582
  %v6535 = vpop.f32.mrb[0].mxu0
  %v6536 = vadd.f32 %v6455, %v6535
  %v6537 = vpop.f32.mrb[0].mxu0
  %v6538 = vpop.f32.mrb[0].mxu0
  %v6539 = vadd.f32 %v6458, %v6538
  %v6540 = vpop.f32.mrb[0].mxu0
  %6541 = vmatprep.mubr.bf16.mxu0 %v2647
  %6542 = vmatmul.mubr.bf16.gmra.mrb[0].mxu0 %v2646
  %v6543 = vpop.f32.mrb[0].mxu0
  %v6544 = vadd.f32 %v6463, %v6543
  %v6545 = vpop.f32.mrb[0].mxu0
  %v6546 = vpop.f32.mrb[0].mxu0
  %v6547 = vadd.f32 %v6466, %v6546
  %v6548 = vpop.f32.mrb[0].mxu0
  %6549 = vmatprep.mubr.bf16.mxu0 %v2711
  %6550 = vmatmul.mubr.bf16.gmra.mrb[0].mxu0 %v2710
  %v6551 = vpop.f32.mrb[0].mxu0
  %v6552 = vadd.f32 %v6471, %v6551
  %v6553 = vpop.f32.mrb[0].mxu0
  %v6554 = vpop.f32.mrb[0].mxu0
  %v6555 = vadd.f32 %v6474, %v6554
  %v6556 = vpop.f32.mrb[0].mxu0
  %6557 = vmatprep.mubr.bf16.mxu0 %v2775
  %6558 = vmatmul.mubr.bf16.gmra.mrb[0].mxu0 %v2774
  %v6559 = vpop.f32.mrb[0].mxu0
  %v6560 = vadd.f32 %v6479, %v6559
  %v6561 = vpop.f32.mrb[0].mxu0
  %v6562 = vpop.f32.mrb[0].mxu0
  %v6563 = vadd.f32 %v6482, %v6562
  %v6564 = vpop.f32.mrb[0].mxu0
  %6565 = vmatprep.mubr.bf16.mxu0 %v2839
  %6566 = vmatmul.mubr.bf16.gmra.mrb[0].mxu0 %v2838
  %v6567 = vpop.f32.mrb[0].mxu0
  %v6568 = vadd.f32 %v6487, %v6567
  %v6569 = vpop.f32.mrb[0].mxu0
  %v6570 = vpop.f32.mrb[0].mxu0
  %v6571 = vadd.f32 %v6490, %v6570
  %v6572 = vpop.f32.mrb[0].mxu0
  %6573 = vmatprep.mubr.bf16.mxu0 %v2903
  %6574 = vmatmul.mubr.bf16.gmra.mrb[0].mxu0 %v2902
  %v6575 = vpop.f32.mrb[0].mxu0
  %v6576 = vadd.f32 %v6495, %v6575
  %v6577 = vpop.f32.mrb[0].mxu0
  %v6578 = vpop.f32.mrb[0].mxu0
  %v6579 = vadd.f32 %v6498, %v6578
  %v6580 = vpop.f32.mrb[0].mxu0
  %6581 = vdwg.mxu0
  %6582 = vmatprep.subr.bf16.mxu0 0
  %6583 = vmatpush1.bf16.msra.mxu0 %v5428
  %6584 = vmatprep.subr.bf16.mxu0 0
  %6585 = vmatpush1.bf16.msra.mxu0 %v5429
  %6586 = vmatprep.subr.bf16.mxu0 0
  %6587 = vmatpush1.bf16.msra.mxu0 %v5430
  %6588 = vmatprep.subr.bf16.mxu0 0
  %6589 = vmatpush1.bf16.msra.mxu0 %v5431
  %6590 = vmatprep.subr.bf16.mxu0 0
  %6591 = vmatpush1.bf16.msra.mxu0 %v5432
  %6592 = vmatprep.subr.bf16.mxu0 0
  %6593 = vmatpush1.bf16.msra.mxu0 %v5433
  %6594 = vmatprep.subr.bf16.mxu0 0
  %6595 = vmatpush1.bf16.msra.mxu0 %v5434
  %6596 = vmatprep.subr.bf16.mxu0 0
  %6597 = vmatpush1.bf16.msra.mxu0 %v5435
  %6598 = vmatprep.subr.bf16.mxu0 0
  %6599 = vmatpush1.bf16.msra.mxu0 %v5436
  %6600 = vmatprep.subr.bf16.mxu0 0
  %6601 = vmatpush1.bf16.msra.mxu0 %v5437
  %6602 = vmatprep.subr.bf16.mxu0 0
  %6603 = vmatpush1.bf16.msra.mxu0 %v5438
  %6604 = vmatprep.subr.bf16.mxu0 0
  %6605 = vmatpush1.bf16.msra.mxu0 %v5439
  %6606 = vmatprep.subr.bf16.mxu0 0
  %6607 = vmatpush1.bf16.msra.mxu0 %v5440
  %6608 = vmatprep.subr.bf16.mxu0 0
  %6609 = vmatpush1.bf16.msra.mxu0 %v5441
  %6610 = vmatprep.subr.bf16.mxu0 0
  %6611 = vmatpush1.bf16.msra.mxu0 %v5442
  %6612 = vmatprep.subr.bf16.mxu0 0
  %6613 = vmatpush1.bf16.msra.mxu0 %v5443
  %6614 = vmatprep.mubr.bf16.mxu0 %v2585
  %6615 = vmatmul.mubr.bf16.gmra.mrb[0].mxu0 %v2584
  %v6616 = vpop.f32.mrb[0].mxu0
  %v6617 = vadd.f32 %v6536, %v6616
  %v6618 = vpop.f32.mrb[0].mxu0
  %v6619 = vpop.f32.mrb[0].mxu0
  %v6620 = vadd.f32 %v6539, %v6619
  %v6621 = vpop.f32.mrb[0].mxu0
  %6622 = vmatprep.mubr.bf16.mxu0 %v2649
  %6623 = vmatmul.mubr.bf16.gmra.mrb[0].mxu0 %v2648
  %v6624 = vpop.f32.mrb[0].mxu0
  %v6625 = vadd.f32 %v6544, %v6624
  %v6626 = vpop.f32.mrb[0].mxu0
  %v6627 = vpop.f32.mrb[0].mxu0
  %v6628 = vadd.f32 %v6547, %v6627
  %v6629 = vpop.f32.mrb[0].mxu0
  %6630 = vmatprep.mubr.bf16.mxu0 %v2713
  %6631 = vmatmul.mubr.bf16.gmra.mrb[0].mxu0 %v2712
  %v6632 = vpop.f32.mrb[0].mxu0
  %v6633 = vadd.f32 %v6552, %v6632
  %v6634 = vpop.f32.mrb[0].mxu0
  %v6635 = vpop.f32.mrb[0].mxu0
  %v6636 = vadd.f32 %v6555, %v6635
  %v6637 = vpop.f32.mrb[0].mxu0
  %6638 = vmatprep.mubr.bf16.mxu0 %v2777
  %6639 = vmatmul.mubr.bf16.gmra.mrb[0].mxu0 %v2776
  %v6640 = vpop.f32.mrb[0].mxu0
  %v6641 = vadd.f32 %v6560, %v6640
  %v6642 = vpop.f32.mrb[0].mxu0
  %v6643 = vpop.f32.mrb[0].mxu0
  %v6644 = vadd.f32 %v6563, %v6643
  %v6645 = vpop.f32.mrb[0].mxu0
  %6646 = vmatprep.mubr.bf16.mxu0 %v2841
  %6647 = vmatmul.mubr.bf16.gmra.mrb[0].mxu0 %v2840
  %v6648 = vpop.f32.mrb[0].mxu0
  %v6649 = vadd.f32 %v6568, %v6648
  %v6650 = vpop.f32.mrb[0].mxu0
  %v6651 = vpop.f32.mrb[0].mxu0
  %v6652 = vadd.f32 %v6571, %v6651
  %v6653 = vpop.f32.mrb[0].mxu0
  %6654 = vmatprep.mubr.bf16.mxu0 %v2905
  %6655 = vmatmul.mubr.bf16.gmra.mrb[0].mxu0 %v2904
  %v6656 = vpop.f32.mrb[0].mxu0
  %v6657 = vadd.f32 %v6576, %v6656
  %v6658 = vpop.f32.mrb[0].mxu0
  %v6659 = vpop.f32.mrb[0].mxu0
  %v6660 = vadd.f32 %v6579, %v6659
  %v6661 = vpop.f32.mrb[0].mxu0
  %6662 = vdwg.mxu0
  %6663 = vmatprep.subr.bf16.mxu0 0
  %6664 = vmatpush1.bf16.msra.mxu0 %v5444
  %6665 = vmatprep.subr.bf16.mxu0 0
  %6666 = vmatpush1.bf16.msra.mxu0 %v5445
  %6667 = vmatprep.subr.bf16.mxu0 0
  %6668 = vmatpush1.bf16.msra.mxu0 %v5446
  %6669 = vmatprep.subr.bf16.mxu0 0
  %6670 = vmatpush1.bf16.msra.mxu0 %v5447
  %6671 = vmatprep.subr.bf16.mxu0 0
  %6672 = vmatpush1.bf16.msra.mxu0 %v5448
  %6673 = vmatprep.subr.bf16.mxu0 0
  %6674 = vmatpush1.bf16.msra.mxu0 %v5449
  %6675 = vmatprep.subr.bf16.mxu0 0
  %6676 = vmatpush1.bf16.msra.mxu0 %v5450
  %6677 = vmatprep.subr.bf16.mxu0 0
  %6678 = vmatpush1.bf16.msra.mxu0 %v5451
  %6679 = vmatprep.subr.bf16.mxu0 0
  %6680 = vmatpush1.bf16.msra.mxu0 %v5452
  %6681 = vmatprep.subr.bf16.mxu0 0
  %6682 = vmatpush1.bf16.msra.mxu0 %v5453
  %6683 = vmatprep.subr.bf16.mxu0 0
  %6684 = vmatpush1.bf16.msra.mxu0 %v5454
  %6685 = vmatprep.subr.bf16.mxu0 0
  %6686 = vmatpush1.bf16.msra.mxu0 %v5455
  %6687 = vmatprep.subr.bf16.mxu0 0
  %6688 = vmatpush1.bf16.msra.mxu0 %v5456
  %6689 = vmatprep.subr.bf16.mxu0 0
  %6690 = vmatpush1.bf16.msra.mxu0 %v5457
  %6691 = vmatprep.subr.bf16.mxu0 0
  %6692 = vmatpush1.bf16.msra.mxu0 %v5458
  %6693 = vmatprep.subr.bf16.mxu0 0
  %6694 = vmatpush1.bf16.msra.mxu0 %v5459
  %6695 = vmatprep.mubr.bf16.mxu0 %v2587
  %6696 = vmatmul.mubr.bf16.gmra.mrb[0].mxu0 %v2586
  %v6697 = vpop.f32.mrb[0].mxu0
  %v6698 = vadd.f32 %v6617, %v6697
  %v6699 = vpop.f32.mrb[0].mxu0
  %v6700 = vpop.f32.mrb[0].mxu0
  %v6701 = vadd.f32 %v6620, %v6700
  %v6702 = vpop.f32.mrb[0].mxu0
  %6703 = vmatprep.mubr.bf16.mxu0 %v2651
  %6704 = vmatmul.mubr.bf16.gmra.mrb[0].mxu0 %v2650
  %v6705 = vpop.f32.mrb[0].mxu0
  %v6706 = vadd.f32 %v6625, %v6705
  %v6707 = vpop.f32.mrb[0].mxu0
  %v6708 = vpop.f32.mrb[0].mxu0
  %v6709 = vadd.f32 %v6628, %v6708
  %v6710 = vpop.f32.mrb[0].mxu0
  %6711 = vmatprep.mubr.bf16.mxu0 %v2715
  %6712 = vmatmul.mubr.bf16.gmra.mrb[0].mxu0 %v2714
  %v6713 = vpop.f32.mrb[0].mxu0
  %v6714 = vadd.f32 %v6633, %v6713
  %v6715 = vpop.f32.mrb[0].mxu0
  %v6716 = vpop.f32.mrb[0].mxu0
  %v6717 = vadd.f32 %v6636, %v6716
  %v6718 = vpop.f32.mrb[0].mxu0
  %6719 = vmatprep.mubr.bf16.mxu0 %v2779
  %6720 = vmatmul.mubr.bf16.gmra.mrb[0].mxu0 %v2778
  %v6721 = vpop.f32.mrb[0].mxu0
  %v6722 = vadd.f32 %v6641, %v6721
  %v6723 = vpop.f32.mrb[0].mxu0
  %v6724 = vpop.f32.mrb[0].mxu0
  %v6725 = vadd.f32 %v6644, %v6724
  %v6726 = vpop.f32.mrb[0].mxu0
  %6727 = vmatprep.mubr.bf16.mxu0 %v2843
  %6728 = vmatmul.mubr.bf16.gmra.mrb[0].mxu0 %v2842
  %v6729 = vpop.f32.mrb[0].mxu0
  %v6730 = vadd.f32 %v6649, %v6729
  %v6731 = vpop.f32.mrb[0].mxu0
  %v6732 = vpop.f32.mrb[0].mxu0
  %v6733 = vadd.f32 %v6652, %v6732
  %v6734 = vpop.f32.mrb[0].mxu0
  %6735 = vmatprep.mubr.bf16.mxu0 %v2907
  %6736 = vmatmul.mubr.bf16.gmra.mrb[0].mxu0 %v2906
  %v6737 = vpop.f32.mrb[0].mxu0
  %v6738 = vadd.f32 %v6657, %v6737
  %v6739 = vpop.f32.mrb[0].mxu0
  %v6740 = vpop.f32.mrb[0].mxu0
  %v6741 = vadd.f32 %v6660, %v6740
  %v6742 = vpop.f32.mrb[0].mxu0
  %6743 = vdwg.mxu0
  %6744 = vmatprep.subr.bf16.mxu0 0
  %6745 = vmatpush1.bf16.msra.mxu0 %v5460
  %6746 = vmatprep.subr.bf16.mxu0 0
  %6747 = vmatpush1.bf16.msra.mxu0 %v5461
  %6748 = vmatprep.subr.bf16.mxu0 0
  %6749 = vmatpush1.bf16.msra.mxu0 %v5462
  %6750 = vmatprep.subr.bf16.mxu0 0
  %6751 = vmatpush1.bf16.msra.mxu0 %v5463
  %6752 = vmatprep.subr.bf16.mxu0 0
  %6753 = vmatpush1.bf16.msra.mxu0 %v5464
  %6754 = vmatprep.subr.bf16.mxu0 0
  %6755 = vmatpush1.bf16.msra.mxu0 %v5465
  %6756 = vmatprep.subr.bf16.mxu0 0
  %6757 = vmatpush1.bf16.msra.mxu0 %v5466
  %6758 = vmatprep.subr.bf16.mxu0 0
  %6759 = vmatpush1.bf16.msra.mxu0 %v5467
  %6760 = vmatprep.subr.bf16.mxu0 0
  %6761 = vmatpush1.bf16.msra.mxu0 %v5468
  %6762 = vmatprep.subr.bf16.mxu0 0
  %6763 = vmatpush1.bf16.msra.mxu0 %v5469
  %6764 = vmatprep.subr.bf16.mxu0 0
  %6765 = vmatpush1.bf16.msra.mxu0 %v5470
  %6766 = vmatprep.subr.bf16.mxu0 0
  %6767 = vmatpush1.bf16.msra.mxu0 %v5471
  %6768 = vmatprep.subr.bf16.mxu0 0
  %6769 = vmatpush1.bf16.msra.mxu0 %v5472
  %6770 = vmatprep.subr.bf16.mxu0 0
  %6771 = vmatpush1.bf16.msra.mxu0 %v5473
  %6772 = vmatprep.subr.bf16.mxu0 0
  %6773 = vmatpush1.bf16.msra.mxu0 %v5474
  %6774 = vmatprep.subr.bf16.mxu0 0
  %6775 = vmatpush1.bf16.msra.mxu0 %v5475
  %6776 = vmatprep.mubr.bf16.mxu0 %v2589
  %6777 = vmatmul.mubr.bf16.gmra.mrb[0].mxu0 %v2588
  %v6778 = vpop.f32.mrb[0].mxu0
  %v6779 = vadd.f32 %v6698, %v6778
  %v6780 = vpop.f32.mrb[0].mxu0
  %v6781 = vpop.f32.mrb[0].mxu0
  %v6782 = vadd.f32 %v6701, %v6781
  %v6783 = vpop.f32.mrb[0].mxu0
  %6784 = vmatprep.mubr.bf16.mxu0 %v2653
  %6785 = vmatmul.mubr.bf16.gmra.mrb[0].mxu0 %v2652
  %v6786 = vpop.f32.mrb[0].mxu0
  %v6787 = vadd.f32 %v6706, %v6786
  %v6788 = vpop.f32.mrb[0].mxu0
  %v6789 = vpop.f32.mrb[0].mxu0
  %v6790 = vadd.f32 %v6709, %v6789
  %v6791 = vpop.f32.mrb[0].mxu0
  %6792 = vmatprep.mubr.bf16.mxu0 %v2717
  %6793 = vmatmul.mubr.bf16.gmra.mrb[0].mxu0 %v2716
  %v6794 = vpop.f32.mrb[0].mxu0
  %v6795 = vadd.f32 %v6714, %v6794
  %v6796 = vpop.f32.mrb[0].mxu0
  %v6797 = vpop.f32.mrb[0].mxu0
  %v6798 = vadd.f32 %v6717, %v6797
  %v6799 = vpop.f32.mrb[0].mxu0
  %6800 = vmatprep.mubr.bf16.mxu0 %v2781
  %6801 = vmatmul.mubr.bf16.gmra.mrb[0].mxu0 %v2780
  %v6802 = vpop.f32.mrb[0].mxu0
  %v6803 = vadd.f32 %v6722, %v6802
  %v6804 = vpop.f32.mrb[0].mxu0
  %v6805 = vpop.f32.mrb[0].mxu0
  %v6806 = vadd.f32 %v6725, %v6805
  %v6807 = vpop.f32.mrb[0].mxu0
  %6808 = vmatprep.mubr.bf16.mxu0 %v2845
  %6809 = vmatmul.mubr.bf16.gmra.mrb[0].mxu0 %v2844
  %v6810 = vpop.f32.mrb[0].mxu0
  %v6811 = vadd.f32 %v6730, %v6810
  %v6812 = vpop.f32.mrb[0].mxu0
  %v6813 = vpop.f32.mrb[0].mxu0
  %v6814 = vadd.f32 %v6733, %v6813
  %v6815 = vpop.f32.mrb[0].mxu0
  %6816 = vmatprep.mubr.bf16.mxu0 %v2909
  %6817 = vmatmul.mubr.bf16.gmra.mrb[0].mxu0 %v2908
  %v6818 = vpop.f32.mrb[0].mxu0
  %v6819 = vadd.f32 %v6738, %v6818
  %v6820 = vpop.f32.mrb[0].mxu0
  %v6821 = vpop.f32.mrb[0].mxu0
  %v6822 = vadd.f32 %v6741, %v6821
  %v6823 = vpop.f32.mrb[0].mxu0
  %6824 = vdwg.mxu0
  %6825 = vmatprep.subr.bf16.mxu0 0
  %6826 = vmatpush1.bf16.msra.mxu0 %v5476
  %6827 = vmatprep.subr.bf16.mxu0 0
  %6828 = vmatpush1.bf16.msra.mxu0 %v5477
  %6829 = vmatprep.subr.bf16.mxu0 0
  %6830 = vmatpush1.bf16.msra.mxu0 %v5478
  %6831 = vmatprep.subr.bf16.mxu0 0
  %6832 = vmatpush1.bf16.msra.mxu0 %v5479
  %6833 = vmatprep.subr.bf16.mxu0 0
  %6834 = vmatpush1.bf16.msra.mxu0 %v5480
  %6835 = vmatprep.subr.bf16.mxu0 0
  %6836 = vmatpush1.bf16.msra.mxu0 %v5481
  %6837 = vmatprep.subr.bf16.mxu0 0
  %6838 = vmatpush1.bf16.msra.mxu0 %v5482
  %6839 = vmatprep.subr.bf16.mxu0 0
  %6840 = vmatpush1.bf16.msra.mxu0 %v5483
  %6841 = vmatprep.subr.bf16.mxu0 0
  %6842 = vmatpush1.bf16.msra.mxu0 %v5484
  %6843 = vmatprep.subr.bf16.mxu0 0
  %6844 = vmatpush1.bf16.msra.mxu0 %v5485
  %6845 = vmatprep.subr.bf16.mxu0 0
  %6846 = vmatpush1.bf16.msra.mxu0 %v5486
  %6847 = vmatprep.subr.bf16.mxu0 0
  %6848 = vmatpush1.bf16.msra.mxu0 %v5487
  %6849 = vmatprep.subr.bf16.mxu0 0
  %6850 = vmatpush1.bf16.msra.mxu0 %v5488
  %6851 = vmatprep.subr.bf16.mxu0 0
  %6852 = vmatpush1.bf16.msra.mxu0 %v5489
  %6853 = vmatprep.subr.bf16.mxu0 0
  %6854 = vmatpush1.bf16.msra.mxu0 %v5490
  %6855 = vmatprep.subr.bf16.mxu0 0
  %6856 = vmatpush1.bf16.msra.mxu0 %v5491
  %6857 = vmatprep.mubr.bf16.mxu0 %v2591
  %6858 = vmatmul.mubr.bf16.gmra.mrb[0].mxu0 %v2590
  %v6859 = vpop.f32.mrb[0].mxu0
  %v6860 = vadd.f32 %v6779, %v6859
  %v6861 = vpop.f32.mrb[0].mxu0
  %v6862 = vpop.f32.mrb[0].mxu0
  %v6863 = vadd.f32 %v6782, %v6862
  %v6864 = vpop.f32.mrb[0].mxu0
  %6865 = vmatprep.mubr.bf16.mxu0 %v2655
  %6866 = vmatmul.mubr.bf16.gmra.mrb[0].mxu0 %v2654
  %v6867 = vpop.f32.mrb[0].mxu0
  %v6868 = vadd.f32 %v6787, %v6867
  %v6869 = vpop.f32.mrb[0].mxu0
  %v6870 = vpop.f32.mrb[0].mxu0
  %v6871 = vadd.f32 %v6790, %v6870
  %v6872 = vpop.f32.mrb[0].mxu0
  %6873 = vmatprep.mubr.bf16.mxu0 %v2719
  %6874 = vmatmul.mubr.bf16.gmra.mrb[0].mxu0 %v2718
  %v6875 = vpop.f32.mrb[0].mxu0
  %v6876 = vadd.f32 %v6795, %v6875
  %v6877 = vpop.f32.mrb[0].mxu0
  %v6878 = vpop.f32.mrb[0].mxu0
  %v6879 = vadd.f32 %v6798, %v6878
  %v6880 = vpop.f32.mrb[0].mxu0
  %6881 = vmatprep.mubr.bf16.mxu0 %v2783
  %6882 = vmatmul.mubr.bf16.gmra.mrb[0].mxu0 %v2782
  %v6883 = vpop.f32.mrb[0].mxu0
  %v6884 = vadd.f32 %v6803, %v6883
  %v6885 = vpop.f32.mrb[0].mxu0
  %v6886 = vpop.f32.mrb[0].mxu0
  %v6887 = vadd.f32 %v6806, %v6886
  %v6888 = vpop.f32.mrb[0].mxu0
  %6889 = vmatprep.mubr.bf16.mxu0 %v2847
  %6890 = vmatmul.mubr.bf16.gmra.mrb[0].mxu0 %v2846
  %v6891 = vpop.f32.mrb[0].mxu0
  %v6892 = vadd.f32 %v6811, %v6891
  %v6893 = vpop.f32.mrb[0].mxu0
  %v6894 = vpop.f32.mrb[0].mxu0
  %v6895 = vadd.f32 %v6814, %v6894
  %v6896 = vpop.f32.mrb[0].mxu0
  %6897 = vmatprep.mubr.bf16.mxu0 %v2911
  %6898 = vmatmul.mubr.bf16.gmra.mrb[0].mxu0 %v2910
  %v6899 = vpop.f32.mrb[0].mxu0
  %v6900 = vadd.f32 %v6819, %v6899
  %v6901 = vpop.f32.mrb[0].mxu0
  %v6902 = vpop.f32.mrb[0].mxu0
  %v6903 = vadd.f32 %v6822, %v6902
  %v6904 = vpop.f32.mrb[0].mxu0
  %6905 = vdwg.mxu0
  %6906 = vmatprep.subr.bf16.mxu0 0
  %6907 = vmatpush1.bf16.msra.mxu0 %v5492
  %6908 = vmatprep.subr.bf16.mxu0 0
  %6909 = vmatpush1.bf16.msra.mxu0 %v5493
  %6910 = vmatprep.subr.bf16.mxu0 0
  %6911 = vmatpush1.bf16.msra.mxu0 %v5494
  %6912 = vmatprep.subr.bf16.mxu0 0
  %6913 = vmatpush1.bf16.msra.mxu0 %v5495
  %6914 = vmatprep.subr.bf16.mxu0 0
  %6915 = vmatpush1.bf16.msra.mxu0 %v5496
  %6916 = vmatprep.subr.bf16.mxu0 0
  %6917 = vmatpush1.bf16.msra.mxu0 %v5497
  %6918 = vmatprep.subr.bf16.mxu0 0
  %6919 = vmatpush1.bf16.msra.mxu0 %v5498
  %6920 = vmatprep.subr.bf16.mxu0 0
  %6921 = vmatpush1.bf16.msra.mxu0 %v5499
  %6922 = vmatprep.subr.bf16.mxu0 0
  %6923 = vmatpush1.bf16.msra.mxu0 %v5500
  %6924 = vmatprep.subr.bf16.mxu0 0
  %6925 = vmatpush1.bf16.msra.mxu0 %v5501
  %6926 = vmatprep.subr.bf16.mxu0 0
  %6927 = vmatpush1.bf16.msra.mxu0 %v5502
  %6928 = vmatprep.subr.bf16.mxu0 0
  %6929 = vmatpush1.bf16.msra.mxu0 %v5503
  %6930 = vmatprep.subr.bf16.mxu0 0
  %6931 = vmatpush1.bf16.msra.mxu0 %v5504
  %6932 = vmatprep.subr.bf16.mxu0 0
  %6933 = vmatpush1.bf16.msra.mxu0 %v5505
  %6934 = vmatprep.subr.bf16.mxu0 0
  %6935 = vmatpush1.bf16.msra.mxu0 %v5506
  %6936 = vmatprep.subr.bf16.mxu0 0
  %6937 = vmatpush1.bf16.msra.mxu0 %v5507
  %6938 = vmatprep.mubr.bf16.mxu0 %v2593
  %6939 = vmatmul.mubr.bf16.gmra.mrb[0].mxu0 %v2592
  %v6940 = vpop.f32.mrb[0].mxu0
  %v6941 = vadd.f32 %v6860, %v6940
  %v6942 = vpop.f32.mrb[0].mxu0
  %v6943 = vpop.f32.mrb[0].mxu0
  %v6944 = vadd.f32 %v6863, %v6943
  %v6945 = vpop.f32.mrb[0].mxu0
  %6946 = vmatprep.mubr.bf16.mxu0 %v2657
  %6947 = vmatmul.mubr.bf16.gmra.mrb[0].mxu0 %v2656
  %v6948 = vpop.f32.mrb[0].mxu0
  %v6949 = vadd.f32 %v6868, %v6948
  %v6950 = vpop.f32.mrb[0].mxu0
  %v6951 = vpop.f32.mrb[0].mxu0
  %v6952 = vadd.f32 %v6871, %v6951
  %v6953 = vpop.f32.mrb[0].mxu0
  %6954 = vmatprep.mubr.bf16.mxu0 %v2721
  %6955 = vmatmul.mubr.bf16.gmra.mrb[0].mxu0 %v2720
  %v6956 = vpop.f32.mrb[0].mxu0
  %v6957 = vadd.f32 %v6876, %v6956
  %v6958 = vpop.f32.mrb[0].mxu0
  %v6959 = vpop.f32.mrb[0].mxu0
  %v6960 = vadd.f32 %v6879, %v6959
  %v6961 = vpop.f32.mrb[0].mxu0
  %6962 = vmatprep.mubr.bf16.mxu0 %v2785
  %6963 = vmatmul.mubr.bf16.gmra.mrb[0].mxu0 %v2784
  %v6964 = vpop.f32.mrb[0].mxu0
  %v6965 = vadd.f32 %v6884, %v6964
  %v6966 = vpop.f32.mrb[0].mxu0
  %v6967 = vpop.f32.mrb[0].mxu0
  %v6968 = vadd.f32 %v6887, %v6967
  %v6969 = vpop.f32.mrb[0].mxu0
  %6970 = vmatprep.mubr.bf16.mxu0 %v2849
  %6971 = vmatmul.mubr.bf16.gmra.mrb[0].mxu0 %v2848
  %v6972 = vpop.f32.mrb[0].mxu0
  %v6973 = vadd.f32 %v6892, %v6972
  %v6974 = vpop.f32.mrb[0].mxu0
  %v6975 = vpop.f32.mrb[0].mxu0
  %v6976 = vadd.f32 %v6895, %v6975
  %v6977 = vpop.f32.mrb[0].mxu0
  %6978 = vmatprep.mubr.bf16.mxu0 %v2913
  %6979 = vmatmul.mubr.bf16.gmra.mrb[0].mxu0 %v2912
  %v6980 = vpop.f32.mrb[0].mxu0
  %v6981 = vadd.f32 %v6900, %v6980
  %v6982 = vpop.f32.mrb[0].mxu0
  %v6983 = vpop.f32.mrb[0].mxu0
  %v6984 = vadd.f32 %v6903, %v6983
  %v6985 = vpop.f32.mrb[0].mxu0
  %6986 = vdwg.mxu0
  %6987 = vmatprep.subr.bf16.mxu0 0
  %6988 = vmatpush1.bf16.msra.mxu0 %v5508
  %6989 = vmatprep.subr.bf16.mxu0 0
  %6990 = vmatpush1.bf16.msra.mxu0 %v5509
  %6991 = vmatprep.subr.bf16.mxu0 0
  %6992 = vmatpush1.bf16.msra.mxu0 %v5510
  %6993 = vmatprep.subr.bf16.mxu0 0
  %6994 = vmatpush1.bf16.msra.mxu0 %v5511
  %6995 = vmatprep.subr.bf16.mxu0 0
  %6996 = vmatpush1.bf16.msra.mxu0 %v5512
  %6997 = vmatprep.subr.bf16.mxu0 0
  %6998 = vmatpush1.bf16.msra.mxu0 %v5513
  %6999 = vmatprep.subr.bf16.mxu0 0
  %7000 = vmatpush1.bf16.msra.mxu0 %v5514
  %7001 = vmatprep.subr.bf16.mxu0 0
  %7002 = vmatpush1.bf16.msra.mxu0 %v5515
  %7003 = vmatprep.subr.bf16.mxu0 0
  %7004 = vmatpush1.bf16.msra.mxu0 %v5516
  %7005 = vmatprep.subr.bf16.mxu0 0
  %7006 = vmatpush1.bf16.msra.mxu0 %v5517
  %7007 = vmatprep.subr.bf16.mxu0 0
  %7008 = vmatpush1.bf16.msra.mxu0 %v5518
  %7009 = vmatprep.subr.bf16.mxu0 0
  %7010 = vmatpush1.bf16.msra.mxu0 %v5519
  %7011 = vmatprep.subr.bf16.mxu0 0
  %7012 = vmatpush1.bf16.msra.mxu0 %v5520
  %7013 = vmatprep.subr.bf16.mxu0 0
  %7014 = vmatpush1.bf16.msra.mxu0 %v5521
  %7015 = vmatprep.subr.bf16.mxu0 0
  %7016 = vmatpush1.bf16.msra.mxu0 %v5522
  %7017 = vmatprep.subr.bf16.mxu0 0
  %7018 = vmatpush1.bf16.msra.mxu0 %v5523
  %7019 = vmatprep.mubr.bf16.mxu0 %v2595
  %7020 = vmatmul.mubr.bf16.gmra.mrb[0].mxu0 %v2594
  %v7021 = vpop.f32.mrb[0].mxu0
  %v7022 = vadd.f32 %v6941, %v7021
  %v7023 = vpop.f32.mrb[0].mxu0
  %v7024 = vpop.f32.mrb[0].mxu0
  %v7025 = vadd.f32 %v6944, %v7024
  %v7026 = vpop.f32.mrb[0].mxu0
  %7027 = vmatprep.mubr.bf16.mxu0 %v2659
  %7028 = vmatmul.mubr.bf16.gmra.mrb[0].mxu0 %v2658
  %v7029 = vpop.f32.mrb[0].mxu0
  %v7030 = vadd.f32 %v6949, %v7029
  %v7031 = vpop.f32.mrb[0].mxu0
  %v7032 = vpop.f32.mrb[0].mxu0
  %v7033 = vadd.f32 %v6952, %v7032
  %v7034 = vpop.f32.mrb[0].mxu0
  %7035 = vmatprep.mubr.bf16.mxu0 %v2723
  %7036 = vmatmul.mubr.bf16.gmra.mrb[0].mxu0 %v2722
  %v7037 = vpop.f32.mrb[0].mxu0
  %v7038 = vadd.f32 %v6957, %v7037
  %v7039 = vpop.f32.mrb[0].mxu0
  %v7040 = vpop.f32.mrb[0].mxu0
  %v7041 = vadd.f32 %v6960, %v7040
  %v7042 = vpop.f32.mrb[0].mxu0
  %7043 = vmatprep.mubr.bf16.mxu0 %v2787
  %7044 = vmatmul.mubr.bf16.gmra.mrb[0].mxu0 %v2786
  %v7045 = vpop.f32.mrb[0].mxu0
  %v7046 = vadd.f32 %v6965, %v7045
  %v7047 = vpop.f32.mrb[0].mxu0
  %v7048 = vpop.f32.mrb[0].mxu0
  %v7049 = vadd.f32 %v6968, %v7048
  %v7050 = vpop.f32.mrb[0].mxu0
  %7051 = vmatprep.mubr.bf16.mxu0 %v2851
  %7052 = vmatmul.mubr.bf16.gmra.mrb[0].mxu0 %v2850
  %v7053 = vpop.f32.mrb[0].mxu0
  %v7054 = vadd.f32 %v6973, %v7053
  %v7055 = vpop.f32.mrb[0].mxu0
  %v7056 = vpop.f32.mrb[0].mxu0
  %v7057 = vadd.f32 %v6976, %v7056
  %v7058 = vpop.f32.mrb[0].mxu0
  %7059 = vmatprep.mubr.bf16.mxu0 %v2915
  %7060 = vmatmul.mubr.bf16.gmra.mrb[0].mxu0 %v2914
  %v7061 = vpop.f32.mrb[0].mxu0
  %v7062 = vadd.f32 %v6981, %v7061
  %v7063 = vpop.f32.mrb[0].mxu0
  %v7064 = vpop.f32.mrb[0].mxu0
  %v7065 = vadd.f32 %v6984, %v7064
  %v7066 = vpop.f32.mrb[0].mxu0
  %7067 = vdwg.mxu0
  %7068 = vmatprep.subr.bf16.mxu0 0
  %7069 = vmatpush1.bf16.msra.mxu0 %v5524
  %7070 = vmatprep.subr.bf16.mxu0 0
  %7071 = vmatpush1.bf16.msra.mxu0 %v5525
  %7072 = vmatprep.subr.bf16.mxu0 0
  %7073 = vmatpush1.bf16.msra.mxu0 %v5526
  %7074 = vmatprep.subr.bf16.mxu0 0
  %7075 = vmatpush1.bf16.msra.mxu0 %v5527
  %7076 = vmatprep.subr.bf16.mxu0 0
  %7077 = vmatpush1.bf16.msra.mxu0 %v5528
  %7078 = vmatprep.subr.bf16.mxu0 0
  %7079 = vmatpush1.bf16.msra.mxu0 %v5529
  %7080 = vmatprep.subr.bf16.mxu0 0
  %7081 = vmatpush1.bf16.msra.mxu0 %v5530
  %7082 = vmatprep.subr.bf16.mxu0 0
  %7083 = vmatpush1.bf16.msra.mxu0 %v5531
  %7084 = vmatprep.subr.bf16.mxu0 0
  %7085 = vmatpush1.bf16.msra.mxu0 %v5532
  %7086 = vmatprep.subr.bf16.mxu0 0
  %7087 = vmatpush1.bf16.msra.mxu0 %v5533
  %7088 = vmatprep.subr.bf16.mxu0 0
  %7089 = vmatpush1.bf16.msra.mxu0 %v5534
  %7090 = vmatprep.subr.bf16.mxu0 0
  %7091 = vmatpush1.bf16.msra.mxu0 %v5535
  %7092 = vmatprep.subr.bf16.mxu0 0
  %7093 = vmatpush1.bf16.msra.mxu0 %v5536
  %7094 = vmatprep.subr.bf16.mxu0 0
  %7095 = vmatpush1.bf16.msra.mxu0 %v5537
  %7096 = vmatprep.subr.bf16.mxu0 0
  %7097 = vmatpush1.bf16.msra.mxu0 %v5538
  %7098 = vmatprep.subr.bf16.mxu0 0
  %7099 = vmatpush1.bf16.msra.mxu0 %v5539
  %7100 = vmatprep.mubr.bf16.mxu0 %v2597
  %7101 = vmatmul.mubr.bf16.gmra.mrb[0].mxu0 %v2596
  %v7102 = vpop.f32.mrb[0].mxu0
  %v7103 = vadd.f32 %v7022, %v7102
  %v7104 = vpop.f32.mrb[0].mxu0
  %v7105 = vpop.f32.mrb[0].mxu0
  %v7106 = vadd.f32 %v7025, %v7105
  %v7107 = vpop.f32.mrb[0].mxu0
  %7108 = vmatprep.mubr.bf16.mxu0 %v2661
  %7109 = vmatmul.mubr.bf16.gmra.mrb[0].mxu0 %v2660
  %v7110 = vpop.f32.mrb[0].mxu0
  %v7111 = vadd.f32 %v7030, %v7110
  %v7112 = vpop.f32.mrb[0].mxu0
  %v7113 = vpop.f32.mrb[0].mxu0
  %v7114 = vadd.f32 %v7033, %v7113
  %v7115 = vpop.f32.mrb[0].mxu0
  %7116 = vmatprep.mubr.bf16.mxu0 %v2725
  %7117 = vmatmul.mubr.bf16.gmra.mrb[0].mxu0 %v2724
  %v7118 = vpop.f32.mrb[0].mxu0
  %v7119 = vadd.f32 %v7038, %v7118
  %v7120 = vpop.f32.mrb[0].mxu0
  %v7121 = vpop.f32.mrb[0].mxu0
  %v7122 = vadd.f32 %v7041, %v7121
  %v7123 = vpop.f32.mrb[0].mxu0
  %7124 = vmatprep.mubr.bf16.mxu0 %v2789
  %7125 = vmatmul.mubr.bf16.gmra.mrb[0].mxu0 %v2788
  %v7126 = vpop.f32.mrb[0].mxu0
  %v7127 = vadd.f32 %v7046, %v7126
  %v7128 = vpop.f32.mrb[0].mxu0
  %v7129 = vpop.f32.mrb[0].mxu0
  %v7130 = vadd.f32 %v7049, %v7129
  %v7131 = vpop.f32.mrb[0].mxu0
  %7132 = vmatprep.mubr.bf16.mxu0 %v2853
  %7133 = vmatmul.mubr.bf16.gmra.mrb[0].mxu0 %v2852
  %v7134 = vpop.f32.mrb[0].mxu0
  %v7135 = vadd.f32 %v7054, %v7134
  %v7136 = vpop.f32.mrb[0].mxu0
  %v7137 = vpop.f32.mrb[0].mxu0
  %v7138 = vadd.f32 %v7057, %v7137
  %v7139 = vpop.f32.mrb[0].mxu0
  %7140 = vmatprep.mubr.bf16.mxu0 %v2917
  %7141 = vmatmul.mubr.bf16.gmra.mrb[0].mxu0 %v2916
  %v7142 = vpop.f32.mrb[0].mxu0
  %v7143 = vadd.f32 %v7062, %v7142
  %v7144 = vpop.f32.mrb[0].mxu0
  %v7145 = vpop.f32.mrb[0].mxu0
  %v7146 = vadd.f32 %v7065, %v7145
  %v7147 = vpop.f32.mrb[0].mxu0
  %7148 = vdwg.mxu0
  %7149 = vmatprep.subr.bf16.mxu0 0
  %7150 = vmatpush1.bf16.msra.mxu0 %v5540
  %7151 = vmatprep.subr.bf16.mxu0 0
  %7152 = vmatpush1.bf16.msra.mxu0 %v5541
  %7153 = vmatprep.subr.bf16.mxu0 0
  %7154 = vmatpush1.bf16.msra.mxu0 %v5542
  %7155 = vmatprep.subr.bf16.mxu0 0
  %7156 = vmatpush1.bf16.msra.mxu0 %v5543
  %7157 = vmatprep.subr.bf16.mxu0 0
  %7158 = vmatpush1.bf16.msra.mxu0 %v5544
  %7159 = vmatprep.subr.bf16.mxu0 0
  %7160 = vmatpush1.bf16.msra.mxu0 %v5545
  %7161 = vmatprep.subr.bf16.mxu0 0
  %7162 = vmatpush1.bf16.msra.mxu0 %v5546
  %7163 = vmatprep.subr.bf16.mxu0 0
  %7164 = vmatpush1.bf16.msra.mxu0 %v5547
  %7165 = vmatprep.subr.bf16.mxu0 0
  %7166 = vmatpush1.bf16.msra.mxu0 %v5548
  %7167 = vmatprep.subr.bf16.mxu0 0
  %7168 = vmatpush1.bf16.msra.mxu0 %v5549
  %7169 = vmatprep.subr.bf16.mxu0 0
  %7170 = vmatpush1.bf16.msra.mxu0 %v5550
  %7171 = vmatprep.subr.bf16.mxu0 0
  %7172 = vmatpush1.bf16.msra.mxu0 %v5551
  %7173 = vmatprep.subr.bf16.mxu0 0
  %7174 = vmatpush1.bf16.msra.mxu0 %v5552
  %7175 = vmatprep.subr.bf16.mxu0 0
  %7176 = vmatpush1.bf16.msra.mxu0 %v5553
  %7177 = vmatprep.subr.bf16.mxu0 0
  %7178 = vmatpush1.bf16.msra.mxu0 %v5554
  %7179 = vmatprep.subr.bf16.mxu0 0
  %7180 = vmatpush1.bf16.msra.mxu0 %v5555
  %7181 = vmatprep.mubr.bf16.mxu0 %v2599
  %7182 = vmatmul.mubr.bf16.gmra.mrb[0].mxu0 %v2598
  %v7183 = vpop.f32.mrb[0].mxu0
  %v7184 = vadd.f32 %v7103, %v7183
  %v7185 = vpop.f32.mrb[0].mxu0
  %v7186 = vpop.f32.mrb[0].mxu0
  %v7187 = vadd.f32 %v7106, %v7186
  %v7188 = vpop.f32.mrb[0].mxu0
  %7189 = vmatprep.mubr.bf16.mxu0 %v2663
  %7190 = vmatmul.mubr.bf16.gmra.mrb[0].mxu0 %v2662
  %v7191 = vpop.f32.mrb[0].mxu0
  %v7192 = vadd.f32 %v7111, %v7191
  %v7193 = vpop.f32.mrb[0].mxu0
  %v7194 = vpop.f32.mrb[0].mxu0
  %v7195 = vadd.f32 %v7114, %v7194
  %v7196 = vpop.f32.mrb[0].mxu0
  %7197 = vmatprep.mubr.bf16.mxu0 %v2727
  %7198 = vmatmul.mubr.bf16.gmra.mrb[0].mxu0 %v2726
  %v7199 = vpop.f32.mrb[0].mxu0
  %v7200 = vadd.f32 %v7119, %v7199
  %v7201 = vpop.f32.mrb[0].mxu0
  %v7202 = vpop.f32.mrb[0].mxu0
  %v7203 = vadd.f32 %v7122, %v7202
  %v7204 = vpop.f32.mrb[0].mxu0
  %7205 = vmatprep.mubr.bf16.mxu0 %v2791
  %7206 = vmatmul.mubr.bf16.gmra.mrb[0].mxu0 %v2790
  %v7207 = vpop.f32.mrb[0].mxu0
  %v7208 = vadd.f32 %v7127, %v7207
  %v7209 = vpop.f32.mrb[0].mxu0
  %v7210 = vpop.f32.mrb[0].mxu0
  %v7211 = vadd.f32 %v7130, %v7210
  %v7212 = vpop.f32.mrb[0].mxu0
  %7213 = vmatprep.mubr.bf16.mxu0 %v2855
  %7214 = vmatmul.mubr.bf16.gmra.mrb[0].mxu0 %v2854
  %v7215 = vpop.f32.mrb[0].mxu0
  %v7216 = vadd.f32 %v7135, %v7215
  %v7217 = vpop.f32.mrb[0].mxu0
  %v7218 = vpop.f32.mrb[0].mxu0
  %v7219 = vadd.f32 %v7138, %v7218
  %v7220 = vpop.f32.mrb[0].mxu0
  %7221 = vmatprep.mubr.bf16.mxu0 %v2919
  %7222 = vmatmul.mubr.bf16.gmra.mrb[0].mxu0 %v2918
  %v7223 = vpop.f32.mrb[0].mxu0
  %v7224 = vadd.f32 %v7143, %v7223
  %v7225 = vpop.f32.mrb[0].mxu0
  %v7226 = vpop.f32.mrb[0].mxu0
  %v7227 = vadd.f32 %v7146, %v7226
  %v7228 = vpop.f32.mrb[0].mxu0
  %7229 = vdwg.mxu0
  %7230 = vmatprep.subr.bf16.mxu0 0
  %7231 = vmatpush1.bf16.msra.mxu0 %v5556
  %7232 = vmatprep.subr.bf16.mxu0 0
  %7233 = vmatpush1.bf16.msra.mxu0 %v5557
  %7234 = vmatprep.subr.bf16.mxu0 0
  %7235 = vmatpush1.bf16.msra.mxu0 %v5558
  %7236 = vmatprep.subr.bf16.mxu0 0
  %7237 = vmatpush1.bf16.msra.mxu0 %v5559
  %7238 = vmatprep.subr.bf16.mxu0 0
  %7239 = vmatpush1.bf16.msra.mxu0 %v5560
  %7240 = vmatprep.subr.bf16.mxu0 0
  %7241 = vmatpush1.bf16.msra.mxu0 %v5561
  %7242 = vmatprep.subr.bf16.mxu0 0
  %7243 = vmatpush1.bf16.msra.mxu0 %v5562
  %7244 = vmatprep.subr.bf16.mxu0 0
  %7245 = vmatpush1.bf16.msra.mxu0 %v5563
  %7246 = vmatprep.subr.bf16.mxu0 0
  %7247 = vmatpush1.bf16.msra.mxu0 %v5564
  %7248 = vmatprep.subr.bf16.mxu0 0
  %7249 = vmatpush1.bf16.msra.mxu0 %v5565
  %7250 = vmatprep.subr.bf16.mxu0 0
  %7251 = vmatpush1.bf16.msra.mxu0 %v5566
  %7252 = vmatprep.subr.bf16.mxu0 0
  %7253 = vmatpush1.bf16.msra.mxu0 %v5567
  %7254 = vmatprep.subr.bf16.mxu0 0
  %7255 = vmatpush1.bf16.msra.mxu0 %v5568
  %7256 = vmatprep.subr.bf16.mxu0 0
  %7257 = vmatpush1.bf16.msra.mxu0 %v5569
  %7258 = vmatprep.subr.bf16.mxu0 0
  %7259 = vmatpush1.bf16.msra.mxu0 %v5570
  %7260 = vmatprep.subr.bf16.mxu0 0
  %7261 = vmatpush1.bf16.msra.mxu0 %v5571
  %7262 = vmatprep.mubr.bf16.mxu0 %v2601
  %7263 = vmatmul.mubr.bf16.gmra.mrb[0].mxu0 %v2600
  %v7264 = vpop.f32.mrb[0].mxu0
  %v7265 = vadd.f32 %v7184, %v7264
  %v7266 = vpop.f32.mrb[0].mxu0
  %v7267 = vpop.f32.mrb[0].mxu0
  %v7268 = vadd.f32 %v7187, %v7267
  %v7269 = vpop.f32.mrb[0].mxu0
  %7270 = vmatprep.mubr.bf16.mxu0 %v2665
  %7271 = vmatmul.mubr.bf16.gmra.mrb[0].mxu0 %v2664
  %v7272 = vpop.f32.mrb[0].mxu0
  %v7273 = vadd.f32 %v7192, %v7272
  %v7274 = vpop.f32.mrb[0].mxu0
  %v7275 = vpop.f32.mrb[0].mxu0
  %v7276 = vadd.f32 %v7195, %v7275
  %v7277 = vpop.f32.mrb[0].mxu0
  %7278 = vmatprep.mubr.bf16.mxu0 %v2729
  %7279 = vmatmul.mubr.bf16.gmra.mrb[0].mxu0 %v2728
  %v7280 = vpop.f32.mrb[0].mxu0
  %v7281 = vadd.f32 %v7200, %v7280
  %v7282 = vpop.f32.mrb[0].mxu0
  %v7283 = vpop.f32.mrb[0].mxu0
  %v7284 = vadd.f32 %v7203, %v7283
  %v7285 = vpop.f32.mrb[0].mxu0
  %7286 = vmatprep.mubr.bf16.mxu0 %v2793
  %7287 = vmatmul.mubr.bf16.gmra.mrb[0].mxu0 %v2792
  %v7288 = vpop.f32.mrb[0].mxu0
  %v7289 = vadd.f32 %v7208, %v7288
  %v7290 = vpop.f32.mrb[0].mxu0
  %v7291 = vpop.f32.mrb[0].mxu0
  %v7292 = vadd.f32 %v7211, %v7291
  %v7293 = vpop.f32.mrb[0].mxu0
  %7294 = vmatprep.mubr.bf16.mxu0 %v2857
  %7295 = vmatmul.mubr.bf16.gmra.mrb[0].mxu0 %v2856
  %v7296 = vpop.f32.mrb[0].mxu0
  %v7297 = vadd.f32 %v7216, %v7296
  %v7298 = vpop.f32.mrb[0].mxu0
  %v7299 = vpop.f32.mrb[0].mxu0
  %v7300 = vadd.f32 %v7219, %v7299
  %v7301 = vpop.f32.mrb[0].mxu0
  %7302 = vmatprep.mubr.bf16.mxu0 %v2921
  %7303 = vmatmul.mubr.bf16.gmra.mrb[0].mxu0 %v2920
  %v7304 = vpop.f32.mrb[0].mxu0
  %v7305 = vadd.f32 %v7224, %v7304
  %v7306 = vpop.f32.mrb[0].mxu0
  %v7307 = vpop.f32.mrb[0].mxu0
  %v7308 = vadd.f32 %v7227, %v7307
  %v7309 = vpop.f32.mrb[0].mxu0
  %7310 = vdwg.mxu0
  %7311 = vmatprep.subr.bf16.mxu0 0
  %7312 = vmatpush1.bf16.msra.mxu0 %v5572
  %7313 = vmatprep.subr.bf16.mxu0 0
  %7314 = vmatpush1.bf16.msra.mxu0 %v5573
  %7315 = vmatprep.subr.bf16.mxu0 0
  %7316 = vmatpush1.bf16.msra.mxu0 %v5574
  %7317 = vmatprep.subr.bf16.mxu0 0
  %7318 = vmatpush1.bf16.msra.mxu0 %v5575
  %7319 = vmatprep.subr.bf16.mxu0 0
  %7320 = vmatpush1.bf16.msra.mxu0 %v5576
  %7321 = vmatprep.subr.bf16.mxu0 0
  %7322 = vmatpush1.bf16.msra.mxu0 %v5577
  %7323 = vmatprep.subr.bf16.mxu0 0
  %7324 = vmatpush1.bf16.msra.mxu0 %v5578
  %7325 = vmatprep.subr.bf16.mxu0 0
  %7326 = vmatpush1.bf16.msra.mxu0 %v5579
  %7327 = vmatprep.subr.bf16.mxu0 0
  %7328 = vmatpush1.bf16.msra.mxu0 %v5580
  %7329 = vmatprep.subr.bf16.mxu0 0
  %7330 = vmatpush1.bf16.msra.mxu0 %v5581
  %7331 = vmatprep.subr.bf16.mxu0 0
  %7332 = vmatpush1.bf16.msra.mxu0 %v5582
  %7333 = vmatprep.subr.bf16.mxu0 0
  %7334 = vmatpush1.bf16.msra.mxu0 %v5583
  %7335 = vmatprep.subr.bf16.mxu0 0
  %7336 = vmatpush1.bf16.msra.mxu0 %v5584
  %7337 = vmatprep.subr.bf16.mxu0 0
  %7338 = vmatpush1.bf16.msra.mxu0 %v5585
  %7339 = vmatprep.subr.bf16.mxu0 0
  %7340 = vmatpush1.bf16.msra.mxu0 %v5586
  %7341 = vmatprep.subr.bf16.mxu0 0
  %7342 = vmatpush1.bf16.msra.mxu0 %v5587
  %7343 = vmatprep.mubr.bf16.mxu0 %v2603
  %7344 = vmatmul.mubr.bf16.gmra.mrb[0].mxu0 %v2602
  %v7345 = vpop.f32.mrb[0].mxu0
  %v7346 = vadd.f32 %v7265, %v7345
  %v7347 = vpop.f32.mrb[0].mxu0
  %v7348 = vpop.f32.mrb[0].mxu0
  %v7349 = vadd.f32 %v7268, %v7348
  %v7350 = vpop.f32.mrb[0].mxu0
  %7351 = vmatprep.mubr.bf16.mxu0 %v2667
  %7352 = vmatmul.mubr.bf16.gmra.mrb[0].mxu0 %v2666
  %v7353 = vpop.f32.mrb[0].mxu0
  %v7354 = vadd.f32 %v7273, %v7353
  %v7355 = vpop.f32.mrb[0].mxu0
  %v7356 = vpop.f32.mrb[0].mxu0
  %v7357 = vadd.f32 %v7276, %v7356
  %v7358 = vpop.f32.mrb[0].mxu0
  %7359 = vmatprep.mubr.bf16.mxu0 %v2731
  %7360 = vmatmul.mubr.bf16.gmra.mrb[0].mxu0 %v2730
  %v7361 = vpop.f32.mrb[0].mxu0
  %v7362 = vadd.f32 %v7281, %v7361
  %v7363 = vpop.f32.mrb[0].mxu0
  %v7364 = vpop.f32.mrb[0].mxu0
  %v7365 = vadd.f32 %v7284, %v7364
  %v7366 = vpop.f32.mrb[0].mxu0
  %7367 = vmatprep.mubr.bf16.mxu0 %v2795
  %7368 = vmatmul.mubr.bf16.gmra.mrb[0].mxu0 %v2794
  %v7369 = vpop.f32.mrb[0].mxu0
  %v7370 = vadd.f32 %v7289, %v7369
  %v7371 = vpop.f32.mrb[0].mxu0
  %v7372 = vpop.f32.mrb[0].mxu0
  %v7373 = vadd.f32 %v7292, %v7372
  %v7374 = vpop.f32.mrb[0].mxu0
  %7375 = vmatprep.mubr.bf16.mxu0 %v2859
  %7376 = vmatmul.mubr.bf16.gmra.mrb[0].mxu0 %v2858
  %v7377 = vpop.f32.mrb[0].mxu0
  %v7378 = vadd.f32 %v7297, %v7377
  %v7379 = vpop.f32.mrb[0].mxu0
  %v7380 = vpop.f32.mrb[0].mxu0
  %v7381 = vadd.f32 %v7300, %v7380
  %v7382 = vpop.f32.mrb[0].mxu0
  %7383 = vmatprep.mubr.bf16.mxu0 %v2923
  %7384 = vmatmul.mubr.bf16.gmra.mrb[0].mxu0 %v2922
  %v7385 = vpop.f32.mrb[0].mxu0
  %v7386 = vadd.f32 %v7305, %v7385
  %v7387 = vpop.f32.mrb[0].mxu0
  %v7388 = vpop.f32.mrb[0].mxu0
  %v7389 = vadd.f32 %v7308, %v7388
  %v7390 = vpop.f32.mrb[0].mxu0
  %7391 = vdwg.mxu0
  %7392 = vmatprep.subr.bf16.mxu0 0
  %7393 = vmatpush1.bf16.msra.mxu0 %v5588
  %7394 = vmatprep.subr.bf16.mxu0 0
  %7395 = vmatpush1.bf16.msra.mxu0 %v5589
  %7396 = vmatprep.subr.bf16.mxu0 0
  %7397 = vmatpush1.bf16.msra.mxu0 %v5590
  %7398 = vmatprep.subr.bf16.mxu0 0
  %7399 = vmatpush1.bf16.msra.mxu0 %v5591
  %7400 = vmatprep.subr.bf16.mxu0 0
  %7401 = vmatpush1.bf16.msra.mxu0 %v5592
  %7402 = vmatprep.subr.bf16.mxu0 0
  %7403 = vmatpush1.bf16.msra.mxu0 %v5593
  %7404 = vmatprep.subr.bf16.mxu0 0
  %7405 = vmatpush1.bf16.msra.mxu0 %v5594
  %7406 = vmatprep.subr.bf16.mxu0 0
  %7407 = vmatpush1.bf16.msra.mxu0 %v5595
  %7408 = vmatprep.subr.bf16.mxu0 0
  %7409 = vmatpush1.bf16.msra.mxu0 %v5596
  %7410 = vmatprep.subr.bf16.mxu0 0
  %7411 = vmatpush1.bf16.msra.mxu0 %v5597
  %7412 = vmatprep.subr.bf16.mxu0 0
  %7413 = vmatpush1.bf16.msra.mxu0 %v5598
  %7414 = vmatprep.subr.bf16.mxu0 0
  %7415 = vmatpush1.bf16.msra.mxu0 %v5599
  %7416 = vmatprep.subr.bf16.mxu0 0
  %7417 = vmatpush1.bf16.msra.mxu0 %v5600
  %7418 = vmatprep.subr.bf16.mxu0 0
  %7419 = vmatpush1.bf16.msra.mxu0 %v5601
  %7420 = vmatprep.subr.bf16.mxu0 0
  %7421 = vmatpush1.bf16.msra.mxu0 %v5602
  %7422 = vmatprep.subr.bf16.mxu0 0
  %7423 = vmatpush1.bf16.msra.mxu0 %v5603
  %7424 = vmatprep.mubr.bf16.mxu0 %v2605
  %7425 = vmatmul.mubr.bf16.gmra.mrb[0].mxu0 %v2604
  %v7426 = vpop.f32.mrb[0].mxu0
  %v7427 = vadd.f32 %v7346, %v7426
  %v7428 = vpop.f32.mrb[0].mxu0
  %v7429 = vpop.f32.mrb[0].mxu0
  %v7430 = vadd.f32 %v7349, %v7429
  %v7431 = vpop.f32.mrb[0].mxu0
  %7432 = vmatprep.mubr.bf16.mxu0 %v2669
  %7433 = vmatmul.mubr.bf16.gmra.mrb[0].mxu0 %v2668
  %v7434 = vpop.f32.mrb[0].mxu0
  %v7435 = vadd.f32 %v7354, %v7434
  %v7436 = vpop.f32.mrb[0].mxu0
  %v7437 = vpop.f32.mrb[0].mxu0
  %v7438 = vadd.f32 %v7357, %v7437
  %v7439 = vpop.f32.mrb[0].mxu0
  %7440 = vmatprep.mubr.bf16.mxu0 %v2733
  %7441 = vmatmul.mubr.bf16.gmra.mrb[0].mxu0 %v2732
  %v7442 = vpop.f32.mrb[0].mxu0
  %v7443 = vadd.f32 %v7362, %v7442
  %v7444 = vpop.f32.mrb[0].mxu0
  %v7445 = vpop.f32.mrb[0].mxu0
  %v7446 = vadd.f32 %v7365, %v7445
  %v7447 = vpop.f32.mrb[0].mxu0
  %7448 = vmatprep.mubr.bf16.mxu0 %v2797
  %7449 = vmatmul.mubr.bf16.gmra.mrb[0].mxu0 %v2796
  %v7450 = vpop.f32.mrb[0].mxu0
  %v7451 = vadd.f32 %v7370, %v7450
  %v7452 = vpop.f32.mrb[0].mxu0
  %v7453 = vpop.f32.mrb[0].mxu0
  %v7454 = vadd.f32 %v7373, %v7453
  %v7455 = vpop.f32.mrb[0].mxu0
  %7456 = vmatprep.mubr.bf16.mxu0 %v2861
  %7457 = vmatmul.mubr.bf16.gmra.mrb[0].mxu0 %v2860
  %v7458 = vpop.f32.mrb[0].mxu0
  %v7459 = vadd.f32 %v7378, %v7458
  %v7460 = vpop.f32.mrb[0].mxu0
  %v7461 = vpop.f32.mrb[0].mxu0
  %v7462 = vadd.f32 %v7381, %v7461
  %v7463 = vpop.f32.mrb[0].mxu0
  %7464 = vmatprep.mubr.bf16.mxu0 %v2925
  %7465 = vmatmul.mubr.bf16.gmra.mrb[0].mxu0 %v2924
  %v7466 = vpop.f32.mrb[0].mxu0
  %v7467 = vadd.f32 %v7386, %v7466
  %v7468 = vpop.f32.mrb[0].mxu0
  %v7469 = vpop.f32.mrb[0].mxu0
  %v7470 = vadd.f32 %v7389, %v7469
  %v7471 = vpop.f32.mrb[0].mxu0
  %7472 = vdwg.mxu0
  %7473 = vmatprep.subr.bf16.mxu0 0
  %7474 = vmatpush1.bf16.msra.mxu0 %v5604
  %7475 = vmatprep.subr.bf16.mxu0 0
  %7476 = vmatpush1.bf16.msra.mxu0 %v5605
  %7477 = vmatprep.subr.bf16.mxu0 0
  %7478 = vmatpush1.bf16.msra.mxu0 %v5606
  %7479 = vmatprep.subr.bf16.mxu0 0
  %7480 = vmatpush1.bf16.msra.mxu0 %v5607
  %7481 = vmatprep.subr.bf16.mxu0 0
  %7482 = vmatpush1.bf16.msra.mxu0 %v5608
  %7483 = vmatprep.subr.bf16.mxu0 0
  %7484 = vmatpush1.bf16.msra.mxu0 %v5609
  %7485 = vmatprep.subr.bf16.mxu0 0
  %7486 = vmatpush1.bf16.msra.mxu0 %v5610
  %7487 = vmatprep.subr.bf16.mxu0 0
  %7488 = vmatpush1.bf16.msra.mxu0 %v5611
  %7489 = vmatprep.subr.bf16.mxu0 0
  %7490 = vmatpush1.bf16.msra.mxu0 %v5612
  %7491 = vmatprep.subr.bf16.mxu0 0
  %7492 = vmatpush1.bf16.msra.mxu0 %v5613
  %7493 = vmatprep.subr.bf16.mxu0 0
  %7494 = vmatpush1.bf16.msra.mxu0 %v5614
  %7495 = vmatprep.subr.bf16.mxu0 0
  %7496 = vmatpush1.bf16.msra.mxu0 %v5615
  %7497 = vmatprep.subr.bf16.mxu0 0
  %7498 = vmatpush1.bf16.msra.mxu0 %v5616
  %7499 = vmatprep.subr.bf16.mxu0 0
  %7500 = vmatpush1.bf16.msra.mxu0 %v5617
  %7501 = vmatprep.subr.bf16.mxu0 0
  %7502 = vmatpush1.bf16.msra.mxu0 %v5618
  %7503 = vmatprep.subr.bf16.mxu0 0
  %7504 = vmatpush1.bf16.msra.mxu0 %v5619
  %7505 = vmatprep.mubr.bf16.mxu0 %v2607
  %7506 = vmatmul.mubr.bf16.gmra.mrb[0].mxu0 %v2606
  %v7507 = vpop.f32.mrb[0].mxu0
  %v7508 = vadd.f32 %v7427, %v7507
  %v7509 = vpop.f32.mrb[0].mxu0
  %v7510 = vpop.f32.mrb[0].mxu0
  %v7511 = vadd.f32 %v7430, %v7510
  %v7512 = vpop.f32.mrb[0].mxu0
  %7513 = vmatprep.mubr.bf16.mxu0 %v2671
  %7514 = vmatmul.mubr.bf16.gmra.mrb[0].mxu0 %v2670
  %v7515 = vpop.f32.mrb[0].mxu0
  %v7516 = vadd.f32 %v7435, %v7515
  %v7517 = vpop.f32.mrb[0].mxu0
  %v7518 = vpop.f32.mrb[0].mxu0
  %v7519 = vadd.f32 %v7438, %v7518
  %v7520 = vpop.f32.mrb[0].mxu0
  %7521 = vmatprep.mubr.bf16.mxu0 %v2735
  %7522 = vmatmul.mubr.bf16.gmra.mrb[0].mxu0 %v2734
  %v7523 = vpop.f32.mrb[0].mxu0
  %v7524 = vadd.f32 %v7443, %v7523
  %v7525 = vpop.f32.mrb[0].mxu0
  %v7526 = vpop.f32.mrb[0].mxu0
  %v7527 = vadd.f32 %v7446, %v7526
  %v7528 = vpop.f32.mrb[0].mxu0
  %7529 = vmatprep.mubr.bf16.mxu0 %v2799
  %7530 = vmatmul.mubr.bf16.gmra.mrb[0].mxu0 %v2798
  %v7531 = vpop.f32.mrb[0].mxu0
  %v7532 = vadd.f32 %v7451, %v7531
  %v7533 = vpop.f32.mrb[0].mxu0
  %v7534 = vpop.f32.mrb[0].mxu0
  %v7535 = vadd.f32 %v7454, %v7534
  %v7536 = vpop.f32.mrb[0].mxu0
  %7537 = vmatprep.mubr.bf16.mxu0 %v2863
  %7538 = vmatmul.mubr.bf16.gmra.mrb[0].mxu0 %v2862
  %v7539 = vpop.f32.mrb[0].mxu0
  %v7540 = vadd.f32 %v7459, %v7539
  %v7541 = vpop.f32.mrb[0].mxu0
  %v7542 = vpop.f32.mrb[0].mxu0
  %v7543 = vadd.f32 %v7462, %v7542
  %v7544 = vpop.f32.mrb[0].mxu0
  %7545 = vmatprep.mubr.bf16.mxu0 %v2927
  %7546 = vmatmul.mubr.bf16.gmra.mrb[0].mxu0 %v2926
  %v7547 = vpop.f32.mrb[0].mxu0
  %v7548 = vadd.f32 %v7467, %v7547
  %v7549 = vpop.f32.mrb[0].mxu0
  %v7550 = vpop.f32.mrb[0].mxu0
  %v7551 = vadd.f32 %v7470, %v7550
  %v7552 = vpop.f32.mrb[0].mxu0
  %7553 = vdwg.mxu0
  %7554 = vmatprep.subr.bf16.mxu0 0
  %7555 = vmatpush1.bf16.msra.mxu0 %v5620
  %7556 = vmatprep.subr.bf16.mxu0 0
  %7557 = vmatpush1.bf16.msra.mxu0 %v5621
  %7558 = vmatprep.subr.bf16.mxu0 0
  %7559 = vmatpush1.bf16.msra.mxu0 %v5622
  %7560 = vmatprep.subr.bf16.mxu0 0
  %7561 = vmatpush1.bf16.msra.mxu0 %v5623
  %7562 = vmatprep.subr.bf16.mxu0 0
  %7563 = vmatpush1.bf16.msra.mxu0 %v5624
  %7564 = vmatprep.subr.bf16.mxu0 0
  %7565 = vmatpush1.bf16.msra.mxu0 %v5625
  %7566 = vmatprep.subr.bf16.mxu0 0
  %7567 = vmatpush1.bf16.msra.mxu0 %v5626
  %7568 = vmatprep.subr.bf16.mxu0 0
  %7569 = vmatpush1.bf16.msra.mxu0 %v5627
  %7570 = vmatprep.subr.bf16.mxu0 0
  %7571 = vmatpush1.bf16.msra.mxu0 %v5628
  %7572 = vmatprep.subr.bf16.mxu0 0
  %7573 = vmatpush1.bf16.msra.mxu0 %v5629
  %7574 = vmatprep.subr.bf16.mxu0 0
  %7575 = vmatpush1.bf16.msra.mxu0 %v5630
  %7576 = vmatprep.subr.bf16.mxu0 0
  %7577 = vmatpush1.bf16.msra.mxu0 %v5631
  %7578 = vmatprep.subr.bf16.mxu0 0
  %7579 = vmatpush1.bf16.msra.mxu0 %v5632
  %7580 = vmatprep.subr.bf16.mxu0 0
  %7581 = vmatpush1.bf16.msra.mxu0 %v5633
  %7582 = vmatprep.subr.bf16.mxu0 0
  %7583 = vmatpush1.bf16.msra.mxu0 %v5634
  %7584 = vmatprep.subr.bf16.mxu0 0
  %7585 = vmatpush1.bf16.msra.mxu0 %v5635
  %7586 = vmatprep.mubr.bf16.mxu0 %v2609
  %7587 = vmatmul.mubr.bf16.gmra.mrb[0].mxu0 %v2608
  %v7588 = vpop.f32.mrb[0].mxu0
  %v7589 = vadd.f32 %v7508, %v7588
  %v7590 = vpop.f32.mrb[0].mxu0
  %v7591 = vpop.f32.mrb[0].mxu0
  %v7592 = vadd.f32 %v7511, %v7591
  %v7593 = vpop.f32.mrb[0].mxu0
  %7594 = vmatprep.mubr.bf16.mxu0 %v2673
  %7595 = vmatmul.mubr.bf16.gmra.mrb[0].mxu0 %v2672
  %v7596 = vpop.f32.mrb[0].mxu0
  %v7597 = vadd.f32 %v7516, %v7596
  %v7598 = vpop.f32.mrb[0].mxu0
  %v7599 = vpop.f32.mrb[0].mxu0
  %v7600 = vadd.f32 %v7519, %v7599
  %v7601 = vpop.f32.mrb[0].mxu0
  %7602 = vmatprep.mubr.bf16.mxu0 %v2737
  %7603 = vmatmul.mubr.bf16.gmra.mrb[0].mxu0 %v2736
  %v7604 = vpop.f32.mrb[0].mxu0
  %v7605 = vadd.f32 %v7524, %v7604
  %v7606 = vpop.f32.mrb[0].mxu0
  %v7607 = vpop.f32.mrb[0].mxu0
  %v7608 = vadd.f32 %v7527, %v7607
  %v7609 = vpop.f32.mrb[0].mxu0
  %7610 = vmatprep.mubr.bf16.mxu0 %v2801
  %7611 = vmatmul.mubr.bf16.gmra.mrb[0].mxu0 %v2800
  %v7612 = vpop.f32.mrb[0].mxu0
  %v7613 = vadd.f32 %v7532, %v7612
  %v7614 = vpop.f32.mrb[0].mxu0
  %v7615 = vpop.f32.mrb[0].mxu0
  %v7616 = vadd.f32 %v7535, %v7615
  %v7617 = vpop.f32.mrb[0].mxu0
  %7618 = vmatprep.mubr.bf16.mxu0 %v2865
  %7619 = vmatmul.mubr.bf16.gmra.mrb[0].mxu0 %v2864
  %v7620 = vpop.f32.mrb[0].mxu0
  %v7621 = vadd.f32 %v7540, %v7620
  %v7622 = vpop.f32.mrb[0].mxu0
  %v7623 = vpop.f32.mrb[0].mxu0
  %v7624 = vadd.f32 %v7543, %v7623
  %v7625 = vpop.f32.mrb[0].mxu0
  %7626 = vmatprep.mubr.bf16.mxu0 %v2929
  %7627 = vmatmul.mubr.bf16.gmra.mrb[0].mxu0 %v2928
  %v7628 = vpop.f32.mrb[0].mxu0
  %v7629 = vadd.f32 %v7548, %v7628
  %v7630 = vpop.f32.mrb[0].mxu0
  %v7631 = vpop.f32.mrb[0].mxu0
  %v7632 = vadd.f32 %v7551, %v7631
  %v7633 = vpop.f32.mrb[0].mxu0
  %7634 = vdwg.mxu0
  %7635 = vmatprep.subr.bf16.mxu0 0
  %7636 = vmatpush1.bf16.msra.mxu0 %v5636
  %7637 = vmatprep.subr.bf16.mxu0 0
  %7638 = vmatpush1.bf16.msra.mxu0 %v5637
  %7639 = vmatprep.subr.bf16.mxu0 0
  %7640 = vmatpush1.bf16.msra.mxu0 %v5638
  %7641 = vmatprep.subr.bf16.mxu0 0
  %7642 = vmatpush1.bf16.msra.mxu0 %v5639
  %7643 = vmatprep.subr.bf16.mxu0 0
  %7644 = vmatpush1.bf16.msra.mxu0 %v5640
  %7645 = vmatprep.subr.bf16.mxu0 0
  %7646 = vmatpush1.bf16.msra.mxu0 %v5641
  %7647 = vmatprep.subr.bf16.mxu0 0
  %7648 = vmatpush1.bf16.msra.mxu0 %v5642
  %7649 = vmatprep.subr.bf16.mxu0 0
  %7650 = vmatpush1.bf16.msra.mxu0 %v5643
  %7651 = vmatprep.subr.bf16.mxu0 0
  %7652 = vmatpush1.bf16.msra.mxu0 %v5644
  %7653 = vmatprep.subr.bf16.mxu0 0
  %7654 = vmatpush1.bf16.msra.mxu0 %v5645
  %7655 = vmatprep.subr.bf16.mxu0 0
  %7656 = vmatpush1.bf16.msra.mxu0 %v5646
  %7657 = vmatprep.subr.bf16.mxu0 0
  %7658 = vmatpush1.bf16.msra.mxu0 %v5647
  %7659 = vmatprep.subr.bf16.mxu0 0
  %7660 = vmatpush1.bf16.msra.mxu0 %v5648
  %7661 = vmatprep.subr.bf16.mxu0 0
  %7662 = vmatpush1.bf16.msra.mxu0 %v5649
  %7663 = vmatprep.subr.bf16.mxu0 0
  %7664 = vmatpush1.bf16.msra.mxu0 %v5650
  %7665 = vmatprep.subr.bf16.mxu0 0
  %7666 = vmatpush1.bf16.msra.mxu0 %v5651
  %7667 = vmatprep.mubr.bf16.mxu0 %v2611
  %7668 = vmatmul.mubr.bf16.gmra.mrb[0].mxu0 %v2610
  %v7669 = vpop.f32.mrb[0].mxu0
  %v7670 = vadd.f32 %v7589, %v7669
  %v7671 = vpop.f32.mrb[0].mxu0
  %v7672 = vpop.f32.mrb[0].mxu0
  %v7673 = vadd.f32 %v7592, %v7672
  %v7674 = vpop.f32.mrb[0].mxu0
  %7675 = vmatprep.mubr.bf16.mxu0 %v2675
  %7676 = vmatmul.mubr.bf16.gmra.mrb[0].mxu0 %v2674
  %v7677 = vpop.f32.mrb[0].mxu0
  %v7678 = vadd.f32 %v7597, %v7677
  %v7679 = vpop.f32.mrb[0].mxu0
  %v7680 = vpop.f32.mrb[0].mxu0
  %v7681 = vadd.f32 %v7600, %v7680
  %v7682 = vpop.f32.mrb[0].mxu0
  %7683 = vmatprep.mubr.bf16.mxu0 %v2739
  %7684 = vmatmul.mubr.bf16.gmra.mrb[0].mxu0 %v2738
  %v7685 = vpop.f32.mrb[0].mxu0
  %v7686 = vadd.f32 %v7605, %v7685
  %v7687 = vpop.f32.mrb[0].mxu0
  %v7688 = vpop.f32.mrb[0].mxu0
  %v7689 = vadd.f32 %v7608, %v7688
  %v7690 = vpop.f32.mrb[0].mxu0
  %7691 = vmatprep.mubr.bf16.mxu0 %v2803
  %7692 = vmatmul.mubr.bf16.gmra.mrb[0].mxu0 %v2802
  %v7693 = vpop.f32.mrb[0].mxu0
  %v7694 = vadd.f32 %v7613, %v7693
  %v7695 = vpop.f32.mrb[0].mxu0
  %v7696 = vpop.f32.mrb[0].mxu0
  %v7697 = vadd.f32 %v7616, %v7696
  %v7698 = vpop.f32.mrb[0].mxu0
  %7699 = vmatprep.mubr.bf16.mxu0 %v2867
  %7700 = vmatmul.mubr.bf16.gmra.mrb[0].mxu0 %v2866
  %v7701 = vpop.f32.mrb[0].mxu0
  %v7702 = vadd.f32 %v7621, %v7701
  %v7703 = vpop.f32.mrb[0].mxu0
  %v7704 = vpop.f32.mrb[0].mxu0
  %v7705 = vadd.f32 %v7624, %v7704
  %v7706 = vpop.f32.mrb[0].mxu0
  %7707 = vmatprep.mubr.bf16.mxu0 %v2931
  %7708 = vmatmul.mubr.bf16.gmra.mrb[0].mxu0 %v2930
  %v7709 = vpop.f32.mrb[0].mxu0
  %v7710 = vadd.f32 %v7629, %v7709
  %v7711 = vpop.f32.mrb[0].mxu0
  %v7712 = vpop.f32.mrb[0].mxu0
  %v7713 = vadd.f32 %v7632, %v7712
  %v7714 = vpop.f32.mrb[0].mxu0
  %7715 = vdwg.mxu0
  %7716 = vmatprep.subr.bf16.mxu0 0
  %7717 = vmatpush1.bf16.msra.mxu0 %v5652
  %7718 = vmatprep.subr.bf16.mxu0 0
  %7719 = vmatpush1.bf16.msra.mxu0 %v5653
  %7720 = vmatprep.subr.bf16.mxu0 0
  %7721 = vmatpush1.bf16.msra.mxu0 %v5654
  %7722 = vmatprep.subr.bf16.mxu0 0
  %7723 = vmatpush1.bf16.msra.mxu0 %v5655
  %7724 = vmatprep.subr.bf16.mxu0 0
  %7725 = vmatpush1.bf16.msra.mxu0 %v5656
  %7726 = vmatprep.subr.bf16.mxu0 0
  %7727 = vmatpush1.bf16.msra.mxu0 %v5657
  %7728 = vmatprep.subr.bf16.mxu0 0
  %7729 = vmatpush1.bf16.msra.mxu0 %v5658
  %7730 = vmatprep.subr.bf16.mxu0 0
  %7731 = vmatpush1.bf16.msra.mxu0 %v5659
  %7732 = vmatprep.subr.bf16.mxu0 0
  %7733 = vmatpush1.bf16.msra.mxu0 %v5660
  %7734 = vmatprep.subr.bf16.mxu0 0
  %7735 = vmatpush1.bf16.msra.mxu0 %v5661
  %7736 = vmatprep.subr.bf16.mxu0 0
  %7737 = vmatpush1.bf16.msra.mxu0 %v5662
  %7738 = vmatprep.subr.bf16.mxu0 0
  %7739 = vmatpush1.bf16.msra.mxu0 %v5663
  %7740 = vmatprep.subr.bf16.mxu0 0
  %7741 = vmatpush1.bf16.msra.mxu0 %v5664
  %7742 = vmatprep.subr.bf16.mxu0 0
  %7743 = vmatpush1.bf16.msra.mxu0 %v5665
  %7744 = vmatprep.subr.bf16.mxu0 0
  %7745 = vmatpush1.bf16.msra.mxu0 %v5666
  %7746 = vmatprep.subr.bf16.mxu0 0
  %7747 = vmatpush1.bf16.msra.mxu0 %v5667
  %7748 = vmatprep.mubr.bf16.mxu0 %v2613
  %7749 = vmatmul.mubr.bf16.gmra.mrb[0].mxu0 %v2612
  %v7750 = vpop.f32.mrb[0].mxu0
  %v7751 = vadd.f32 %v7670, %v7750
  %v7752 = vpop.f32.mrb[0].mxu0
  %v7753 = vpop.f32.mrb[0].mxu0
  %v7754 = vadd.f32 %v7673, %v7753
  %v7755 = vpop.f32.mrb[0].mxu0
  %7756 = vmatprep.mubr.bf16.mxu0 %v2677
  %7757 = vmatmul.mubr.bf16.gmra.mrb[0].mxu0 %v2676
  %v7758 = vpop.f32.mrb[0].mxu0
  %v7759 = vadd.f32 %v7678, %v7758
  %v7760 = vpop.f32.mrb[0].mxu0
  %v7761 = vpop.f32.mrb[0].mxu0
  %v7762 = vadd.f32 %v7681, %v7761
  %v7763 = vpop.f32.mrb[0].mxu0
  %7764 = vmatprep.mubr.bf16.mxu0 %v2741
  %7765 = vmatmul.mubr.bf16.gmra.mrb[0].mxu0 %v2740
  %v7766 = vpop.f32.mrb[0].mxu0
  %v7767 = vadd.f32 %v7686, %v7766
  %v7768 = vpop.f32.mrb[0].mxu0
  %v7769 = vpop.f32.mrb[0].mxu0
  %v7770 = vadd.f32 %v7689, %v7769
  %v7771 = vpop.f32.mrb[0].mxu0
  %7772 = vmatprep.mubr.bf16.mxu0 %v2805
  %7773 = vmatmul.mubr.bf16.gmra.mrb[0].mxu0 %v2804
  %v7774 = vpop.f32.mrb[0].mxu0
  %v7775 = vadd.f32 %v7694, %v7774
  %v7776 = vpop.f32.mrb[0].mxu0
  %v7777 = vpop.f32.mrb[0].mxu0
  %v7778 = vadd.f32 %v7697, %v7777
  %v7779 = vpop.f32.mrb[0].mxu0
  %7780 = vmatprep.mubr.bf16.mxu0 %v2869
  %7781 = vmatmul.mubr.bf16.gmra.mrb[0].mxu0 %v2868
  %v7782 = vpop.f32.mrb[0].mxu0
  %v7783 = vadd.f32 %v7702, %v7782
  %v7784 = vpop.f32.mrb[0].mxu0
  %v7785 = vpop.f32.mrb[0].mxu0
  %v7786 = vadd.f32 %v7705, %v7785
  %v7787 = vpop.f32.mrb[0].mxu0
  %7788 = vmatprep.mubr.bf16.mxu0 %v2933
  %7789 = vmatmul.mubr.bf16.gmra.mrb[0].mxu0 %v2932
  %v7790 = vpop.f32.mrb[0].mxu0
  %v7791 = vadd.f32 %v7710, %v7790
  %v7792 = vpop.f32.mrb[0].mxu0
  %v7793 = vpop.f32.mrb[0].mxu0
  %v7794 = vadd.f32 %v7713, %v7793
  %v7795 = vpop.f32.mrb[0].mxu0
  %7796 = vdwg.mxu0
  %7797 = vmatprep.subr.bf16.mxu0 0
  %7798 = vmatpush1.bf16.msra.mxu0 %v5668
  %7799 = vmatprep.subr.bf16.mxu0 0
  %7800 = vmatpush1.bf16.msra.mxu0 %v5669
  %7801 = vmatprep.subr.bf16.mxu0 0
  %7802 = vmatpush1.bf16.msra.mxu0 %v5670
  %7803 = vmatprep.subr.bf16.mxu0 0
  %7804 = vmatpush1.bf16.msra.mxu0 %v5671
  %7805 = vmatprep.subr.bf16.mxu0 0
  %7806 = vmatpush1.bf16.msra.mxu0 %v5672
  %7807 = vmatprep.subr.bf16.mxu0 0
  %7808 = vmatpush1.bf16.msra.mxu0 %v5673
  %7809 = vmatprep.subr.bf16.mxu0 0
  %7810 = vmatpush1.bf16.msra.mxu0 %v5674
  %7811 = vmatprep.subr.bf16.mxu0 0
  %7812 = vmatpush1.bf16.msra.mxu0 %v5675
  %7813 = vmatprep.subr.bf16.mxu0 0
  %7814 = vmatpush1.bf16.msra.mxu0 %v5676
  %7815 = vmatprep.subr.bf16.mxu0 0
  %7816 = vmatpush1.bf16.msra.mxu0 %v5677
  %7817 = vmatprep.subr.bf16.mxu0 0
  %7818 = vmatpush1.bf16.msra.mxu0 %v5678
  %7819 = vmatprep.subr.bf16.mxu0 0
  %7820 = vmatpush1.bf16.msra.mxu0 %v5679
  %7821 = vmatprep.subr.bf16.mxu0 0
  %7822 = vmatpush1.bf16.msra.mxu0 %v5680
  %7823 = vmatprep.subr.bf16.mxu0 0
  %7824 = vmatpush1.bf16.msra.mxu0 %v5681
  %7825 = vmatprep.subr.bf16.mxu0 0
  %7826 = vmatpush1.bf16.msra.mxu0 %v5682
  %7827 = vmatprep.subr.bf16.mxu0 0
  %7828 = vmatpush1.bf16.msra.mxu0 %v5683
  %7829 = vmatprep.mubr.bf16.mxu0 %v2615
  %7830 = vmatmul.mubr.bf16.gmra.mrb[0].mxu0 %v2614
  %v7831 = vpop.f32.mrb[0].mxu0
  %v7832 = vadd.f32 %v7751, %v7831
  %v7833 = vpop.f32.mrb[0].mxu0
  %v7834 = vpop.f32.mrb[0].mxu0
  %v7835 = vadd.f32 %v7754, %v7834
  %v7836 = vpop.f32.mrb[0].mxu0
  %7837 = vmatprep.mubr.bf16.mxu0 %v2679
  %7838 = vmatmul.mubr.bf16.gmra.mrb[0].mxu0 %v2678
  %v7839 = vpop.f32.mrb[0].mxu0
  %v7840 = vadd.f32 %v7759, %v7839
  %v7841 = vpop.f32.mrb[0].mxu0
  %v7842 = vpop.f32.mrb[0].mxu0
  %v7843 = vadd.f32 %v7762, %v7842
  %v7844 = vpop.f32.mrb[0].mxu0
  %7845 = vmatprep.mubr.bf16.mxu0 %v2743
  %7846 = vmatmul.mubr.bf16.gmra.mrb[0].mxu0 %v2742
  %v7847 = vpop.f32.mrb[0].mxu0
  %v7848 = vadd.f32 %v7767, %v7847
  %v7849 = vpop.f32.mrb[0].mxu0
  %v7850 = vpop.f32.mrb[0].mxu0
  %v7851 = vadd.f32 %v7770, %v7850
  %v7852 = vpop.f32.mrb[0].mxu0
  %7853 = vmatprep.mubr.bf16.mxu0 %v2807
  %7854 = vmatmul.mubr.bf16.gmra.mrb[0].mxu0 %v2806
  %v7855 = vpop.f32.mrb[0].mxu0
  %v7856 = vadd.f32 %v7775, %v7855
  %v7857 = vpop.f32.mrb[0].mxu0
  %v7858 = vpop.f32.mrb[0].mxu0
  %v7859 = vadd.f32 %v7778, %v7858
  %v7860 = vpop.f32.mrb[0].mxu0
  %7861 = vmatprep.mubr.bf16.mxu0 %v2871
  %7862 = vmatmul.mubr.bf16.gmra.mrb[0].mxu0 %v2870
  %v7863 = vpop.f32.mrb[0].mxu0
  %v7864 = vadd.f32 %v7783, %v7863
  %v7865 = vpop.f32.mrb[0].mxu0
  %v7866 = vpop.f32.mrb[0].mxu0
  %v7867 = vadd.f32 %v7786, %v7866
  %v7868 = vpop.f32.mrb[0].mxu0
  %7869 = vmatprep.mubr.bf16.mxu0 %v2935
  %7870 = vmatmul.mubr.bf16.gmra.mrb[0].mxu0 %v2934
  %v7871 = vpop.f32.mrb[0].mxu0
  %v7872 = vadd.f32 %v7791, %v7871
  %v7873 = vpop.f32.mrb[0].mxu0
  %v7874 = vpop.f32.mrb[0].mxu0
  %v7875 = vadd.f32 %v7794, %v7874
  %v7876 = vpop.f32.mrb[0].mxu0
  %7877 = vdwg.mxu0
  %7878 = vmatprep.subr.bf16.mxu0 0
  %7879 = vmatpush1.bf16.msra.mxu0 %v5684
  %7880 = vmatprep.subr.bf16.mxu0 0
  %7881 = vmatpush1.bf16.msra.mxu0 %v5685
  %7882 = vmatprep.subr.bf16.mxu0 0
  %7883 = vmatpush1.bf16.msra.mxu0 %v5686
  %7884 = vmatprep.subr.bf16.mxu0 0
  %7885 = vmatpush1.bf16.msra.mxu0 %v5687
  %7886 = vmatprep.subr.bf16.mxu0 0
  %7887 = vmatpush1.bf16.msra.mxu0 %v5688
  %7888 = vmatprep.subr.bf16.mxu0 0
  %7889 = vmatpush1.bf16.msra.mxu0 %v5689
  %7890 = vmatprep.subr.bf16.mxu0 0
  %7891 = vmatpush1.bf16.msra.mxu0 %v5690
  %7892 = vmatprep.subr.bf16.mxu0 0
  %7893 = vmatpush1.bf16.msra.mxu0 %v5691
  %7894 = vmatprep.subr.bf16.mxu0 0
  %7895 = vmatpush1.bf16.msra.mxu0 %v5692
  %7896 = vmatprep.subr.bf16.mxu0 0
  %7897 = vmatpush1.bf16.msra.mxu0 %v5693
  %7898 = vmatprep.subr.bf16.mxu0 0
  %7899 = vmatpush1.bf16.msra.mxu0 %v5694
  %7900 = vmatprep.subr.bf16.mxu0 0
  %7901 = vmatpush1.bf16.msra.mxu0 %v5695
  %7902 = vmatprep.subr.bf16.mxu0 0
  %7903 = vmatpush1.bf16.msra.mxu0 %v5696
  %7904 = vmatprep.subr.bf16.mxu0 0
  %7905 = vmatpush1.bf16.msra.mxu0 %v5697
  %7906 = vmatprep.subr.bf16.mxu0 0
  %7907 = vmatpush1.bf16.msra.mxu0 %v5698
  %7908 = vmatprep.subr.bf16.mxu0 0
  %7909 = vmatpush1.bf16.msra.mxu0 %v5699
  %7910 = vmatprep.mubr.bf16.mxu0 %v2617
  %7911 = vmatmul.mubr.bf16.gmra.mrb[0].mxu0 %v2616
  %v7912 = vpop.f32.mrb[0].mxu0
  %v7913 = vadd.f32 %v7832, %v7912
  %v7914 = vpop.f32.mrb[0].mxu0
  %v7915 = vpop.f32.mrb[0].mxu0
  %v7916 = vadd.f32 %v7835, %v7915
  %v7917 = vpop.f32.mrb[0].mxu0
  %7918 = vmatprep.mubr.bf16.mxu0 %v2681
  %7919 = vmatmul.mubr.bf16.gmra.mrb[0].mxu0 %v2680
  %v7920 = vpop.f32.mrb[0].mxu0
  %v7921 = vadd.f32 %v7840, %v7920
  %v7922 = vpop.f32.mrb[0].mxu0
  %v7923 = vpop.f32.mrb[0].mxu0
  %v7924 = vadd.f32 %v7843, %v7923
  %v7925 = vpop.f32.mrb[0].mxu0
  %7926 = vmatprep.mubr.bf16.mxu0 %v2745
  %7927 = vmatmul.mubr.bf16.gmra.mrb[0].mxu0 %v2744
  %v7928 = vpop.f32.mrb[0].mxu0
  %v7929 = vadd.f32 %v7848, %v7928
  %v7930 = vpop.f32.mrb[0].mxu0
  %v7931 = vpop.f32.mrb[0].mxu0
  %v7932 = vadd.f32 %v7851, %v7931
  %v7933 = vpop.f32.mrb[0].mxu0
  %7934 = vmatprep.mubr.bf16.mxu0 %v2809
  %7935 = vmatmul.mubr.bf16.gmra.mrb[0].mxu0 %v2808
  %v7936 = vpop.f32.mrb[0].mxu0
  %v7937 = vadd.f32 %v7856, %v7936
  %v7938 = vpop.f32.mrb[0].mxu0
  %v7939 = vpop.f32.mrb[0].mxu0
  %v7940 = vadd.f32 %v7859, %v7939
  %v7941 = vpop.f32.mrb[0].mxu0
  %7942 = vmatprep.mubr.bf16.mxu0 %v2873
  %7943 = vmatmul.mubr.bf16.gmra.mrb[0].mxu0 %v2872
  %v7944 = vpop.f32.mrb[0].mxu0
  %v7945 = vadd.f32 %v7864, %v7944
  %v7946 = vpop.f32.mrb[0].mxu0
  %v7947 = vpop.f32.mrb[0].mxu0
  %v7948 = vadd.f32 %v7867, %v7947
  %v7949 = vpop.f32.mrb[0].mxu0
  %7950 = vmatprep.mubr.bf16.mxu0 %v2937
  %7951 = vmatmul.mubr.bf16.gmra.mrb[0].mxu0 %v2936
  %v7952 = vpop.f32.mrb[0].mxu0
  %v7953 = vadd.f32 %v7872, %v7952
  %v7954 = vpop.f32.mrb[0].mxu0
  %v7955 = vpop.f32.mrb[0].mxu0
  %v7956 = vadd.f32 %v7875, %v7955
  %v7957 = vpop.f32.mrb[0].mxu0
  %7958 = vdwg.mxu0
  %7959 = vmatprep.subr.bf16.mxu0 0
  %7960 = vmatpush1.bf16.msra.mxu0 %v5700
  %7961 = vmatprep.subr.bf16.mxu0 0
  %7962 = vmatpush1.bf16.msra.mxu0 %v5701
  %7963 = vmatprep.subr.bf16.mxu0 0
  %7964 = vmatpush1.bf16.msra.mxu0 %v5702
  %7965 = vmatprep.subr.bf16.mxu0 0
  %7966 = vmatpush1.bf16.msra.mxu0 %v5703
  %7967 = vmatprep.subr.bf16.mxu0 0
  %7968 = vmatpush1.bf16.msra.mxu0 %v5704
  %7969 = vmatprep.subr.bf16.mxu0 0
  %7970 = vmatpush1.bf16.msra.mxu0 %v5705
  %7971 = vmatprep.subr.bf16.mxu0 0
  %7972 = vmatpush1.bf16.msra.mxu0 %v5706
  %7973 = vmatprep.subr.bf16.mxu0 0
  %7974 = vmatpush1.bf16.msra.mxu0 %v5707
  %7975 = vmatprep.subr.bf16.mxu0 0
  %7976 = vmatpush1.bf16.msra.mxu0 %v5708
  %7977 = vmatprep.subr.bf16.mxu0 0
  %7978 = vmatpush1.bf16.msra.mxu0 %v5709
  %7979 = vmatprep.subr.bf16.mxu0 0
  %7980 = vmatpush1.bf16.msra.mxu0 %v5710
  %7981 = vmatprep.subr.bf16.mxu0 0
  %7982 = vmatpush1.bf16.msra.mxu0 %v5711
  %7983 = vmatprep.subr.bf16.mxu0 0
  %7984 = vmatpush1.bf16.msra.mxu0 %v5712
  %7985 = vmatprep.subr.bf16.mxu0 0
  %7986 = vmatpush1.bf16.msra.mxu0 %v5713
  %7987 = vmatprep.subr.bf16.mxu0 0
  %7988 = vmatpush1.bf16.msra.mxu0 %v5714
  %7989 = vmatprep.subr.bf16.mxu0 0
  %7990 = vmatpush1.bf16.msra.mxu0 %v5715
  %7991 = vmatprep.mubr.bf16.mxu0 %v2619
  %7992 = vmatmul.mubr.bf16.gmra.mrb[0].mxu0 %v2618
  %v7993 = vpop.f32.mrb[0].mxu0
  %v7994 = vadd.f32 %v7913, %v7993
  %v7995 = vpop.f32.mrb[0].mxu0
  %v7996 = vpop.f32.mrb[0].mxu0
  %v7997 = vadd.f32 %v7916, %v7996
  %v7998 = vpop.f32.mrb[0].mxu0
  %7999 = vmatprep.mubr.bf16.mxu0 %v2683
  %8000 = vmatmul.mubr.bf16.gmra.mrb[0].mxu0 %v2682
  %v8001 = vpop.f32.mrb[0].mxu0
  %v8002 = vadd.f32 %v7921, %v8001
  %v8003 = vpop.f32.mrb[0].mxu0
  %v8004 = vpop.f32.mrb[0].mxu0
  %v8005 = vadd.f32 %v7924, %v8004
  %v8006 = vpop.f32.mrb[0].mxu0
  %8007 = vmatprep.mubr.bf16.mxu0 %v2747
  %8008 = vmatmul.mubr.bf16.gmra.mrb[0].mxu0 %v2746
  %v8009 = vpop.f32.mrb[0].mxu0
  %v8010 = vadd.f32 %v7929, %v8009
  %v8011 = vpop.f32.mrb[0].mxu0
  %v8012 = vpop.f32.mrb[0].mxu0
  %v8013 = vadd.f32 %v7932, %v8012
  %v8014 = vpop.f32.mrb[0].mxu0
  %8015 = vmatprep.mubr.bf16.mxu0 %v2811
  %8016 = vmatmul.mubr.bf16.gmra.mrb[0].mxu0 %v2810
  %v8017 = vpop.f32.mrb[0].mxu0
  %v8018 = vadd.f32 %v7937, %v8017
  %v8019 = vpop.f32.mrb[0].mxu0
  %v8020 = vpop.f32.mrb[0].mxu0
  %v8021 = vadd.f32 %v7940, %v8020
  %v8022 = vpop.f32.mrb[0].mxu0
  %8023 = vmatprep.mubr.bf16.mxu0 %v2875
  %8024 = vmatmul.mubr.bf16.gmra.mrb[0].mxu0 %v2874
  %v8025 = vpop.f32.mrb[0].mxu0
  %v8026 = vadd.f32 %v7945, %v8025
  %v8027 = vpop.f32.mrb[0].mxu0
  %v8028 = vpop.f32.mrb[0].mxu0
  %v8029 = vadd.f32 %v7948, %v8028
  %v8030 = vpop.f32.mrb[0].mxu0
  %8031 = vmatprep.mubr.bf16.mxu0 %v2939
  %8032 = vmatmul.mubr.bf16.gmra.mrb[0].mxu0 %v2938
  %v8033 = vpop.f32.mrb[0].mxu0
  %v8034 = vadd.f32 %v7953, %v8033
  %v8035 = vpop.f32.mrb[0].mxu0
  %v8036 = vpop.f32.mrb[0].mxu0
  %v8037 = vadd.f32 %v7956, %v8036
  %v8038 = vpop.f32.mrb[0].mxu0
  %8039 = vdwg.mxu0
  %8040 = vmatprep.subr.bf16.mxu0 0
  %8041 = vmatpush1.bf16.msra.mxu0 %v5716
  %8042 = vmatprep.subr.bf16.mxu0 0
  %8043 = vmatpush1.bf16.msra.mxu0 %v5717
  %8044 = vmatprep.subr.bf16.mxu0 0
  %8045 = vmatpush1.bf16.msra.mxu0 %v5718
  %8046 = vmatprep.subr.bf16.mxu0 0
  %8047 = vmatpush1.bf16.msra.mxu0 %v5719
  %8048 = vmatprep.subr.bf16.mxu0 0
  %8049 = vmatpush1.bf16.msra.mxu0 %v5720
  %8050 = vmatprep.subr.bf16.mxu0 0
  %8051 = vmatpush1.bf16.msra.mxu0 %v5721
  %8052 = vmatprep.subr.bf16.mxu0 0
  %8053 = vmatpush1.bf16.msra.mxu0 %v5722
  %8054 = vmatprep.subr.bf16.mxu0 0
  %8055 = vmatpush1.bf16.msra.mxu0 %v5723
  %8056 = vmatprep.subr.bf16.mxu0 0
  %8057 = vmatpush1.bf16.msra.mxu0 %v5724
  %8058 = vmatprep.subr.bf16.mxu0 0
  %8059 = vmatpush1.bf16.msra.mxu0 %v5725
  %8060 = vmatprep.subr.bf16.mxu0 0
  %8061 = vmatpush1.bf16.msra.mxu0 %v5726
  %8062 = vmatprep.subr.bf16.mxu0 0
  %8063 = vmatpush1.bf16.msra.mxu0 %v5727
  %8064 = vmatprep.subr.bf16.mxu0 0
  %8065 = vmatpush1.bf16.msra.mxu0 %v5728
  %8066 = vmatprep.subr.bf16.mxu0 0
  %8067 = vmatpush1.bf16.msra.mxu0 %v5729
  %8068 = vmatprep.subr.bf16.mxu0 0
  %8069 = vmatpush1.bf16.msra.mxu0 %v5730
  %8070 = vmatprep.subr.bf16.mxu0 0
  %8071 = vmatpush1.bf16.msra.mxu0 %v5731
  %8072 = vmatprep.mubr.bf16.mxu0 %v2621
  %8073 = vmatmul.mubr.bf16.gmra.mrb[0].mxu0 %v2620
  %v8074 = vpop.f32.mrb[0].mxu0
  %v8075 = vadd.f32 %v7994, %v8074
  %v8076 = vpop.f32.mrb[0].mxu0
  %v8077 = vpop.f32.mrb[0].mxu0
  %v8078 = vadd.f32 %v7997, %v8077
  %v8079 = vpop.f32.mrb[0].mxu0
  %8080 = vmatprep.mubr.bf16.mxu0 %v2685
  %8081 = vmatmul.mubr.bf16.gmra.mrb[0].mxu0 %v2684
  %v8082 = vpop.f32.mrb[0].mxu0
  %v8083 = vadd.f32 %v8002, %v8082
  %v8084 = vpop.f32.mrb[0].mxu0
  %v8085 = vpop.f32.mrb[0].mxu0
  %v8086 = vadd.f32 %v8005, %v8085
  %v8087 = vpop.f32.mrb[0].mxu0
  %8088 = vmatprep.mubr.bf16.mxu0 %v2749
  %8089 = vmatmul.mubr.bf16.gmra.mrb[0].mxu0 %v2748
  %v8090 = vpop.f32.mrb[0].mxu0
  %v8091 = vadd.f32 %v8010, %v8090
  %v8092 = vpop.f32.mrb[0].mxu0
  %v8093 = vpop.f32.mrb[0].mxu0
  %v8094 = vadd.f32 %v8013, %v8093
  %v8095 = vpop.f32.mrb[0].mxu0
  %8096 = vmatprep.mubr.bf16.mxu0 %v2813
  %8097 = vmatmul.mubr.bf16.gmra.mrb[0].mxu0 %v2812
  %v8098 = vpop.f32.mrb[0].mxu0
  %v8099 = vadd.f32 %v8018, %v8098
  %v8100 = vpop.f32.mrb[0].mxu0
  %v8101 = vpop.f32.mrb[0].mxu0
  %v8102 = vadd.f32 %v8021, %v8101
  %v8103 = vpop.f32.mrb[0].mxu0
  %8104 = vmatprep.mubr.bf16.mxu0 %v2877
  %8105 = vmatmul.mubr.bf16.gmra.mrb[0].mxu0 %v2876
  %v8106 = vpop.f32.mrb[0].mxu0
  %v8107 = vadd.f32 %v8026, %v8106
  %v8108 = vpop.f32.mrb[0].mxu0
  %v8109 = vpop.f32.mrb[0].mxu0
  %v8110 = vadd.f32 %v8029, %v8109
  %v8111 = vpop.f32.mrb[0].mxu0
  %8112 = vmatprep.mubr.bf16.mxu0 %v2941
  %8113 = vmatmul.mubr.bf16.gmra.mrb[0].mxu0 %v2940
  %v8114 = vpop.f32.mrb[0].mxu0
  %v8115 = vadd.f32 %v8034, %v8114
  %v8116 = vpop.f32.mrb[0].mxu0
  %v8117 = vpop.f32.mrb[0].mxu0
  %v8118 = vadd.f32 %v8037, %v8117
  %v8119 = vpop.f32.mrb[0].mxu0
  %8120 = vdwg.mxu0
  %8121 = vmatprep.subr.bf16.mxu0 0
  %8122 = vmatpush1.bf16.msra.mxu0 %v5732
  %8123 = vmatprep.subr.bf16.mxu0 0
  %8124 = vmatpush1.bf16.msra.mxu0 %v5733
  %8125 = vmatprep.subr.bf16.mxu0 0
  %8126 = vmatpush1.bf16.msra.mxu0 %v5734
  %8127 = vmatprep.subr.bf16.mxu0 0
  %8128 = vmatpush1.bf16.msra.mxu0 %v5735
  %8129 = vmatprep.subr.bf16.mxu0 0
  %8130 = vmatpush1.bf16.msra.mxu0 %v5736
  %8131 = vmatprep.subr.bf16.mxu0 0
  %8132 = vmatpush1.bf16.msra.mxu0 %v5737
  %8133 = vmatprep.subr.bf16.mxu0 0
  %8134 = vmatpush1.bf16.msra.mxu0 %v5738
  %8135 = vmatprep.subr.bf16.mxu0 0
  %8136 = vmatpush1.bf16.msra.mxu0 %v5739
  %8137 = vmatprep.subr.bf16.mxu0 0
  %8138 = vmatpush1.bf16.msra.mxu0 %v5740
  %8139 = vmatprep.subr.bf16.mxu0 0
  %8140 = vmatpush1.bf16.msra.mxu0 %v5741
  %8141 = vmatprep.subr.bf16.mxu0 0
  %8142 = vmatpush1.bf16.msra.mxu0 %v5742
  %8143 = vmatprep.subr.bf16.mxu0 0
  %8144 = vmatpush1.bf16.msra.mxu0 %v5743
  %8145 = vmatprep.subr.bf16.mxu0 0
  %8146 = vmatpush1.bf16.msra.mxu0 %v5744
  %8147 = vmatprep.subr.bf16.mxu0 0
  %8148 = vmatpush1.bf16.msra.mxu0 %v5745
  %8149 = vmatprep.subr.bf16.mxu0 0
  %8150 = vmatpush1.bf16.msra.mxu0 %v5746
  %8151 = vmatprep.subr.bf16.mxu0 0
  %8152 = vmatpush1.bf16.msra.mxu0 %v5747
  %8153 = vmatprep.mubr.bf16.mxu0 %v2623
  %8154 = vmatmul.mubr.bf16.gmra.mrb[0].mxu0 %v2622
  %v8155 = vpop.f32.mrb[0].mxu0
  %v8156 = vadd.f32 %v8075, %v8155
  %v8157 = vpop.f32.mrb[0].mxu0
  %v8158 = vpop.f32.mrb[0].mxu0
  %v8159 = vadd.f32 %v8078, %v8158
  %v8160 = vpop.f32.mrb[0].mxu0
  %8161 = vmatprep.mubr.bf16.mxu0 %v2687
  %8162 = vmatmul.mubr.bf16.gmra.mrb[0].mxu0 %v2686
  %v8163 = vpop.f32.mrb[0].mxu0
  %v8164 = vadd.f32 %v8083, %v8163
  %v8165 = vpop.f32.mrb[0].mxu0
  %v8166 = vpop.f32.mrb[0].mxu0
  %v8167 = vadd.f32 %v8086, %v8166
  %v8168 = vpop.f32.mrb[0].mxu0
  %8169 = vmatprep.mubr.bf16.mxu0 %v2751
  %8170 = vmatmul.mubr.bf16.gmra.mrb[0].mxu0 %v2750
  %v8171 = vpop.f32.mrb[0].mxu0
  %v8172 = vadd.f32 %v8091, %v8171
  %v8173 = vpop.f32.mrb[0].mxu0
  %v8174 = vpop.f32.mrb[0].mxu0
  %v8175 = vadd.f32 %v8094, %v8174
  %v8176 = vpop.f32.mrb[0].mxu0
  %8177 = vmatprep.mubr.bf16.mxu0 %v2815
  %8178 = vmatmul.mubr.bf16.gmra.mrb[0].mxu0 %v2814
  %v8179 = vpop.f32.mrb[0].mxu0
  %v8180 = vadd.f32 %v8099, %v8179
  %v8181 = vpop.f32.mrb[0].mxu0
  %v8182 = vpop.f32.mrb[0].mxu0
  %v8183 = vadd.f32 %v8102, %v8182
  %v8184 = vpop.f32.mrb[0].mxu0
  %8185 = vmatprep.mubr.bf16.mxu0 %v2879
  %8186 = vmatmul.mubr.bf16.gmra.mrb[0].mxu0 %v2878
  %v8187 = vpop.f32.mrb[0].mxu0
  %v8188 = vadd.f32 %v8107, %v8187
  %v8189 = vpop.f32.mrb[0].mxu0
  %v8190 = vpop.f32.mrb[0].mxu0
  %v8191 = vadd.f32 %v8110, %v8190
  %v8192 = vpop.f32.mrb[0].mxu0
  %8193 = vmatprep.mubr.bf16.mxu0 %v2943
  %8194 = vmatmul.mubr.bf16.gmra.mrb[0].mxu0 %v2942
  %v8195 = vpop.f32.mrb[0].mxu0
  %v8196 = vadd.f32 %v8115, %v8195
  %v8197 = vpop.f32.mrb[0].mxu0
  %v8198 = vpop.f32.mrb[0].mxu0
  %v8199 = vadd.f32 %v8118, %v8198
  %v8200 = vpop.f32.mrb[0].mxu0
  %8201 = vdwg.mxu0
  %8202 = vmatprep.subr.bf16.mxu0 0
  %8203 = vmatpush1.bf16.msra.mxu0 %v5748
  %8204 = vmatprep.subr.bf16.mxu0 0
  %8205 = vmatpush1.bf16.msra.mxu0 %v5749
  %8206 = vmatprep.subr.bf16.mxu0 0
  %8207 = vmatpush1.bf16.msra.mxu0 %v5750
  %8208 = vmatprep.subr.bf16.mxu0 0
  %8209 = vmatpush1.bf16.msra.mxu0 %v5751
  %8210 = vmatprep.subr.bf16.mxu0 0
  %8211 = vmatpush1.bf16.msra.mxu0 %v5752
  %8212 = vmatprep.subr.bf16.mxu0 0
  %8213 = vmatpush1.bf16.msra.mxu0 %v5753
  %8214 = vmatprep.subr.bf16.mxu0 0
  %8215 = vmatpush1.bf16.msra.mxu0 %v5754
  %8216 = vmatprep.subr.bf16.mxu0 0
  %8217 = vmatpush1.bf16.msra.mxu0 %v5755
  %8218 = vmatprep.subr.bf16.mxu0 0
  %8219 = vmatpush1.bf16.msra.mxu0 %v5756
  %8220 = vmatprep.subr.bf16.mxu0 0
  %8221 = vmatpush1.bf16.msra.mxu0 %v5757
  %8222 = vmatprep.subr.bf16.mxu0 0
  %8223 = vmatpush1.bf16.msra.mxu0 %v5758
  %8224 = vmatprep.subr.bf16.mxu0 0
  %8225 = vmatpush1.bf16.msra.mxu0 %v5759
  %8226 = vmatprep.subr.bf16.mxu0 0
  %8227 = vmatpush1.bf16.msra.mxu0 %v5760
  %8228 = vmatprep.subr.bf16.mxu0 0
  %8229 = vmatpush1.bf16.msra.mxu0 %v5761
  %8230 = vmatprep.subr.bf16.mxu0 0
  %8231 = vmatpush1.bf16.msra.mxu0 %v5762
  %8232 = vmatprep.subr.bf16.mxu0 0
  %8233 = vmatpush1.bf16.msra.mxu0 %v5763
  %8234 = vmatprep.mubr.bf16.mxu0 %v2625
  %8235 = vmatmul.mubr.bf16.gmra.mrb[0].mxu0 %v2624
  %v8236 = vpop.f32.mrb[0].mxu0
  %v8237 = vadd.f32 %v8156, %v8236
  %v8238 = vpop.f32.mrb[0].mxu0
  %v8239 = vpop.f32.mrb[0].mxu0
  %v8240 = vadd.f32 %v8159, %v8239
  %v8241 = vpop.f32.mrb[0].mxu0
  %8242 = vmatprep.mubr.bf16.mxu0 %v2689
  %8243 = vmatmul.mubr.bf16.gmra.mrb[0].mxu0 %v2688
  %v8244 = vpop.f32.mrb[0].mxu0
  %v8245 = vadd.f32 %v8164, %v8244
  %v8246 = vpop.f32.mrb[0].mxu0
  %v8247 = vpop.f32.mrb[0].mxu0
  %v8248 = vadd.f32 %v8167, %v8247
  %v8249 = vpop.f32.mrb[0].mxu0
  %8250 = vmatprep.mubr.bf16.mxu0 %v2753
  %8251 = vmatmul.mubr.bf16.gmra.mrb[0].mxu0 %v2752
  %v8252 = vpop.f32.mrb[0].mxu0
  %v8253 = vadd.f32 %v8172, %v8252
  %v8254 = vpop.f32.mrb[0].mxu0
  %v8255 = vpop.f32.mrb[0].mxu0
  %v8256 = vadd.f32 %v8175, %v8255
  %v8257 = vpop.f32.mrb[0].mxu0
  %8258 = vmatprep.mubr.bf16.mxu0 %v2817
  %8259 = vmatmul.mubr.bf16.gmra.mrb[0].mxu0 %v2816
  %v8260 = vpop.f32.mrb[0].mxu0
  %v8261 = vadd.f32 %v8180, %v8260
  %v8262 = vpop.f32.mrb[0].mxu0
  %v8263 = vpop.f32.mrb[0].mxu0
  %v8264 = vadd.f32 %v8183, %v8263
  %v8265 = vpop.f32.mrb[0].mxu0
  %8266 = vmatprep.mubr.bf16.mxu0 %v2881
  %8267 = vmatmul.mubr.bf16.gmra.mrb[0].mxu0 %v2880
  %v8268 = vpop.f32.mrb[0].mxu0
  %v8269 = vadd.f32 %v8188, %v8268
  %v8270 = vpop.f32.mrb[0].mxu0
  %v8271 = vpop.f32.mrb[0].mxu0
  %v8272 = vadd.f32 %v8191, %v8271
  %v8273 = vpop.f32.mrb[0].mxu0
  %8274 = vmatprep.mubr.bf16.mxu0 %v2945
  %8275 = vmatmul.mubr.bf16.gmra.mrb[0].mxu0 %v2944
  %v8276 = vpop.f32.mrb[0].mxu0
  %v8277 = vadd.f32 %v8196, %v8276
  %v8278 = vpop.f32.mrb[0].mxu0
  %v8279 = vpop.f32.mrb[0].mxu0
  %v8280 = vadd.f32 %v8199, %v8279
  %v8281 = vpop.f32.mrb[0].mxu0
  %8282 = vdwg.mxu0
  %8283 = vmatprep.subr.bf16.mxu0 0
  %8284 = vmatpush1.bf16.msra.mxu0 %v5764
  %8285 = vmatprep.subr.bf16.mxu0 0
  %8286 = vmatpush1.bf16.msra.mxu0 %v5765
  %8287 = vmatprep.subr.bf16.mxu0 0
  %8288 = vmatpush1.bf16.msra.mxu0 %v5766
  %8289 = vmatprep.subr.bf16.mxu0 0
  %8290 = vmatpush1.bf16.msra.mxu0 %v5767
  %8291 = vmatprep.subr.bf16.mxu0 0
  %8292 = vmatpush1.bf16.msra.mxu0 %v5768
  %8293 = vmatprep.subr.bf16.mxu0 0
  %8294 = vmatpush1.bf16.msra.mxu0 %v5769
  %8295 = vmatprep.subr.bf16.mxu0 0
  %8296 = vmatpush1.bf16.msra.mxu0 %v5770
  %8297 = vmatprep.subr.bf16.mxu0 0
  %8298 = vmatpush1.bf16.msra.mxu0 %v5771
  %8299 = vmatprep.subr.bf16.mxu0 0
  %8300 = vmatpush1.bf16.msra.mxu0 %v5772
  %8301 = vmatprep.subr.bf16.mxu0 0
  %8302 = vmatpush1.bf16.msra.mxu0 %v5773
  %8303 = vmatprep.subr.bf16.mxu0 0
  %8304 = vmatpush1.bf16.msra.mxu0 %v5774
  %8305 = vmatprep.subr.bf16.mxu0 0
  %8306 = vmatpush1.bf16.msra.mxu0 %v5775
  %8307 = vmatprep.subr.bf16.mxu0 0
  %8308 = vmatpush1.bf16.msra.mxu0 %v5776
  %8309 = vmatprep.subr.bf16.mxu0 0
  %8310 = vmatpush1.bf16.msra.mxu0 %v5777
  %8311 = vmatprep.subr.bf16.mxu0 0
  %8312 = vmatpush1.bf16.msra.mxu0 %v5778
  %8313 = vmatprep.subr.bf16.mxu0 0
  %8314 = vmatpush1.bf16.msra.mxu0 %v5779
  %8315 = vmatprep.mubr.bf16.mxu0 %v2627
  %8316 = vmatmul.mubr.bf16.gmra.mrb[0].mxu0 %v2626
  %v8317 = vpop.f32.mrb[0].mxu0
  %v8318 = vadd.f32 %v8237, %v8317
  %v8319 = vpop.f32.mrb[0].mxu0
  %v8320 = vpop.f32.mrb[0].mxu0
  %v8321 = vadd.f32 %v8240, %v8320
  %v8322 = vpop.f32.mrb[0].mxu0
  %8323 = vmatprep.mubr.bf16.mxu0 %v2691
  %8324 = vmatmul.mubr.bf16.gmra.mrb[0].mxu0 %v2690
  %v8325 = vpop.f32.mrb[0].mxu0
  %v8326 = vadd.f32 %v8245, %v8325
  %v8327 = vpop.f32.mrb[0].mxu0
  %v8328 = vpop.f32.mrb[0].mxu0
  %v8329 = vadd.f32 %v8248, %v8328
  %v8330 = vpop.f32.mrb[0].mxu0
  %8331 = vmatprep.mubr.bf16.mxu0 %v2755
  %8332 = vmatmul.mubr.bf16.gmra.mrb[0].mxu0 %v2754
  %v8333 = vpop.f32.mrb[0].mxu0
  %v8334 = vadd.f32 %v8253, %v8333
  %v8335 = vpop.f32.mrb[0].mxu0
  %v8336 = vpop.f32.mrb[0].mxu0
  %v8337 = vadd.f32 %v8256, %v8336
  %v8338 = vpop.f32.mrb[0].mxu0
  %8339 = vmatprep.mubr.bf16.mxu0 %v2819
  %8340 = vmatmul.mubr.bf16.gmra.mrb[0].mxu0 %v2818
  %v8341 = vpop.f32.mrb[0].mxu0
  %v8342 = vadd.f32 %v8261, %v8341
  %v8343 = vpop.f32.mrb[0].mxu0
  %v8344 = vpop.f32.mrb[0].mxu0
  %v8345 = vadd.f32 %v8264, %v8344
  %v8346 = vpop.f32.mrb[0].mxu0
  %8347 = vmatprep.mubr.bf16.mxu0 %v2883
  %8348 = vmatmul.mubr.bf16.gmra.mrb[0].mxu0 %v2882
  %v8349 = vpop.f32.mrb[0].mxu0
  %v8350 = vadd.f32 %v8269, %v8349
  %v8351 = vpop.f32.mrb[0].mxu0
  %v8352 = vpop.f32.mrb[0].mxu0
  %v8353 = vadd.f32 %v8272, %v8352
  %v8354 = vpop.f32.mrb[0].mxu0
  %8355 = vmatprep.mubr.bf16.mxu0 %v2947
  %8356 = vmatmul.mubr.bf16.gmra.mrb[0].mxu0 %v2946
  %v8357 = vpop.f32.mrb[0].mxu0
  %v8358 = vadd.f32 %v8277, %v8357
  %v8359 = vpop.f32.mrb[0].mxu0
  %v8360 = vpop.f32.mrb[0].mxu0
  %v8361 = vadd.f32 %v8280, %v8360
  %v8362 = vpop.f32.mrb[0].mxu0
  %8363 = vdwg.mxu0
  %8364 = vmatprep.subr.bf16.mxu0 0
  %8365 = vmatpush1.bf16.msra.mxu0 %v5780
  %8366 = vmatprep.subr.bf16.mxu0 0
  %8367 = vmatpush1.bf16.msra.mxu0 %v5781
  %8368 = vmatprep.subr.bf16.mxu0 0
  %8369 = vmatpush1.bf16.msra.mxu0 %v5782
  %8370 = vmatprep.subr.bf16.mxu0 0
  %8371 = vmatpush1.bf16.msra.mxu0 %v5783
  %8372 = vmatprep.subr.bf16.mxu0 0
  %8373 = vmatpush1.bf16.msra.mxu0 %v5784
  %8374 = vmatprep.subr.bf16.mxu0 0
  %8375 = vmatpush1.bf16.msra.mxu0 %v5785
  %8376 = vmatprep.subr.bf16.mxu0 0
  %8377 = vmatpush1.bf16.msra.mxu0 %v5786
  %8378 = vmatprep.subr.bf16.mxu0 0
  %8379 = vmatpush1.bf16.msra.mxu0 %v5787
  %8380 = vmatprep.subr.bf16.mxu0 0
  %8381 = vmatpush1.bf16.msra.mxu0 %v5788
  %8382 = vmatprep.subr.bf16.mxu0 0
  %8383 = vmatpush1.bf16.msra.mxu0 %v5789
  %8384 = vmatprep.subr.bf16.mxu0 0
  %8385 = vmatpush1.bf16.msra.mxu0 %v5790
  %8386 = vmatprep.subr.bf16.mxu0 0
  %8387 = vmatpush1.bf16.msra.mxu0 %v5791
  %8388 = vmatprep.subr.bf16.mxu0 0
  %8389 = vmatpush1.bf16.msra.mxu0 %v5792
  %8390 = vmatprep.subr.bf16.mxu0 0
  %8391 = vmatpush1.bf16.msra.mxu0 %v5793
  %8392 = vmatprep.subr.bf16.mxu0 0
  %8393 = vmatpush1.bf16.msra.mxu0 %v5794
  %8394 = vmatprep.subr.bf16.mxu0 0
  %8395 = vmatpush1.bf16.msra.mxu0 %v5795
  %8396 = vmatprep.mubr.bf16.mxu0 %v2629
  %8397 = vmatmul.mubr.bf16.gmra.mrb[0].mxu0 %v2628
  %v8398 = vpop.f32.mrb[0].mxu0
  %v8399 = vadd.f32 %v8318, %v8398
  %v8400 = vpop.f32.mrb[0].mxu0
  %v8401 = vpop.f32.mrb[0].mxu0
  %v8402 = vadd.f32 %v8321, %v8401
  %v8403 = vpop.f32.mrb[0].mxu0
  %8404 = vmatprep.mubr.bf16.mxu0 %v2693
  %8405 = vmatmul.mubr.bf16.gmra.mrb[0].mxu0 %v2692
  %v8406 = vpop.f32.mrb[0].mxu0
  %v8407 = vadd.f32 %v8326, %v8406
  %v8408 = vpop.f32.mrb[0].mxu0
  %v8409 = vpop.f32.mrb[0].mxu0
  %v8410 = vadd.f32 %v8329, %v8409
  %v8411 = vpop.f32.mrb[0].mxu0
  %8412 = vmatprep.mubr.bf16.mxu0 %v2757
  %8413 = vmatmul.mubr.bf16.gmra.mrb[0].mxu0 %v2756
  %v8414 = vpop.f32.mrb[0].mxu0
  %v8415 = vadd.f32 %v8334, %v8414
  %v8416 = vpop.f32.mrb[0].mxu0
  %v8417 = vpop.f32.mrb[0].mxu0
  %v8418 = vadd.f32 %v8337, %v8417
  %v8419 = vpop.f32.mrb[0].mxu0
  %8420 = vmatprep.mubr.bf16.mxu0 %v2821
  %8421 = vmatmul.mubr.bf16.gmra.mrb[0].mxu0 %v2820
  %v8422 = vpop.f32.mrb[0].mxu0
  %v8423 = vadd.f32 %v8342, %v8422
  %v8424 = vpop.f32.mrb[0].mxu0
  %v8425 = vpop.f32.mrb[0].mxu0
  %v8426 = vadd.f32 %v8345, %v8425
  %v8427 = vpop.f32.mrb[0].mxu0
  %8428 = vmatprep.mubr.bf16.mxu0 %v2885
  %8429 = vmatmul.mubr.bf16.gmra.mrb[0].mxu0 %v2884
  %v8430 = vpop.f32.mrb[0].mxu0
  %v8431 = vadd.f32 %v8350, %v8430
  %v8432 = vpop.f32.mrb[0].mxu0
  %v8433 = vpop.f32.mrb[0].mxu0
  %v8434 = vadd.f32 %v8353, %v8433
  %v8435 = vpop.f32.mrb[0].mxu0
  %8436 = vmatprep.mubr.bf16.mxu0 %v2949
  %8437 = vmatmul.mubr.bf16.gmra.mrb[0].mxu0 %v2948
  %v8438 = vpop.f32.mrb[0].mxu0
  %v8439 = vadd.f32 %v8358, %v8438
  %v8440 = vpop.f32.mrb[0].mxu0
  %v8441 = vpop.f32.mrb[0].mxu0
  %v8442 = vadd.f32 %v8361, %v8441
  %v8443 = vpop.f32.mrb[0].mxu0
  %8444 = vdwg.mxu0
  %8445 = vmatprep.subr.bf16.mxu0 0
  %8446 = vmatpush1.bf16.msra.mxu0 %v5796
  %8447 = vmatprep.subr.bf16.mxu0 0
  %8448 = vmatpush1.bf16.msra.mxu0 %v5797
  %8449 = vmatprep.subr.bf16.mxu0 0
  %8450 = vmatpush1.bf16.msra.mxu0 %v5798
  %8451 = vmatprep.subr.bf16.mxu0 0
  %8452 = vmatpush1.bf16.msra.mxu0 %v5799
  %8453 = vmatprep.subr.bf16.mxu0 0
  %8454 = vmatpush1.bf16.msra.mxu0 %v5800
  %8455 = vmatprep.subr.bf16.mxu0 0
  %8456 = vmatpush1.bf16.msra.mxu0 %v5801
  %8457 = vmatprep.subr.bf16.mxu0 0
  %8458 = vmatpush1.bf16.msra.mxu0 %v5802
  %8459 = vmatprep.subr.bf16.mxu0 0
  %8460 = vmatpush1.bf16.msra.mxu0 %v5803
  %8461 = vmatprep.subr.bf16.mxu0 0
  %8462 = vmatpush1.bf16.msra.mxu0 %v5804
  %8463 = vmatprep.subr.bf16.mxu0 0
  %8464 = vmatpush1.bf16.msra.mxu0 %v5805
  %8465 = vmatprep.subr.bf16.mxu0 0
  %8466 = vmatpush1.bf16.msra.mxu0 %v5806
  %8467 = vmatprep.subr.bf16.mxu0 0
  %8468 = vmatpush1.bf16.msra.mxu0 %v5807
  %8469 = vmatprep.subr.bf16.mxu0 0
  %8470 = vmatpush1.bf16.msra.mxu0 %v5808
  %8471 = vmatprep.subr.bf16.mxu0 0
  %8472 = vmatpush1.bf16.msra.mxu0 %v5809
  %8473 = vmatprep.subr.bf16.mxu0 0
  %8474 = vmatpush1.bf16.msra.mxu0 %v5810
  %8475 = vmatprep.subr.bf16.mxu0 0
  %8476 = vmatpush1.bf16.msra.mxu0 %v5811
  %8477 = vmatprep.mubr.bf16.mxu0 %v2631
  %8478 = vmatmul.mubr.bf16.gmra.mrb[0].mxu0 %v2630
  %v8479 = vpop.f32.mrb[0].mxu0
  %v8480 = vadd.f32 %v8399, %v8479
  %v8481 = vpop.f32.mrb[0].mxu0
  %v8482 = vpop.f32.mrb[0].mxu0
  %v8483 = vadd.f32 %v8402, %v8482
  %v8484 = vpop.f32.mrb[0].mxu0
  %8485 = vmatprep.mubr.bf16.mxu0 %v2695
  %8486 = vmatmul.mubr.bf16.gmra.mrb[0].mxu0 %v2694
  %v8487 = vpop.f32.mrb[0].mxu0
  %v8488 = vadd.f32 %v8407, %v8487
  %v8489 = vpop.f32.mrb[0].mxu0
  %v8490 = vpop.f32.mrb[0].mxu0
  %v8491 = vadd.f32 %v8410, %v8490
  %v8492 = vpop.f32.mrb[0].mxu0
  %8493 = vmatprep.mubr.bf16.mxu0 %v2759
  %8494 = vmatmul.mubr.bf16.gmra.mrb[0].mxu0 %v2758
  %v8495 = vpop.f32.mrb[0].mxu0
  %v8496 = vadd.f32 %v8415, %v8495
  %v8497 = vpop.f32.mrb[0].mxu0
  %v8498 = vpop.f32.mrb[0].mxu0
  %v8499 = vadd.f32 %v8418, %v8498
  %v8500 = vpop.f32.mrb[0].mxu0
  %8501 = vmatprep.mubr.bf16.mxu0 %v2823
  %8502 = vmatmul.mubr.bf16.gmra.mrb[0].mxu0 %v2822
  %v8503 = vpop.f32.mrb[0].mxu0
  %v8504 = vadd.f32 %v8423, %v8503
  %v8505 = vpop.f32.mrb[0].mxu0
  %v8506 = vpop.f32.mrb[0].mxu0
  %v8507 = vadd.f32 %v8426, %v8506
  %v8508 = vpop.f32.mrb[0].mxu0
  %8509 = vmatprep.mubr.bf16.mxu0 %v2887
  %8510 = vmatmul.mubr.bf16.gmra.mrb[0].mxu0 %v2886
  %v8511 = vpop.f32.mrb[0].mxu0
  %v8512 = vadd.f32 %v8431, %v8511
  %v8513 = vpop.f32.mrb[0].mxu0
  %v8514 = vpop.f32.mrb[0].mxu0
  %v8515 = vadd.f32 %v8434, %v8514
  %v8516 = vpop.f32.mrb[0].mxu0
  %8517 = vmatprep.mubr.bf16.mxu0 %v2951
  %8518 = vmatmul.mubr.bf16.gmra.mrb[0].mxu0 %v2950
  %v8519 = vpop.f32.mrb[0].mxu0
  %v8520 = vadd.f32 %v8439, %v8519
  %v8521 = vpop.f32.mrb[0].mxu0
  %v8522 = vpop.f32.mrb[0].mxu0
  %v8523 = vadd.f32 %v8442, %v8522
  %v8524 = vpop.f32.mrb[0].mxu0
  %8525 = vdwg.mxu0
  %8526 = vmatprep.subr.bf16.mxu0 0
  %8527 = vmatpush1.bf16.msra.mxu0 %v5812
  %8528 = vmatprep.subr.bf16.mxu0 0
  %8529 = vmatpush1.bf16.msra.mxu0 %v5813
  %8530 = vmatprep.subr.bf16.mxu0 0
  %8531 = vmatpush1.bf16.msra.mxu0 %v5814
  %8532 = vmatprep.subr.bf16.mxu0 0
  %8533 = vmatpush1.bf16.msra.mxu0 %v5815
  %8534 = vmatprep.subr.bf16.mxu0 0
  %8535 = vmatpush1.bf16.msra.mxu0 %v5816
  %8536 = vmatprep.subr.bf16.mxu0 0
  %8537 = vmatpush1.bf16.msra.mxu0 %v5817
  %8538 = vmatprep.subr.bf16.mxu0 0
  %8539 = vmatpush1.bf16.msra.mxu0 %v5818
  %8540 = vmatprep.subr.bf16.mxu0 0
  %8541 = vmatpush1.bf16.msra.mxu0 %v5819
  %8542 = vmatprep.subr.bf16.mxu0 0
  %8543 = vmatpush1.bf16.msra.mxu0 %v5820
  %8544 = vmatprep.subr.bf16.mxu0 0
  %8545 = vmatpush1.bf16.msra.mxu0 %v5821
  %8546 = vmatprep.subr.bf16.mxu0 0
  %8547 = vmatpush1.bf16.msra.mxu0 %v5822
  %8548 = vmatprep.subr.bf16.mxu0 0
  %8549 = vmatpush1.bf16.msra.mxu0 %v5823
  %8550 = vmatprep.subr.bf16.mxu0 0
  %8551 = vmatpush1.bf16.msra.mxu0 %v5824
  %8552 = vmatprep.subr.bf16.mxu0 0
  %8553 = vmatpush1.bf16.msra.mxu0 %v5825
  %8554 = vmatprep.subr.bf16.mxu0 0
  %8555 = vmatpush1.bf16.msra.mxu0 %v5826
  %8556 = vmatprep.subr.bf16.mxu0 0
  %8557 = vmatpush1.bf16.msra.mxu0 %v5827
  %8558 = vmatprep.mubr.bf16.mxu0 %v2633
  %8559 = vmatmul.mubr.bf16.gmra.mrb[0].mxu0 %v2632
  %v8560 = vpop.f32.mrb[0].mxu0
  %v8561 = vadd.f32 %v8480, %v8560
  %v8562 = vpop.f32.mrb[0].mxu0
  %v8563 = vpop.f32.mrb[0].mxu0
  %v8564 = vadd.f32 %v8483, %v8563
  %v8565 = vpop.f32.mrb[0].mxu0
  %8566 = vmatprep.mubr.bf16.mxu0 %v2697
  %8567 = vmatmul.mubr.bf16.gmra.mrb[0].mxu0 %v2696
  %v8568 = vpop.f32.mrb[0].mxu0
  %v8569 = vadd.f32 %v8488, %v8568
  %v8570 = vpop.f32.mrb[0].mxu0
  %v8571 = vpop.f32.mrb[0].mxu0
  %v8572 = vadd.f32 %v8491, %v8571
  %v8573 = vpop.f32.mrb[0].mxu0
  %8574 = vmatprep.mubr.bf16.mxu0 %v2761
  %8575 = vmatmul.mubr.bf16.gmra.mrb[0].mxu0 %v2760
  %v8576 = vpop.f32.mrb[0].mxu0
  %v8577 = vadd.f32 %v8496, %v8576
  %v8578 = vpop.f32.mrb[0].mxu0
  %v8579 = vpop.f32.mrb[0].mxu0
  %v8580 = vadd.f32 %v8499, %v8579
  %v8581 = vpop.f32.mrb[0].mxu0
  %8582 = vmatprep.mubr.bf16.mxu0 %v2825
  %8583 = vmatmul.mubr.bf16.gmra.mrb[0].mxu0 %v2824
  %v8584 = vpop.f32.mrb[0].mxu0
  %v8585 = vadd.f32 %v8504, %v8584
  %v8586 = vpop.f32.mrb[0].mxu0
  %v8587 = vpop.f32.mrb[0].mxu0
  %v8588 = vadd.f32 %v8507, %v8587
  %v8589 = vpop.f32.mrb[0].mxu0
  %8590 = vmatprep.mubr.bf16.mxu0 %v2889
  %8591 = vmatmul.mubr.bf16.gmra.mrb[0].mxu0 %v2888
  %v8592 = vpop.f32.mrb[0].mxu0
  %v8593 = vadd.f32 %v8512, %v8592
  %v8594 = vpop.f32.mrb[0].mxu0
  %v8595 = vpop.f32.mrb[0].mxu0
  %v8596 = vadd.f32 %v8515, %v8595
  %v8597 = vpop.f32.mrb[0].mxu0
  %8598 = vmatprep.mubr.bf16.mxu0 %v2953
  %8599 = vmatmul.mubr.bf16.gmra.mrb[0].mxu0 %v2952
  %v8600 = vpop.f32.mrb[0].mxu0
  %v8601 = vadd.f32 %v8520, %v8600
  %v8602 = vpop.f32.mrb[0].mxu0
  %v8603 = vpop.f32.mrb[0].mxu0
  %v8604 = vadd.f32 %v8523, %v8603
  %v8605 = vpop.f32.mrb[0].mxu0
  %8606 = vdwg.mxu0
  %8607 = vmatprep.subr.bf16.mxu0 0
  %8608 = vmatpush1.bf16.msra.mxu0 %v5828
  %8609 = vmatprep.subr.bf16.mxu0 0
  %8610 = vmatpush1.bf16.msra.mxu0 %v5829
  %8611 = vmatprep.subr.bf16.mxu0 0
  %8612 = vmatpush1.bf16.msra.mxu0 %v5830
  %8613 = vmatprep.subr.bf16.mxu0 0
  %8614 = vmatpush1.bf16.msra.mxu0 %v5831
  %8615 = vmatprep.subr.bf16.mxu0 0
  %8616 = vmatpush1.bf16.msra.mxu0 %v5832
  %8617 = vmatprep.subr.bf16.mxu0 0
  %8618 = vmatpush1.bf16.msra.mxu0 %v5833
  %8619 = vmatprep.subr.bf16.mxu0 0
  %8620 = vmatpush1.bf16.msra.mxu0 %v5834
  %8621 = vmatprep.subr.bf16.mxu0 0
  %8622 = vmatpush1.bf16.msra.mxu0 %v5835
  %8623 = vmatprep.subr.bf16.mxu0 0
  %8624 = vmatpush1.bf16.msra.mxu0 %v5836
  %8625 = vmatprep.subr.bf16.mxu0 0
  %8626 = vmatpush1.bf16.msra.mxu0 %v5837
  %8627 = vmatprep.subr.bf16.mxu0 0
  %8628 = vmatpush1.bf16.msra.mxu0 %v5838
  %8629 = vmatprep.subr.bf16.mxu0 0
  %8630 = vmatpush1.bf16.msra.mxu0 %v5839
  %8631 = vmatprep.subr.bf16.mxu0 0
  %8632 = vmatpush1.bf16.msra.mxu0 %v5840
  %8633 = vmatprep.subr.bf16.mxu0 0
  %8634 = vmatpush1.bf16.msra.mxu0 %v5841
  %8635 = vmatprep.subr.bf16.mxu0 0
  %8636 = vmatpush1.bf16.msra.mxu0 %v5842
  %8637 = vmatprep.subr.bf16.mxu0 0
  %8638 = vmatpush1.bf16.msra.mxu0 %v5843
  %8639 = vmatprep.mubr.bf16.mxu0 %v2635
  %8640 = vmatmul.mubr.bf16.gmra.mrb[0].mxu0 %v2634
  %v8641 = vpop.f32.mrb[0].mxu0
  %v8642 = vadd.f32 %v8561, %v8641
  %v8643 = vpop.f32.mrb[0].mxu0
  %v8644 = vpop.f32.mrb[0].mxu0
  %v8645 = vadd.f32 %v8564, %v8644
  %v8646 = vpop.f32.mrb[0].mxu0
  %8647 = vmatprep.mubr.bf16.mxu0 %v2699
  %8648 = vmatmul.mubr.bf16.gmra.mrb[0].mxu0 %v2698
  %v8649 = vpop.f32.mrb[0].mxu0
  %v8650 = vadd.f32 %v8569, %v8649
  %v8651 = vpop.f32.mrb[0].mxu0
  %v8652 = vpop.f32.mrb[0].mxu0
  %v8653 = vadd.f32 %v8572, %v8652
  %v8654 = vpop.f32.mrb[0].mxu0
  %8655 = vmatprep.mubr.bf16.mxu0 %v2763
  %8656 = vmatmul.mubr.bf16.gmra.mrb[0].mxu0 %v2762
  %v8657 = vpop.f32.mrb[0].mxu0
  %v8658 = vadd.f32 %v8577, %v8657
  %v8659 = vpop.f32.mrb[0].mxu0
  %v8660 = vpop.f32.mrb[0].mxu0
  %v8661 = vadd.f32 %v8580, %v8660
  %v8662 = vpop.f32.mrb[0].mxu0
  %8663 = vmatprep.mubr.bf16.mxu0 %v2827
  %8664 = vmatmul.mubr.bf16.gmra.mrb[0].mxu0 %v2826
  %v8665 = vpop.f32.mrb[0].mxu0
  %v8666 = vadd.f32 %v8585, %v8665
  %v8667 = vpop.f32.mrb[0].mxu0
  %v8668 = vpop.f32.mrb[0].mxu0
  %v8669 = vadd.f32 %v8588, %v8668
  %v8670 = vpop.f32.mrb[0].mxu0
  %8671 = vmatprep.mubr.bf16.mxu0 %v2891
  %8672 = vmatmul.mubr.bf16.gmra.mrb[0].mxu0 %v2890
  %v8673 = vpop.f32.mrb[0].mxu0
  %v8674 = vadd.f32 %v8593, %v8673
  %v8675 = vpop.f32.mrb[0].mxu0
  %v8676 = vpop.f32.mrb[0].mxu0
  %v8677 = vadd.f32 %v8596, %v8676
  %v8678 = vpop.f32.mrb[0].mxu0
  %8679 = vmatprep.mubr.bf16.mxu0 %v2955
  %8680 = vmatmul.mubr.bf16.gmra.mrb[0].mxu0 %v2954
  %v8681 = vpop.f32.mrb[0].mxu0
  %v8682 = vadd.f32 %v8601, %v8681
  %v8683 = vpop.f32.mrb[0].mxu0
  %v8684 = vpop.f32.mrb[0].mxu0
  %v8685 = vadd.f32 %v8604, %v8684
  %v8686 = vpop.f32.mrb[0].mxu0
  %8687 = vdwg.mxu0
  %8688 = vmatprep.subr.bf16.mxu0 0
  %8689 = vmatpush1.bf16.msra.mxu0 %v5844
  %8690 = vmatprep.subr.bf16.mxu0 0
  %8691 = vmatpush1.bf16.msra.mxu0 %v5845
  %8692 = vmatprep.subr.bf16.mxu0 0
  %8693 = vmatpush1.bf16.msra.mxu0 %v5846
  %8694 = vmatprep.subr.bf16.mxu0 0
  %8695 = vmatpush1.bf16.msra.mxu0 %v5847
  %8696 = vmatprep.subr.bf16.mxu0 0
  %8697 = vmatpush1.bf16.msra.mxu0 %v5848
  %8698 = vmatprep.subr.bf16.mxu0 0
  %8699 = vmatpush1.bf16.msra.mxu0 %v5849
  %8700 = vmatprep.subr.bf16.mxu0 0
  %8701 = vmatpush1.bf16.msra.mxu0 %v5850
  %8702 = vmatprep.subr.bf16.mxu0 0
  %8703 = vmatpush1.bf16.msra.mxu0 %v5851
  %8704 = vmatprep.subr.bf16.mxu0 0
  %8705 = vmatpush1.bf16.msra.mxu0 %v5852
  %8706 = vmatprep.subr.bf16.mxu0 0
  %8707 = vmatpush1.bf16.msra.mxu0 %v5853
  %8708 = vmatprep.subr.bf16.mxu0 0
  %8709 = vmatpush1.bf16.msra.mxu0 %v5854
  %8710 = vmatprep.subr.bf16.mxu0 0
  %8711 = vmatpush1.bf16.msra.mxu0 %v5855
  %8712 = vmatprep.subr.bf16.mxu0 0
  %8713 = vmatpush1.bf16.msra.mxu0 %v5856
  %8714 = vmatprep.subr.bf16.mxu0 0
  %8715 = vmatpush1.bf16.msra.mxu0 %v5857
  %8716 = vmatprep.subr.bf16.mxu0 0
  %8717 = vmatpush1.bf16.msra.mxu0 %v5858
  %8718 = vmatprep.subr.bf16.mxu0 0
  %8719 = vmatpush1.bf16.msra.mxu0 %v5859
  %8720 = vmatprep.mubr.bf16.mxu0 %v2637
  %8721 = vmatmul.mubr.bf16.gmra.mrb[0].mxu0 %v2636
  %v8722 = vpop.f32.mrb[0].mxu0
  %v8723 = vadd.f32 %v8642, %v8722
  %v8724 = vpop.f32.mrb[0].mxu0
  %v8725 = vpop.f32.mrb[0].mxu0
  %v8726 = vadd.f32 %v8645, %v8725
  %v8727 = vpop.f32.mrb[0].mxu0
  %8728 = vmatprep.mubr.bf16.mxu0 %v2701
  %8729 = vmatmul.mubr.bf16.gmra.mrb[0].mxu0 %v2700
  %v8730 = vpop.f32.mrb[0].mxu0
  %v8731 = vadd.f32 %v8650, %v8730
  %v8732 = vpop.f32.mrb[0].mxu0
  %v8733 = vpop.f32.mrb[0].mxu0
  %v8734 = vadd.f32 %v8653, %v8733
  %v8735 = vpop.f32.mrb[0].mxu0
  %8736 = vmatprep.mubr.bf16.mxu0 %v2765
  %8737 = vmatmul.mubr.bf16.gmra.mrb[0].mxu0 %v2764
  %v8738 = vpop.f32.mrb[0].mxu0
  %v8739 = vadd.f32 %v8658, %v8738
  %v8740 = vpop.f32.mrb[0].mxu0
  %v8741 = vpop.f32.mrb[0].mxu0
  %v8742 = vadd.f32 %v8661, %v8741
  %v8743 = vpop.f32.mrb[0].mxu0
  %8744 = vmatprep.mubr.bf16.mxu0 %v2829
  %8745 = vmatmul.mubr.bf16.gmra.mrb[0].mxu0 %v2828
  %v8746 = vpop.f32.mrb[0].mxu0
  %v8747 = vadd.f32 %v8666, %v8746
  %v8748 = vpop.f32.mrb[0].mxu0
  %v8749 = vpop.f32.mrb[0].mxu0
  %v8750 = vadd.f32 %v8669, %v8749
  %v8751 = vpop.f32.mrb[0].mxu0
  %8752 = vmatprep.mubr.bf16.mxu0 %v2893
  %8753 = vmatmul.mubr.bf16.gmra.mrb[0].mxu0 %v2892
  %v8754 = vpop.f32.mrb[0].mxu0
  %v8755 = vadd.f32 %v8674, %v8754
  %v8756 = vpop.f32.mrb[0].mxu0
  %v8757 = vpop.f32.mrb[0].mxu0
  %v8758 = vadd.f32 %v8677, %v8757
  %v8759 = vpop.f32.mrb[0].mxu0
  %8760 = vmatprep.mubr.bf16.mxu0 %v2957
  %8761 = vmatmul.mubr.bf16.gmra.mrb[0].mxu0 %v2956
  %v8762 = vpop.f32.mrb[0].mxu0
  %v8763 = vadd.f32 %v8682, %v8762
  %v8764 = vpop.f32.mrb[0].mxu0
  %v8765 = vpop.f32.mrb[0].mxu0
  %v8766 = vadd.f32 %v8685, %v8765
  %v8767 = vpop.f32.mrb[0].mxu0
  %8768 = vdwg.mxu0
  %8769 = vmatprep.subr.bf16.mxu0 0
  %8770 = vmatpush1.bf16.msra.mxu0 %v5860
  %8771 = vmatprep.subr.bf16.mxu0 0
  %8772 = vmatpush1.bf16.msra.mxu0 %v5861
  %8773 = vmatprep.subr.bf16.mxu0 0
  %8774 = vmatpush1.bf16.msra.mxu0 %v5862
  %8775 = vmatprep.subr.bf16.mxu0 0
  %8776 = vmatpush1.bf16.msra.mxu0 %v5863
  %8777 = vmatprep.subr.bf16.mxu0 0
  %8778 = vmatpush1.bf16.msra.mxu0 %v5864
  %8779 = vmatprep.subr.bf16.mxu0 0
  %8780 = vmatpush1.bf16.msra.mxu0 %v5865
  %8781 = vmatprep.subr.bf16.mxu0 0
  %8782 = vmatpush1.bf16.msra.mxu0 %v5866
  %8783 = vmatprep.subr.bf16.mxu0 0
  %8784 = vmatpush1.bf16.msra.mxu0 %v5867
  %8785 = vmatprep.subr.bf16.mxu0 0
  %8786 = vmatpush1.bf16.msra.mxu0 %v5868
  %8787 = vmatprep.subr.bf16.mxu0 0
  %8788 = vmatpush1.bf16.msra.mxu0 %v5869
  %8789 = vmatprep.subr.bf16.mxu0 0
  %8790 = vmatpush1.bf16.msra.mxu0 %v5870
  %8791 = vmatprep.subr.bf16.mxu0 0
  %8792 = vmatpush1.bf16.msra.mxu0 %v5871
  %8793 = vmatprep.subr.bf16.mxu0 0
  %8794 = vmatpush1.bf16.msra.mxu0 %v5872
  %8795 = vmatprep.subr.bf16.mxu0 0
  %8796 = vmatpush1.bf16.msra.mxu0 %v5873
  %8797 = vmatprep.subr.bf16.mxu0 0
  %8798 = vmatpush1.bf16.msra.mxu0 %v5874
  %8799 = vmatprep.subr.bf16.mxu0 0
  %8800 = vmatpush1.bf16.msra.mxu0 %v5875
  %8801 = vmatprep.mubr.bf16.mxu0 %v2639
  %8802 = vmatmul.mubr.bf16.gmra.mrb[0].mxu0 %v2638
  %v8803 = vpop.f32.mrb[0].mxu0
  %v8804 = vadd.f32 %v8723, %v8803
  %v8805 = vpop.f32.mrb[0].mxu0
  %v8806 = vpop.f32.mrb[0].mxu0
  %v8807 = vadd.f32 %v8726, %v8806
  %v8808 = vpop.f32.mrb[0].mxu0
  %8809 = vmatprep.mubr.bf16.mxu0 %v2703
  %8810 = vmatmul.mubr.bf16.gmra.mrb[0].mxu0 %v2702
  %v8811 = vpop.f32.mrb[0].mxu0
  %v8812 = vadd.f32 %v8731, %v8811
  %v8813 = vpop.f32.mrb[0].mxu0
  %v8814 = vpop.f32.mrb[0].mxu0
  %v8815 = vadd.f32 %v8734, %v8814
  %v8816 = vpop.f32.mrb[0].mxu0
  %8817 = vmatprep.mubr.bf16.mxu0 %v2767
  %8818 = vmatmul.mubr.bf16.gmra.mrb[0].mxu0 %v2766
  %v8819 = vpop.f32.mrb[0].mxu0
  %v8820 = vadd.f32 %v8739, %v8819
  %v8821 = vpop.f32.mrb[0].mxu0
  %v8822 = vpop.f32.mrb[0].mxu0
  %v8823 = vadd.f32 %v8742, %v8822
  %v8824 = vpop.f32.mrb[0].mxu0
  %8825 = vmatprep.mubr.bf16.mxu0 %v2831
  %8826 = vmatmul.mubr.bf16.gmra.mrb[0].mxu0 %v2830
  %v8827 = vpop.f32.mrb[0].mxu0
  %v8828 = vadd.f32 %v8747, %v8827
  %v8829 = vpop.f32.mrb[0].mxu0
  %v8830 = vpop.f32.mrb[0].mxu0
  %v8831 = vadd.f32 %v8750, %v8830
  %v8832 = vpop.f32.mrb[0].mxu0
  %8833 = vmatprep.mubr.bf16.mxu0 %v2895
  %8834 = vmatmul.mubr.bf16.gmra.mrb[0].mxu0 %v2894
  %v8835 = vpop.f32.mrb[0].mxu0
  %v8836 = vadd.f32 %v8755, %v8835
  %v8837 = vpop.f32.mrb[0].mxu0
  %v8838 = vpop.f32.mrb[0].mxu0
  %v8839 = vadd.f32 %v8758, %v8838
  %v8840 = vpop.f32.mrb[0].mxu0
  %8841 = vmatprep.mubr.bf16.mxu0 %v2959
  %8842 = vmatmul.mubr.bf16.gmra.mrb[0].mxu0 %v2958
  %v8843 = vpop.f32.mrb[0].mxu0
  %v8844 = vadd.f32 %v8763, %v8843
  %v8845 = vpop.f32.mrb[0].mxu0
  %v8846 = vpop.f32.mrb[0].mxu0
  %v8847 = vadd.f32 %v8766, %v8846
  %v8848 = vpop.f32.mrb[0].mxu0
  %8849 = vdwg.mxu0
  %8850 = vmatprep.subr.bf16.mxu0 0
  %8851 = vmatpush1.bf16.msra.mxu0 %v5876
  %8852 = vmatprep.subr.bf16.mxu0 0
  %8853 = vmatpush1.bf16.msra.mxu0 %v5877
  %8854 = vmatprep.subr.bf16.mxu0 0
  %8855 = vmatpush1.bf16.msra.mxu0 %v5878
  %8856 = vmatprep.subr.bf16.mxu0 0
  %8857 = vmatpush1.bf16.msra.mxu0 %v5879
  %8858 = vmatprep.subr.bf16.mxu0 0
  %8859 = vmatpush1.bf16.msra.mxu0 %v5880
  %8860 = vmatprep.subr.bf16.mxu0 0
  %8861 = vmatpush1.bf16.msra.mxu0 %v5881
  %8862 = vmatprep.subr.bf16.mxu0 0
  %8863 = vmatpush1.bf16.msra.mxu0 %v5882
  %8864 = vmatprep.subr.bf16.mxu0 0
  %8865 = vmatpush1.bf16.msra.mxu0 %v5883
  %8866 = vmatprep.subr.bf16.mxu0 0
  %8867 = vmatpush1.bf16.msra.mxu0 %v5884
  %8868 = vmatprep.subr.bf16.mxu0 0
  %8869 = vmatpush1.bf16.msra.mxu0 %v5885
  %8870 = vmatprep.subr.bf16.mxu0 0
  %8871 = vmatpush1.bf16.msra.mxu0 %v5886
  %8872 = vmatprep.subr.bf16.mxu0 0
  %8873 = vmatpush1.bf16.msra.mxu0 %v5887
  %8874 = vmatprep.subr.bf16.mxu0 0
  %8875 = vmatpush1.bf16.msra.mxu0 %v5888
  %8876 = vmatprep.subr.bf16.mxu0 0
  %8877 = vmatpush1.bf16.msra.mxu0 %v5889
  %8878 = vmatprep.subr.bf16.mxu0 0
  %8879 = vmatpush1.bf16.msra.mxu0 %v5890
  %8880 = vmatprep.subr.bf16.mxu0 0
  %8881 = vmatpush1.bf16.msra.mxu0 %v5891
  %8882 = vmatprep.mubr.bf16.mxu0 %v2641
  %8883 = vmatmul.mubr.bf16.gmra.mrb[0].mxu0 %v2640
  %v8884 = vpop.f32.mrb[0].mxu0
  %v8885 = vadd.f32 %v8804, %v8884
  %v8886 = vpop.f32.mrb[0].mxu0
  %v8887 = vpop.f32.mrb[0].mxu0
  %v8888 = vadd.f32 %v8807, %v8887
  %v8889 = vpop.f32.mrb[0].mxu0
  %8890 = vmatprep.mubr.bf16.mxu0 %v2705
  %8891 = vmatmul.mubr.bf16.gmra.mrb[0].mxu0 %v2704
  %v8892 = vpop.f32.mrb[0].mxu0
  %v8893 = vadd.f32 %v8812, %v8892
  %v8894 = vpop.f32.mrb[0].mxu0
  %v8895 = vpop.f32.mrb[0].mxu0
  %v8896 = vadd.f32 %v8815, %v8895
  %v8897 = vpop.f32.mrb[0].mxu0
  %8898 = vmatprep.mubr.bf16.mxu0 %v2769
  %8899 = vmatmul.mubr.bf16.gmra.mrb[0].mxu0 %v2768
  %v8900 = vpop.f32.mrb[0].mxu0
  %v8901 = vadd.f32 %v8820, %v8900
  %v8902 = vpop.f32.mrb[0].mxu0
  %v8903 = vpop.f32.mrb[0].mxu0
  %v8904 = vadd.f32 %v8823, %v8903
  %v8905 = vpop.f32.mrb[0].mxu0
  %8906 = vmatprep.mubr.bf16.mxu0 %v2833
  %8907 = vmatmul.mubr.bf16.gmra.mrb[0].mxu0 %v2832
  %v8908 = vpop.f32.mrb[0].mxu0
  %v8909 = vadd.f32 %v8828, %v8908
  %v8910 = vpop.f32.mrb[0].mxu0
  %v8911 = vpop.f32.mrb[0].mxu0
  %v8912 = vadd.f32 %v8831, %v8911
  %v8913 = vpop.f32.mrb[0].mxu0
  %8914 = vmatprep.mubr.bf16.mxu0 %v2897
  %8915 = vmatmul.mubr.bf16.gmra.mrb[0].mxu0 %v2896
  %v8916 = vpop.f32.mrb[0].mxu0
  %v8917 = vadd.f32 %v8836, %v8916
  %v8918 = vpop.f32.mrb[0].mxu0
  %v8919 = vpop.f32.mrb[0].mxu0
  %v8920 = vadd.f32 %v8839, %v8919
  %v8921 = vpop.f32.mrb[0].mxu0
  %8922 = vmatprep.mubr.bf16.mxu0 %v2961
  %8923 = vmatmul.mubr.bf16.gmra.mrb[0].mxu0 %v2960
  %v8924 = vpop.f32.mrb[0].mxu0
  %v8925 = vadd.f32 %v8844, %v8924
  %v8926 = vpop.f32.mrb[0].mxu0
  %v8927 = vpop.f32.mrb[0].mxu0
  %v8928 = vadd.f32 %v8847, %v8927
  %v8929 = vpop.f32.mrb[0].mxu0
  %8930 = vdwg.mxu0
  %8931 = vmatprep.subr.bf16.mxu0 0
  %8932 = vmatpush1.bf16.msra.mxu0 %v5892
  %8933 = vmatprep.subr.bf16.mxu0 0
  %8934 = vmatpush1.bf16.msra.mxu0 %v5893
  %8935 = vmatprep.subr.bf16.mxu0 0
  %8936 = vmatpush1.bf16.msra.mxu0 %v5894
  %8937 = vmatprep.subr.bf16.mxu0 0
  %8938 = vmatpush1.bf16.msra.mxu0 %v5895
  %8939 = vmatprep.subr.bf16.mxu0 0
  %8940 = vmatpush1.bf16.msra.mxu0 %v5896
  %8941 = vmatprep.subr.bf16.mxu0 0
  %8942 = vmatpush1.bf16.msra.mxu0 %v5897
  %8943 = vmatprep.subr.bf16.mxu0 0
  %8944 = vmatpush1.bf16.msra.mxu0 %v5898
  %8945 = vmatprep.subr.bf16.mxu0 0
  %8946 = vmatpush1.bf16.msra.mxu0 %v5899
  %8947 = vmatprep.subr.bf16.mxu0 0
  %8948 = vmatpush1.bf16.msra.mxu0 %v5900
  %8949 = vmatprep.subr.bf16.mxu0 0
  %8950 = vmatpush1.bf16.msra.mxu0 %v5901
  %8951 = vmatprep.subr.bf16.mxu0 0
  %8952 = vmatpush1.bf16.msra.mxu0 %v5902
  %8953 = vmatprep.subr.bf16.mxu0 0
  %8954 = vmatpush1.bf16.msra.mxu0 %v5903
  %8955 = vmatprep.subr.bf16.mxu0 0
  %8956 = vmatpush1.bf16.msra.mxu0 %v5904
  %8957 = vmatprep.subr.bf16.mxu0 0
  %8958 = vmatpush1.bf16.msra.mxu0 %v5905
  %8959 = vmatprep.subr.bf16.mxu0 0
  %8960 = vmatpush1.bf16.msra.mxu0 %v5906
  %8961 = vmatprep.subr.bf16.mxu0 0
  %8962 = vmatpush1.bf16.msra.mxu0 %v5907
  %8963 = vmatprep.mubr.bf16.mxu0 %v2643
  %8964 = vmatmul.mubr.bf16.gmra.mrb[0].mxu0 %v2642
  %v8965 = vpop.f32.mrb[0].mxu0
  %v8966 = vadd.f32 %v8885, %v8965
  %v8967 = vpop.f32.mrb[0].mxu0
  %v8968 = vpop.f32.mrb[0].mxu0
  %v8969 = vadd.f32 %v8888, %v8968
  %v8970 = vpop.f32.mrb[0].mxu0
  %8971 = vmatprep.mubr.bf16.mxu0 %v2707
  %8972 = vmatmul.mubr.bf16.gmra.mrb[0].mxu0 %v2706
  %v8973 = vpop.f32.mrb[0].mxu0
  %v8974 = vadd.f32 %v8893, %v8973
  %v8975 = vpop.f32.mrb[0].mxu0
  %v8976 = vpop.f32.mrb[0].mxu0
  %v8977 = vadd.f32 %v8896, %v8976
  %v8978 = vpop.f32.mrb[0].mxu0
  %8979 = vmatprep.mubr.bf16.mxu0 %v2771
  %8980 = vmatmul.mubr.bf16.gmra.mrb[0].mxu0 %v2770
  %v8981 = vpop.f32.mrb[0].mxu0
  %v8982 = vadd.f32 %v8901, %v8981
  %v8983 = vpop.f32.mrb[0].mxu0
  %v8984 = vpop.f32.mrb[0].mxu0
  %v8985 = vadd.f32 %v8904, %v8984
  %v8986 = vpop.f32.mrb[0].mxu0
  %8987 = vmatprep.mubr.bf16.mxu0 %v2835
  %8988 = vmatmul.mubr.bf16.gmra.mrb[0].mxu0 %v2834
  %v8989 = vpop.f32.mrb[0].mxu0
  %v8990 = vadd.f32 %v8909, %v8989
  %v8991 = vpop.f32.mrb[0].mxu0
  %v8992 = vpop.f32.mrb[0].mxu0
  %v8993 = vadd.f32 %v8912, %v8992
  %v8994 = vpop.f32.mrb[0].mxu0
  %8995 = vmatprep.mubr.bf16.mxu0 %v2899
  %8996 = vmatmul.mubr.bf16.gmra.mrb[0].mxu0 %v2898
  %v8997 = vpop.f32.mrb[0].mxu0
  %v8998 = vadd.f32 %v8917, %v8997
  %v8999 = vpop.f32.mrb[0].mxu0
  %v9000 = vpop.f32.mrb[0].mxu0
  %v9001 = vadd.f32 %v8920, %v9000
  %v9002 = vpop.f32.mrb[0].mxu0
  %9003 = vmatprep.mubr.bf16.mxu0 %v2963
  %9004 = vmatmul.mubr.bf16.gmra.mrb[0].mxu0 %v2962
  %v9005 = vpop.f32.mrb[0].mxu0
  %v9006 = vadd.f32 %v8925, %v9005
  %v9007 = vpop.f32.mrb[0].mxu0
  %v9008 = vpop.f32.mrb[0].mxu0
  %v9009 = vadd.f32 %v8928, %v9008
  %v9010 = vpop.f32.mrb[0].mxu0
  %9011 = vdwg.mxu0
  %v9012 = vmax.f32 %v8966, 0.0
  %v9013 = vmax.f32 %v8969, 0.0
  %v9014 = vmax.f32 %v8974, 0.0
  %v9015 = vmax.f32 %v8977, 0.0
  %v9016 = vmax.f32 %v8982, 0.0
  %v9017 = vmax.f32 %v8985, 0.0
  %v9018 = vmax.f32 %v8990, 0.0
  %v9019 = vmax.f32 %v8993, 0.0
  %v9020 = vmax.f32 %v8998, 0.0
  %v9021 = vmax.f32 %v9001, 0.0
  %v9022 = vmax.f32 %v9006, 0.0
  %v9023 = vmax.f32 %v9009, 0.0
  %v9024 = vld [vmem:[%s2 + $0x1] sm:$0x1]
  %v9025 = vlaneseq
  %v9026 = vshrl.u32 %v9025, 7
  %v9027 = vsub.s32 0, %v9026
  %v9028 = vrot.slane %v9024, %v9027
  %v9029 = vmul.f32 %v9012, %v9028
  %v9030 = vmul.f32 %v9013, %v9028
  %v9031 = vmul.f32 %v9014, %v9028
  %v9032 = vmul.f32 %v9015, %v9028
  %v9033 = vmul.f32 %v9016, %v9028
  %v9034 = vmul.f32 %v9017, %v9028
  %v9035 = vmul.f32 %v9018, %v9028
  %v9036 = vmul.f32 %v9019, %v9028
  %v9037 = vmul.f32 %v9020, %v9028
  %v9038 = vmul.f32 %v9021, %v9028
  %v9039 = vmul.f32 %v9022, %v9028
  %v9040 = vmul.f32 %v9023, %v9028
  %v9041 = vld [vmem:[%s2 + $0x2] sm:$0x1]
  %v9042 = vlaneseq
  %v9043 = vshrl.u32 %v9042, 7
  %v9044 = vsub.s32 0, %v9043
  %v9045 = vrot.slane %v9041, %v9044
  %v9046 = vadd.f32 %v9029, %v9045
  %v9047 = vadd.f32 %v9030, %v9045
  %v9048 = vadd.f32 %v9031, %v9045
  %v9049 = vadd.f32 %v9032, %v9045
  %v9050 = vadd.f32 %v9033, %v9045
  %v9051 = vadd.f32 %v9034, %v9045
  %v9052 = vadd.f32 %v9035, %v9045
  %v9053 = vadd.f32 %v9036, %v9045
  %v9054 = vadd.f32 %v9037, %v9045
  %v9055 = vadd.f32 %v9038, %v9045
  %v9056 = vadd.f32 %v9039, %v9045
  %v9057 = vadd.f32 %v9040, %v9045
  %v9058 = vpack.c.bf16 %v9047, %v9046
  %v9059 = vpack.c.bf16 %v9049, %v9048
  %v9060 = vpack.c.bf16 %v9051, %v9050
  %v9061 = vpack.c.bf16 %v9053, %v9052
  %v9062 = vpack.c.bf16 %v9055, %v9054
  %v9063 = vpack.c.bf16 %v9057, %v9056
  %v9070 = vunpack.c.l.b16 %v9058
  %v9071 = vunpack.c.h.b16 %v9058
  %v9072 = vunpack.c.l.b16 %v9059
  %v9073 = vunpack.c.h.b16 %v9059
  %v9074 = vunpack.c.l.b16 %v9060
  %v9075 = vunpack.c.h.b16 %v9060
  %v9076 = vunpack.c.l.b16 %v9061
  %v9077 = vunpack.c.h.b16 %v9061
  %v9078 = vunpack.c.l.b16 %v9062
  %v9079 = vunpack.c.h.b16 %v9062
  %v9080 = vunpack.c.l.b16 %v9063
  %v9081 = vunpack.c.h.b16 %v9063
  %v9082 = vpack.c.b16 %v9070, %v9070
  %v9083 = vpack.c.b16 %v9071, %v9071
  %v9084 = vpack.c.b16 %v9072, %v9072
  %v9085 = vpack.c.b16 %v9073, %v9073
  %v9086 = vpack.c.b16 %v9074, %v9074
  %v9087 = vpack.c.b16 %v9075, %v9075
  %v9088 = vpack.c.b16 %v9076, %v9076
  %v9089 = vpack.c.b16 %v9077, %v9077
  %v9090 = vpack.c.b16 %v9078, %v9078
  %v9091 = vpack.c.b16 %v9079, %v9079
  %v9092 = vpack.c.b16 %v9080, %v9080
  %v9093 = vpack.c.b16 %v9081, %v9081
  %9106 = vst [vmem:[%s3] sm:$0xf] %v9082
  %9107 = vst [vmem:[%s3 + $0x4] sm:$0xf] %v9083
  %9108 = vst [vmem:[%s3 + $0x8] sm:$0xf] %v9084
  %9109 = vst [vmem:[%s3 + $0xc] sm:$0xf] %v9085
  %9110 = vst [vmem:[%s3 + $0x10] sm:$0xf] %v9086
  %9111 = vst [vmem:[%s3 + $0x14] sm:$0xf] %v9087
  %9112 = vst [vmem:[%s3 + $0x18] sm:$0xf] %v9088
  %9113 = vst [vmem:[%s3 + $0x1c] sm:$0xf] %v9089
  %9114 = vst [vmem:[%s3 + $0x20] sm:$0xf] %v9090
  %9115 = vst [vmem:[%s3 + $0x24] sm:$0xf] %v9091
  %9116 = vst [vmem:[%s3 + $0x28] sm:$0xf] %v9092
  %9117 = vst [vmem:[%s3 + $0x2c] sm:$0x1] %v9093
  // Predicated region
  $region14: #{forward.5} parent=0 // pred_check
    _
  $region15: #{forward.5} parent=0 // pred_check_branch
    %9119 = sbr.rel (0) target = $region17
  $region16: #{forward.5} parent=0 // pred_region
    _
  $region17: #{forward.5} parent=0 // pred_fallthru
    _
  // Predicated region
  $region18: #{forward.5} parent=0 // pred_check
    _
  $region19: #{forward.5} parent=0 // pred_check_branch
    %9121 = sbr.rel (0) target = $region21
  $region20: #{forward.5} parent=0 // pred_region
    _
  $region21: #{forward.5} parent=0 // pred_fallthru
    _

// kernel: forward.6
$region0: #{forward.6}
  #allocation0 [shape = 'u32[]', space=smem, size = 0x4, offset = 0x4, fixed_abs, tag = 'smem constant byte address 0x4 - core index']
  #allocation1 [shape = 'u32[144,128]{1,0:T(1,128)}', space=vmem, size = 0x12000, scoped, tag = 'internal scratch']
  %s0 = inlined_call_operand.vmem [shape: bf16[24,3456], index: 0, kind: input, shape index: {}]
  %s1 = inlined_call_operand.vmem [shape: bf16[3456,128], index: 1, kind: input, shape index: {}]
  %s2 = inlined_call_operand.vmem [shape: f32[3,128], index: 2, kind: input, shape index: {}]
  %s3 = inlined_call_operand.vmem [shape: bf16[24,128], index: 3, kind: output, shape index: {}]
  %s4 = sld [smem:[#allocation0]]
  $region22: #{forward.6} parent=0
    _
  %s6 = ssub.s32 1, %s4
  %s7 = scalar_select 0, %s6, %s4
  // Predicated region
  $region2: #{forward.6} parent=0 // pred_check
    _
  $region3: #{forward.6} parent=0 // pred_check_branch
    %9 = sbr.rel (0) target = $region5
  $region4: #{forward.6} parent=0 // pred_region
    _
  $region5: #{forward.6} parent=0 // pred_fallthru
    _
  // Predicated region
  $region6: #{forward.6} parent=0 // pred_check
    _
  $region7: #{forward.6} parent=0 // pred_check_branch
    %11 = sbr.rel (0) target = $region9
  $region8: #{forward.6} parent=0 // pred_region
    _
  $region9: #{forward.6} parent=0 // pred_fallthru
    _
  // Predicated region
  $region10: #{forward.6} parent=0 // pred_check
    _
  $region11: #{forward.6} parent=0 // pred_check_branch
    %13 = sbr.rel (0) target = $region13
  $region12: #{forward.6} parent=0 // pred_region
    _
  $region13: #{forward.6} parent=0 // pred_fallthru
    _
  %v15 = vld [vmem:[%s0] sm:$0xff]
  %v16 = vld [vmem:[%s0 + $0x8] sm:$0xff]
  %v17 = vld [vmem:[%s0 + $0x10] sm:$0xff]
  %v18 = vld [vmem:[%s0 + $0x18] sm:$0xff]
  %v19 = vld [vmem:[%s0 + $0x20] sm:$0xff]
  %v20 = vld [vmem:[%s0 + $0x28] sm:$0xff]
  %v21 = vld [vmem:[%s0 + $0x30] sm:$0xff]
  %v22 = vld [vmem:[%s0 + $0x38] sm:$0xff]
  %v23 = vld [vmem:[%s0 + $0x40] sm:$0xff]
  %v24 = vld [vmem:[%s0 + $0x48] sm:$0xff]
  %v25 = vld [vmem:[%s0 + $0x50] sm:$0xff]
  %v26 = vld [vmem:[%s0 + $0x58] sm:$0xff]
  %v27 = vld [vmem:[%s0 + $0x60] sm:$0xff]
  %v28 = vld [vmem:[%s0 + $0x68] sm:$0xf]
  %v29 = vld [vmem:[%s0 + $0x6c] sm:$0xff]
  %v30 = vld [vmem:[%s0 + $0x74] sm:$0xff]
  %v31 = vld [vmem:[%s0 + $0x7c] sm:$0xff]
  %v32 = vld [vmem:[%s0 + $0x84] sm:$0xff]
  %v33 = vld [vmem:[%s0 + $0x8c] sm:$0xff]
  %v34 = vld [vmem:[%s0 + $0x94] sm:$0xff]
  %v35 = vld [vmem:[%s0 + $0x9c] sm:$0xff]
  %v36 = vld [vmem:[%s0 + $0xa4] sm:$0xff]
  %v37 = vld [vmem:[%s0 + $0xac] sm:$0xff]
  %v38 = vld [vmem:[%s0 + $0xb4] sm:$0xff]
  %v39 = vld [vmem:[%s0 + $0xbc] sm:$0xff]
  %v40 = vld [vmem:[%s0 + $0xc4] sm:$0xff]
  %v41 = vld [vmem:[%s0 + $0xcc] sm:$0xff]
  %v42 = vld [vmem:[%s0 + $0xd4] sm:$0xf]
  %v43 = vld [vmem:[%s0 + $0xd8] sm:$0xff]
  %v44 = vld [vmem:[%s0 + $0xe0] sm:$0xff]
  %v45 = vld [vmem:[%s0 + $0xe8] sm:$0xff]
  %v46 = vld [vmem:[%s0 + $0xf0] sm:$0xff]
  %v47 = vld [vmem:[%s0 + $0xf8] sm:$0xff]
  %v48 = vld [vmem:[%s0 + $0x100] sm:$0xff]
  %v49 = vld [vmem:[%s0 + $0x108] sm:$0xff]
  %v50 = vld [vmem:[%s0 + $0x110] sm:$0xff]
  %v51 = vld [vmem:[%s0 + $0x118] sm:$0xff]
  %v52 = vld [vmem:[%s0 + $0x120] sm:$0xff]
  %v53 = vld [vmem:[%s0 + $0x128] sm:$0xff]
  %v54 = vld [vmem:[%s0 + $0x130] sm:$0xff]
  %v55 = vld [vmem:[%s0 + $0x138] sm:$0xff]
  %v56 = vld [vmem:[%s0 + $0x140] sm:$0xf]
  %v57 = vld [vmem:[%s1] sm:$0xf]
  %v58 = vld [vmem:[%s1 + $0x4] sm:$0xf]
  %v59 = vld [vmem:[%s1 + $0x8] sm:$0xf]
  %v60 = vld [vmem:[%s1 + $0xc] sm:$0xf]
  %v61 = vld [vmem:[%s1 + $0x10] sm:$0xf]
  %v62 = vld [vmem:[%s1 + $0x14] sm:$0xf]
  %v63 = vld [vmem:[%s1 + $0x18] sm:$0xf]
  %v64 = vld [vmem:[%s1 + $0x1c] sm:$0xf]
  %v65 = vld [vmem:[%s1 + $0x20] sm:$0xf]
  %v66 = vld [vmem:[%s1 + $0x24] sm:$0xf]
  %v67 = vld [vmem:[%s1 + $0x28] sm:$0xf]
  %v68 = vld [vmem:[%s1 + $0x2c] sm:$0xf]
  %v69 = vld [vmem:[%s1 + $0x30] sm:$0xf]
  %v70 = vld [vmem:[%s1 + $0x34] sm:$0xf]
  %v71 = vld [vmem:[%s1 + $0x38] sm:$0xf]
  %v72 = vld [vmem:[%s1 + $0x3c] sm:$0xf]
  %v73 = vld [vmem:[%s1 + $0x40] sm:$0xf]
  %v74 = vld [vmem:[%s1 + $0x44] sm:$0xf]
  %v75 = vld [vmem:[%s1 + $0x48] sm:$0xf]
  %v76 = vld [vmem:[%s1 + $0x4c] sm:$0xf]
  %v77 = vld [vmem:[%s1 + $0x50] sm:$0xf]
  %v78 = vld [vmem:[%s1 + $0x54] sm:$0xf]
  %v79 = vld [vmem:[%s1 + $0x58] sm:$0xf]
  %v80 = vld [vmem:[%s1 + $0x5c] sm:$0xf]
  %v81 = vld [vmem:[%s1 + $0x60] sm:$0xf]
  %v82 = vld [vmem:[%s1 + $0x64] sm:$0xf]
  %v83 = vld [vmem:[%s1 + $0x68] sm:$0xf]
  %v84 = vld [vmem:[%s1 + $0x6c] sm:$0xf]
  %v85 = vld [vmem:[%s1 + $0x70] sm:$0xf]
  %v86 = vld [vmem:[%s1 + $0x74] sm:$0xf]
  %v87 = vld [vmem:[%s1 + $0x78] sm:$0xf]
  %v88 = vld [vmem:[%s1 + $0x7c] sm:$0xf]
  %v89 = vld [vmem:[%s1 + $0x80] sm:$0xf]
  %v90 = vld [vmem:[%s1 + $0x84] sm:$0xf]
  %v91 = vld [vmem:[%s1 + $0x88] sm:$0xf]
  %v92 = vld [vmem:[%s1 + $0x8c] sm:$0xf]
  %v93 = vld [vmem:[%s1 + $0x90] sm:$0xf]
  %v94 = vld [vmem:[%s1 + $0x94] sm:$0xf]
  %v95 = vld [vmem:[%s1 + $0x98] sm:$0xf]
  %v96 = vld [vmem:[%s1 + $0x9c] sm:$0xf]
  %v97 = vld [vmem:[%s1 + $0xa0] sm:$0xf]
  %v98 = vld [vmem:[%s1 + $0xa4] sm:$0xf]
  %v99 = vld [vmem:[%s1 + $0xa8] sm:$0xf]
  %v100 = vld [vmem:[%s1 + $0xac] sm:$0xf]
  %v101 = vld [vmem:[%s1 + $0xb0] sm:$0xf]
  %v102 = vld [vmem:[%s1 + $0xb4] sm:$0xf]
  %v103 = vld [vmem:[%s1 + $0xb8] sm:$0xf]
  %v104 = vld [vmem:[%s1 + $0xbc] sm:$0xf]
  %v105 = vld [vmem:[%s1 + $0xc0] sm:$0xf]
  %v106 = vld [vmem:[%s1 + $0xc4] sm:$0xf]
  %v107 = vld [vmem:[%s1 + $0xc8] sm:$0xf]
  %v108 = vld [vmem:[%s1 + $0xcc] sm:$0xf]
  %v109 = vld [vmem:[%s1 + $0xd0] sm:$0xf]
  %v110 = vld [vmem:[%s1 + $0xd4] sm:$0xf]
  %v111 = vld [vmem:[%s1 + $0xd8] sm:$0xf]
  %v112 = vld [vmem:[%s1 + $0xdc] sm:$0xf]
  %v113 = vld [vmem:[%s1 + $0xe0] sm:$0xf]
  %v114 = vld [vmem:[%s1 + $0xe4] sm:$0xf]
  %v115 = vld [vmem:[%s1 + $0xe8] sm:$0xf]
  %v116 = vld [vmem:[%s1 + $0xec] sm:$0xf]
  %v117 = vld [vmem:[%s1 + $0xf0] sm:$0xf]
  %v118 = vld [vmem:[%s1 + $0xf4] sm:$0xf]
  %v119 = vld [vmem:[%s1 + $0xf8] sm:$0xf]
  %v120 = vld [vmem:[%s1 + $0xfc] sm:$0xf]
  %v121 = vld [vmem:[%s1 + $0x100] sm:$0xf]
  %v122 = vld [vmem:[%s1 + $0x104] sm:$0xf]
  %v123 = vld [vmem:[%s1 + $0x108] sm:$0xf]
  %v124 = vld [vmem:[%s1 + $0x10c] sm:$0xf]
  %v125 = vld [vmem:[%s1 + $0x110] sm:$0xf]
  %v126 = vld [vmem:[%s1 + $0x114] sm:$0xf]
  %v127 = vld [vmem:[%s1 + $0x118] sm:$0xf]
  %v128 = vld [vmem:[%s1 + $0x11c] sm:$0xf]
  %v129 = vld [vmem:[%s1 + $0x120] sm:$0xf]
  %v130 = vld [vmem:[%s1 + $0x124] sm:$0xf]
  %v131 = vld [vmem:[%s1 + $0x128] sm:$0xf]
  %v132 = vld [vmem:[%s1 + $0x12c] sm:$0xf]
  %v133 = vld [vmem:[%s1 + $0x130] sm:$0xf]
  %v134 = vld [vmem:[%s1 + $0x134] sm:$0xf]
  %v135 = vld [vmem:[%s1 + $0x138] sm:$0xf]
  %v136 = vld [vmem:[%s1 + $0x13c] sm:$0xf]
  %v137 = vld [vmem:[%s1 + $0x140] sm:$0xf]
  %v138 = vld [vmem:[%s1 + $0x144] sm:$0xf]
  %v139 = vld [vmem:[%s1 + $0x148] sm:$0xf]
  %v140 = vld [vmem:[%s1 + $0x14c] sm:$0xf]
  %v141 = vld [vmem:[%s1 + $0x150] sm:$0xf]
  %v142 = vld [vmem:[%s1 + $0x154] sm:$0xf]
  %v143 = vld [vmem:[%s1 + $0x158] sm:$0xf]
  %v144 = vld [vmem:[%s1 + $0x15c] sm:$0xf]
  %v145 = vld [vmem:[%s1 + $0x160] sm:$0xf]
  %v146 = vld [vmem:[%s1 + $0x164] sm:$0xf]
  %v147 = vld [vmem:[%s1 + $0x168] sm:$0xf]
  %v148 = vld [vmem:[%s1 + $0x16c] sm:$0xf]
  %v149 = vld [vmem:[%s1 + $0x170] sm:$0xf]
  %v150 = vld [vmem:[%s1 + $0x174] sm:$0xf]
  %v151 = vld [vmem:[%s1 + $0x178] sm:$0xf]
  %v152 = vld [vmem:[%s1 + $0x17c] sm:$0xf]
  %v153 = vld [vmem:[%s1 + $0x180] sm:$0xf]
  %v154 = vld [vmem:[%s1 + $0x184] sm:$0xf]
  %v155 = vld [vmem:[%s1 + $0x188] sm:$0xf]
  %v156 = vld [vmem:[%s1 + $0x18c] sm:$0xf]
  %v157 = vld [vmem:[%s1 + $0x190] sm:$0xf]
  %v158 = vld [vmem:[%s1 + $0x194] sm:$0xf]
  %v159 = vld [vmem:[%s1 + $0x198] sm:$0xf]
  %v160 = vld [vmem:[%s1 + $0x19c] sm:$0xf]
  %v161 = vld [vmem:[%s1 + $0x1a0] sm:$0xf]
  %v162 = vld [vmem:[%s1 + $0x1a4] sm:$0xf]
  %v163 = vld [vmem:[%s1 + $0x1a8] sm:$0xf]
  %v164 = vld [vmem:[%s1 + $0x1ac] sm:$0xf]
  %v165 = vld [vmem:[%s1 + $0x1b0] sm:$0xf]
  %v166 = vld [vmem:[%s1 + $0x1b4] sm:$0xf]
  %v167 = vld [vmem:[%s1 + $0x1b8] sm:$0xf]
  %v168 = vld [vmem:[%s1 + $0x1bc] sm:$0xf]
  %v169 = vld [vmem:[%s1 + $0x1c0] sm:$0xf]
  %v170 = vld [vmem:[%s1 + $0x1c4] sm:$0xf]
  %v171 = vld [vmem:[%s1 + $0x1c8] sm:$0xf]
  %v172 = vld [vmem:[%s1 + $0x1cc] sm:$0xf]
  %v173 = vld [vmem:[%s1 + $0x1d0] sm:$0xf]
  %v174 = vld [vmem:[%s1 + $0x1d4] sm:$0xf]
  %v175 = vld [vmem:[%s1 + $0x1d8] sm:$0xf]
  %v176 = vld [vmem:[%s1 + $0x1dc] sm:$0xf]
  %v177 = vld [vmem:[%s1 + $0x1e0] sm:$0xf]
  %v178 = vld [vmem:[%s1 + $0x1e4] sm:$0xf]
  %v179 = vld [vmem:[%s1 + $0x1e8] sm:$0xf]
  %v180 = vld [vmem:[%s1 + $0x1ec] sm:$0xf]
  %v181 = vld [vmem:[%s1 + $0x1f0] sm:$0xf]
  %v182 = vld [vmem:[%s1 + $0x1f4] sm:$0xf]
  %v183 = vld [vmem:[%s1 + $0x1f8] sm:$0xf]
  %v184 = vld [vmem:[%s1 + $0x1fc] sm:$0xf]
  %v185 = vld [vmem:[%s1 + $0x200] sm:$0xf]
  %v186 = vld [vmem:[%s1 + $0x204] sm:$0xf]
  %v187 = vld [vmem:[%s1 + $0x208] sm:$0xf]
  %v188 = vld [vmem:[%s1 + $0x20c] sm:$0xf]
  %v189 = vld [vmem:[%s1 + $0x210] sm:$0xf]
  %v190 = vld [vmem:[%s1 + $0x214] sm:$0xf]
  %v191 = vld [vmem:[%s1 + $0x218] sm:$0xf]
  %v192 = vld [vmem:[%s1 + $0x21c] sm:$0xf]
  %v193 = vld [vmem:[%s1 + $0x220] sm:$0xf]
  %v194 = vld [vmem:[%s1 + $0x224] sm:$0xf]
  %v195 = vld [vmem:[%s1 + $0x228] sm:$0xf]
  %v196 = vld [vmem:[%s1 + $0x22c] sm:$0xf]
  %v197 = vld [vmem:[%s1 + $0x230] sm:$0xf]
  %v198 = vld [vmem:[%s1 + $0x234] sm:$0xf]
  %v199 = vld [vmem:[%s1 + $0x238] sm:$0xf]
  %v200 = vld [vmem:[%s1 + $0x23c] sm:$0xf]
  %v201 = vld [vmem:[%s1 + $0x240] sm:$0xf]
  %v202 = vld [vmem:[%s1 + $0x244] sm:$0xf]
  %v203 = vld [vmem:[%s1 + $0x248] sm:$0xf]
  %v204 = vld [vmem:[%s1 + $0x24c] sm:$0xf]
  %v205 = vld [vmem:[%s1 + $0x250] sm:$0xf]
  %v206 = vld [vmem:[%s1 + $0x254] sm:$0xf]
  %v207 = vld [vmem:[%s1 + $0x258] sm:$0xf]
  %v208 = vld [vmem:[%s1 + $0x25c] sm:$0xf]
  %v209 = vld [vmem:[%s1 + $0x260] sm:$0xf]
  %v210 = vld [vmem:[%s1 + $0x264] sm:$0xf]
  %v211 = vld [vmem:[%s1 + $0x268] sm:$0xf]
  %v212 = vld [vmem:[%s1 + $0x26c] sm:$0xf]
  %v213 = vld [vmem:[%s1 + $0x270] sm:$0xf]
  %v214 = vld [vmem:[%s1 + $0x274] sm:$0xf]
  %v215 = vld [vmem:[%s1 + $0x278] sm:$0xf]
  %v216 = vld [vmem:[%s1 + $0x27c] sm:$0xf]
  %v217 = vld [vmem:[%s1 + $0x280] sm:$0xf]
  %v218 = vld [vmem:[%s1 + $0x284] sm:$0xf]
  %v219 = vld [vmem:[%s1 + $0x288] sm:$0xf]
  %v220 = vld [vmem:[%s1 + $0x28c] sm:$0xf]
  %v221 = vld [vmem:[%s1 + $0x290] sm:$0xf]
  %v222 = vld [vmem:[%s1 + $0x294] sm:$0xf]
  %v223 = vld [vmem:[%s1 + $0x298] sm:$0xf]
  %v224 = vld [vmem:[%s1 + $0x29c] sm:$0xf]
  %v225 = vld [vmem:[%s1 + $0x2a0] sm:$0xf]
  %v226 = vld [vmem:[%s1 + $0x2a4] sm:$0xf]
  %v227 = vld [vmem:[%s1 + $0x2a8] sm:$0xf]
  %v228 = vld [vmem:[%s1 + $0x2ac] sm:$0xf]
  %v229 = vld [vmem:[%s1 + $0x2b0] sm:$0xf]
  %v230 = vld [vmem:[%s1 + $0x2b4] sm:$0xf]
  %v231 = vld [vmem:[%s1 + $0x2b8] sm:$0xf]
  %v232 = vld [vmem:[%s1 + $0x2bc] sm:$0xf]
  %v233 = vld [vmem:[%s1 + $0x2c0] sm:$0xf]
  %v234 = vld [vmem:[%s1 + $0x2c4] sm:$0xf]
  %v235 = vld [vmem:[%s1 + $0x2c8] sm:$0xf]
  %v236 = vld [vmem:[%s1 + $0x2cc] sm:$0xf]
  %v237 = vld [vmem:[%s1 + $0x2d0] sm:$0xf]
  %v238 = vld [vmem:[%s1 + $0x2d4] sm:$0xf]
  %v239 = vld [vmem:[%s1 + $0x2d8] sm:$0xf]
  %v240 = vld [vmem:[%s1 + $0x2dc] sm:$0xf]
  %v241 = vld [vmem:[%s1 + $0x2e0] sm:$0xf]
  %v242 = vld [vmem:[%s1 + $0x2e4] sm:$0xf]
  %v243 = vld [vmem:[%s1 + $0x2e8] sm:$0xf]
  %v244 = vld [vmem:[%s1 + $0x2ec] sm:$0xf]
  %v245 = vld [vmem:[%s1 + $0x2f0] sm:$0xf]
  %v246 = vld [vmem:[%s1 + $0x2f4] sm:$0xf]
  %v247 = vld [vmem:[%s1 + $0x2f8] sm:$0xf]
  %v248 = vld [vmem:[%s1 + $0x2fc] sm:$0xf]
  %v249 = vld [vmem:[%s1 + $0x300] sm:$0xf]
  %v250 = vld [vmem:[%s1 + $0x304] sm:$0xf]
  %v251 = vld [vmem:[%s1 + $0x308] sm:$0xf]
  %v252 = vld [vmem:[%s1 + $0x30c] sm:$0xf]
  %v253 = vld [vmem:[%s1 + $0x310] sm:$0xf]
  %v254 = vld [vmem:[%s1 + $0x314] sm:$0xf]
  %v255 = vld [vmem:[%s1 + $0x318] sm:$0xf]
  %v256 = vld [vmem:[%s1 + $0x31c] sm:$0xf]
  %v257 = vld [vmem:[%s1 + $0x320] sm:$0xf]
  %v258 = vld [vmem:[%s1 + $0x324] sm:$0xf]
  %v259 = vld [vmem:[%s1 + $0x328] sm:$0xf]
  %v260 = vld [vmem:[%s1 + $0x32c] sm:$0xf]
  %v261 = vld [vmem:[%s1 + $0x330] sm:$0xf]
  %v262 = vld [vmem:[%s1 + $0x334] sm:$0xf]
  %v263 = vld [vmem:[%s1 + $0x338] sm:$0xf]
  %v264 = vld [vmem:[%s1 + $0x33c] sm:$0xf]
  %v265 = vld [vmem:[%s1 + $0x340] sm:$0xf]
  %v266 = vld [vmem:[%s1 + $0x344] sm:$0xf]
  %v267 = vld [vmem:[%s1 + $0x348] sm:$0xf]
  %v268 = vld [vmem:[%s1 + $0x34c] sm:$0xf]
  %v269 = vld [vmem:[%s1 + $0x350] sm:$0xf]
  %v270 = vld [vmem:[%s1 + $0x354] sm:$0xf]
  %v271 = vld [vmem:[%s1 + $0x358] sm:$0xf]
  %v272 = vld [vmem:[%s1 + $0x35c] sm:$0xf]
  %v273 = vld [vmem:[%s1 + $0x360] sm:$0xf]
  %v274 = vld [vmem:[%s1 + $0x364] sm:$0xf]
  %v275 = vld [vmem:[%s1 + $0x368] sm:$0xf]
  %v276 = vld [vmem:[%s1 + $0x36c] sm:$0xf]
  %v277 = vld [vmem:[%s1 + $0x370] sm:$0xf]
  %v278 = vld [vmem:[%s1 + $0x374] sm:$0xf]
  %v279 = vld [vmem:[%s1 + $0x378] sm:$0xf]
  %v280 = vld [vmem:[%s1 + $0x37c] sm:$0xf]
  %v281 = vld [vmem:[%s1 + $0x380] sm:$0xf]
  %v282 = vld [vmem:[%s1 + $0x384] sm:$0xf]
  %v283 = vld [vmem:[%s1 + $0x388] sm:$0xf]
  %v284 = vld [vmem:[%s1 + $0x38c] sm:$0xf]
  %v285 = vld [vmem:[%s1 + $0x390] sm:$0xf]
  %v286 = vld [vmem:[%s1 + $0x394] sm:$0xf]
  %v287 = vld [vmem:[%s1 + $0x398] sm:$0xf]
  %v288 = vld [vmem:[%s1 + $0x39c] sm:$0xf]
  %v289 = vld [vmem:[%s1 + $0x3a0] sm:$0xf]
  %v290 = vld [vmem:[%s1 + $0x3a4] sm:$0xf]
  %v291 = vld [vmem:[%s1 + $0x3a8] sm:$0xf]
  %v292 = vld [vmem:[%s1 + $0x3ac] sm:$0xf]
  %v293 = vld [vmem:[%s1 + $0x3b0] sm:$0xf]
  %v294 = vld [vmem:[%s1 + $0x3b4] sm:$0xf]
  %v295 = vld [vmem:[%s1 + $0x3b8] sm:$0xf]
  %v296 = vld [vmem:[%s1 + $0x3bc] sm:$0xf]
  %v297 = vld [vmem:[%s1 + $0x3c0] sm:$0xf]
  %v298 = vld [vmem:[%s1 + $0x3c4] sm:$0xf]
  %v299 = vld [vmem:[%s1 + $0x3c8] sm:$0xf]
  %v300 = vld [vmem:[%s1 + $0x3cc] sm:$0xf]
  %v301 = vld [vmem:[%s1 + $0x3d0] sm:$0xf]
  %v302 = vld [vmem:[%s1 + $0x3d4] sm:$0xf]
  %v303 = vld [vmem:[%s1 + $0x3d8] sm:$0xf]
  %v304 = vld [vmem:[%s1 + $0x3dc] sm:$0xf]
  %v305 = vld [vmem:[%s1 + $0x3e0] sm:$0xf]
  %v306 = vld [vmem:[%s1 + $0x3e4] sm:$0xf]
  %v307 = vld [vmem:[%s1 + $0x3e8] sm:$0xf]
  %v308 = vld [vmem:[%s1 + $0x3ec] sm:$0xf]
  %v309 = vld [vmem:[%s1 + $0x3f0] sm:$0xf]
  %v310 = vld [vmem:[%s1 + $0x3f4] sm:$0xf]
  %v311 = vld [vmem:[%s1 + $0x3f8] sm:$0xf]
  %v312 = vld [vmem:[%s1 + $0x3fc] sm:$0xf]
  %v313 = vld [vmem:[%s1 + $0x400] sm:$0xf]
  %v314 = vld [vmem:[%s1 + $0x404] sm:$0xf]
  %v315 = vld [vmem:[%s1 + $0x408] sm:$0xf]
  %v316 = vld [vmem:[%s1 + $0x40c] sm:$0xf]
  %v317 = vld [vmem:[%s1 + $0x410] sm:$0xf]
  %v318 = vld [vmem:[%s1 + $0x414] sm:$0xf]
  %v319 = vld [vmem:[%s1 + $0x418] sm:$0xf]
  %v320 = vld [vmem:[%s1 + $0x41c] sm:$0xf]
  %v321 = vld [vmem:[%s1 + $0x420] sm:$0xf]
  %v322 = vld [vmem:[%s1 + $0x424] sm:$0xf]
  %v323 = vld [vmem:[%s1 + $0x428] sm:$0xf]
  %v324 = vld [vmem:[%s1 + $0x42c] sm:$0xf]
  %v325 = vld [vmem:[%s1 + $0x430] sm:$0xf]
  %v326 = vld [vmem:[%s1 + $0x434] sm:$0xf]
  %v327 = vld [vmem:[%s1 + $0x438] sm:$0xf]
  %v328 = vld [vmem:[%s1 + $0x43c] sm:$0xf]
  %v329 = vld [vmem:[%s1 + $0x440] sm:$0xf]
  %v330 = vld [vmem:[%s1 + $0x444] sm:$0xf]
  %v331 = vld [vmem:[%s1 + $0x448] sm:$0xf]
  %v332 = vld [vmem:[%s1 + $0x44c] sm:$0xf]
  %v333 = vld [vmem:[%s1 + $0x450] sm:$0xf]
  %v334 = vld [vmem:[%s1 + $0x454] sm:$0xf]
  %v335 = vld [vmem:[%s1 + $0x458] sm:$0xf]
  %v336 = vld [vmem:[%s1 + $0x45c] sm:$0xf]
  %v337 = vld [vmem:[%s1 + $0x460] sm:$0xf]
  %v338 = vld [vmem:[%s1 + $0x464] sm:$0xf]
  %v339 = vld [vmem:[%s1 + $0x468] sm:$0xf]
  %v340 = vld [vmem:[%s1 + $0x46c] sm:$0xf]
  %v341 = vld [vmem:[%s1 + $0x470] sm:$0xf]
  %v342 = vld [vmem:[%s1 + $0x474] sm:$0xf]
  %v343 = vld [vmem:[%s1 + $0x478] sm:$0xf]
  %v344 = vld [vmem:[%s1 + $0x47c] sm:$0xf]
  %v345 = vld [vmem:[%s1 + $0x480] sm:$0xf]
  %v346 = vld [vmem:[%s1 + $0x484] sm:$0xf]
  %v347 = vld [vmem:[%s1 + $0x488] sm:$0xf]
  %v348 = vld [vmem:[%s1 + $0x48c] sm:$0xf]
  %v349 = vld [vmem:[%s1 + $0x490] sm:$0xf]
  %v350 = vld [vmem:[%s1 + $0x494] sm:$0xf]
  %v351 = vld [vmem:[%s1 + $0x498] sm:$0xf]
  %v352 = vld [vmem:[%s1 + $0x49c] sm:$0xf]
  %v353 = vld [vmem:[%s1 + $0x4a0] sm:$0xf]
  %v354 = vld [vmem:[%s1 + $0x4a4] sm:$0xf]
  %v355 = vld [vmem:[%s1 + $0x4a8] sm:$0xf]
  %v356 = vld [vmem:[%s1 + $0x4ac] sm:$0xf]
  %v357 = vld [vmem:[%s1 + $0x4b0] sm:$0xf]
  %v358 = vld [vmem:[%s1 + $0x4b4] sm:$0xf]
  %v359 = vld [vmem:[%s1 + $0x4b8] sm:$0xf]
  %v360 = vld [vmem:[%s1 + $0x4bc] sm:$0xf]
  %v361 = vld [vmem:[%s1 + $0x4c0] sm:$0xf]
  %v362 = vld [vmem:[%s1 + $0x4c4] sm:$0xf]
  %v363 = vld [vmem:[%s1 + $0x4c8] sm:$0xf]
  %v364 = vld [vmem:[%s1 + $0x4cc] sm:$0xf]
  %v365 = vld [vmem:[%s1 + $0x4d0] sm:$0xf]
  %v366 = vld [vmem:[%s1 + $0x4d4] sm:$0xf]
  %v367 = vld [vmem:[%s1 + $0x4d8] sm:$0xf]
  %v368 = vld [vmem:[%s1 + $0x4dc] sm:$0xf]
  %v369 = vld [vmem:[%s1 + $0x4e0] sm:$0xf]
  %v370 = vld [vmem:[%s1 + $0x4e4] sm:$0xf]
  %v371 = vld [vmem:[%s1 + $0x4e8] sm:$0xf]
  %v372 = vld [vmem:[%s1 + $0x4ec] sm:$0xf]
  %v373 = vld [vmem:[%s1 + $0x4f0] sm:$0xf]
  %v374 = vld [vmem:[%s1 + $0x4f4] sm:$0xf]
  %v375 = vld [vmem:[%s1 + $0x4f8] sm:$0xf]
  %v376 = vld [vmem:[%s1 + $0x4fc] sm:$0xf]
  %v377 = vld [vmem:[%s1 + $0x500] sm:$0xf]
  %v378 = vld [vmem:[%s1 + $0x504] sm:$0xf]
  %v379 = vld [vmem:[%s1 + $0x508] sm:$0xf]
  %v380 = vld [vmem:[%s1 + $0x50c] sm:$0xf]
  %v381 = vld [vmem:[%s1 + $0x510] sm:$0xf]
  %v382 = vld [vmem:[%s1 + $0x514] sm:$0xf]
  %v383 = vld [vmem:[%s1 + $0x518] sm:$0xf]
  %v384 = vld [vmem:[%s1 + $0x51c] sm:$0xf]
  %v385 = vld [vmem:[%s1 + $0x520] sm:$0xf]
  %v386 = vld [vmem:[%s1 + $0x524] sm:$0xf]
  %v387 = vld [vmem:[%s1 + $0x528] sm:$0xf]
  %v388 = vld [vmem:[%s1 + $0x52c] sm:$0xf]
  %v389 = vld [vmem:[%s1 + $0x530] sm:$0xf]
  %v390 = vld [vmem:[%s1 + $0x534] sm:$0xf]
  %v391 = vld [vmem:[%s1 + $0x538] sm:$0xf]
  %v392 = vld [vmem:[%s1 + $0x53c] sm:$0xf]
  %v393 = vld [vmem:[%s1 + $0x540] sm:$0xf]
  %v394 = vld [vmem:[%s1 + $0x544] sm:$0xf]
  %v395 = vld [vmem:[%s1 + $0x548] sm:$0xf]
  %v396 = vld [vmem:[%s1 + $0x54c] sm:$0xf]
  %v397 = vld [vmem:[%s1 + $0x550] sm:$0xf]
  %v398 = vld [vmem:[%s1 + $0x554] sm:$0xf]
  %v399 = vld [vmem:[%s1 + $0x558] sm:$0xf]
  %v400 = vld [vmem:[%s1 + $0x55c] sm:$0xf]
  %v401 = vld [vmem:[%s1 + $0x560] sm:$0xf]
  %v402 = vld [vmem:[%s1 + $0x564] sm:$0xf]
  %v403 = vld [vmem:[%s1 + $0x568] sm:$0xf]
  %v404 = vld [vmem:[%s1 + $0x56c] sm:$0xf]
  %v405 = vld [vmem:[%s1 + $0x570] sm:$0xf]
  %v406 = vld [vmem:[%s1 + $0x574] sm:$0xf]
  %v407 = vld [vmem:[%s1 + $0x578] sm:$0xf]
  %v408 = vld [vmem:[%s1 + $0x57c] sm:$0xf]
  %v409 = vld [vmem:[%s1 + $0x580] sm:$0xf]
  %v410 = vld [vmem:[%s1 + $0x584] sm:$0xf]
  %v411 = vld [vmem:[%s1 + $0x588] sm:$0xf]
  %v412 = vld [vmem:[%s1 + $0x58c] sm:$0xf]
  %v413 = vld [vmem:[%s1 + $0x590] sm:$0xf]
  %v414 = vld [vmem:[%s1 + $0x594] sm:$0xf]
  %v415 = vld [vmem:[%s1 + $0x598] sm:$0xf]
  %v416 = vld [vmem:[%s1 + $0x59c] sm:$0xf]
  %v417 = vld [vmem:[%s1 + $0x5a0] sm:$0xf]
  %v418 = vld [vmem:[%s1 + $0x5a4] sm:$0xf]
  %v419 = vld [vmem:[%s1 + $0x5a8] sm:$0xf]
  %v420 = vld [vmem:[%s1 + $0x5ac] sm:$0xf]
  %v421 = vld [vmem:[%s1 + $0x5b0] sm:$0xf]
  %v422 = vld [vmem:[%s1 + $0x5b4] sm:$0xf]
  %v423 = vld [vmem:[%s1 + $0x5b8] sm:$0xf]
  %v424 = vld [vmem:[%s1 + $0x5bc] sm:$0xf]
  %v425 = vld [vmem:[%s1 + $0x5c0] sm:$0xf]
  %v426 = vld [vmem:[%s1 + $0x5c4] sm:$0xf]
  %v427 = vld [vmem:[%s1 + $0x5c8] sm:$0xf]
  %v428 = vld [vmem:[%s1 + $0x5cc] sm:$0xf]
  %v429 = vld [vmem:[%s1 + $0x5d0] sm:$0xf]
  %v430 = vld [vmem:[%s1 + $0x5d4] sm:$0xf]
  %v431 = vld [vmem:[%s1 + $0x5d8] sm:$0xf]
  %v432 = vld [vmem:[%s1 + $0x5dc] sm:$0xf]
  %v433 = vld [vmem:[%s1 + $0x5e0] sm:$0xf]
  %v434 = vld [vmem:[%s1 + $0x5e4] sm:$0xf]
  %v435 = vld [vmem:[%s1 + $0x5e8] sm:$0xf]
  %v436 = vld [vmem:[%s1 + $0x5ec] sm:$0xf]
  %v437 = vld [vmem:[%s1 + $0x5f0] sm:$0xf]
  %v438 = vld [vmem:[%s1 + $0x5f4] sm:$0xf]
  %v439 = vld [vmem:[%s1 + $0x5f8] sm:$0xf]
  %v440 = vld [vmem:[%s1 + $0x5fc] sm:$0xf]
  %v441 = vld [vmem:[%s1 + $0x600] sm:$0xf]
  %v442 = vld [vmem:[%s1 + $0x604] sm:$0xf]
  %v443 = vld [vmem:[%s1 + $0x608] sm:$0xf]
  %v444 = vld [vmem:[%s1 + $0x60c] sm:$0xf]
  %v445 = vld [vmem:[%s1 + $0x610] sm:$0xf]
  %v446 = vld [vmem:[%s1 + $0x614] sm:$0xf]
  %v447 = vld [vmem:[%s1 + $0x618] sm:$0xf]
  %v448 = vld [vmem:[%s1 + $0x61c] sm:$0xf]
  %v449 = vld [vmem:[%s1 + $0x620] sm:$0xf]
  %v450 = vld [vmem:[%s1 + $0x624] sm:$0xf]
  %v451 = vld [vmem:[%s1 + $0x628] sm:$0xf]
  %v452 = vld [vmem:[%s1 + $0x62c] sm:$0xf]
  %v453 = vld [vmem:[%s1 + $0x630] sm:$0xf]
  %v454 = vld [vmem:[%s1 + $0x634] sm:$0xf]
  %v455 = vld [vmem:[%s1 + $0x638] sm:$0xf]
  %v456 = vld [vmem:[%s1 + $0x63c] sm:$0xf]
  %v457 = vld [vmem:[%s1 + $0x640] sm:$0xf]
  %v458 = vld [vmem:[%s1 + $0x644] sm:$0xf]
  %v459 = vld [vmem:[%s1 + $0x648] sm:$0xf]
  %v460 = vld [vmem:[%s1 + $0x64c] sm:$0xf]
  %v461 = vld [vmem:[%s1 + $0x650] sm:$0xf]
  %v462 = vld [vmem:[%s1 + $0x654] sm:$0xf]
  %v463 = vld [vmem:[%s1 + $0x658] sm:$0xf]
  %v464 = vld [vmem:[%s1 + $0x65c] sm:$0xf]
  %v465 = vld [vmem:[%s1 + $0x660] sm:$0xf]
  %v466 = vld [vmem:[%s1 + $0x664] sm:$0xf]
  %v467 = vld [vmem:[%s1 + $0x668] sm:$0xf]
  %v468 = vld [vmem:[%s1 + $0x66c] sm:$0xf]
  %v469 = vld [vmem:[%s1 + $0x670] sm:$0xf]
  %v470 = vld [vmem:[%s1 + $0x674] sm:$0xf]
  %v471 = vld [vmem:[%s1 + $0x678] sm:$0xf]
  %v472 = vld [vmem:[%s1 + $0x67c] sm:$0xf]
  %v473 = vld [vmem:[%s1 + $0x680] sm:$0xf]
  %v474 = vld [vmem:[%s1 + $0x684] sm:$0xf]
  %v475 = vld [vmem:[%s1 + $0x688] sm:$0xf]
  %v476 = vld [vmem:[%s1 + $0x68c] sm:$0xf]
  %v477 = vld [vmem:[%s1 + $0x690] sm:$0xf]
  %v478 = vld [vmem:[%s1 + $0x694] sm:$0xf]
  %v479 = vld [vmem:[%s1 + $0x698] sm:$0xf]
  %v480 = vld [vmem:[%s1 + $0x69c] sm:$0xf]
  %v481 = vld [vmem:[%s1 + $0x6a0] sm:$0xf]
  %v482 = vld [vmem:[%s1 + $0x6a4] sm:$0xf]
  %v483 = vld [vmem:[%s1 + $0x6a8] sm:$0xf]
  %v484 = vld [vmem:[%s1 + $0x6ac] sm:$0xf]
  %v485 = vld [vmem:[%s1 + $0x6b0] sm:$0xf]
  %v486 = vld [vmem:[%s1 + $0x6b4] sm:$0xf]
  %v487 = vld [vmem:[%s1 + $0x6b8] sm:$0xf]
  %v488 = vld [vmem:[%s1 + $0x6bc] sm:$0xf]
  %v489 = vld [vmem:[%s2] sm:$0x1]
  %v490 = vlaneseq
  %v491 = vshrl.u32 %v490, 7
  %v492 = vsub.s32 0, %v491
  %v493 = vrot.slane %v489, %v492
  %v536 = vunpack.c.l.b16 %v15
  %v537 = vunpack.c.h.b16 %v15
  %v538 = vunpack.c.l.b16 %v16
  %v539 = vunpack.c.h.b16 %v16
  %v540 = vunpack.c.l.b16 %v17
  %v541 = vunpack.c.h.b16 %v17
  %v542 = vunpack.c.l.b16 %v18
  %v543 = vunpack.c.h.b16 %v18
  %v544 = vunpack.c.l.b16 %v19
  %v545 = vunpack.c.h.b16 %v19
  %v546 = vunpack.c.l.b16 %v20
  %v547 = vunpack.c.h.b16 %v20
  %v548 = vunpack.c.l.b16 %v21
  %v549 = vunpack.c.h.b16 %v21
  %v550 = vunpack.c.l.b16 %v22
  %v551 = vunpack.c.h.b16 %v22
  %v552 = vunpack.c.l.b16 %v23
  %v553 = vunpack.c.h.b16 %v23
  %v554 = vunpack.c.l.b16 %v24
  %v555 = vunpack.c.h.b16 %v24
  %v556 = vunpack.c.l.b16 %v25
  %v557 = vunpack.c.h.b16 %v25
  %v558 = vunpack.c.l.b16 %v26
  %v559 = vunpack.c.h.b16 %v26
  %v560 = vunpack.c.l.b16 %v27
  %v561 = vunpack.c.h.b16 %v27
  %v562 = vunpack.c.l.b16 %v28
  %v563 = vunpack.c.l.b16 %v29
  %v564 = vunpack.c.h.b16 %v29
  %v565 = vunpack.c.l.b16 %v30
  %v566 = vunpack.c.h.b16 %v30
  %v567 = vunpack.c.l.b16 %v31
  %v568 = vunpack.c.h.b16 %v31
  %v569 = vunpack.c.l.b16 %v32
  %v570 = vunpack.c.h.b16 %v32
  %v571 = vunpack.c.l.b16 %v33
  %v572 = vunpack.c.h.b16 %v33
  %v573 = vunpack.c.l.b16 %v34
  %v574 = vunpack.c.h.b16 %v34
  %v575 = vunpack.c.l.b16 %v35
  %v576 = vunpack.c.h.b16 %v35
  %v577 = vunpack.c.l.b16 %v36
  %v578 = vunpack.c.h.b16 %v36
  %v579 = vunpack.c.l.b16 %v37
  %v580 = vunpack.c.h.b16 %v37
  %v581 = vunpack.c.l.b16 %v38
  %v582 = vunpack.c.h.b16 %v38
  %v583 = vunpack.c.l.b16 %v39
  %v584 = vunpack.c.h.b16 %v39
  %v585 = vunpack.c.l.b16 %v40
  %v586 = vunpack.c.h.b16 %v40
  %v587 = vunpack.c.l.b16 %v41
  %v588 = vunpack.c.h.b16 %v41
  %v589 = vunpack.c.l.b16 %v42
  %v590 = vunpack.c.l.b16 %v43
  %v591 = vunpack.c.h.b16 %v43
  %v592 = vunpack.c.l.b16 %v44
  %v593 = vunpack.c.h.b16 %v44
  %v594 = vunpack.c.l.b16 %v45
  %v595 = vunpack.c.h.b16 %v45
  %v596 = vunpack.c.l.b16 %v46
  %v597 = vunpack.c.h.b16 %v46
  %v598 = vunpack.c.l.b16 %v47
  %v599 = vunpack.c.h.b16 %v47
  %v600 = vunpack.c.l.b16 %v48
  %v601 = vunpack.c.h.b16 %v48
  %v602 = vunpack.c.l.b16 %v49
  %v603 = vunpack.c.h.b16 %v49
  %v604 = vunpack.c.l.b16 %v50
  %v605 = vunpack.c.h.b16 %v50
  %v606 = vunpack.c.l.b16 %v51
  %v607 = vunpack.c.h.b16 %v51
  %v608 = vunpack.c.l.b16 %v52
  %v609 = vunpack.c.h.b16 %v52
  %v610 = vunpack.c.l.b16 %v53
  %v611 = vunpack.c.h.b16 %v53
  %v612 = vunpack.c.l.b16 %v54
  %v613 = vunpack.c.h.b16 %v54
  %v614 = vunpack.c.l.b16 %v55
  %v615 = vunpack.c.h.b16 %v55
  %v616 = vunpack.c.l.b16 %v56
  %v617 = vpack.c.b16 %v563, %v536
  %v618 = vpack.c.b16 %v564, %v537
  %v619 = vpack.c.b16 %v565, %v538
  %v620 = vpack.c.b16 %v566, %v539
  %v621 = vpack.c.b16 %v567, %v540
  %v622 = vpack.c.b16 %v568, %v541
  %v623 = vpack.c.b16 %v569, %v542
  %v624 = vpack.c.b16 %v570, %v543
  %v625 = vpack.c.b16 %v571, %v544
  %v626 = vpack.c.b16 %v572, %v545
  %v627 = vpack.c.b16 %v573, %v546
  %v628 = vpack.c.b16 %v574, %v547
  %v629 = vpack.c.b16 %v575, %v548
  %v630 = vpack.c.b16 %v576, %v549
  %v631 = vpack.c.b16 %v577, %v550
  %v632 = vpack.c.b16 %v578, %v551
  %v633 = vpack.c.b16 %v579, %v552
  %v634 = vpack.c.b16 %v580, %v553
  %v635 = vpack.c.b16 %v581, %v554
  %v636 = vpack.c.b16 %v582, %v555
  %v637 = vpack.c.b16 %v583, %v556
  %v638 = vpack.c.b16 %v584, %v557
  %v639 = vpack.c.b16 %v585, %v558
  %v640 = vpack.c.b16 %v586, %v559
  %v641 = vpack.c.b16 %v587, %v560
  %v642 = vpack.c.b16 %v588, %v561
  %v643 = vpack.c.b16 %v589, %v562
  %v644 = vpack.c.b16 %v590, %v590
  %v645 = vpack.c.b16 %v591, %v591
  %v646 = vpack.c.b16 %v592, %v592
  %v647 = vpack.c.b16 %v593, %v593
  %v648 = vpack.c.b16 %v594, %v594
  %v649 = vpack.c.b16 %v595, %v595
  %v650 = vpack.c.b16 %v596, %v596
  %v651 = vpack.c.b16 %v597, %v597
  %v652 = vpack.c.b16 %v598, %v598
  %v653 = vpack.c.b16 %v599, %v599
  %v654 = vpack.c.b16 %v600, %v600
  %v655 = vpack.c.b16 %v601, %v601
  %v656 = vpack.c.b16 %v602, %v602
  %v657 = vpack.c.b16 %v603, %v603
  %v658 = vpack.c.b16 %v604, %v604
  %v659 = vpack.c.b16 %v605, %v605
  %v660 = vpack.c.b16 %v606, %v606
  %v661 = vpack.c.b16 %v607, %v607
  %v662 = vpack.c.b16 %v608, %v608
  %v663 = vpack.c.b16 %v609, %v609
  %v664 = vpack.c.b16 %v610, %v610
  %v665 = vpack.c.b16 %v611, %v611
  %v666 = vpack.c.b16 %v612, %v612
  %v667 = vpack.c.b16 %v613, %v613
  %v668 = vpack.c.b16 %v614, %v614
  %v669 = vpack.c.b16 %v615, %v615
  %v670 = vpack.c.b16 %v616, %v616
  %v1157 = vunpack.c.l.b16 %v57
  %v1158 = vunpack.c.l.b16 %v58
  %v1159 = vunpack.c.l.b16 %v59
  %v1160 = vunpack.c.l.b16 %v60
  %v1161 = vunpack.c.l.b16 %v61
  %v1162 = vunpack.c.l.b16 %v62
  %v1163 = vunpack.c.l.b16 %v63
  %v1164 = vunpack.c.l.b16 %v64
  %v1165 = vunpack.c.l.b16 %v65
  %v1166 = vunpack.c.l.b16 %v66
  %v1167 = vunpack.c.l.b16 %v67
  %v1168 = vunpack.c.l.b16 %v68
  %v1169 = vunpack.c.l.b16 %v69
  %v1170 = vunpack.c.l.b16 %v70
  %v1171 = vunpack.c.l.b16 %v71
  %v1172 = vunpack.c.l.b16 %v72
  %v1173 = vunpack.c.l.b16 %v73
  %v1174 = vunpack.c.l.b16 %v74
  %v1175 = vunpack.c.l.b16 %v75
  %v1176 = vunpack.c.l.b16 %v76
  %v1177 = vunpack.c.l.b16 %v77
  %v1178 = vunpack.c.l.b16 %v78
  %v1179 = vunpack.c.l.b16 %v79
  %v1180 = vunpack.c.l.b16 %v80
  %v1181 = vunpack.c.l.b16 %v81
  %v1182 = vunpack.c.l.b16 %v82
  %v1183 = vunpack.c.l.b16 %v83
  %v1184 = vunpack.c.l.b16 %v84
  %v1185 = vunpack.c.l.b16 %v85
  %v1186 = vunpack.c.l.b16 %v86
  %v1187 = vunpack.c.l.b16 %v87
  %v1188 = vunpack.c.l.b16 %v88
  %v1189 = vunpack.c.l.b16 %v89
  %v1190 = vunpack.c.l.b16 %v90
  %v1191 = vunpack.c.l.b16 %v91
  %v1192 = vunpack.c.l.b16 %v92
  %v1193 = vunpack.c.l.b16 %v93
  %v1194 = vunpack.c.l.b16 %v94
  %v1195 = vunpack.c.l.b16 %v95
  %v1196 = vunpack.c.l.b16 %v96
  %v1197 = vunpack.c.l.b16 %v97
  %v1198 = vunpack.c.l.b16 %v98
  %v1199 = vunpack.c.l.b16 %v99
  %v1200 = vunpack.c.l.b16 %v100
  %v1201 = vunpack.c.l.b16 %v101
  %v1202 = vunpack.c.l.b16 %v102
  %v1203 = vunpack.c.l.b16 %v103
  %v1204 = vunpack.c.l.b16 %v104
  %v1205 = vunpack.c.l.b16 %v105
  %v1206 = vunpack.c.l.b16 %v106
  %v1207 = vunpack.c.l.b16 %v107
  %v1208 = vunpack.c.l.b16 %v108
  %v1209 = vunpack.c.l.b16 %v109
  %v1210 = vunpack.c.l.b16 %v110
  %v1211 = vunpack.c.l.b16 %v111
  %v1212 = vunpack.c.l.b16 %v112
  %v1213 = vunpack.c.l.b16 %v113
  %v1214 = vunpack.c.l.b16 %v114
  %v1215 = vunpack.c.l.b16 %v115
  %v1216 = vunpack.c.l.b16 %v116
  %v1217 = vunpack.c.l.b16 %v117
  %v1218 = vunpack.c.l.b16 %v118
  %v1219 = vunpack.c.l.b16 %v119
  %v1220 = vunpack.c.l.b16 %v120
  %v1221 = vunpack.c.l.b16 %v121
  %v1222 = vunpack.c.l.b16 %v122
  %v1223 = vunpack.c.l.b16 %v123
  %v1224 = vunpack.c.l.b16 %v124
  %v1225 = vunpack.c.l.b16 %v125
  %v1226 = vunpack.c.l.b16 %v126
  %v1227 = vunpack.c.l.b16 %v127
  %v1228 = vunpack.c.l.b16 %v128
  %v1229 = vunpack.c.l.b16 %v129
  %v1230 = vunpack.c.l.b16 %v130
  %v1231 = vunpack.c.l.b16 %v131
  %v1232 = vunpack.c.l.b16 %v132
  %v1233 = vunpack.c.l.b16 %v133
  %v1234 = vunpack.c.l.b16 %v134
  %v1235 = vunpack.c.l.b16 %v135
  %v1236 = vunpack.c.l.b16 %v136
  %v1237 = vunpack.c.l.b16 %v137
  %v1238 = vunpack.c.l.b16 %v138
  %v1239 = vunpack.c.l.b16 %v139
  %v1240 = vunpack.c.l.b16 %v140
  %v1241 = vunpack.c.l.b16 %v141
  %v1242 = vunpack.c.l.b16 %v142
  %v1243 = vunpack.c.l.b16 %v143
  %v1244 = vunpack.c.l.b16 %v144
  %v1245 = vunpack.c.l.b16 %v145
  %v1246 = vunpack.c.l.b16 %v146
  %v1247 = vunpack.c.l.b16 %v147
  %v1248 = vunpack.c.l.b16 %v148
  %v1249 = vunpack.c.l.b16 %v149
  %v1250 = vunpack.c.l.b16 %v150
  %v1251 = vunpack.c.l.b16 %v151
  %v1252 = vunpack.c.l.b16 %v152
  %v1253 = vunpack.c.l.b16 %v153
  %v1254 = vunpack.c.l.b16 %v154
  %v1255 = vunpack.c.l.b16 %v155
  %v1256 = vunpack.c.l.b16 %v156
  %v1257 = vunpack.c.l.b16 %v157
  %v1258 = vunpack.c.l.b16 %v158
  %v1259 = vunpack.c.l.b16 %v159
  %v1260 = vunpack.c.l.b16 %v160
  %v1261 = vunpack.c.l.b16 %v161
  %v1262 = vunpack.c.l.b16 %v162
  %v1263 = vunpack.c.l.b16 %v163
  %v1264 = vunpack.c.l.b16 %v164
  %v1265 = vunpack.c.l.b16 %v165
  %v1266 = vunpack.c.l.b16 %v166
  %v1267 = vunpack.c.l.b16 %v167
  %v1268 = vunpack.c.l.b16 %v168
  %v1269 = vunpack.c.l.b16 %v169
  %v1270 = vunpack.c.l.b16 %v170
  %v1271 = vunpack.c.l.b16 %v171
  %v1272 = vunpack.c.l.b16 %v172
  %v1273 = vunpack.c.l.b16 %v173
  %v1274 = vunpack.c.l.b16 %v174
  %v1275 = vunpack.c.l.b16 %v175
  %v1276 = vunpack.c.l.b16 %v176
  %v1277 = vunpack.c.l.b16 %v177
  %v1278 = vunpack.c.l.b16 %v178
  %v1279 = vunpack.c.l.b16 %v179
  %v1280 = vunpack.c.l.b16 %v180
  %v1281 = vunpack.c.l.b16 %v181
  %v1282 = vunpack.c.l.b16 %v182
  %v1283 = vunpack.c.l.b16 %v183
  %v1284 = vunpack.c.l.b16 %v184
  %v1285 = vunpack.c.l.b16 %v185
  %v1286 = vunpack.c.l.b16 %v186
  %v1287 = vunpack.c.l.b16 %v187
  %v1288 = vunpack.c.l.b16 %v188
  %v1289 = vunpack.c.l.b16 %v189
  %v1290 = vunpack.c.l.b16 %v190
  %v1291 = vunpack.c.l.b16 %v191
  %v1292 = vunpack.c.l.b16 %v192
  %v1293 = vunpack.c.l.b16 %v193
  %v1294 = vunpack.c.l.b16 %v194
  %v1295 = vunpack.c.l.b16 %v195
  %v1296 = vunpack.c.l.b16 %v196
  %v1297 = vunpack.c.l.b16 %v197
  %v1298 = vunpack.c.l.b16 %v198
  %v1299 = vunpack.c.l.b16 %v199
  %v1300 = vunpack.c.l.b16 %v200
  %v1301 = vunpack.c.l.b16 %v201
  %v1302 = vunpack.c.l.b16 %v202
  %v1303 = vunpack.c.l.b16 %v203
  %v1304 = vunpack.c.l.b16 %v204
  %v1305 = vunpack.c.l.b16 %v205
  %v1306 = vunpack.c.l.b16 %v206
  %v1307 = vunpack.c.l.b16 %v207
  %v1308 = vunpack.c.l.b16 %v208
  %v1309 = vunpack.c.l.b16 %v209
  %v1310 = vunpack.c.l.b16 %v210
  %v1311 = vunpack.c.l.b16 %v211
  %v1312 = vunpack.c.l.b16 %v212
  %v1313 = vunpack.c.l.b16 %v213
  %v1314 = vunpack.c.l.b16 %v214
  %v1315 = vunpack.c.l.b16 %v215
  %v1316 = vunpack.c.l.b16 %v216
  %v1317 = vunpack.c.l.b16 %v217
  %v1318 = vunpack.c.l.b16 %v218
  %v1319 = vunpack.c.l.b16 %v219
  %v1320 = vunpack.c.l.b16 %v220
  %v1321 = vunpack.c.l.b16 %v221
  %v1322 = vunpack.c.l.b16 %v222
  %v1323 = vunpack.c.l.b16 %v223
  %v1324 = vunpack.c.l.b16 %v224
  %v1325 = vunpack.c.l.b16 %v225
  %v1326 = vunpack.c.l.b16 %v226
  %v1327 = vunpack.c.l.b16 %v227
  %v1328 = vunpack.c.l.b16 %v228
  %v1329 = vunpack.c.l.b16 %v229
  %v1330 = vunpack.c.l.b16 %v230
  %v1331 = vunpack.c.l.b16 %v231
  %v1332 = vunpack.c.l.b16 %v232
  %v1333 = vunpack.c.l.b16 %v233
  %v1334 = vunpack.c.l.b16 %v234
  %v1335 = vunpack.c.l.b16 %v235
  %v1336 = vunpack.c.l.b16 %v236
  %v1337 = vunpack.c.l.b16 %v237
  %v1338 = vunpack.c.l.b16 %v238
  %v1339 = vunpack.c.l.b16 %v239
  %v1340 = vunpack.c.l.b16 %v240
  %v1341 = vunpack.c.l.b16 %v241
  %v1342 = vunpack.c.l.b16 %v242
  %v1343 = vunpack.c.l.b16 %v243
  %v1344 = vunpack.c.l.b16 %v244
  %v1345 = vunpack.c.l.b16 %v245
  %v1346 = vunpack.c.l.b16 %v246
  %v1347 = vunpack.c.l.b16 %v247
  %v1348 = vunpack.c.l.b16 %v248
  %v1349 = vunpack.c.l.b16 %v249
  %v1350 = vunpack.c.l.b16 %v250
  %v1351 = vunpack.c.l.b16 %v251
  %v1352 = vunpack.c.l.b16 %v252
  %v1353 = vunpack.c.l.b16 %v253
  %v1354 = vunpack.c.l.b16 %v254
  %v1355 = vunpack.c.l.b16 %v255
  %v1356 = vunpack.c.l.b16 %v256
  %v1357 = vunpack.c.l.b16 %v257
  %v1358 = vunpack.c.l.b16 %v258
  %v1359 = vunpack.c.l.b16 %v259
  %v1360 = vunpack.c.l.b16 %v260
  %v1361 = vunpack.c.l.b16 %v261
  %v1362 = vunpack.c.l.b16 %v262
  %v1363 = vunpack.c.l.b16 %v263
  %v1364 = vunpack.c.l.b16 %v264
  %v1365 = vunpack.c.l.b16 %v265
  %v1366 = vunpack.c.l.b16 %v266
  %v1367 = vunpack.c.l.b16 %v267
  %v1368 = vunpack.c.l.b16 %v268
  %v1369 = vunpack.c.l.b16 %v269
  %v1370 = vunpack.c.l.b16 %v270
  %v1371 = vunpack.c.l.b16 %v271
  %v1372 = vunpack.c.l.b16 %v272
  %v1373 = vunpack.c.l.b16 %v273
  %v1374 = vunpack.c.l.b16 %v274
  %v1375 = vunpack.c.l.b16 %v275
  %v1376 = vunpack.c.l.b16 %v276
  %v1377 = vunpack.c.l.b16 %v277
  %v1378 = vunpack.c.l.b16 %v278
  %v1379 = vunpack.c.l.b16 %v279
  %v1380 = vunpack.c.l.b16 %v280
  %v1381 = vunpack.c.l.b16 %v281
  %v1382 = vunpack.c.l.b16 %v282
  %v1383 = vunpack.c.l.b16 %v283
  %v1384 = vunpack.c.l.b16 %v284
  %v1385 = vunpack.c.l.b16 %v285
  %v1386 = vunpack.c.l.b16 %v286
  %v1387 = vunpack.c.l.b16 %v287
  %v1388 = vunpack.c.l.b16 %v288
  %v1389 = vunpack.c.l.b16 %v289
  %v1390 = vunpack.c.l.b16 %v290
  %v1391 = vunpack.c.l.b16 %v291
  %v1392 = vunpack.c.l.b16 %v292
  %v1393 = vunpack.c.l.b16 %v293
  %v1394 = vunpack.c.l.b16 %v294
  %v1395 = vunpack.c.l.b16 %v295
  %v1396 = vunpack.c.l.b16 %v296
  %v1397 = vunpack.c.l.b16 %v297
  %v1398 = vunpack.c.l.b16 %v298
  %v1399 = vunpack.c.l.b16 %v299
  %v1400 = vunpack.c.l.b16 %v300
  %v1401 = vunpack.c.l.b16 %v301
  %v1402 = vunpack.c.l.b16 %v302
  %v1403 = vunpack.c.l.b16 %v303
  %v1404 = vunpack.c.l.b16 %v304
  %v1405 = vunpack.c.l.b16 %v305
  %v1406 = vunpack.c.l.b16 %v306
  %v1407 = vunpack.c.l.b16 %v307
  %v1408 = vunpack.c.l.b16 %v308
  %v1409 = vunpack.c.l.b16 %v309
  %v1410 = vunpack.c.l.b16 %v310
  %v1411 = vunpack.c.l.b16 %v311
  %v1412 = vunpack.c.l.b16 %v312
  %v1413 = vunpack.c.l.b16 %v313
  %v1414 = vunpack.c.l.b16 %v314
  %v1415 = vunpack.c.l.b16 %v315
  %v1416 = vunpack.c.l.b16 %v316
  %v1417 = vunpack.c.l.b16 %v317
  %v1418 = vunpack.c.l.b16 %v318
  %v1419 = vunpack.c.l.b16 %v319
  %v1420 = vunpack.c.l.b16 %v320
  %v1421 = vunpack.c.l.b16 %v321
  %v1422 = vunpack.c.l.b16 %v322
  %v1423 = vunpack.c.l.b16 %v323
  %v1424 = vunpack.c.l.b16 %v324
  %v1425 = vunpack.c.l.b16 %v325
  %v1426 = vunpack.c.l.b16 %v326
  %v1427 = vunpack.c.l.b16 %v327
  %v1428 = vunpack.c.l.b16 %v328
  %v1429 = vunpack.c.l.b16 %v329
  %v1430 = vunpack.c.l.b16 %v330
  %v1431 = vunpack.c.l.b16 %v331
  %v1432 = vunpack.c.l.b16 %v332
  %v1433 = vunpack.c.l.b16 %v333
  %v1434 = vunpack.c.l.b16 %v334
  %v1435 = vunpack.c.l.b16 %v335
  %v1436 = vunpack.c.l.b16 %v336
  %v1437 = vunpack.c.l.b16 %v337
  %v1438 = vunpack.c.l.b16 %v338
  %v1439 = vunpack.c.l.b16 %v339
  %v1440 = vunpack.c.l.b16 %v340
  %v1441 = vunpack.c.l.b16 %v341
  %v1442 = vunpack.c.l.b16 %v342
  %v1443 = vunpack.c.l.b16 %v343
  %v1444 = vunpack.c.l.b16 %v344
  %v1445 = vunpack.c.l.b16 %v345
  %v1446 = vunpack.c.l.b16 %v346
  %v1447 = vunpack.c.l.b16 %v347
  %v1448 = vunpack.c.l.b16 %v348
  %v1449 = vunpack.c.l.b16 %v349
  %v1450 = vunpack.c.l.b16 %v350
  %v1451 = vunpack.c.l.b16 %v351
  %v1452 = vunpack.c.l.b16 %v352
  %v1453 = vunpack.c.l.b16 %v353
  %v1454 = vunpack.c.l.b16 %v354
  %v1455 = vunpack.c.l.b16 %v355
  %v1456 = vunpack.c.l.b16 %v356
  %v1457 = vunpack.c.l.b16 %v357
  %v1458 = vunpack.c.l.b16 %v358
  %v1459 = vunpack.c.l.b16 %v359
  %v1460 = vunpack.c.l.b16 %v360
  %v1461 = vunpack.c.l.b16 %v361
  %v1462 = vunpack.c.l.b16 %v362
  %v1463 = vunpack.c.l.b16 %v363
  %v1464 = vunpack.c.l.b16 %v364
  %v1465 = vunpack.c.l.b16 %v365
  %v1466 = vunpack.c.l.b16 %v366
  %v1467 = vunpack.c.l.b16 %v367
  %v1468 = vunpack.c.l.b16 %v368
  %v1469 = vunpack.c.l.b16 %v369
  %v1470 = vunpack.c.l.b16 %v370
  %v1471 = vunpack.c.l.b16 %v371
  %v1472 = vunpack.c.l.b16 %v372
  %v1473 = vunpack.c.l.b16 %v373
  %v1474 = vunpack.c.l.b16 %v374
  %v1475 = vunpack.c.l.b16 %v375
  %v1476 = vunpack.c.l.b16 %v376
  %v1477 = vunpack.c.l.b16 %v377
  %v1478 = vunpack.c.l.b16 %v378
  %v1479 = vunpack.c.l.b16 %v379
  %v1480 = vunpack.c.l.b16 %v380
  %v1481 = vunpack.c.l.b16 %v381
  %v1482 = vunpack.c.l.b16 %v382
  %v1483 = vunpack.c.l.b16 %v383
  %v1484 = vunpack.c.l.b16 %v384
  %v1485 = vunpack.c.l.b16 %v385
  %v1486 = vunpack.c.l.b16 %v386
  %v1487 = vunpack.c.l.b16 %v387
  %v1488 = vunpack.c.l.b16 %v388
  %v1489 = vunpack.c.l.b16 %v389
  %v1490 = vunpack.c.l.b16 %v390
  %v1491 = vunpack.c.l.b16 %v391
  %v1492 = vunpack.c.l.b16 %v392
  %v1493 = vunpack.c.l.b16 %v393
  %v1494 = vunpack.c.l.b16 %v394
  %v1495 = vunpack.c.l.b16 %v395
  %v1496 = vunpack.c.l.b16 %v396
  %v1497 = vunpack.c.l.b16 %v397
  %v1498 = vunpack.c.l.b16 %v398
  %v1499 = vunpack.c.l.b16 %v399
  %v1500 = vunpack.c.l.b16 %v400
  %v1501 = vunpack.c.l.b16 %v401
  %v1502 = vunpack.c.l.b16 %v402
  %v1503 = vunpack.c.l.b16 %v403
  %v1504 = vunpack.c.l.b16 %v404
  %v1505 = vunpack.c.l.b16 %v405
  %v1506 = vunpack.c.l.b16 %v406
  %v1507 = vunpack.c.l.b16 %v407
  %v1508 = vunpack.c.l.b16 %v408
  %v1509 = vunpack.c.l.b16 %v409
  %v1510 = vunpack.c.l.b16 %v410
  %v1511 = vunpack.c.l.b16 %v411
  %v1512 = vunpack.c.l.b16 %v412
  %v1513 = vunpack.c.l.b16 %v413
  %v1514 = vunpack.c.l.b16 %v414
  %v1515 = vunpack.c.l.b16 %v415
  %v1516 = vunpack.c.l.b16 %v416
  %v1517 = vunpack.c.l.b16 %v417
  %v1518 = vunpack.c.l.b16 %v418
  %v1519 = vunpack.c.l.b16 %v419
  %v1520 = vunpack.c.l.b16 %v420
  %v1521 = vunpack.c.l.b16 %v421
  %v1522 = vunpack.c.l.b16 %v422
  %v1523 = vunpack.c.l.b16 %v423
  %v1524 = vunpack.c.l.b16 %v424
  %v1525 = vunpack.c.l.b16 %v425
  %v1526 = vunpack.c.l.b16 %v426
  %v1527 = vunpack.c.l.b16 %v427
  %v1528 = vunpack.c.l.b16 %v428
  %v1529 = vunpack.c.l.b16 %v429
  %v1530 = vunpack.c.l.b16 %v430
  %v1531 = vunpack.c.l.b16 %v431
  %v1532 = vunpack.c.l.b16 %v432
  %v1533 = vunpack.c.l.b16 %v433
  %v1534 = vunpack.c.l.b16 %v434
  %v1535 = vunpack.c.l.b16 %v435
  %v1536 = vunpack.c.l.b16 %v436
  %v1537 = vunpack.c.l.b16 %v437
  %v1538 = vunpack.c.l.b16 %v438
  %v1539 = vunpack.c.l.b16 %v439
  %v1540 = vunpack.c.l.b16 %v440
  %v1541 = vunpack.c.l.b16 %v441
  %v1542 = vunpack.c.l.b16 %v442
  %v1543 = vunpack.c.l.b16 %v443
  %v1544 = vunpack.c.l.b16 %v444
  %v1545 = vunpack.c.l.b16 %v445
  %v1546 = vunpack.c.l.b16 %v446
  %v1547 = vunpack.c.l.b16 %v447
  %v1548 = vunpack.c.l.b16 %v448
  %v1549 = vunpack.c.l.b16 %v449
  %v1550 = vunpack.c.l.b16 %v450
  %v1551 = vunpack.c.l.b16 %v451
  %v1552 = vunpack.c.l.b16 %v452
  %v1553 = vunpack.c.l.b16 %v453
  %v1554 = vunpack.c.l.b16 %v454
  %v1555 = vunpack.c.l.b16 %v455
  %v1556 = vunpack.c.l.b16 %v456
  %v1557 = vunpack.c.l.b16 %v457
  %v1558 = vunpack.c.l.b16 %v458
  %v1559 = vunpack.c.l.b16 %v459
  %v1560 = vunpack.c.l.b16 %v460
  %v1561 = vunpack.c.l.b16 %v461
  %v1562 = vunpack.c.l.b16 %v462
  %v1563 = vunpack.c.l.b16 %v463
  %v1564 = vunpack.c.l.b16 %v464
  %v1565 = vunpack.c.l.b16 %v465
  %v1566 = vunpack.c.l.b16 %v466
  %v1567 = vunpack.c.l.b16 %v467
  %v1568 = vunpack.c.l.b16 %v468
  %v1569 = vunpack.c.l.b16 %v469
  %v1570 = vunpack.c.l.b16 %v470
  %v1571 = vunpack.c.l.b16 %v471
  %v1572 = vunpack.c.l.b16 %v472
  %v1573 = vunpack.c.l.b16 %v473
  %v1574 = vunpack.c.l.b16 %v474
  %v1575 = vunpack.c.l.b16 %v475
  %v1576 = vunpack.c.l.b16 %v476
  %v1577 = vunpack.c.l.b16 %v477
  %v1578 = vunpack.c.l.b16 %v478
  %v1579 = vunpack.c.l.b16 %v479
  %v1580 = vunpack.c.l.b16 %v480
  %v1581 = vunpack.c.l.b16 %v481
  %v1582 = vunpack.c.l.b16 %v482
  %v1583 = vunpack.c.l.b16 %v483
  %v1584 = vunpack.c.l.b16 %v484
  %v1585 = vunpack.c.l.b16 %v485
  %v1586 = vunpack.c.l.b16 %v486
  %v1587 = vunpack.c.l.b16 %v487
  %v1588 = vunpack.c.l.b16 %v488
  %v1589 = vpack.c.b16 %v1158, %v1157
  %v1590 = vpack.c.b16 %v1160, %v1159
  %v1591 = vpack.c.b16 %v1162, %v1161
  %v1592 = vpack.c.b16 %v1164, %v1163
  %v1593 = vpack.c.b16 %v1166, %v1165
  %v1594 = vpack.c.b16 %v1168, %v1167
  %v1595 = vpack.c.b16 %v1170, %v1169
  %v1596 = vpack.c.b16 %v1172, %v1171
  %v1597 = vpack.c.b16 %v1174, %v1173
  %v1598 = vpack.c.b16 %v1176, %v1175
  %v1599 = vpack.c.b16 %v1178, %v1177
  %v1600 = vpack.c.b16 %v1180, %v1179
  %v1601 = vpack.c.b16 %v1182, %v1181
  %v1602 = vpack.c.b16 %v1184, %v1183
  %v1603 = vpack.c.b16 %v1186, %v1185
  %v1604 = vpack.c.b16 %v1188, %v1187
  %v1605 = vpack.c.b16 %v1190, %v1189
  %v1606 = vpack.c.b16 %v1192, %v1191
  %v1607 = vpack.c.b16 %v1194, %v1193
  %v1608 = vpack.c.b16 %v1196, %v1195
  %v1609 = vpack.c.b16 %v1198, %v1197
  %v1610 = vpack.c.b16 %v1200, %v1199
  %v1611 = vpack.c.b16 %v1202, %v1201
  %v1612 = vpack.c.b16 %v1204, %v1203
  %v1613 = vpack.c.b16 %v1206, %v1205
  %v1614 = vpack.c.b16 %v1208, %v1207
  %v1615 = vpack.c.b16 %v1210, %v1209
  %v1616 = vpack.c.b16 %v1212, %v1211
  %v1617 = vpack.c.b16 %v1214, %v1213
  %v1618 = vpack.c.b16 %v1216, %v1215
  %v1619 = vpack.c.b16 %v1218, %v1217
  %v1620 = vpack.c.b16 %v1220, %v1219
  %v1621 = vpack.c.b16 %v1222, %v1221
  %v1622 = vpack.c.b16 %v1224, %v1223
  %v1623 = vpack.c.b16 %v1226, %v1225
  %v1624 = vpack.c.b16 %v1228, %v1227
  %v1625 = vpack.c.b16 %v1230, %v1229
  %v1626 = vpack.c.b16 %v1232, %v1231
  %v1627 = vpack.c.b16 %v1234, %v1233
  %v1628 = vpack.c.b16 %v1236, %v1235
  %v1629 = vpack.c.b16 %v1238, %v1237
  %v1630 = vpack.c.b16 %v1240, %v1239
  %v1631 = vpack.c.b16 %v1242, %v1241
  %v1632 = vpack.c.b16 %v1244, %v1243
  %v1633 = vpack.c.b16 %v1246, %v1245
  %v1634 = vpack.c.b16 %v1248, %v1247
  %v1635 = vpack.c.b16 %v1250, %v1249
  %v1636 = vpack.c.b16 %v1252, %v1251
  %v1637 = vpack.c.b16 %v1254, %v1253
  %v1638 = vpack.c.b16 %v1256, %v1255
  %v1639 = vpack.c.b16 %v1258, %v1257
  %v1640 = vpack.c.b16 %v1260, %v1259
  %v1641 = vpack.c.b16 %v1262, %v1261
  %v1642 = vpack.c.b16 %v1264, %v1263
  %v1643 = vpack.c.b16 %v1266, %v1265
  %v1644 = vpack.c.b16 %v1268, %v1267
  %v1645 = vpack.c.b16 %v1270, %v1269
  %v1646 = vpack.c.b16 %v1272, %v1271
  %v1647 = vpack.c.b16 %v1274, %v1273
  %v1648 = vpack.c.b16 %v1276, %v1275
  %v1649 = vpack.c.b16 %v1278, %v1277
  %v1650 = vpack.c.b16 %v1280, %v1279
  %v1651 = vpack.c.b16 %v1282, %v1281
  %v1652 = vpack.c.b16 %v1284, %v1283
  %v1653 = vpack.c.b16 %v1286, %v1285
  %v1654 = vpack.c.b16 %v1288, %v1287
  %v1655 = vpack.c.b16 %v1290, %v1289
  %v1656 = vpack.c.b16 %v1292, %v1291
  %v1657 = vpack.c.b16 %v1294, %v1293
  %v1658 = vpack.c.b16 %v1296, %v1295
  %v1659 = vpack.c.b16 %v1298, %v1297
  %v1660 = vpack.c.b16 %v1300, %v1299
  %v1661 = vpack.c.b16 %v1302, %v1301
  %v1662 = vpack.c.b16 %v1304, %v1303
  %v1663 = vpack.c.b16 %v1306, %v1305
  %v1664 = vpack.c.b16 %v1308, %v1307
  %v1665 = vpack.c.b16 %v1310, %v1309
  %v1666 = vpack.c.b16 %v1312, %v1311
  %v1667 = vpack.c.b16 %v1314, %v1313
  %v1668 = vpack.c.b16 %v1316, %v1315
  %v1669 = vpack.c.b16 %v1318, %v1317
  %v1670 = vpack.c.b16 %v1320, %v1319
  %v1671 = vpack.c.b16 %v1322, %v1321
  %v1672 = vpack.c.b16 %v1324, %v1323
  %v1673 = vpack.c.b16 %v1326, %v1325
  %v1674 = vpack.c.b16 %v1328, %v1327
  %v1675 = vpack.c.b16 %v1330, %v1329
  %v1676 = vpack.c.b16 %v1332, %v1331
  %v1677 = vpack.c.b16 %v1334, %v1333
  %v1678 = vpack.c.b16 %v1336, %v1335
  %v1679 = vpack.c.b16 %v1338, %v1337
  %v1680 = vpack.c.b16 %v1340, %v1339
  %v1681 = vpack.c.b16 %v1342, %v1341
  %v1682 = vpack.c.b16 %v1344, %v1343
  %v1683 = vpack.c.b16 %v1346, %v1345
  %v1684 = vpack.c.b16 %v1348, %v1347
  %v1685 = vpack.c.b16 %v1350, %v1349
  %v1686 = vpack.c.b16 %v1352, %v1351
  %v1687 = vpack.c.b16 %v1354, %v1353
  %v1688 = vpack.c.b16 %v1356, %v1355
  %v1689 = vpack.c.b16 %v1358, %v1357
  %v1690 = vpack.c.b16 %v1360, %v1359
  %v1691 = vpack.c.b16 %v1362, %v1361
  %v1692 = vpack.c.b16 %v1364, %v1363
  %v1693 = vpack.c.b16 %v1366, %v1365
  %v1694 = vpack.c.b16 %v1368, %v1367
  %v1695 = vpack.c.b16 %v1370, %v1369
  %v1696 = vpack.c.b16 %v1372, %v1371
  %v1697 = vpack.c.b16 %v1374, %v1373
  %v1698 = vpack.c.b16 %v1376, %v1375
  %v1699 = vpack.c.b16 %v1378, %v1377
  %v1700 = vpack.c.b16 %v1380, %v1379
  %v1701 = vpack.c.b16 %v1382, %v1381
  %v1702 = vpack.c.b16 %v1384, %v1383
  %v1703 = vpack.c.b16 %v1386, %v1385
  %v1704 = vpack.c.b16 %v1388, %v1387
  %v1705 = vpack.c.b16 %v1390, %v1389
  %v1706 = vpack.c.b16 %v1392, %v1391
  %v1707 = vpack.c.b16 %v1394, %v1393
  %v1708 = vpack.c.b16 %v1396, %v1395
  %v1709 = vpack.c.b16 %v1398, %v1397
  %v1710 = vpack.c.b16 %v1400, %v1399
  %v1711 = vpack.c.b16 %v1402, %v1401
  %v1712 = vpack.c.b16 %v1404, %v1403
  %v1713 = vpack.c.b16 %v1406, %v1405
  %v1714 = vpack.c.b16 %v1408, %v1407
  %v1715 = vpack.c.b16 %v1410, %v1409
  %v1716 = vpack.c.b16 %v1412, %v1411
  %v1717 = vpack.c.b16 %v1414, %v1413
  %v1718 = vpack.c.b16 %v1416, %v1415
  %v1719 = vpack.c.b16 %v1418, %v1417
  %v1720 = vpack.c.b16 %v1420, %v1419
  %v1721 = vpack.c.b16 %v1422, %v1421
  %v1722 = vpack.c.b16 %v1424, %v1423
  %v1723 = vpack.c.b16 %v1426, %v1425
  %v1724 = vpack.c.b16 %v1428, %v1427
  %v1725 = vpack.c.b16 %v1430, %v1429
  %v1726 = vpack.c.b16 %v1432, %v1431
  %v1727 = vpack.c.b16 %v1434, %v1433
  %v1728 = vpack.c.b16 %v1436, %v1435
  %v1729 = vpack.c.b16 %v1438, %v1437
  %v1730 = vpack.c.b16 %v1440, %v1439
  %v1731 = vpack.c.b16 %v1442, %v1441
  %v1732 = vpack.c.b16 %v1444, %v1443
  %v1733 = vpack.c.b16 %v1446, %v1445
  %v1734 = vpack.c.b16 %v1448, %v1447
  %v1735 = vpack.c.b16 %v1450, %v1449
  %v1736 = vpack.c.b16 %v1452, %v1451
  %v1737 = vpack.c.b16 %v1454, %v1453
  %v1738 = vpack.c.b16 %v1456, %v1455
  %v1739 = vpack.c.b16 %v1458, %v1457
  %v1740 = vpack.c.b16 %v1460, %v1459
  %v1741 = vpack.c.b16 %v1462, %v1461
  %v1742 = vpack.c.b16 %v1464, %v1463
  %v1743 = vpack.c.b16 %v1466, %v1465
  %v1744 = vpack.c.b16 %v1468, %v1467
  %v1745 = vpack.c.b16 %v1470, %v1469
  %v1746 = vpack.c.b16 %v1472, %v1471
  %v1747 = vpack.c.b16 %v1474, %v1473
  %v1748 = vpack.c.b16 %v1476, %v1475
  %v1749 = vpack.c.b16 %v1478, %v1477
  %v1750 = vpack.c.b16 %v1480, %v1479
  %v1751 = vpack.c.b16 %v1482, %v1481
  %v1752 = vpack.c.b16 %v1484, %v1483
  %v1753 = vpack.c.b16 %v1486, %v1485
  %v1754 = vpack.c.b16 %v1488, %v1487
  %v1755 = vpack.c.b16 %v1490, %v1489
  %v1756 = vpack.c.b16 %v1492, %v1491
  %v1757 = vpack.c.b16 %v1494, %v1493
  %v1758 = vpack.c.b16 %v1496, %v1495
  %v1759 = vpack.c.b16 %v1498, %v1497
  %v1760 = vpack.c.b16 %v1500, %v1499
  %v1761 = vpack.c.b16 %v1502, %v1501
  %v1762 = vpack.c.b16 %v1504, %v1503
  %v1763 = vpack.c.b16 %v1506, %v1505
  %v1764 = vpack.c.b16 %v1508, %v1507
  %v1765 = vpack.c.b16 %v1510, %v1509
  %v1766 = vpack.c.b16 %v1512, %v1511
  %v1767 = vpack.c.b16 %v1514, %v1513
  %v1768 = vpack.c.b16 %v1516, %v1515
  %v1769 = vpack.c.b16 %v1518, %v1517
  %v1770 = vpack.c.b16 %v1520, %v1519
  %v1771 = vpack.c.b16 %v1522, %v1521
  %v1772 = vpack.c.b16 %v1524, %v1523
  %v1773 = vpack.c.b16 %v1526, %v1525
  %v1774 = vpack.c.b16 %v1528, %v1527
  %v1775 = vpack.c.b16 %v1530, %v1529
  %v1776 = vpack.c.b16 %v1532, %v1531
  %v1777 = vpack.c.b16 %v1534, %v1533
  %v1778 = vpack.c.b16 %v1536, %v1535
  %v1779 = vpack.c.b16 %v1538, %v1537
  %v1780 = vpack.c.b16 %v1540, %v1539
  %v1781 = vpack.c.b16 %v1542, %v1541
  %v1782 = vpack.c.b16 %v1544, %v1543
  %v1783 = vpack.c.b16 %v1546, %v1545
  %v1784 = vpack.c.b16 %v1548, %v1547
  %v1785 = vpack.c.b16 %v1550, %v1549
  %v1786 = vpack.c.b16 %v1552, %v1551
  %v1787 = vpack.c.b16 %v1554, %v1553
  %v1788 = vpack.c.b16 %v1556, %v1555
  %v1789 = vpack.c.b16 %v1558, %v1557
  %v1790 = vpack.c.b16 %v1560, %v1559
  %v1791 = vpack.c.b16 %v1562, %v1561
  %v1792 = vpack.c.b16 %v1564, %v1563
  %v1793 = vpack.c.b16 %v1566, %v1565
  %v1794 = vpack.c.b16 %v1568, %v1567
  %v1795 = vpack.c.b16 %v1570, %v1569
  %v1796 = vpack.c.b16 %v1572, %v1571
  %v1797 = vpack.c.b16 %v1574, %v1573
  %v1798 = vpack.c.b16 %v1576, %v1575
  %v1799 = vpack.c.b16 %v1578, %v1577
  %v1800 = vpack.c.b16 %v1580, %v1579
  %v1801 = vpack.c.b16 %v1582, %v1581
  %v1802 = vpack.c.b16 %v1584, %v1583
  %v1803 = vpack.c.b16 %v1586, %v1585
  %v1804 = vpack.c.b16 %v1588, %v1587
  %2021 = vmatprep.subr.bf16.mxu0 0
  %2022 = vmatpush1.bf16.msra.mxu0 %v1589
  %2023 = vmatprep.subr.bf16.mxu0 0
  %2024 = vmatpush1.bf16.msra.mxu0 %v1590
  %2025 = vmatprep.subr.bf16.mxu0 0
  %2026 = vmatpush1.bf16.msra.mxu0 %v1591
  %2027 = vmatprep.subr.bf16.mxu0 0
  %2028 = vmatpush1.bf16.msra.mxu0 %v1592
  %2029 = vmatprep.subr.bf16.mxu0 0
  %2030 = vmatpush1.bf16.msra.mxu0 %v1593
  %2031 = vmatprep.subr.bf16.mxu0 0
  %2032 = vmatpush1.bf16.msra.mxu0 %v1594
  %2033 = vmatprep.subr.bf16.mxu0 0
  %2034 = vmatpush1.bf16.msra.mxu0 %v1595
  %2035 = vmatprep.subr.bf16.mxu0 0
  %2036 = vmatpush1.bf16.msra.mxu0 %v1596
  %2037 = vmatprep.subr.bf16.mxu0 0
  %2038 = vmatpush1.bf16.msra.mxu0 %v1597
  %2039 = vmatprep.subr.bf16.mxu0 0
  %2040 = vmatpush1.bf16.msra.mxu0 %v1598
  %2041 = vmatprep.subr.bf16.mxu0 0
  %2042 = vmatpush1.bf16.msra.mxu0 %v1599
  %2043 = vmatprep.subr.bf16.mxu0 0
  %2044 = vmatpush1.bf16.msra.mxu0 %v1600
  %2045 = vmatprep.subr.bf16.mxu0 0
  %2046 = vmatpush1.bf16.msra.mxu0 %v1601
  %2047 = vmatprep.subr.bf16.mxu0 0
  %2048 = vmatpush1.bf16.msra.mxu0 %v1602
  %2049 = vmatprep.subr.bf16.mxu0 0
  %2050 = vmatpush1.bf16.msra.mxu0 %v1603
  %2051 = vmatprep.subr.bf16.mxu0 0
  %2052 = vmatpush1.bf16.msra.mxu0 %v1604
  %2053 = vmatprep.mubr.bf16.mxu0 %v618
  %2054 = vmatmul.mubr.bf16.gmra.mrb[0].mxu0 %v617
  %v2055 = vpop.f32.mrb[0].mxu0
  %v2056 = vadd.f32 %v493, %v2055
  %v2057 = vpop.f32.mrb[0].mxu0
  %v2058 = vpop.f32.mrb[0].mxu0
  %v2059 = vadd.f32 %v493, %v2058
  %v2060 = vpop.f32.mrb[0].mxu0
  %2061 = vmatprep.mubr.bf16.mxu0 %v645
  %2062 = vmatmul.mubr.bf16.gmra.mrb[0].mxu0 %v644
  %v2063 = vpop.f32.mrb[0].mxu0
  %v2064 = vadd.f32 %v493, %v2063
  %v2065 = vpop.f32.mrb[0].mxu0
  %v2066 = vpop.f32.mrb[0].mxu0
  %v2067 = vpop.f32.mrb[0].mxu0
  %2068 = vdwg.mxu0
  %2069 = vmatprep.subr.bf16.mxu0 0
  %2070 = vmatpush1.bf16.msra.mxu0 %v1605
  %2071 = vmatprep.subr.bf16.mxu0 0
  %2072 = vmatpush1.bf16.msra.mxu0 %v1606
  %2073 = vmatprep.subr.bf16.mxu0 0
  %2074 = vmatpush1.bf16.msra.mxu0 %v1607
  %2075 = vmatprep.subr.bf16.mxu0 0
  %2076 = vmatpush1.bf16.msra.mxu0 %v1608
  %2077 = vmatprep.subr.bf16.mxu0 0
  %2078 = vmatpush1.bf16.msra.mxu0 %v1609
  %2079 = vmatprep.subr.bf16.mxu0 0
  %2080 = vmatpush1.bf16.msra.mxu0 %v1610
  %2081 = vmatprep.subr.bf16.mxu0 0
  %2082 = vmatpush1.bf16.msra.mxu0 %v1611
  %2083 = vmatprep.subr.bf16.mxu0 0
  %2084 = vmatpush1.bf16.msra.mxu0 %v1612
  %2085 = vmatprep.subr.bf16.mxu0 0
  %2086 = vmatpush1.bf16.msra.mxu0 %v1613
  %2087 = vmatprep.subr.bf16.mxu0 0
  %2088 = vmatpush1.bf16.msra.mxu0 %v1614
  %2089 = vmatprep.subr.bf16.mxu0 0
  %2090 = vmatpush1.bf16.msra.mxu0 %v1615
  %2091 = vmatprep.subr.bf16.mxu0 0
  %2092 = vmatpush1.bf16.msra.mxu0 %v1616
  %2093 = vmatprep.subr.bf16.mxu0 0
  %2094 = vmatpush1.bf16.msra.mxu0 %v1617
  %2095 = vmatprep.subr.bf16.mxu0 0
  %2096 = vmatpush1.bf16.msra.mxu0 %v1618
  %2097 = vmatprep.subr.bf16.mxu0 0
  %2098 = vmatpush1.bf16.msra.mxu0 %v1619
  %2099 = vmatprep.subr.bf16.mxu0 0
  %2100 = vmatpush1.bf16.msra.mxu0 %v1620
  %2101 = vmatprep.mubr.bf16.mxu0 %v620
  %2102 = vmatmul.mubr.bf16.gmra.mrb[0].mxu0 %v619
  %v2103 = vpop.f32.mrb[0].mxu0
  %v2104 = vadd.f32 %v2056, %v2103
  %v2105 = vpop.f32.mrb[0].mxu0
  %v2106 = vpop.f32.mrb[0].mxu0
  %v2107 = vadd.f32 %v2059, %v2106
  %v2108 = vpop.f32.mrb[0].mxu0
  %2109 = vmatprep.mubr.bf16.mxu0 %v647
  %2110 = vmatmul.mubr.bf16.gmra.mrb[0].mxu0 %v646
  %v2111 = vpop.f32.mrb[0].mxu0
  %v2112 = vadd.f32 %v2064, %v2111
  %v2113 = vpop.f32.mrb[0].mxu0
  %v2114 = vpop.f32.mrb[0].mxu0
  %v2115 = vpop.f32.mrb[0].mxu0
  %2116 = vdwg.mxu0
  %2117 = vmatprep.subr.bf16.mxu0 0
  %2118 = vmatpush1.bf16.msra.mxu0 %v1621
  %2119 = vmatprep.subr.bf16.mxu0 0
  %2120 = vmatpush1.bf16.msra.mxu0 %v1622
  %2121 = vmatprep.subr.bf16.mxu0 0
  %2122 = vmatpush1.bf16.msra.mxu0 %v1623
  %2123 = vmatprep.subr.bf16.mxu0 0
  %2124 = vmatpush1.bf16.msra.mxu0 %v1624
  %2125 = vmatprep.subr.bf16.mxu0 0
  %2126 = vmatpush1.bf16.msra.mxu0 %v1625
  %2127 = vmatprep.subr.bf16.mxu0 0
  %2128 = vmatpush1.bf16.msra.mxu0 %v1626
  %2129 = vmatprep.subr.bf16.mxu0 0
  %2130 = vmatpush1.bf16.msra.mxu0 %v1627
  %2131 = vmatprep.subr.bf16.mxu0 0
  %2132 = vmatpush1.bf16.msra.mxu0 %v1628
  %2133 = vmatprep.subr.bf16.mxu0 0
  %2134 = vmatpush1.bf16.msra.mxu0 %v1629
  %2135 = vmatprep.subr.bf16.mxu0 0
  %2136 = vmatpush1.bf16.msra.mxu0 %v1630
  %2137 = vmatprep.subr.bf16.mxu0 0
  %2138 = vmatpush1.bf16.msra.mxu0 %v1631
  %2139 = vmatprep.subr.bf16.mxu0 0
  %2140 = vmatpush1.bf16.msra.mxu0 %v1632
  %2141 = vmatprep.subr.bf16.mxu0 0
  %2142 = vmatpush1.bf16.msra.mxu0 %v1633
  %2143 = vmatprep.subr.bf16.mxu0 0
  %2144 = vmatpush1.bf16.msra.mxu0 %v1634
  %2145 = vmatprep.subr.bf16.mxu0 0
  %2146 = vmatpush1.bf16.msra.mxu0 %v1635
  %2147 = vmatprep.subr.bf16.mxu0 0
  %2148 = vmatpush1.bf16.msra.mxu0 %v1636
  %2149 = vmatprep.mubr.bf16.mxu0 %v622
  %2150 = vmatmul.mubr.bf16.gmra.mrb[0].mxu0 %v621
  %v2151 = vpop.f32.mrb[0].mxu0
  %v2152 = vadd.f32 %v2104, %v2151
  %v2153 = vpop.f32.mrb[0].mxu0
  %v2154 = vpop.f32.mrb[0].mxu0
  %v2155 = vadd.f32 %v2107, %v2154
  %v2156 = vpop.f32.mrb[0].mxu0
  %2157 = vmatprep.mubr.bf16.mxu0 %v649
  %2158 = vmatmul.mubr.bf16.gmra.mrb[0].mxu0 %v648
  %v2159 = vpop.f32.mrb[0].mxu0
  %v2160 = vadd.f32 %v2112, %v2159
  %v2161 = vpop.f32.mrb[0].mxu0
  %v2162 = vpop.f32.mrb[0].mxu0
  %v2163 = vpop.f32.mrb[0].mxu0
  %2164 = vdwg.mxu0
  %2165 = vmatprep.subr.bf16.mxu0 0
  %2166 = vmatpush1.bf16.msra.mxu0 %v1637
  %2167 = vmatprep.subr.bf16.mxu0 0
  %2168 = vmatpush1.bf16.msra.mxu0 %v1638
  %2169 = vmatprep.subr.bf16.mxu0 0
  %2170 = vmatpush1.bf16.msra.mxu0 %v1639
  %2171 = vmatprep.subr.bf16.mxu0 0
  %2172 = vmatpush1.bf16.msra.mxu0 %v1640
  %2173 = vmatprep.subr.bf16.mxu0 0
  %2174 = vmatpush1.bf16.msra.mxu0 %v1641
  %2175 = vmatprep.subr.bf16.mxu0 0
  %2176 = vmatpush1.bf16.msra.mxu0 %v1642
  %2177 = vmatprep.subr.bf16.mxu0 0
  %2178 = vmatpush1.bf16.msra.mxu0 %v1643
  %2179 = vmatprep.subr.bf16.mxu0 0
  %2180 = vmatpush1.bf16.msra.mxu0 %v1644
  %2181 = vmatprep.subr.bf16.mxu0 0
  %2182 = vmatpush1.bf16.msra.mxu0 %v1645
  %2183 = vmatprep.subr.bf16.mxu0 0
  %2184 = vmatpush1.bf16.msra.mxu0 %v1646
  %2185 = vmatprep.subr.bf16.mxu0 0
  %2186 = vmatpush1.bf16.msra.mxu0 %v1647
  %2187 = vmatprep.subr.bf16.mxu0 0
  %2188 = vmatpush1.bf16.msra.mxu0 %v1648
  %2189 = vmatprep.subr.bf16.mxu0 0
  %2190 = vmatpush1.bf16.msra.mxu0 %v1649
  %2191 = vmatprep.subr.bf16.mxu0 0
  %2192 = vmatpush1.bf16.msra.mxu0 %v1650
  %2193 = vmatprep.subr.bf16.mxu0 0
  %2194 = vmatpush1.bf16.msra.mxu0 %v1651
  %2195 = vmatprep.subr.bf16.mxu0 0
  %2196 = vmatpush1.bf16.msra.mxu0 %v1652
  %2197 = vmatprep.mubr.bf16.mxu0 %v624
  %2198 = vmatmul.mubr.bf16.gmra.mrb[0].mxu0 %v623
  %v2199 = vpop.f32.mrb[0].mxu0
  %v2200 = vadd.f32 %v2152, %v2199
  %v2201 = vpop.f32.mrb[0].mxu0
  %v2202 = vpop.f32.mrb[0].mxu0
  %v2203 = vadd.f32 %v2155, %v2202
  %v2204 = vpop.f32.mrb[0].mxu0
  %2205 = vmatprep.mubr.bf16.mxu0 %v651
  %2206 = vmatmul.mubr.bf16.gmra.mrb[0].mxu0 %v650
  %v2207 = vpop.f32.mrb[0].mxu0
  %v2208 = vadd.f32 %v2160, %v2207
  %v2209 = vpop.f32.mrb[0].mxu0
  %v2210 = vpop.f32.mrb[0].mxu0
  %v2211 = vpop.f32.mrb[0].mxu0
  %2212 = vdwg.mxu0
  %2213 = vmatprep.subr.bf16.mxu0 0
  %2214 = vmatpush1.bf16.msra.mxu0 %v1653
  %2215 = vmatprep.subr.bf16.mxu0 0
  %2216 = vmatpush1.bf16.msra.mxu0 %v1654
  %2217 = vmatprep.subr.bf16.mxu0 0
  %2218 = vmatpush1.bf16.msra.mxu0 %v1655
  %2219 = vmatprep.subr.bf16.mxu0 0
  %2220 = vmatpush1.bf16.msra.mxu0 %v1656
  %2221 = vmatprep.subr.bf16.mxu0 0
  %2222 = vmatpush1.bf16.msra.mxu0 %v1657
  %2223 = vmatprep.subr.bf16.mxu0 0
  %2224 = vmatpush1.bf16.msra.mxu0 %v1658
  %2225 = vmatprep.subr.bf16.mxu0 0
  %2226 = vmatpush1.bf16.msra.mxu0 %v1659
  %2227 = vmatprep.subr.bf16.mxu0 0
  %2228 = vmatpush1.bf16.msra.mxu0 %v1660
  %2229 = vmatprep.subr.bf16.mxu0 0
  %2230 = vmatpush1.bf16.msra.mxu0 %v1661
  %2231 = vmatprep.subr.bf16.mxu0 0
  %2232 = vmatpush1.bf16.msra.mxu0 %v1662
  %2233 = vmatprep.subr.bf16.mxu0 0
  %2234 = vmatpush1.bf16.msra.mxu0 %v1663
  %2235 = vmatprep.subr.bf16.mxu0 0
  %2236 = vmatpush1.bf16.msra.mxu0 %v1664
  %2237 = vmatprep.subr.bf16.mxu0 0
  %2238 = vmatpush1.bf16.msra.mxu0 %v1665
  %2239 = vmatprep.subr.bf16.mxu0 0
  %2240 = vmatpush1.bf16.msra.mxu0 %v1666
  %2241 = vmatprep.subr.bf16.mxu0 0
  %2242 = vmatpush1.bf16.msra.mxu0 %v1667
  %2243 = vmatprep.subr.bf16.mxu0 0
  %2244 = vmatpush1.bf16.msra.mxu0 %v1668
  %2245 = vmatprep.mubr.bf16.mxu0 %v626
  %2246 = vmatmul.mubr.bf16.gmra.mrb[0].mxu0 %v625
  %v2247 = vpop.f32.mrb[0].mxu0
  %v2248 = vadd.f32 %v2200, %v2247
  %v2249 = vpop.f32.mrb[0].mxu0
  %v2250 = vpop.f32.mrb[0].mxu0
  %v2251 = vadd.f32 %v2203, %v2250
  %v2252 = vpop.f32.mrb[0].mxu0
  %2253 = vmatprep.mubr.bf16.mxu0 %v653
  %2254 = vmatmul.mubr.bf16.gmra.mrb[0].mxu0 %v652
  %v2255 = vpop.f32.mrb[0].mxu0
  %v2256 = vadd.f32 %v2208, %v2255
  %v2257 = vpop.f32.mrb[0].mxu0
  %v2258 = vpop.f32.mrb[0].mxu0
  %v2259 = vpop.f32.mrb[0].mxu0
  %2260 = vdwg.mxu0
  %2261 = vmatprep.subr.bf16.mxu0 0
  %2262 = vmatpush1.bf16.msra.mxu0 %v1669
  %2263 = vmatprep.subr.bf16.mxu0 0
  %2264 = vmatpush1.bf16.msra.mxu0 %v1670
  %2265 = vmatprep.subr.bf16.mxu0 0
  %2266 = vmatpush1.bf16.msra.mxu0 %v1671
  %2267 = vmatprep.subr.bf16.mxu0 0
  %2268 = vmatpush1.bf16.msra.mxu0 %v1672
  %2269 = vmatprep.subr.bf16.mxu0 0
  %2270 = vmatpush1.bf16.msra.mxu0 %v1673
  %2271 = vmatprep.subr.bf16.mxu0 0
  %2272 = vmatpush1.bf16.msra.mxu0 %v1674
  %2273 = vmatprep.subr.bf16.mxu0 0
  %2274 = vmatpush1.bf16.msra.mxu0 %v1675
  %2275 = vmatprep.subr.bf16.mxu0 0
  %2276 = vmatpush1.bf16.msra.mxu0 %v1676
  %2277 = vmatprep.subr.bf16.mxu0 0
  %2278 = vmatpush1.bf16.msra.mxu0 %v1677
  %2279 = vmatprep.subr.bf16.mxu0 0
  %2280 = vmatpush1.bf16.msra.mxu0 %v1678
  %2281 = vmatprep.subr.bf16.mxu0 0
  %2282 = vmatpush1.bf16.msra.mxu0 %v1679
  %2283 = vmatprep.subr.bf16.mxu0 0
  %2284 = vmatpush1.bf16.msra.mxu0 %v1680
  %2285 = vmatprep.subr.bf16.mxu0 0
  %2286 = vmatpush1.bf16.msra.mxu0 %v1681
  %2287 = vmatprep.subr.bf16.mxu0 0
  %2288 = vmatpush1.bf16.msra.mxu0 %v1682
  %2289 = vmatprep.subr.bf16.mxu0 0
  %2290 = vmatpush1.bf16.msra.mxu0 %v1683
  %2291 = vmatprep.subr.bf16.mxu0 0
  %2292 = vmatpush1.bf16.msra.mxu0 %v1684
  %2293 = vmatprep.mubr.bf16.mxu0 %v628
  %2294 = vmatmul.mubr.bf16.gmra.mrb[0].mxu0 %v627
  %v2295 = vpop.f32.mrb[0].mxu0
  %v2296 = vadd.f32 %v2248, %v2295
  %v2297 = vpop.f32.mrb[0].mxu0
  %v2298 = vpop.f32.mrb[0].mxu0
  %v2299 = vadd.f32 %v2251, %v2298
  %v2300 = vpop.f32.mrb[0].mxu0
  %2301 = vmatprep.mubr.bf16.mxu0 %v655
  %2302 = vmatmul.mubr.bf16.gmra.mrb[0].mxu0 %v654
  %v2303 = vpop.f32.mrb[0].mxu0
  %v2304 = vadd.f32 %v2256, %v2303
  %v2305 = vpop.f32.mrb[0].mxu0
  %v2306 = vpop.f32.mrb[0].mxu0
  %v2307 = vpop.f32.mrb[0].mxu0
  %2308 = vdwg.mxu0
  %2309 = vmatprep.subr.bf16.mxu0 0
  %2310 = vmatpush1.bf16.msra.mxu0 %v1685
  %2311 = vmatprep.subr.bf16.mxu0 0
  %2312 = vmatpush1.bf16.msra.mxu0 %v1686
  %2313 = vmatprep.subr.bf16.mxu0 0
  %2314 = vmatpush1.bf16.msra.mxu0 %v1687
  %2315 = vmatprep.subr.bf16.mxu0 0
  %2316 = vmatpush1.bf16.msra.mxu0 %v1688
  %2317 = vmatprep.subr.bf16.mxu0 0
  %2318 = vmatpush1.bf16.msra.mxu0 %v1689
  %2319 = vmatprep.subr.bf16.mxu0 0
  %2320 = vmatpush1.bf16.msra.mxu0 %v1690
  %2321 = vmatprep.subr.bf16.mxu0 0
  %2322 = vmatpush1.bf16.msra.mxu0 %v1691
  %2323 = vmatprep.subr.bf16.mxu0 0
  %2324 = vmatpush1.bf16.msra.mxu0 %v1692
  %2325 = vmatprep.subr.bf16.mxu0 0
  %2326 = vmatpush1.bf16.msra.mxu0 %v1693
  %2327 = vmatprep.subr.bf16.mxu0 0
  %2328 = vmatpush1.bf16.msra.mxu0 %v1694
  %2329 = vmatprep.subr.bf16.mxu0 0
  %2330 = vmatpush1.bf16.msra.mxu0 %v1695
  %2331 = vmatprep.subr.bf16.mxu0 0
  %2332 = vmatpush1.bf16.msra.mxu0 %v1696
  %2333 = vmatprep.subr.bf16.mxu0 0
  %2334 = vmatpush1.bf16.msra.mxu0 %v1697
  %2335 = vmatprep.subr.bf16.mxu0 0
  %2336 = vmatpush1.bf16.msra.mxu0 %v1698
  %2337 = vmatprep.subr.bf16.mxu0 0
  %2338 = vmatpush1.bf16.msra.mxu0 %v1699
  %2339 = vmatprep.subr.bf16.mxu0 0
  %2340 = vmatpush1.bf16.msra.mxu0 %v1700
  %2341 = vmatprep.mubr.bf16.mxu0 %v630
  %2342 = vmatmul.mubr.bf16.gmra.mrb[0].mxu0 %v629
  %v2343 = vpop.f32.mrb[0].mxu0
  %v2344 = vadd.f32 %v2296, %v2343
  %v2345 = vpop.f32.mrb[0].mxu0
  %v2346 = vpop.f32.mrb[0].mxu0
  %v2347 = vadd.f32 %v2299, %v2346
  %v2348 = vpop.f32.mrb[0].mxu0
  %2349 = vmatprep.mubr.bf16.mxu0 %v657
  %2350 = vmatmul.mubr.bf16.gmra.mrb[0].mxu0 %v656
  %v2351 = vpop.f32.mrb[0].mxu0
  %v2352 = vadd.f32 %v2304, %v2351
  %v2353 = vpop.f32.mrb[0].mxu0
  %v2354 = vpop.f32.mrb[0].mxu0
  %v2355 = vpop.f32.mrb[0].mxu0
  %2356 = vdwg.mxu0
  %2357 = vmatprep.subr.bf16.mxu0 0
  %2358 = vmatpush1.bf16.msra.mxu0 %v1701
  %2359 = vmatprep.subr.bf16.mxu0 0
  %2360 = vmatpush1.bf16.msra.mxu0 %v1702
  %2361 = vmatprep.subr.bf16.mxu0 0
  %2362 = vmatpush1.bf16.msra.mxu0 %v1703
  %2363 = vmatprep.subr.bf16.mxu0 0
  %2364 = vmatpush1.bf16.msra.mxu0 %v1704
  %2365 = vmatprep.subr.bf16.mxu0 0
  %2366 = vmatpush1.bf16.msra.mxu0 %v1705
  %2367 = vmatprep.subr.bf16.mxu0 0
  %2368 = vmatpush1.bf16.msra.mxu0 %v1706
  %2369 = vmatprep.subr.bf16.mxu0 0
  %2370 = vmatpush1.bf16.msra.mxu0 %v1707
  %2371 = vmatprep.subr.bf16.mxu0 0
  %2372 = vmatpush1.bf16.msra.mxu0 %v1708
  %2373 = vmatprep.subr.bf16.mxu0 0
  %2374 = vmatpush1.bf16.msra.mxu0 %v1709
  %2375 = vmatprep.subr.bf16.mxu0 0
  %2376 = vmatpush1.bf16.msra.mxu0 %v1710
  %2377 = vmatprep.subr.bf16.mxu0 0
  %2378 = vmatpush1.bf16.msra.mxu0 %v1711
  %2379 = vmatprep.subr.bf16.mxu0 0
  %2380 = vmatpush1.bf16.msra.mxu0 %v1712
  %2381 = vmatprep.subr.bf16.mxu0 0
  %2382 = vmatpush1.bf16.msra.mxu0 %v1713
  %2383 = vmatprep.subr.bf16.mxu0 0
  %2384 = vmatpush1.bf16.msra.mxu0 %v1714
  %2385 = vmatprep.subr.bf16.mxu0 0
  %2386 = vmatpush1.bf16.msra.mxu0 %v1715
  %2387 = vmatprep.subr.bf16.mxu0 0
  %2388 = vmatpush1.bf16.msra.mxu0 %v1716
  %2389 = vmatprep.mubr.bf16.mxu0 %v632
  %2390 = vmatmul.mubr.bf16.gmra.mrb[0].mxu0 %v631
  %v2391 = vpop.f32.mrb[0].mxu0
  %v2392 = vadd.f32 %v2344, %v2391
  %v2393 = vpop.f32.mrb[0].mxu0
  %v2394 = vpop.f32.mrb[0].mxu0
  %v2395 = vadd.f32 %v2347, %v2394
  %v2396 = vpop.f32.mrb[0].mxu0
  %2397 = vmatprep.mubr.bf16.mxu0 %v659
  %2398 = vmatmul.mubr.bf16.gmra.mrb[0].mxu0 %v658
  %v2399 = vpop.f32.mrb[0].mxu0
  %v2400 = vadd.f32 %v2352, %v2399
  %v2401 = vpop.f32.mrb[0].mxu0
  %v2402 = vpop.f32.mrb[0].mxu0
  %v2403 = vpop.f32.mrb[0].mxu0
  %2404 = vdwg.mxu0
  %2405 = vmatprep.subr.bf16.mxu0 0
  %2406 = vmatpush1.bf16.msra.mxu0 %v1717
  %2407 = vmatprep.subr.bf16.mxu0 0
  %2408 = vmatpush1.bf16.msra.mxu0 %v1718
  %2409 = vmatprep.subr.bf16.mxu0 0
  %2410 = vmatpush1.bf16.msra.mxu0 %v1719
  %2411 = vmatprep.subr.bf16.mxu0 0
  %2412 = vmatpush1.bf16.msra.mxu0 %v1720
  %2413 = vmatprep.subr.bf16.mxu0 0
  %2414 = vmatpush1.bf16.msra.mxu0 %v1721
  %2415 = vmatprep.subr.bf16.mxu0 0
  %2416 = vmatpush1.bf16.msra.mxu0 %v1722
  %2417 = vmatprep.subr.bf16.mxu0 0
  %2418 = vmatpush1.bf16.msra.mxu0 %v1723
  %2419 = vmatprep.subr.bf16.mxu0 0
  %2420 = vmatpush1.bf16.msra.mxu0 %v1724
  %2421 = vmatprep.subr.bf16.mxu0 0
  %2422 = vmatpush1.bf16.msra.mxu0 %v1725
  %2423 = vmatprep.subr.bf16.mxu0 0
  %2424 = vmatpush1.bf16.msra.mxu0 %v1726
  %2425 = vmatprep.subr.bf16.mxu0 0
  %2426 = vmatpush1.bf16.msra.mxu0 %v1727
  %2427 = vmatprep.subr.bf16.mxu0 0
  %2428 = vmatpush1.bf16.msra.mxu0 %v1728
  %2429 = vmatprep.subr.bf16.mxu0 0
  %2430 = vmatpush1.bf16.msra.mxu0 %v1729
  %2431 = vmatprep.subr.bf16.mxu0 0
  %2432 = vmatpush1.bf16.msra.mxu0 %v1730
  %2433 = vmatprep.subr.bf16.mxu0 0
  %2434 = vmatpush1.bf16.msra.mxu0 %v1731
  %2435 = vmatprep.subr.bf16.mxu0 0
  %2436 = vmatpush1.bf16.msra.mxu0 %v1732
  %2437 = vmatprep.mubr.bf16.mxu0 %v634
  %2438 = vmatmul.mubr.bf16.gmra.mrb[0].mxu0 %v633
  %v2439 = vpop.f32.mrb[0].mxu0
  %v2440 = vadd.f32 %v2392, %v2439
  %v2441 = vpop.f32.mrb[0].mxu0
  %v2442 = vpop.f32.mrb[0].mxu0
  %v2443 = vadd.f32 %v2395, %v2442
  %v2444 = vpop.f32.mrb[0].mxu0
  %2445 = vmatprep.mubr.bf16.mxu0 %v661
  %2446 = vmatmul.mubr.bf16.gmra.mrb[0].mxu0 %v660
  %v2447 = vpop.f32.mrb[0].mxu0
  %v2448 = vadd.f32 %v2400, %v2447
  %v2449 = vpop.f32.mrb[0].mxu0
  %v2450 = vpop.f32.mrb[0].mxu0
  %v2451 = vpop.f32.mrb[0].mxu0
  %2452 = vdwg.mxu0
  %2453 = vmatprep.subr.bf16.mxu0 0
  %2454 = vmatpush1.bf16.msra.mxu0 %v1733
  %2455 = vmatprep.subr.bf16.mxu0 0
  %2456 = vmatpush1.bf16.msra.mxu0 %v1734
  %2457 = vmatprep.subr.bf16.mxu0 0
  %2458 = vmatpush1.bf16.msra.mxu0 %v1735
  %2459 = vmatprep.subr.bf16.mxu0 0
  %2460 = vmatpush1.bf16.msra.mxu0 %v1736
  %2461 = vmatprep.subr.bf16.mxu0 0
  %2462 = vmatpush1.bf16.msra.mxu0 %v1737
  %2463 = vmatprep.subr.bf16.mxu0 0
  %2464 = vmatpush1.bf16.msra.mxu0 %v1738
  %2465 = vmatprep.subr.bf16.mxu0 0
  %2466 = vmatpush1.bf16.msra.mxu0 %v1739
  %2467 = vmatprep.subr.bf16.mxu0 0
  %2468 = vmatpush1.bf16.msra.mxu0 %v1740
  %2469 = vmatprep.subr.bf16.mxu0 0
  %2470 = vmatpush1.bf16.msra.mxu0 %v1741
  %2471 = vmatprep.subr.bf16.mxu0 0
  %2472 = vmatpush1.bf16.msra.mxu0 %v1742
  %2473 = vmatprep.subr.bf16.mxu0 0
  %2474 = vmatpush1.bf16.msra.mxu0 %v1743
  %2475 = vmatprep.subr.bf16.mxu0 0
  %2476 = vmatpush1.bf16.msra.mxu0 %v1744
  %2477 = vmatprep.subr.bf16.mxu0 0
  %2478 = vmatpush1.bf16.msra.mxu0 %v1745
  %2479 = vmatprep.subr.bf16.mxu0 0
  %2480 = vmatpush1.bf16.msra.mxu0 %v1746
  %2481 = vmatprep.subr.bf16.mxu0 0
  %2482 = vmatpush1.bf16.msra.mxu0 %v1747
  %2483 = vmatprep.subr.bf16.mxu0 0
  %2484 = vmatpush1.bf16.msra.mxu0 %v1748
  %2485 = vmatprep.mubr.bf16.mxu0 %v636
  %2486 = vmatmul.mubr.bf16.gmra.mrb[0].mxu0 %v635
  %v2487 = vpop.f32.mrb[0].mxu0
  %v2488 = vadd.f32 %v2440, %v2487
  %v2489 = vpop.f32.mrb[0].mxu0
  %v2490 = vpop.f32.mrb[0].mxu0
  %v2491 = vadd.f32 %v2443, %v2490
  %v2492 = vpop.f32.mrb[0].mxu0
  %2493 = vmatprep.mubr.bf16.mxu0 %v663
  %2494 = vmatmul.mubr.bf16.gmra.mrb[0].mxu0 %v662
  %v2495 = vpop.f32.mrb[0].mxu0
  %v2496 = vadd.f32 %v2448, %v2495
  %v2497 = vpop.f32.mrb[0].mxu0
  %v2498 = vpop.f32.mrb[0].mxu0
  %v2499 = vpop.f32.mrb[0].mxu0
  %2500 = vdwg.mxu0
  %2501 = vmatprep.subr.bf16.mxu0 0
  %2502 = vmatpush1.bf16.msra.mxu0 %v1749
  %2503 = vmatprep.subr.bf16.mxu0 0
  %2504 = vmatpush1.bf16.msra.mxu0 %v1750
  %2505 = vmatprep.subr.bf16.mxu0 0
  %2506 = vmatpush1.bf16.msra.mxu0 %v1751
  %2507 = vmatprep.subr.bf16.mxu0 0
  %2508 = vmatpush1.bf16.msra.mxu0 %v1752
  %2509 = vmatprep.subr.bf16.mxu0 0
  %2510 = vmatpush1.bf16.msra.mxu0 %v1753
  %2511 = vmatprep.subr.bf16.mxu0 0
  %2512 = vmatpush1.bf16.msra.mxu0 %v1754
  %2513 = vmatprep.subr.bf16.mxu0 0
  %2514 = vmatpush1.bf16.msra.mxu0 %v1755
  %2515 = vmatprep.subr.bf16.mxu0 0
  %2516 = vmatpush1.bf16.msra.mxu0 %v1756
  %2517 = vmatprep.subr.bf16.mxu0 0
  %2518 = vmatpush1.bf16.msra.mxu0 %v1757
  %2519 = vmatprep.subr.bf16.mxu0 0
  %2520 = vmatpush1.bf16.msra.mxu0 %v1758
  %2521 = vmatprep.subr.bf16.mxu0 0
  %2522 = vmatpush1.bf16.msra.mxu0 %v1759
  %2523 = vmatprep.subr.bf16.mxu0 0
  %2524 = vmatpush1.bf16.msra.mxu0 %v1760
  %2525 = vmatprep.subr.bf16.mxu0 0
  %2526 = vmatpush1.bf16.msra.mxu0 %v1761
  %2527 = vmatprep.subr.bf16.mxu0 0
  %2528 = vmatpush1.bf16.msra.mxu0 %v1762
  %2529 = vmatprep.subr.bf16.mxu0 0
  %2530 = vmatpush1.bf16.msra.mxu0 %v1763
  %2531 = vmatprep.subr.bf16.mxu0 0
  %2532 = vmatpush1.bf16.msra.mxu0 %v1764
  %2533 = vmatprep.mubr.bf16.mxu0 %v638
  %2534 = vmatmul.mubr.bf16.gmra.mrb[0].mxu0 %v637
  %v2535 = vpop.f32.mrb[0].mxu0
  %v2536 = vadd.f32 %v2488, %v2535
  %v2537 = vpop.f32.mrb[0].mxu0
  %v2538 = vpop.f32.mrb[0].mxu0
  %v2539 = vadd.f32 %v2491, %v2538
  %v2540 = vpop.f32.mrb[0].mxu0
  %2541 = vmatprep.mubr.bf16.mxu0 %v665
  %2542 = vmatmul.mubr.bf16.gmra.mrb[0].mxu0 %v664
  %v2543 = vpop.f32.mrb[0].mxu0
  %v2544 = vadd.f32 %v2496, %v2543
  %v2545 = vpop.f32.mrb[0].mxu0
  %v2546 = vpop.f32.mrb[0].mxu0
  %v2547 = vpop.f32.mrb[0].mxu0
  %2548 = vdwg.mxu0
  %2549 = vmatprep.subr.bf16.mxu0 0
  %2550 = vmatpush1.bf16.msra.mxu0 %v1765
  %2551 = vmatprep.subr.bf16.mxu0 0
  %2552 = vmatpush1.bf16.msra.mxu0 %v1766
  %2553 = vmatprep.subr.bf16.mxu0 0
  %2554 = vmatpush1.bf16.msra.mxu0 %v1767
  %2555 = vmatprep.subr.bf16.mxu0 0
  %2556 = vmatpush1.bf16.msra.mxu0 %v1768
  %2557 = vmatprep.subr.bf16.mxu0 0
  %2558 = vmatpush1.bf16.msra.mxu0 %v1769
  %2559 = vmatprep.subr.bf16.mxu0 0
  %2560 = vmatpush1.bf16.msra.mxu0 %v1770
  %2561 = vmatprep.subr.bf16.mxu0 0
  %2562 = vmatpush1.bf16.msra.mxu0 %v1771
  %2563 = vmatprep.subr.bf16.mxu0 0
  %2564 = vmatpush1.bf16.msra.mxu0 %v1772
  %2565 = vmatprep.subr.bf16.mxu0 0
  %2566 = vmatpush1.bf16.msra.mxu0 %v1773
  %2567 = vmatprep.subr.bf16.mxu0 0
  %2568 = vmatpush1.bf16.msra.mxu0 %v1774
  %2569 = vmatprep.subr.bf16.mxu0 0
  %2570 = vmatpush1.bf16.msra.mxu0 %v1775
  %2571 = vmatprep.subr.bf16.mxu0 0
  %2572 = vmatpush1.bf16.msra.mxu0 %v1776
  %2573 = vmatprep.subr.bf16.mxu0 0
  %2574 = vmatpush1.bf16.msra.mxu0 %v1777
  %2575 = vmatprep.subr.bf16.mxu0 0
  %2576 = vmatpush1.bf16.msra.mxu0 %v1778
  %2577 = vmatprep.subr.bf16.mxu0 0
  %2578 = vmatpush1.bf16.msra.mxu0 %v1779
  %2579 = vmatprep.subr.bf16.mxu0 0
  %2580 = vmatpush1.bf16.msra.mxu0 %v1780
  %2581 = vmatprep.mubr.bf16.mxu0 %v640
  %2582 = vmatmul.mubr.bf16.gmra.mrb[0].mxu0 %v639
  %v2583 = vpop.f32.mrb[0].mxu0
  %v2584 = vadd.f32 %v2536, %v2583
  %v2585 = vpop.f32.mrb[0].mxu0
  %v2586 = vpop.f32.mrb[0].mxu0
  %v2587 = vadd.f32 %v2539, %v2586
  %v2588 = vpop.f32.mrb[0].mxu0
  %2589 = vmatprep.mubr.bf16.mxu0 %v667
  %2590 = vmatmul.mubr.bf16.gmra.mrb[0].mxu0 %v666
  %v2591 = vpop.f32.mrb[0].mxu0
  %v2592 = vadd.f32 %v2544, %v2591
  %v2593 = vpop.f32.mrb[0].mxu0
  %v2594 = vpop.f32.mrb[0].mxu0
  %v2595 = vpop.f32.mrb[0].mxu0
  %2596 = vdwg.mxu0
  %2597 = vmatprep.subr.bf16.mxu0 0
  %2598 = vmatpush1.bf16.msra.mxu0 %v1781
  %2599 = vmatprep.subr.bf16.mxu0 0
  %2600 = vmatpush1.bf16.msra.mxu0 %v1782
  %2601 = vmatprep.subr.bf16.mxu0 0
  %2602 = vmatpush1.bf16.msra.mxu0 %v1783
  %2603 = vmatprep.subr.bf16.mxu0 0
  %2604 = vmatpush1.bf16.msra.mxu0 %v1784
  %2605 = vmatprep.subr.bf16.mxu0 0
  %2606 = vmatpush1.bf16.msra.mxu0 %v1785
  %2607 = vmatprep.subr.bf16.mxu0 0
  %2608 = vmatpush1.bf16.msra.mxu0 %v1786
  %2609 = vmatprep.subr.bf16.mxu0 0
  %2610 = vmatpush1.bf16.msra.mxu0 %v1787
  %2611 = vmatprep.subr.bf16.mxu0 0
  %2612 = vmatpush1.bf16.msra.mxu0 %v1788
  %2613 = vmatprep.subr.bf16.mxu0 0
  %2614 = vmatpush1.bf16.msra.mxu0 %v1789
  %2615 = vmatprep.subr.bf16.mxu0 0
  %2616 = vmatpush1.bf16.msra.mxu0 %v1790
  %2617 = vmatprep.subr.bf16.mxu0 0
  %2618 = vmatpush1.bf16.msra.mxu0 %v1791
  %2619 = vmatprep.subr.bf16.mxu0 0
  %2620 = vmatpush1.bf16.msra.mxu0 %v1792
  %2621 = vmatprep.subr.bf16.mxu0 0
  %2622 = vmatpush1.bf16.msra.mxu0 %v1793
  %2623 = vmatprep.subr.bf16.mxu0 0
  %2624 = vmatpush1.bf16.msra.mxu0 %v1794
  %2625 = vmatprep.subr.bf16.mxu0 0
  %2626 = vmatpush1.bf16.msra.mxu0 %v1795
  %2627 = vmatprep.subr.bf16.mxu0 0
  %2628 = vmatpush1.bf16.msra.mxu0 %v1796
  %2629 = vmatprep.mubr.bf16.mxu0 %v642
  %2630 = vmatmul.mubr.bf16.gmra.mrb[0].mxu0 %v641
  %v2631 = vpop.f32.mrb[0].mxu0
  %v2632 = vadd.f32 %v2584, %v2631
  %v2633 = vpop.f32.mrb[0].mxu0
  %v2634 = vpop.f32.mrb[0].mxu0
  %v2635 = vadd.f32 %v2587, %v2634
  %v2636 = vpop.f32.mrb[0].mxu0
  %2637 = vmatprep.mubr.bf16.mxu0 %v669
  %2638 = vmatmul.mubr.bf16.gmra.mrb[0].mxu0 %v668
  %v2639 = vpop.f32.mrb[0].mxu0
  %v2640 = vadd.f32 %v2592, %v2639
  %v2641 = vpop.f32.mrb[0].mxu0
  %v2642 = vpop.f32.mrb[0].mxu0
  %v2643 = vpop.f32.mrb[0].mxu0
  %2644 = vdwg.mxu0
  %2645 = vmatprep.subr.bf16.mxu0 0
  %2646 = vmatpush1.bf16.msra.mxu0 %v1797
  %2647 = vmatprep.subr.bf16.mxu0 0
  %2648 = vmatpush1.bf16.msra.mxu0 %v1798
  %2649 = vmatprep.subr.bf16.mxu0 0
  %2650 = vmatpush1.bf16.msra.mxu0 %v1799
  %2651 = vmatprep.subr.bf16.mxu0 0
  %2652 = vmatpush1.bf16.msra.mxu0 %v1800
  %2653 = vmatprep.subr.bf16.mxu0 0
  %2654 = vmatpush1.bf16.msra.mxu0 %v1801
  %2655 = vmatprep.subr.bf16.mxu0 0
  %2656 = vmatpush1.bf16.msra.mxu0 %v1802
  %2657 = vmatprep.subr.bf16.mxu0 0
  %2658 = vmatpush1.bf16.msra.mxu0 %v1803
  %2659 = vmatprep.subr.bf16.mxu0 0
  %2660 = vmatpush1.bf16.msra.mxu0 %v1804
  %2661 = vmatprep.subr.bf16.mxu0 0
  %2662 = vmatpush1.bf16.msra.mxu0 0
  %2663 = vmatprep.subr.bf16.mxu0 0
  %2664 = vmatpush1.bf16.msra.mxu0 0
  %2665 = vmatprep.subr.bf16.mxu0 0
  %2666 = vmatpush1.bf16.msra.mxu0 0
  %2667 = vmatprep.subr.bf16.mxu0 0
  %2668 = vmatpush1.bf16.msra.mxu0 0
  %2669 = vmatprep.subr.bf16.mxu0 0
  %2670 = vmatpush1.bf16.msra.mxu0 0
  %2671 = vmatprep.subr.bf16.mxu0 0
  %2672 = vmatpush1.bf16.msra.mxu0 0
  %2673 = vmatprep.subr.bf16.mxu0 0
  %2674 = vmatpush1.bf16.msra.mxu0 0
  %2675 = vmatprep.subr.bf16.mxu0 0
  %2676 = vmatpush1.bf16.msra.mxu0 0
  %2677 = vmatprep.mubr.bf16.mxu0 0
  %2678 = vmatmul.mubr.bf16.gmra.mrb[0].mxu0 %v643
  %v2679 = vpop.f32.mrb[0].mxu0
  %v2680 = vadd.f32 %v2632, %v2679
  %v2681 = vpop.f32.mrb[0].mxu0
  %v2682 = vpop.f32.mrb[0].mxu0
  %v2683 = vadd.f32 %v2635, %v2682
  %v2684 = vpop.f32.mrb[0].mxu0
  %2685 = vmatprep.mubr.bf16.mxu0 0
  %2686 = vmatmul.mubr.bf16.gmra.mrb[0].mxu0 %v670
  %v2687 = vpop.f32.mrb[0].mxu0
  %v2688 = vadd.f32 %v2640, %v2687
  %v2689 = vpop.f32.mrb[0].mxu0
  %v2690 = vpop.f32.mrb[0].mxu0
  %v2691 = vpop.f32.mrb[0].mxu0
  %2692 = vdwg.mxu0
  %v2693 = vmax.f32 %v2680, 0.0
  %v2694 = vmax.f32 %v2683, 0.0
  %v2695 = vmax.f32 %v2688, 0.0
  %v2696 = vld [vmem:[%s2 + $0x1] sm:$0x1]
  %v2697 = vlaneseq
  %v2698 = vshrl.u32 %v2697, 7
  %v2699 = vsub.s32 0, %v2698
  %v2700 = vrot.slane %v2696, %v2699
  %v2701 = vmul.f32 %v2693, %v2700
  %v2702 = vmul.f32 %v2694, %v2700
  %v2703 = vmul.f32 %v2695, %v2700
  %v2704 = vld [vmem:[%s2 + $0x2] sm:$0x1]
  %v2705 = vlaneseq
  %v2706 = vshrl.u32 %v2705, 7
  %v2707 = vsub.s32 0, %v2706
  %v2708 = vrot.slane %v2704, %v2707
  %v2709 = vadd.f32 %v2701, %v2708
  %v2710 = vadd.f32 %v2702, %v2708
  %v2711 = vadd.f32 %v2703, %v2708
  %v2712 = vpack.c.bf16 %v2710, %v2709
  %v2713 = vpack.c.bf16 %v2711, %v2711
  %v2716 = vunpack.c.l.b16 %v2712
  %v2717 = vunpack.c.h.b16 %v2712
  %v2718 = vunpack.c.l.b16 %v2713
  %v2719 = vpack.c.b16 %v2716, %v2716
  %v2720 = vpack.c.b16 %v2717, %v2717
  %v2721 = vpack.c.b16 %v2718, %v2718
  %2725 = vst [vmem:[%s3] sm:$0xf] %v2719
  %2726 = vst [vmem:[%s3 + $0x4] sm:$0xf] %v2720
  %2727 = vst [vmem:[%s3 + $0x8] sm:$0xf] %v2721
  // Predicated region
  $region14: #{forward.6} parent=0 // pred_check
    _
  $region15: #{forward.6} parent=0 // pred_check_branch
    %2729 = sbr.rel (0) target = $region17
  $region16: #{forward.6} parent=0 // pred_region
    _
  $region17: #{forward.6} parent=0 // pred_fallthru
    _
  // Predicated region
  $region18: #{forward.6} parent=0 // pred_check
    _
  $region19: #{forward.6} parent=0 // pred_check_branch
    %2731 = sbr.rel (0) target = $region21
  $region20: #{forward.6} parent=0 // pred_region
    _
  $region21: #{forward.6} parent=0 // pred_fallthru
    _

// kernel: forward.7
$region0: #{forward.7}
  #allocation0 [shape = 'u32[]', space=smem, size = 0x4, offset = 0x4, fixed_abs, tag = 'smem constant byte address 0x4 - core index']
  #allocation1 [shape = 'u32[144,128]{1,0:T(1,128)}', space=vmem, size = 0x12000, scoped, tag = 'internal scratch']
  #allocation2 [shape = 'f32[1,1]{1,0:T(1,128)S(1)}', space=vmem, size = 0x200, scoped, tag = 'scoped memory for forward.7']
  %s0 = inlined_call_operand.vmem [shape: bf16[16,1024], index: 0, kind: input, shape index: {}]
  %s1 = inlined_call_operand.vmem [shape: bf16[1024,256], index: 1, kind: input, shape index: {}]
  %s2 = inlined_call_operand.vmem [shape: f32[3,256], index: 2, kind: input, shape index: {}]
  %s3 = inlined_call_operand.vmem [shape: f32[1,256], index: 3, kind: input, shape index: {}]
  %s4 = inlined_call_operand.<no memory space> [shape: f32[1,1], index: 4, kind: input, shape index: {}]
  %s5 = inlined_call_operand.vmem [shape: f32[2,1], index: 5, kind: output, shape index: {}]
  %s6 = sld [smem:[#allocation0]]
  $region30: #{forward.7} parent=0
    _
  %s8 = ssub.s32 1, %s6
  %s9 = scalar_select 0, %s8, %s6
  %v10 = vstv %s4
  %11 = vst [vmem:[#allocation2] sm:$0x1] %v10
  // Predicated region
  $region2: #{forward.7} parent=0 // pred_check
    _
  $region3: #{forward.7} parent=0 // pred_check_branch
    %13 = sbr.rel (0) target = $region5
  $region4: #{forward.7} parent=0 // pred_region
    _
  $region5: #{forward.7} parent=0 // pred_fallthru
    _
  // Predicated region
  $region6: #{forward.7} parent=0 // pred_check
    _
  $region7: #{forward.7} parent=0 // pred_check_branch
    %15 = sbr.rel (0) target = $region9
  $region8: #{forward.7} parent=0 // pred_region
    _
  $region9: #{forward.7} parent=0 // pred_fallthru
    _
  // Predicated region
  $region10: #{forward.7} parent=0 // pred_check
    _
  $region11: #{forward.7} parent=0 // pred_check_branch
    %17 = sbr.rel (0) target = $region13
  $region12: #{forward.7} parent=0 // pred_region
    _
  $region13: #{forward.7} parent=0 // pred_fallthru
    _
  // Predicated region
  $region14: #{forward.7} parent=0 // pred_check
    _
  $region15: #{forward.7} parent=0 // pred_check_branch
    %19 = sbr.rel (0) target = $region17
  $region16: #{forward.7} parent=0 // pred_region
    _
  $region17: #{forward.7} parent=0 // pred_fallthru
    _
  // Predicated region
  $region18: #{forward.7} parent=0 // pred_check
    _
  $region19: #{forward.7} parent=0 // pred_check_branch
    %21 = sbr.rel (0) target = $region21
  $region20: #{forward.7} parent=0 // pred_region
    _
  $region21: #{forward.7} parent=0 // pred_fallthru
    _
  %v22 = vld [vmem:[%s0] sm:$0xff]
  %v23 = vld [vmem:[%s0 + $0x8] sm:$0xff]
  %v24 = vld [vmem:[%s0 + $0x10] sm:$0xff]
  %v25 = vld [vmem:[%s0 + $0x18] sm:$0xff]
  %v26 = vld [vmem:[%s0 + $0x20] sm:$0xff]
  %v27 = vld [vmem:[%s0 + $0x28] sm:$0xff]
  %v28 = vld [vmem:[%s0 + $0x30] sm:$0xff]
  %v29 = vld [vmem:[%s0 + $0x38] sm:$0xff]
  %v30 = vld [vmem:[%s1] sm:$0xff]
  %v31 = vld [vmem:[%s1 + $0x8] sm:$0xff]
  %v32 = vld [vmem:[%s1 + $0x10] sm:$0xff]
  %v33 = vld [vmem:[%s1 + $0x18] sm:$0xff]
  %v34 = vld [vmem:[%s1 + $0x20] sm:$0xff]
  %v35 = vld [vmem:[%s1 + $0x28] sm:$0xff]
  %v36 = vld [vmem:[%s1 + $0x30] sm:$0xff]
  %v37 = vld [vmem:[%s1 + $0x38] sm:$0xff]
  %v38 = vld [vmem:[%s1 + $0x40] sm:$0xff]
  %v39 = vld [vmem:[%s1 + $0x48] sm:$0xff]
  %v40 = vld [vmem:[%s1 + $0x50] sm:$0xff]
  %v41 = vld [vmem:[%s1 + $0x58] sm:$0xff]
  %v42 = vld [vmem:[%s1 + $0x60] sm:$0xff]
  %v43 = vld [vmem:[%s1 + $0x68] sm:$0xff]
  %v44 = vld [vmem:[%s1 + $0x70] sm:$0xff]
  %v45 = vld [vmem:[%s1 + $0x78] sm:$0xff]
  %v46 = vld [vmem:[%s1 + $0x80] sm:$0xff]
  %v47 = vld [vmem:[%s1 + $0x88] sm:$0xff]
  %v48 = vld [vmem:[%s1 + $0x90] sm:$0xff]
  %v49 = vld [vmem:[%s1 + $0x98] sm:$0xff]
  %v50 = vld [vmem:[%s1 + $0xa0] sm:$0xff]
  %v51 = vld [vmem:[%s1 + $0xa8] sm:$0xff]
  %v52 = vld [vmem:[%s1 + $0xb0] sm:$0xff]
  %v53 = vld [vmem:[%s1 + $0xb8] sm:$0xff]
  %v54 = vld [vmem:[%s1 + $0xc0] sm:$0xff]
  %v55 = vld [vmem:[%s1 + $0xc8] sm:$0xff]
  %v56 = vld [vmem:[%s1 + $0xd0] sm:$0xff]
  %v57 = vld [vmem:[%s1 + $0xd8] sm:$0xff]
  %v58 = vld [vmem:[%s1 + $0xe0] sm:$0xff]
  %v59 = vld [vmem:[%s1 + $0xe8] sm:$0xff]
  %v60 = vld [vmem:[%s1 + $0xf0] sm:$0xff]
  %v61 = vld [vmem:[%s1 + $0xf8] sm:$0xff]
  %v62 = vld [vmem:[%s1 + $0x100] sm:$0xff]
  %v63 = vld [vmem:[%s1 + $0x108] sm:$0xff]
  %v64 = vld [vmem:[%s1 + $0x110] sm:$0xff]
  %v65 = vld [vmem:[%s1 + $0x118] sm:$0xff]
  %v66 = vld [vmem:[%s1 + $0x120] sm:$0xff]
  %v67 = vld [vmem:[%s1 + $0x128] sm:$0xff]
  %v68 = vld [vmem:[%s1 + $0x130] sm:$0xff]
  %v69 = vld [vmem:[%s1 + $0x138] sm:$0xff]
  %v70 = vld [vmem:[%s1 + $0x140] sm:$0xff]
  %v71 = vld [vmem:[%s1 + $0x148] sm:$0xff]
  %v72 = vld [vmem:[%s1 + $0x150] sm:$0xff]
  %v73 = vld [vmem:[%s1 + $0x158] sm:$0xff]
  %v74 = vld [vmem:[%s1 + $0x160] sm:$0xff]
  %v75 = vld [vmem:[%s1 + $0x168] sm:$0xff]
  %v76 = vld [vmem:[%s1 + $0x170] sm:$0xff]
  %v77 = vld [vmem:[%s1 + $0x178] sm:$0xff]
  %v78 = vld [vmem:[%s1 + $0x180] sm:$0xff]
  %v79 = vld [vmem:[%s1 + $0x188] sm:$0xff]
  %v80 = vld [vmem:[%s1 + $0x190] sm:$0xff]
  %v81 = vld [vmem:[%s1 + $0x198] sm:$0xff]
  %v82 = vld [vmem:[%s1 + $0x1a0] sm:$0xff]
  %v83 = vld [vmem:[%s1 + $0x1a8] sm:$0xff]
  %v84 = vld [vmem:[%s1 + $0x1b0] sm:$0xff]
  %v85 = vld [vmem:[%s1 + $0x1b8] sm:$0xff]
  %v86 = vld [vmem:[%s1 + $0x1c0] sm:$0xff]
  %v87 = vld [vmem:[%s1 + $0x1c8] sm:$0xff]
  %v88 = vld [vmem:[%s1 + $0x1d0] sm:$0xff]
  %v89 = vld [vmem:[%s1 + $0x1d8] sm:$0xff]
  %v90 = vld [vmem:[%s1 + $0x1e0] sm:$0xff]
  %v91 = vld [vmem:[%s1 + $0x1e8] sm:$0xff]
  %v92 = vld [vmem:[%s1 + $0x1f0] sm:$0xff]
  %v93 = vld [vmem:[%s1 + $0x1f8] sm:$0xff]
  %v94 = vld [vmem:[%s1 + $0x200] sm:$0xff]
  %v95 = vld [vmem:[%s1 + $0x208] sm:$0xff]
  %v96 = vld [vmem:[%s1 + $0x210] sm:$0xff]
  %v97 = vld [vmem:[%s1 + $0x218] sm:$0xff]
  %v98 = vld [vmem:[%s1 + $0x220] sm:$0xff]
  %v99 = vld [vmem:[%s1 + $0x228] sm:$0xff]
  %v100 = vld [vmem:[%s1 + $0x230] sm:$0xff]
  %v101 = vld [vmem:[%s1 + $0x238] sm:$0xff]
  %v102 = vld [vmem:[%s1 + $0x240] sm:$0xff]
  %v103 = vld [vmem:[%s1 + $0x248] sm:$0xff]
  %v104 = vld [vmem:[%s1 + $0x250] sm:$0xff]
  %v105 = vld [vmem:[%s1 + $0x258] sm:$0xff]
  %v106 = vld [vmem:[%s1 + $0x260] sm:$0xff]
  %v107 = vld [vmem:[%s1 + $0x268] sm:$0xff]
  %v108 = vld [vmem:[%s1 + $0x270] sm:$0xff]
  %v109 = vld [vmem:[%s1 + $0x278] sm:$0xff]
  %v110 = vld [vmem:[%s1 + $0x280] sm:$0xff]
  %v111 = vld [vmem:[%s1 + $0x288] sm:$0xff]
  %v112 = vld [vmem:[%s1 + $0x290] sm:$0xff]
  %v113 = vld [vmem:[%s1 + $0x298] sm:$0xff]
  %v114 = vld [vmem:[%s1 + $0x2a0] sm:$0xff]
  %v115 = vld [vmem:[%s1 + $0x2a8] sm:$0xff]
  %v116 = vld [vmem:[%s1 + $0x2b0] sm:$0xff]
  %v117 = vld [vmem:[%s1 + $0x2b8] sm:$0xff]
  %v118 = vld [vmem:[%s1 + $0x2c0] sm:$0xff]
  %v119 = vld [vmem:[%s1 + $0x2c8] sm:$0xff]
  %v120 = vld [vmem:[%s1 + $0x2d0] sm:$0xff]
  %v121 = vld [vmem:[%s1 + $0x2d8] sm:$0xff]
  %v122 = vld [vmem:[%s1 + $0x2e0] sm:$0xff]
  %v123 = vld [vmem:[%s1 + $0x2e8] sm:$0xff]
  %v124 = vld [vmem:[%s1 + $0x2f0] sm:$0xff]
  %v125 = vld [vmem:[%s1 + $0x2f8] sm:$0xff]
  %v126 = vld [vmem:[%s1 + $0x300] sm:$0xff]
  %v127 = vld [vmem:[%s1 + $0x308] sm:$0xff]
  %v128 = vld [vmem:[%s1 + $0x310] sm:$0xff]
  %v129 = vld [vmem:[%s1 + $0x318] sm:$0xff]
  %v130 = vld [vmem:[%s1 + $0x320] sm:$0xff]
  %v131 = vld [vmem:[%s1 + $0x328] sm:$0xff]
  %v132 = vld [vmem:[%s1 + $0x330] sm:$0xff]
  %v133 = vld [vmem:[%s1 + $0x338] sm:$0xff]
  %v134 = vld [vmem:[%s1 + $0x340] sm:$0xff]
  %v135 = vld [vmem:[%s1 + $0x348] sm:$0xff]
  %v136 = vld [vmem:[%s1 + $0x350] sm:$0xff]
  %v137 = vld [vmem:[%s1 + $0x358] sm:$0xff]
  %v138 = vld [vmem:[%s1 + $0x360] sm:$0xff]
  %v139 = vld [vmem:[%s1 + $0x368] sm:$0xff]
  %v140 = vld [vmem:[%s1 + $0x370] sm:$0xff]
  %v141 = vld [vmem:[%s1 + $0x378] sm:$0xff]
  %v142 = vld [vmem:[%s1 + $0x380] sm:$0xff]
  %v143 = vld [vmem:[%s1 + $0x388] sm:$0xff]
  %v144 = vld [vmem:[%s1 + $0x390] sm:$0xff]
  %v145 = vld [vmem:[%s1 + $0x398] sm:$0xff]
  %v146 = vld [vmem:[%s1 + $0x3a0] sm:$0xff]
  %v147 = vld [vmem:[%s1 + $0x3a8] sm:$0xff]
  %v148 = vld [vmem:[%s1 + $0x3b0] sm:$0xff]
  %v149 = vld [vmem:[%s1 + $0x3b8] sm:$0xff]
  %v150 = vld [vmem:[%s1 + $0x3c0] sm:$0xff]
  %v151 = vld [vmem:[%s1 + $0x3c8] sm:$0xff]
  %v152 = vld [vmem:[%s1 + $0x3d0] sm:$0xff]
  %v153 = vld [vmem:[%s1 + $0x3d8] sm:$0xff]
  %v154 = vld [vmem:[%s1 + $0x3e0] sm:$0xff]
  %v155 = vld [vmem:[%s1 + $0x3e8] sm:$0xff]
  %v156 = vld [vmem:[%s1 + $0x3f0] sm:$0xff]
  %v157 = vld [vmem:[%s1 + $0x3f8] sm:$0xff]
  %v158 = vld [vmem:[%s2] ss:$4 sm:$0x3]
  %v160 = vlaneseq
  %v161 = vshrl.u32 %v160, 7
  %v162 = vsub.s32 0, %v161
  %v163 = vrot.slane %v158, %v162
  %v164 = vlaneseq
  %v165 = vshrl.u32 %v164, 7
  %v166 = vsub.s32 1, %v165
  %v167 = vrot.slane %v158, %v166
  %v178 = vunpack.c.l.b16 %v22
  %v179 = vunpack.c.h.b16 %v22
  %v180 = vunpack.c.l.b16 %v23
  %v181 = vunpack.c.h.b16 %v23
  %v182 = vunpack.c.l.b16 %v24
  %v183 = vunpack.c.h.b16 %v24
  %v184 = vunpack.c.l.b16 %v25
  %v185 = vunpack.c.h.b16 %v25
  %v186 = vunpack.c.l.b16 %v26
  %v187 = vunpack.c.h.b16 %v26
  %v188 = vunpack.c.l.b16 %v27
  %v189 = vunpack.c.h.b16 %v27
  %v190 = vunpack.c.l.b16 %v28
  %v191 = vunpack.c.h.b16 %v28
  %v192 = vunpack.c.l.b16 %v29
  %v193 = vunpack.c.h.b16 %v29
  %v194 = vpack.c.b16 %v186, %v178
  %v195 = vpack.c.b16 %v187, %v179
  %v196 = vpack.c.b16 %v188, %v180
  %v197 = vpack.c.b16 %v189, %v181
  %v198 = vpack.c.b16 %v190, %v182
  %v199 = vpack.c.b16 %v191, %v183
  %v200 = vpack.c.b16 %v192, %v184
  %v201 = vpack.c.b16 %v193, %v185
  %v338 = vunpack.c.l.b16 %v30
  %v339 = vunpack.c.h.b16 %v30
  %v340 = vunpack.c.l.b16 %v31
  %v341 = vunpack.c.h.b16 %v31
  %v342 = vunpack.c.l.b16 %v32
  %v343 = vunpack.c.h.b16 %v32
  %v344 = vunpack.c.l.b16 %v33
  %v345 = vunpack.c.h.b16 %v33
  %v346 = vunpack.c.l.b16 %v34
  %v347 = vunpack.c.h.b16 %v34
  %v348 = vunpack.c.l.b16 %v35
  %v349 = vunpack.c.h.b16 %v35
  %v350 = vunpack.c.l.b16 %v36
  %v351 = vunpack.c.h.b16 %v36
  %v352 = vunpack.c.l.b16 %v37
  %v353 = vunpack.c.h.b16 %v37
  %v354 = vunpack.c.l.b16 %v38
  %v355 = vunpack.c.h.b16 %v38
  %v356 = vunpack.c.l.b16 %v39
  %v357 = vunpack.c.h.b16 %v39
  %v358 = vunpack.c.l.b16 %v40
  %v359 = vunpack.c.h.b16 %v40
  %v360 = vunpack.c.l.b16 %v41
  %v361 = vunpack.c.h.b16 %v41
  %v362 = vunpack.c.l.b16 %v42
  %v363 = vunpack.c.h.b16 %v42
  %v364 = vunpack.c.l.b16 %v43
  %v365 = vunpack.c.h.b16 %v43
  %v366 = vunpack.c.l.b16 %v44
  %v367 = vunpack.c.h.b16 %v44
  %v368 = vunpack.c.l.b16 %v45
  %v369 = vunpack.c.h.b16 %v45
  %v370 = vunpack.c.l.b16 %v46
  %v371 = vunpack.c.h.b16 %v46
  %v372 = vunpack.c.l.b16 %v47
  %v373 = vunpack.c.h.b16 %v47
  %v374 = vunpack.c.l.b16 %v48
  %v375 = vunpack.c.h.b16 %v48
  %v376 = vunpack.c.l.b16 %v49
  %v377 = vunpack.c.h.b16 %v49
  %v378 = vunpack.c.l.b16 %v50
  %v379 = vunpack.c.h.b16 %v50
  %v380 = vunpack.c.l.b16 %v51
  %v381 = vunpack.c.h.b16 %v51
  %v382 = vunpack.c.l.b16 %v52
  %v383 = vunpack.c.h.b16 %v52
  %v384 = vunpack.c.l.b16 %v53
  %v385 = vunpack.c.h.b16 %v53
  %v386 = vunpack.c.l.b16 %v54
  %v387 = vunpack.c.h.b16 %v54
  %v388 = vunpack.c.l.b16 %v55
  %v389 = vunpack.c.h.b16 %v55
  %v390 = vunpack.c.l.b16 %v56
  %v391 = vunpack.c.h.b16 %v56
  %v392 = vunpack.c.l.b16 %v57
  %v393 = vunpack.c.h.b16 %v57
  %v394 = vunpack.c.l.b16 %v58
  %v395 = vunpack.c.h.b16 %v58
  %v396 = vunpack.c.l.b16 %v59
  %v397 = vunpack.c.h.b16 %v59
  %v398 = vunpack.c.l.b16 %v60
  %v399 = vunpack.c.h.b16 %v60
  %v400 = vunpack.c.l.b16 %v61
  %v401 = vunpack.c.h.b16 %v61
  %v402 = vunpack.c.l.b16 %v62
  %v403 = vunpack.c.h.b16 %v62
  %v404 = vunpack.c.l.b16 %v63
  %v405 = vunpack.c.h.b16 %v63
  %v406 = vunpack.c.l.b16 %v64
  %v407 = vunpack.c.h.b16 %v64
  %v408 = vunpack.c.l.b16 %v65
  %v409 = vunpack.c.h.b16 %v65
  %v410 = vunpack.c.l.b16 %v66
  %v411 = vunpack.c.h.b16 %v66
  %v412 = vunpack.c.l.b16 %v67
  %v413 = vunpack.c.h.b16 %v67
  %v414 = vunpack.c.l.b16 %v68
  %v415 = vunpack.c.h.b16 %v68
  %v416 = vunpack.c.l.b16 %v69
  %v417 = vunpack.c.h.b16 %v69
  %v418 = vunpack.c.l.b16 %v70
  %v419 = vunpack.c.h.b16 %v70
  %v420 = vunpack.c.l.b16 %v71
  %v421 = vunpack.c.h.b16 %v71
  %v422 = vunpack.c.l.b16 %v72
  %v423 = vunpack.c.h.b16 %v72
  %v424 = vunpack.c.l.b16 %v73
  %v425 = vunpack.c.h.b16 %v73
  %v426 = vunpack.c.l.b16 %v74
  %v427 = vunpack.c.h.b16 %v74
  %v428 = vunpack.c.l.b16 %v75
  %v429 = vunpack.c.h.b16 %v75
  %v430 = vunpack.c.l.b16 %v76
  %v431 = vunpack.c.h.b16 %v76
  %v432 = vunpack.c.l.b16 %v77
  %v433 = vunpack.c.h.b16 %v77
  %v434 = vunpack.c.l.b16 %v78
  %v435 = vunpack.c.h.b16 %v78
  %v436 = vunpack.c.l.b16 %v79
  %v437 = vunpack.c.h.b16 %v79
  %v438 = vunpack.c.l.b16 %v80
  %v439 = vunpack.c.h.b16 %v80
  %v440 = vunpack.c.l.b16 %v81
  %v441 = vunpack.c.h.b16 %v81
  %v442 = vunpack.c.l.b16 %v82
  %v443 = vunpack.c.h.b16 %v82
  %v444 = vunpack.c.l.b16 %v83
  %v445 = vunpack.c.h.b16 %v83
  %v446 = vunpack.c.l.b16 %v84
  %v447 = vunpack.c.h.b16 %v84
  %v448 = vunpack.c.l.b16 %v85
  %v449 = vunpack.c.h.b16 %v85
  %v450 = vunpack.c.l.b16 %v86
  %v451 = vunpack.c.h.b16 %v86
  %v452 = vunpack.c.l.b16 %v87
  %v453 = vunpack.c.h.b16 %v87
  %v454 = vunpack.c.l.b16 %v88
  %v455 = vunpack.c.h.b16 %v88
  %v456 = vunpack.c.l.b16 %v89
  %v457 = vunpack.c.h.b16 %v89
  %v458 = vunpack.c.l.b16 %v90
  %v459 = vunpack.c.h.b16 %v90
  %v460 = vunpack.c.l.b16 %v91
  %v461 = vunpack.c.h.b16 %v91
  %v462 = vunpack.c.l.b16 %v92
  %v463 = vunpack.c.h.b16 %v92
  %v464 = vunpack.c.l.b16 %v93
  %v465 = vunpack.c.h.b16 %v93
  %v466 = vunpack.c.l.b16 %v94
  %v467 = vunpack.c.h.b16 %v94
  %v468 = vunpack.c.l.b16 %v95
  %v469 = vunpack.c.h.b16 %v95
  %v470 = vunpack.c.l.b16 %v96
  %v471 = vunpack.c.h.b16 %v96
  %v472 = vunpack.c.l.b16 %v97
  %v473 = vunpack.c.h.b16 %v97
  %v474 = vunpack.c.l.b16 %v98
  %v475 = vunpack.c.h.b16 %v98
  %v476 = vunpack.c.l.b16 %v99
  %v477 = vunpack.c.h.b16 %v99
  %v478 = vunpack.c.l.b16 %v100
  %v479 = vunpack.c.h.b16 %v100
  %v480 = vunpack.c.l.b16 %v101
  %v481 = vunpack.c.h.b16 %v101
  %v482 = vunpack.c.l.b16 %v102
  %v483 = vunpack.c.h.b16 %v102
  %v484 = vunpack.c.l.b16 %v103
  %v485 = vunpack.c.h.b16 %v103
  %v486 = vunpack.c.l.b16 %v104
  %v487 = vunpack.c.h.b16 %v104
  %v488 = vunpack.c.l.b16 %v105
  %v489 = vunpack.c.h.b16 %v105
  %v490 = vunpack.c.l.b16 %v106
  %v491 = vunpack.c.h.b16 %v106
  %v492 = vunpack.c.l.b16 %v107
  %v493 = vunpack.c.h.b16 %v107
  %v494 = vunpack.c.l.b16 %v108
  %v495 = vunpack.c.h.b16 %v108
  %v496 = vunpack.c.l.b16 %v109
  %v497 = vunpack.c.h.b16 %v109
  %v498 = vunpack.c.l.b16 %v110
  %v499 = vunpack.c.h.b16 %v110
  %v500 = vunpack.c.l.b16 %v111
  %v501 = vunpack.c.h.b16 %v111
  %v502 = vunpack.c.l.b16 %v112
  %v503 = vunpack.c.h.b16 %v112
  %v504 = vunpack.c.l.b16 %v113
  %v505 = vunpack.c.h.b16 %v113
  %v506 = vunpack.c.l.b16 %v114
  %v507 = vunpack.c.h.b16 %v114
  %v508 = vunpack.c.l.b16 %v115
  %v509 = vunpack.c.h.b16 %v115
  %v510 = vunpack.c.l.b16 %v116
  %v511 = vunpack.c.h.b16 %v116
  %v512 = vunpack.c.l.b16 %v117
  %v513 = vunpack.c.h.b16 %v117
  %v514 = vunpack.c.l.b16 %v118
  %v515 = vunpack.c.h.b16 %v118
  %v516 = vunpack.c.l.b16 %v119
  %v517 = vunpack.c.h.b16 %v119
  %v518 = vunpack.c.l.b16 %v120
  %v519 = vunpack.c.h.b16 %v120
  %v520 = vunpack.c.l.b16 %v121
  %v521 = vunpack.c.h.b16 %v121
  %v522 = vunpack.c.l.b16 %v122
  %v523 = vunpack.c.h.b16 %v122
  %v524 = vunpack.c.l.b16 %v123
  %v525 = vunpack.c.h.b16 %v123
  %v526 = vunpack.c.l.b16 %v124
  %v527 = vunpack.c.h.b16 %v124
  %v528 = vunpack.c.l.b16 %v125
  %v529 = vunpack.c.h.b16 %v125
  %v530 = vunpack.c.l.b16 %v126
  %v531 = vunpack.c.h.b16 %v126
  %v532 = vunpack.c.l.b16 %v127
  %v533 = vunpack.c.h.b16 %v127
  %v534 = vunpack.c.l.b16 %v128
  %v535 = vunpack.c.h.b16 %v128
  %v536 = vunpack.c.l.b16 %v129
  %v537 = vunpack.c.h.b16 %v129
  %v538 = vunpack.c.l.b16 %v130
  %v539 = vunpack.c.h.b16 %v130
  %v540 = vunpack.c.l.b16 %v131
  %v541 = vunpack.c.h.b16 %v131
  %v542 = vunpack.c.l.b16 %v132
  %v543 = vunpack.c.h.b16 %v132
  %v544 = vunpack.c.l.b16 %v133
  %v545 = vunpack.c.h.b16 %v133
  %v546 = vunpack.c.l.b16 %v134
  %v547 = vunpack.c.h.b16 %v134
  %v548 = vunpack.c.l.b16 %v135
  %v549 = vunpack.c.h.b16 %v135
  %v550 = vunpack.c.l.b16 %v136
  %v551 = vunpack.c.h.b16 %v136
  %v552 = vunpack.c.l.b16 %v137
  %v553 = vunpack.c.h.b16 %v137
  %v554 = vunpack.c.l.b16 %v138
  %v555 = vunpack.c.h.b16 %v138
  %v556 = vunpack.c.l.b16 %v139
  %v557 = vunpack.c.h.b16 %v139
  %v558 = vunpack.c.l.b16 %v140
  %v559 = vunpack.c.h.b16 %v140
  %v560 = vunpack.c.l.b16 %v141
  %v561 = vunpack.c.h.b16 %v141
  %v562 = vunpack.c.l.b16 %v142
  %v563 = vunpack.c.h.b16 %v142
  %v564 = vunpack.c.l.b16 %v143
  %v565 = vunpack.c.h.b16 %v143
  %v566 = vunpack.c.l.b16 %v144
  %v567 = vunpack.c.h.b16 %v144
  %v568 = vunpack.c.l.b16 %v145
  %v569 = vunpack.c.h.b16 %v145
  %v570 = vunpack.c.l.b16 %v146
  %v571 = vunpack.c.h.b16 %v146
  %v572 = vunpack.c.l.b16 %v147
  %v573 = vunpack.c.h.b16 %v147
  %v574 = vunpack.c.l.b16 %v148
  %v575 = vunpack.c.h.b16 %v148
  %v576 = vunpack.c.l.b16 %v149
  %v577 = vunpack.c.h.b16 %v149
  %v578 = vunpack.c.l.b16 %v150
  %v579 = vunpack.c.h.b16 %v150
  %v580 = vunpack.c.l.b16 %v151
  %v581 = vunpack.c.h.b16 %v151
  %v582 = vunpack.c.l.b16 %v152
  %v583 = vunpack.c.h.b16 %v152
  %v584 = vunpack.c.l.b16 %v153
  %v585 = vunpack.c.h.b16 %v153
  %v586 = vunpack.c.l.b16 %v154
  %v587 = vunpack.c.h.b16 %v154
  %v588 = vunpack.c.l.b16 %v155
  %v589 = vunpack.c.h.b16 %v155
  %v590 = vunpack.c.l.b16 %v156
  %v591 = vunpack.c.h.b16 %v156
  %v592 = vunpack.c.l.b16 %v157
  %v593 = vunpack.c.h.b16 %v157
  %v594 = vpack.c.b16 %v340, %v338
  %v595 = vpack.c.b16 %v341, %v339
  %v596 = vpack.c.b16 %v344, %v342
  %v597 = vpack.c.b16 %v345, %v343
  %v598 = vpack.c.b16 %v348, %v346
  %v599 = vpack.c.b16 %v349, %v347
  %v600 = vpack.c.b16 %v352, %v350
  %v601 = vpack.c.b16 %v353, %v351
  %v602 = vpack.c.b16 %v356, %v354
  %v603 = vpack.c.b16 %v357, %v355
  %v604 = vpack.c.b16 %v360, %v358
  %v605 = vpack.c.b16 %v361, %v359
  %v606 = vpack.c.b16 %v364, %v362
  %v607 = vpack.c.b16 %v365, %v363
  %v608 = vpack.c.b16 %v368, %v366
  %v609 = vpack.c.b16 %v369, %v367
  %v610 = vpack.c.b16 %v372, %v370
  %v611 = vpack.c.b16 %v373, %v371
  %v612 = vpack.c.b16 %v376, %v374
  %v613 = vpack.c.b16 %v377, %v375
  %v614 = vpack.c.b16 %v380, %v378
  %v615 = vpack.c.b16 %v381, %v379
  %v616 = vpack.c.b16 %v384, %v382
  %v617 = vpack.c.b16 %v385, %v383
  %v618 = vpack.c.b16 %v388, %v386
  %v619 = vpack.c.b16 %v389, %v387
  %v620 = vpack.c.b16 %v392, %v390
  %v621 = vpack.c.b16 %v393, %v391
  %v622 = vpack.c.b16 %v396, %v394
  %v623 = vpack.c.b16 %v397, %v395
  %v624 = vpack.c.b16 %v400, %v398
  %v625 = vpack.c.b16 %v401, %v399
  %v626 = vpack.c.b16 %v404, %v402
  %v627 = vpack.c.b16 %v405, %v403
  %v628 = vpack.c.b16 %v408, %v406
  %v629 = vpack.c.b16 %v409, %v407
  %v630 = vpack.c.b16 %v412, %v410
  %v631 = vpack.c.b16 %v413, %v411
  %v632 = vpack.c.b16 %v416, %v414
  %v633 = vpack.c.b16 %v417, %v415
  %v634 = vpack.c.b16 %v420, %v418
  %v635 = vpack.c.b16 %v421, %v419
  %v636 = vpack.c.b16 %v424, %v422
  %v637 = vpack.c.b16 %v425, %v423
  %v638 = vpack.c.b16 %v428, %v426
  %v639 = vpack.c.b16 %v429, %v427
  %v640 = vpack.c.b16 %v432, %v430
  %v641 = vpack.c.b16 %v433, %v431
  %v642 = vpack.c.b16 %v436, %v434
  %v643 = vpack.c.b16 %v437, %v435
  %v644 = vpack.c.b16 %v440, %v438
  %v645 = vpack.c.b16 %v441, %v439
  %v646 = vpack.c.b16 %v444, %v442
  %v647 = vpack.c.b16 %v445, %v443
  %v648 = vpack.c.b16 %v448, %v446
  %v649 = vpack.c.b16 %v449, %v447
  %v650 = vpack.c.b16 %v452, %v450
  %v651 = vpack.c.b16 %v453, %v451
  %v652 = vpack.c.b16 %v456, %v454
  %v653 = vpack.c.b16 %v457, %v455
  %v654 = vpack.c.b16 %v460, %v458
  %v655 = vpack.c.b16 %v461, %v459
  %v656 = vpack.c.b16 %v464, %v462
  %v657 = vpack.c.b16 %v465, %v463
  %v658 = vpack.c.b16 %v468, %v466
  %v659 = vpack.c.b16 %v469, %v467
  %v660 = vpack.c.b16 %v472, %v470
  %v661 = vpack.c.b16 %v473, %v471
  %v662 = vpack.c.b16 %v476, %v474
  %v663 = vpack.c.b16 %v477, %v475
  %v664 = vpack.c.b16 %v480, %v478
  %v665 = vpack.c.b16 %v481, %v479
  %v666 = vpack.c.b16 %v484, %v482
  %v667 = vpack.c.b16 %v485, %v483
  %v668 = vpack.c.b16 %v488, %v486
  %v669 = vpack.c.b16 %v489, %v487
  %v670 = vpack.c.b16 %v492, %v490
  %v671 = vpack.c.b16 %v493, %v491
  %v672 = vpack.c.b16 %v496, %v494
  %v673 = vpack.c.b16 %v497, %v495
  %v674 = vpack.c.b16 %v500, %v498
  %v675 = vpack.c.b16 %v501, %v499
  %v676 = vpack.c.b16 %v504, %v502
  %v677 = vpack.c.b16 %v505, %v503
  %v678 = vpack.c.b16 %v508, %v506
  %v679 = vpack.c.b16 %v509, %v507
  %v680 = vpack.c.b16 %v512, %v510
  %v681 = vpack.c.b16 %v513, %v511
  %v682 = vpack.c.b16 %v516, %v514
  %v683 = vpack.c.b16 %v517, %v515
  %v684 = vpack.c.b16 %v520, %v518
  %v685 = vpack.c.b16 %v521, %v519
  %v686 = vpack.c.b16 %v524, %v522
  %v687 = vpack.c.b16 %v525, %v523
  %v688 = vpack.c.b16 %v528, %v526
  %v689 = vpack.c.b16 %v529, %v527
  %v690 = vpack.c.b16 %v532, %v530
  %v691 = vpack.c.b16 %v533, %v531
  %v692 = vpack.c.b16 %v536, %v534
  %v693 = vpack.c.b16 %v537, %v535
  %v694 = vpack.c.b16 %v540, %v538
  %v695 = vpack.c.b16 %v541, %v539
  %v696 = vpack.c.b16 %v544, %v542
  %v697 = vpack.c.b16 %v545, %v543
  %v698 = vpack.c.b16 %v548, %v546
  %v699 = vpack.c.b16 %v549, %v547
  %v700 = vpack.c.b16 %v552, %v550
  %v701 = vpack.c.b16 %v553, %v551
  %v702 = vpack.c.b16 %v556, %v554
  %v703 = vpack.c.b16 %v557, %v555
  %v704 = vpack.c.b16 %v560, %v558
  %v705 = vpack.c.b16 %v561, %v559
  %v706 = vpack.c.b16 %v564, %v562
  %v707 = vpack.c.b16 %v565, %v563
  %v708 = vpack.c.b16 %v568, %v566
  %v709 = vpack.c.b16 %v569, %v567
  %v710 = vpack.c.b16 %v572, %v570
  %v711 = vpack.c.b16 %v573, %v571
  %v712 = vpack.c.b16 %v576, %v574
  %v713 = vpack.c.b16 %v577, %v575
  %v714 = vpack.c.b16 %v580, %v578
  %v715 = vpack.c.b16 %v581, %v579
  %v716 = vpack.c.b16 %v584, %v582
  %v717 = vpack.c.b16 %v585, %v583
  %v718 = vpack.c.b16 %v588, %v586
  %v719 = vpack.c.b16 %v589, %v587
  %v720 = vpack.c.b16 %v592, %v590
  %v721 = vpack.c.b16 %v593, %v591
  %850 = vmatprep.subr.bf16.mxu0 %v595
  %851 = vmatpush1.bf16.msra.mxu0 %v594
  %852 = vmatprep.subr.bf16.mxu0 %v597
  %853 = vmatpush1.bf16.msra.mxu0 %v596
  %854 = vmatprep.subr.bf16.mxu0 %v599
  %855 = vmatpush1.bf16.msra.mxu0 %v598
  %856 = vmatprep.subr.bf16.mxu0 %v601
  %857 = vmatpush1.bf16.msra.mxu0 %v600
  %858 = vmatprep.subr.bf16.mxu0 %v603
  %859 = vmatpush1.bf16.msra.mxu0 %v602
  %860 = vmatprep.subr.bf16.mxu0 %v605
  %861 = vmatpush1.bf16.msra.mxu0 %v604
  %862 = vmatprep.subr.bf16.mxu0 %v607
  %863 = vmatpush1.bf16.msra.mxu0 %v606
  %864 = vmatprep.subr.bf16.mxu0 %v609
  %865 = vmatpush1.bf16.msra.mxu0 %v608
  %866 = vmatprep.subr.bf16.mxu0 %v611
  %867 = vmatpush1.bf16.msra.mxu0 %v610
  %868 = vmatprep.subr.bf16.mxu0 %v613
  %869 = vmatpush1.bf16.msra.mxu0 %v612
  %870 = vmatprep.subr.bf16.mxu0 %v615
  %871 = vmatpush1.bf16.msra.mxu0 %v614
  %872 = vmatprep.subr.bf16.mxu0 %v617
  %873 = vmatpush1.bf16.msra.mxu0 %v616
  %874 = vmatprep.subr.bf16.mxu0 %v619
  %875 = vmatpush1.bf16.msra.mxu0 %v618
  %876 = vmatprep.subr.bf16.mxu0 %v621
  %877 = vmatpush1.bf16.msra.mxu0 %v620
  %878 = vmatprep.subr.bf16.mxu0 %v623
  %879 = vmatpush1.bf16.msra.mxu0 %v622
  %880 = vmatprep.subr.bf16.mxu0 %v625
  %881 = vmatpush1.bf16.msra.mxu0 %v624
  %882 = vmatprep.mubr.bf16.mxu0 %v195
  %883 = vmatmul.mubr.bf16.gmra.mrb[0].mxu0 %v194
  %v884 = vpop.f32.mrb[0].mxu0
  %v885 = vadd.f32 %v163, %v884
  %v886 = vpop.f32.mrb[0].mxu0
  %v887 = vadd.f32 %v167, %v886
  %v888 = vpop.f32.mrb[0].mxu0
  %v889 = vadd.f32 %v163, %v888
  %v890 = vpop.f32.mrb[0].mxu0
  %v891 = vadd.f32 %v167, %v890
  %892 = vdwg.mxu0
  %893 = vmatprep.subr.bf16.mxu0 %v627
  %894 = vmatpush1.bf16.msra.mxu0 %v626
  %895 = vmatprep.subr.bf16.mxu0 %v629
  %896 = vmatpush1.bf16.msra.mxu0 %v628
  %897 = vmatprep.subr.bf16.mxu0 %v631
  %898 = vmatpush1.bf16.msra.mxu0 %v630
  %899 = vmatprep.subr.bf16.mxu0 %v633
  %900 = vmatpush1.bf16.msra.mxu0 %v632
  %901 = vmatprep.subr.bf16.mxu0 %v635
  %902 = vmatpush1.bf16.msra.mxu0 %v634
  %903 = vmatprep.subr.bf16.mxu0 %v637
  %904 = vmatpush1.bf16.msra.mxu0 %v636
  %905 = vmatprep.subr.bf16.mxu0 %v639
  %906 = vmatpush1.bf16.msra.mxu0 %v638
  %907 = vmatprep.subr.bf16.mxu0 %v641
  %908 = vmatpush1.bf16.msra.mxu0 %v640
  %909 = vmatprep.subr.bf16.mxu0 %v643
  %910 = vmatpush1.bf16.msra.mxu0 %v642
  %911 = vmatprep.subr.bf16.mxu0 %v645
  %912 = vmatpush1.bf16.msra.mxu0 %v644
  %913 = vmatprep.subr.bf16.mxu0 %v647
  %914 = vmatpush1.bf16.msra.mxu0 %v646
  %915 = vmatprep.subr.bf16.mxu0 %v649
  %916 = vmatpush1.bf16.msra.mxu0 %v648
  %917 = vmatprep.subr.bf16.mxu0 %v651
  %918 = vmatpush1.bf16.msra.mxu0 %v650
  %919 = vmatprep.subr.bf16.mxu0 %v653
  %920 = vmatpush1.bf16.msra.mxu0 %v652
  %921 = vmatprep.subr.bf16.mxu0 %v655
  %922 = vmatpush1.bf16.msra.mxu0 %v654
  %923 = vmatprep.subr.bf16.mxu0 %v657
  %924 = vmatpush1.bf16.msra.mxu0 %v656
  %925 = vmatprep.mubr.bf16.mxu0 %v197
  %926 = vmatmul.mubr.bf16.gmra.mrb[0].mxu0 %v196
  %v927 = vpop.f32.mrb[0].mxu0
  %v928 = vadd.f32 %v885, %v927
  %v929 = vpop.f32.mrb[0].mxu0
  %v930 = vadd.f32 %v887, %v929
  %v931 = vpop.f32.mrb[0].mxu0
  %v932 = vadd.f32 %v889, %v931
  %v933 = vpop.f32.mrb[0].mxu0
  %v934 = vadd.f32 %v891, %v933
  %935 = vdwg.mxu0
  %936 = vmatprep.subr.bf16.mxu0 %v659
  %937 = vmatpush1.bf16.msra.mxu0 %v658
  %938 = vmatprep.subr.bf16.mxu0 %v661
  %939 = vmatpush1.bf16.msra.mxu0 %v660
  %940 = vmatprep.subr.bf16.mxu0 %v663
  %941 = vmatpush1.bf16.msra.mxu0 %v662
  %942 = vmatprep.subr.bf16.mxu0 %v665
  %943 = vmatpush1.bf16.msra.mxu0 %v664
  %944 = vmatprep.subr.bf16.mxu0 %v667
  %945 = vmatpush1.bf16.msra.mxu0 %v666
  %946 = vmatprep.subr.bf16.mxu0 %v669
  %947 = vmatpush1.bf16.msra.mxu0 %v668
  %948 = vmatprep.subr.bf16.mxu0 %v671
  %949 = vmatpush1.bf16.msra.mxu0 %v670
  %950 = vmatprep.subr.bf16.mxu0 %v673
  %951 = vmatpush1.bf16.msra.mxu0 %v672
  %952 = vmatprep.subr.bf16.mxu0 %v675
  %953 = vmatpush1.bf16.msra.mxu0 %v674
  %954 = vmatprep.subr.bf16.mxu0 %v677
  %955 = vmatpush1.bf16.msra.mxu0 %v676
  %956 = vmatprep.subr.bf16.mxu0 %v679
  %957 = vmatpush1.bf16.msra.mxu0 %v678
  %958 = vmatprep.subr.bf16.mxu0 %v681
  %959 = vmatpush1.bf16.msra.mxu0 %v680
  %960 = vmatprep.subr.bf16.mxu0 %v683
  %961 = vmatpush1.bf16.msra.mxu0 %v682
  %962 = vmatprep.subr.bf16.mxu0 %v685
  %963 = vmatpush1.bf16.msra.mxu0 %v684
  %964 = vmatprep.subr.bf16.mxu0 %v687
  %965 = vmatpush1.bf16.msra.mxu0 %v686
  %966 = vmatprep.subr.bf16.mxu0 %v689
  %967 = vmatpush1.bf16.msra.mxu0 %v688
  %968 = vmatprep.mubr.bf16.mxu0 %v199
  %969 = vmatmul.mubr.bf16.gmra.mrb[0].mxu0 %v198
  %v970 = vpop.f32.mrb[0].mxu0
  %v971 = vadd.f32 %v928, %v970
  %v972 = vpop.f32.mrb[0].mxu0
  %v973 = vadd.f32 %v930, %v972
  %v974 = vpop.f32.mrb[0].mxu0
  %v975 = vadd.f32 %v932, %v974
  %v976 = vpop.f32.mrb[0].mxu0
  %v977 = vadd.f32 %v934, %v976
  %978 = vdwg.mxu0
  %979 = vmatprep.subr.bf16.mxu0 %v691
  %980 = vmatpush1.bf16.msra.mxu0 %v690
  %981 = vmatprep.subr.bf16.mxu0 %v693
  %982 = vmatpush1.bf16.msra.mxu0 %v692
  %983 = vmatprep.subr.bf16.mxu0 %v695
  %984 = vmatpush1.bf16.msra.mxu0 %v694
  %985 = vmatprep.subr.bf16.mxu0 %v697
  %986 = vmatpush1.bf16.msra.mxu0 %v696
  %987 = vmatprep.subr.bf16.mxu0 %v699
  %988 = vmatpush1.bf16.msra.mxu0 %v698
  %989 = vmatprep.subr.bf16.mxu0 %v701
  %990 = vmatpush1.bf16.msra.mxu0 %v700
  %991 = vmatprep.subr.bf16.mxu0 %v703
  %992 = vmatpush1.bf16.msra.mxu0 %v702
  %993 = vmatprep.subr.bf16.mxu0 %v705
  %994 = vmatpush1.bf16.msra.mxu0 %v704
  %995 = vmatprep.subr.bf16.mxu0 %v707
  %996 = vmatpush1.bf16.msra.mxu0 %v706
  %997 = vmatprep.subr.bf16.mxu0 %v709
  %998 = vmatpush1.bf16.msra.mxu0 %v708
  %999 = vmatprep.subr.bf16.mxu0 %v711
  %1000 = vmatpush1.bf16.msra.mxu0 %v710
  %1001 = vmatprep.subr.bf16.mxu0 %v713
  %1002 = vmatpush1.bf16.msra.mxu0 %v712
  %1003 = vmatprep.subr.bf16.mxu0 %v715
  %1004 = vmatpush1.bf16.msra.mxu0 %v714
  %1005 = vmatprep.subr.bf16.mxu0 %v717
  %1006 = vmatpush1.bf16.msra.mxu0 %v716
  %1007 = vmatprep.subr.bf16.mxu0 %v719
  %1008 = vmatpush1.bf16.msra.mxu0 %v718
  %1009 = vmatprep.subr.bf16.mxu0 %v721
  %1010 = vmatpush1.bf16.msra.mxu0 %v720
  %1011 = vmatprep.mubr.bf16.mxu0 %v201
  %1012 = vmatmul.mubr.bf16.gmra.mrb[0].mxu0 %v200
  %v1013 = vpop.f32.mrb[0].mxu0
  %v1014 = vadd.f32 %v971, %v1013
  %v1015 = vpop.f32.mrb[0].mxu0
  %v1016 = vadd.f32 %v973, %v1015
  %v1017 = vpop.f32.mrb[0].mxu0
  %v1018 = vadd.f32 %v975, %v1017
  %v1019 = vpop.f32.mrb[0].mxu0
  %v1020 = vadd.f32 %v977, %v1019
  %1021 = vdwg.mxu0
  %v1022 = vmax.f32 %v1014, 0.0
  %v1023 = vmax.f32 %v1016, 0.0
  %v1024 = vmax.f32 %v1018, 0.0
  %v1025 = vmax.f32 %v1020, 0.0
  %s1026 = scalar_lea.vmem %s2, 1
  %v1027 = vld [vmem:[%s1026] ss:$4 sm:$0x3]
  %v1029 = vlaneseq
  %v1030 = vshrl.u32 %v1029, 7
  %v1031 = vsub.s32 0, %v1030
  %v1032 = vrot.slane %v1027, %v1031
  %v1033 = vlaneseq
  %v1034 = vshrl.u32 %v1033, 7
  %v1035 = vsub.s32 1, %v1034
  %v1036 = vrot.slane %v1027, %v1035
  %v1039 = vmul.f32 %v1022, %v1032
  %v1040 = vmul.f32 %v1023, %v1036
  %v1041 = vmul.f32 %v1024, %v1032
  %v1042 = vmul.f32 %v1025, %v1036
  %s1043 = scalar_lea.vmem %s2, 2
  %v1044 = vld [vmem:[%s1043] ss:$4 sm:$0x3]
  %v1046 = vlaneseq
  %v1047 = vshrl.u32 %v1046, 7
  %v1048 = vsub.s32 0, %v1047
  %v1049 = vrot.slane %v1044, %v1048
  %v1050 = vlaneseq
  %v1051 = vshrl.u32 %v1050, 7
  %v1052 = vsub.s32 1, %v1051
  %v1053 = vrot.slane %v1044, %v1052
  %v1056 = vadd.f32 %v1039, %v1049
  %v1057 = vadd.f32 %v1040, %v1053
  %v1058 = vadd.f32 %v1041, %v1049
  %v1059 = vadd.f32 %v1042, %v1053
  %v1060 = vrot.slane %v1056, 4
  %v1061 = vadd.f32 %v1056, %v1060
  %v1062 = vrot.slane %v1061, 2
  %v1063 = vadd.f32 %v1061, %v1062
  %v1064 = vrot.slane %v1063, 1
  %v1065 = vadd.f32 %v1063, %v1064
  %v1066 = vrot.slane %v1057, 4
  %v1067 = vadd.f32 %v1057, %v1066
  %v1068 = vrot.slane %v1067, 2
  %v1069 = vadd.f32 %v1067, %v1068
  %v1070 = vrot.slane %v1069, 1
  %v1071 = vadd.f32 %v1069, %v1070
  %v1072 = vrot.slane %v1058, 4
  %v1073 = vadd.f32 %v1058, %v1072
  %v1074 = vrot.slane %v1073, 2
  %v1075 = vadd.f32 %v1073, %v1074
  %v1076 = vrot.slane %v1075, 1
  %v1077 = vadd.f32 %v1075, %v1076
  %v1078 = vrot.slane %v1059, 4
  %v1079 = vadd.f32 %v1059, %v1078
  %v1080 = vrot.slane %v1079, 2
  %v1081 = vadd.f32 %v1079, %v1080
  %v1082 = vrot.slane %v1081, 1
  %v1083 = vadd.f32 %v1081, %v1082
  %v1084 = vrcp.pop 8.0
  %v1085 = vmul.f32 %v1065, %v1084
  %v1086 = vmul.f32 %v1071, %v1084
  %v1087 = vmul.f32 %v1077, %v1084
  %v1088 = vmul.f32 %v1083, %v1084
  %v1089 = vld [vmem:[%s3] sm:$0x3]
  %v1091 = vlaneseq
  %v1092 = vshrl.u32 %v1091, 7
  %v1093 = vsub.s32 0, %v1092
  %v1094 = vrot.slane %v1089, %v1093
  %v1095 = vlaneseq
  %v1096 = vshrl.u32 %v1095, 7
  %v1097 = vsub.s32 1, %v1096
  %v1098 = vrot.slane %v1089, %v1097
  %v1101 = vmul.f32 %v1085, %v1094
  %v1102 = vmul.f32 %v1086, %v1098
  %v1103 = vmul.f32 %v1087, %v1094
  %v1104 = vmul.f32 %v1088, %v1098
  %v1109 = vrot.slane %v1103, 7
  %vm1110 = vcmask 1041409
  %v1111 = vsel %vm1110, %v1109, %v1101
  %v1112 = vrot.slane %v1104, 7
  %v1113 = vsel %vm1110, %v1112, %v1102
  %vm1116 = vcmask 1041408
  %v1117 = vsel %vm1116, %v1111, 0.0
  %v1118 = vsel %vm1116, %v1113, 0.0
  %v1119 = vadd.f32 %v1117, %v1118
  %1120 = vadd.xlane.f32.xlu0 %v1119
  %v1121 = vpop.xlane.xlu0 %1120
  %v1122 = vld [vmem:[#allocation2] sm:$0x1]
  %v1124 = vlaneseq
  %v1125 = vshrl.u32 %v1124, 7
  %v1126 = vsub.s32 0, %v1125
  %v1127 = vrot.slane %v1122, %v1126
  %v1129 = vadd.f32 %v1121, %v1127
  %v1130 = vxor.u32 %v1129, 2147483648
  %v1131 = vmul.f32 %v1130, 1.442695
  %v1132 = vpow.pop %v1131
  %v1133 = vadd.f32 %v1132, 1.0
  %v1134 = vrcp.pop %v1133
  %v1135 = vmul.f32 1.0, %v1134
  %vm1136 = vcmask 1024
  %1137 = vst.msk [vmem:[%s5] sm:$0x3] %vm1136, %v1135
  // Predicated region
  $region22: #{forward.7} parent=0 // pred_check
    _
  $region23: #{forward.7} parent=0 // pred_check_branch
    %1139 = sbr.rel (0) target = $region25
  $region24: #{forward.7} parent=0 // pred_region
    _
  $region25: #{forward.7} parent=0 // pred_fallthru
    _
  // Predicated region
  $region26: #{forward.7} parent=0 // pred_check
    _
  $region27: #{forward.7} parent=0 // pred_check_branch
    %1141 = sbr.rel (0) target = $region29
  $region28: #{forward.7} parent=0 // pred_region
    _
  $region29: #{forward.7} parent=0 // pred_fallthru
    _

</llo_original>
